<compile_context>
chip_gen: v7x
topology: tpu7x:2x2x1
jax: 0.10.0
libtpu: 0.0.40
codegen_flags: <defaults>
</compile_context>

<pallas_src>
import numpy as np
import jax
import jax.numpy as jnp
from jax.experimental import pallas as pl
from jax.experimental.pallas import tpu as pltpu


# ---------------------------------------------------------------------------
# helpers
# ---------------------------------------------------------------------------
def _round_up(x, m):
    return ((x + m - 1) // m) * m


def _pad_gates(w, H, Hp):
    """(..., 3H) -> (..., 3Hp): zero-pad each (r,z,n) gate block from H to Hp."""
    lead = w.shape[:-1]
    w3 = w.reshape(lead + (3, H))
    pad = [(0, 0)] * (len(lead) + 1) + [(0, Hp - H)]
    return jnp.pad(w3, pad).reshape(lead + (3 * Hp,))


def _prep_gru_direction(wi, wh, bi, bh, H, Hp, split_at=None):
    """Prepare one GRU direction for the kernel:
       - gate blocks padded H -> Hp  (lane-aligned r/z/n slices in the kernel)
       - W_ih / W_hh cast to bf16    (MXU operands; accumulation stays f32)
       - b_ih + b_hh[r,z] combined into one bias folded into the hoisted xp
       - b_hn kept separate          (must stay inside the r * (...) term)
    Returns (wi_parts, wh_p, bx, bn)."""
    bh_rz = jnp.concatenate([bh[:, :2 * H], jnp.zeros((1, H), bh.dtype)], axis=-1)
    bx = _pad_gates(bi + bh_rz, H, Hp).astype(jnp.float32)            # (1, 3Hp)
    bn = jnp.pad(bh[:, 2 * H:3 * H], ((0, 0), (0, Hp - H))).astype(jnp.float32)
    wh_p = _pad_gates(jnp.pad(wh, ((0, Hp - H), (0, 0))), H, Hp).astype(jnp.bfloat16)
    if split_at is None:
        wi_parts = (_pad_gates(wi, H, Hp).astype(jnp.bfloat16),)
    else:                                   # pre-split concat(ctx, att) weight
        wi_parts = (_pad_gates(wi[:split_at], H, Hp).astype(jnp.bfloat16),
                    _pad_gates(wi[split_at:], H, Hp).astype(jnp.bfloat16))
    return wi_parts, wh_p, bx, bn


def _prepare_weights(params, Dw, H, Hp, C, Cp):
    cg = params["context_gru"]
    gg = params["gate_gru"]
    (wif_c,), whf_c, bxf_c, bnf_c = _prep_gru_direction(cg[0], cg[1], cg[2], cg[3], H, Hp)
    (wib_c,), whb_c, bxb_c, bnb_c = _prep_gru_direction(cg[4], cg[5], cg[6], cg[7], H, Hp)
    (wifc_g, wifa_g), whf_g, bxf_g, bnf_g = _prep_gru_direction(
        gg[0], gg[1], gg[2], gg[3], H, Hp, split_at=Dw)
    (wibc_g, wiba_g), whb_g, bxb_g, bnb_g = _prep_gru_direction(
        gg[4], gg[5], gg[6], gg[7], H, Hp, split_at=Dw)

    lin_W, lin_b = params["lin_W"], params["lin_b"]
    wlf = jnp.pad(lin_W[:H, :], ((0, Hp - H), (0, Cp - C)))            # f32
    wlb = jnp.pad(lin_W[H:, :], ((0, Hp - H), (0, Cp - C)))            # f32
    bl = jnp.pad(lin_b.reshape(1, C), ((0, 0), (0, Cp - C)))           # f32

    watt = params["att_W"].astype(jnp.bfloat16)
    return (watt,
            wif_c, whf_c, bxf_c, bnf_c, wib_c, whb_c, bxb_c, bnb_c,
            wifc_g, wifa_g, whf_g, bxf_g, bnf_g,
            wibc_g, wiba_g, whb_g, bxb_g, bnb_g,
            wlf, wlb, bl)


def _pick_block_b(B, max_rows=256):
    """Largest batch block that divides B, stays sublane-friendly, and leaves
    >= 2 grid steps once B is big enough (so v7x's two TensorCores both get
    work via the "parallel" batch axis).  Small B: one block (latency)."""
    if B <= 8:
        return B
    cap = min(max_rows, B // 2)
    for d in range(cap, 7, -1):
        if B % d == 0 and d % 8 == 0:
            return d
    return B


# ---------------------------------------------------------------------------
# Fused kernel: attention + both BiGRUs + gate + max-pool + Linear
# ---------------------------------------------------------------------------
def _fused_forward_kernel(
        ctx_ref, asp_ref, mask_ref, watt_ref,
        wif_c_ref, whf_c_ref, bxf_c_ref, bnf_c_ref,
        wib_c_ref, whb_c_ref, bxb_c_ref, bnb_c_ref,
        wifc_g_ref, wifa_g_ref, whf_g_ref, bxf_g_ref, bnf_g_ref,
        wibc_g_ref, wiba_g_ref, whb_g_ref, bxb_g_ref, bnb_g_ref,
        wlf_ref, wlb_ref, bl_ref,
        out_ref):
    f32, bf16 = jnp.float32, jnp.bfloat16
    Bb, L1, Dw = ctx_ref.shape
    L2 = asp_ref.shape[1]
    Hp = whf_c_ref.shape[0]                       # padded hidden (multiple of 128)

    # ---- FullyAwareAttention (bf16 MXU operands, f32 softmax math) ---------
    ctx = ctx_ref[...]                            # (Bb, L1, Dw) bf16
    asp = asp_ref[...]                            # (Bb, L2, Dw) bf16
    w_att = watt_ref[...]                         # (Dw, Dw)     bf16
    ctx2 = ctx.reshape(Bb * L1, Dw)               # L % 8 == 0 -> layout-free
    asp2 = asp.reshape(Bb * L2, Dw)
    sx = jnp.maximum(jnp.dot(ctx2, w_att, preferred_element_type=f32), 0.0)
    sy = jnp.maximum(jnp.dot(asp2, w_att, preferred_element_type=f32), 0.0)
    s = jnp.einsum("bld,bmd->blm",
                   sx.reshape(Bb, L1, Dw).astype(bf16),
                   sy.reshape(Bb, L2, Dw).astype(bf16),
                   preferred_element_type=f32)    # (Bb, L1, L2)
    # masked softmax over dim=1 (the L1 axis); mask broadcasts across L1.
    s_max = jnp.max(s, axis=1, keepdims=True)
    s_exp = jnp.exp(s - s_max) * mask_ref[...]
    inv = pl.reciprocal(jnp.sum(s_exp, axis=1, keepdims=True) + 1e-10,
                        approx=True)              # EUP slot, overlaps the exp
    alpha = (s_exp * inv).astype(bf16)
    att2 = jnp.einsum("blm,bmd->bld", alpha, asp,
                      preferred_element_type=f32
                      ).reshape(Bb * L1, Dw).astype(bf16)

    # ---- Hoisted GRU input projections for ALL timesteps -------------------
    # bx* = b_ih + b_hh[r,z]; gate blocks padded to Hp -> lane-aligned slices.
    def proj1(x2, w_ref, b_ref):
        return (jnp.dot(x2, w_ref[...], preferred_element_type=f32)
                + b_ref[...]).reshape(Bb, L1, 3 * Hp)

    xp_cf = proj1(ctx2, wif_c_ref, bxf_c_ref)
    xp_cb = proj1(ctx2, wib_c_ref, bxb_c_ref)
    # gate_gru input is concat(ctx, att): W_ih arrives pre-split, no concat.
    xp_gf = (jnp.dot(ctx2, wifc_g_ref[...], preferred_element_type=f32)
             + jnp.dot(att2, wifa_g_ref[...], preferred_element_type=f32)
             + bxf_g_ref[...]).reshape(Bb, L1, 3 * Hp)
    xp_gb = (jnp.dot(ctx2, wibc_g_ref[...], preferred_element_type=f32)
             + jnp.dot(att2, wiba_g_ref[...], preferred_element_type=f32)
             + bxb_g_ref[...]).reshape(Bb, L1, 3 * Hp)

    # ---- Recurrence: 4 independent chains advance per time step ------------
    whf_c = whf_c_ref[...]; whb_c = whb_c_ref[...]
    whf_g = whf_g_ref[...]; whb_g = whb_g_ref[...]
    # pre-broadcast b_hn ONCE (JAX does not CSE broadcast_in_dim inside loops)
    bnf_c = jnp.broadcast_to(bnf_c_ref[...], (Bb, Hp))
    bnb_c = jnp.broadcast_to(bnb_c_ref[...], (Bb, Hp))
    bnf_g = jnp.broadcast_to(bnf_g_ref[...], (Bb, Hp))
    bnb_g = jnp.broadcast_to(bnb_g_ref[...], (Bb, Hp))

    def cell(xp_t, h, wh, bhn):
        # xp_t already holds x_t @ W_ih + b_ih + b_hh[r,z].  PyTorch gate
        # order (r,z,n); b_hn stays inside the r * (...) term.  Slices are at
        # multiples of Hp (=128k) -> whole-vreg, lane-aligned VPU ops.
        hp = jnp.dot(h.astype(bf16), wh, preferred_element_type=f32)   # (Bb,3Hp)
        r = jax.nn.sigmoid(xp_t[:, 0:Hp] + hp[:, 0:Hp])
        z = jax.nn.sigmoid(xp_t[:, Hp:2 * Hp] + hp[:, Hp:2 * Hp])
        n = jnp.tanh(xp_t[:, 2 * Hp:3 * Hp] + r * (hp[:, 2 * Hp:3 * Hp] + bhn))
        return (1.0 - z) * n + z * h

    zeros_h = jnp.zeros((Bb, Hp), f32)
    h_cf = zeros_h; h_cb = zeros_h; h_gf = zeros_h; h_gb = zeros_h
    acc_f = jnp.full((Bb, Hp), -jnp.inf, f32)
    acc_b = jnp.full((Bb, Hp), -jnp.inf, f32)

    # Static unroll is fine for L <= ~32 (per review); see TODO(synk) above.
    for i in range(L1):
        tb = L1 - 1 - i
        h_cf = cell(xp_cf[:, i, :], h_cf, whf_c, bnf_c)
        h_gf = cell(xp_gf[:, i, :], h_gf, whf_g, bnf_g)
        h_cb = cell(xp_cb[:, tb, :], h_cb, whb_c, bnb_c)
        h_gb = cell(xp_gb[:, tb, :], h_gb, whb_g, bnb_g)
        # max-pool over t is order independent -> running max is exact.
        acc_f = jnp.maximum(acc_f, h_cf * h_gf)
        acc_b = jnp.maximum(acc_b, h_cb * h_gb)

    # ---- Epilogue: pooled -> Linear (fwd/bwd halves; lane-dense Cp store) ---
    out_ref[...] = (jnp.dot(acc_f, wlf_ref[...], preferred_element_type=f32)
                    + jnp.dot(acc_b, wlb_ref[...], preferred_element_type=f32)
                    + bl_ref[...])


def fused_forward(context, aspect, aspect_masks, params, block_b=None):
    B, L1, Dw = context.shape
    L2 = aspect.shape[1]
    H = params["context_gru"][1].shape[0]
    C = params["lin_W"].shape[1]
    # TODO(synk): pad/mask L1, L2 for sequence lengths not multiple of 8
    #             (L1 padding needs a masked recurrence + masked pooling).
    assert L1 % 8 == 0 and L2 % 8 == 0, "sequence lengths must be multiples of 8"

    Hp = _round_up(H, 128)               # lane-aligned gate blocks
    Cp = _round_up(C, 128)               # lane-dense output store

    weights = _prepare_weights(params, Dw, H, Hp, C, Cp)

    if block_b is None:
        block_b = _pick_block_b(B)
    assert B % block_b == 0, "block_b must divide B"
    nb = B // block_b

    ctx_bf = context.astype(jnp.bfloat16)          # halve activation DMA bytes
    asp_bf = aspect.astype(jnp.bfloat16)
    mask3 = aspect_masks.reshape(B, 1, L2).astype(jnp.float32)

    data_specs = [
        pl.BlockSpec((block_b, L1, Dw), lambda b: (b, 0, 0)),
        pl.BlockSpec((block_b, L2, Dw), lambda b: (b, 0, 0)),
        pl.BlockSpec((block_b, 1, L2), lambda b: (b, 0, 0)),
    ]
    weight_specs = [pl.BlockSpec(w.shape, lambda b: (0, 0)) for w in weights]

    out = pl.pallas_call(
        _fused_forward_kernel,
        out_shape=jax.ShapeDtypeStruct((B, Cp), jnp.float32),
        grid=(nb,),
        in_specs=data_specs + weight_specs,
        out_specs=pl.BlockSpec((block_b, Cp), lambda b: (b, 0)),
        compiler_params=pltpu.CompilerParams(
            dimension_semantics=("parallel",),        # megacore / v7x dual-TC
            vmem_limit_bytes=64 * 1024 * 1024),
    )(ctx_bf, asp_bf, mask3, *weights)
    return out[:, :C]


# ---------------------------------------------------------------------------
# Full model forward (embedding lookup stays as plain-JAX glue)
# ---------------------------------------------------------------------------
def model_forward(params, context_ids, context_masks, aspect_ids, aspect_masks):
    # context_masks is unused in the reference PyTorch forward (kept for parity).
    wordmat = params["wordmat"]
    context = jnp.take(wordmat, context_ids, axis=0)          # (B, L1, Dw)
    aspect = jnp.take(wordmat, aspect_ids, axis=0)            # (B, L2, Dw)
    return fused_forward(context, aspect, aspect_masks, params)


# ---------------------------------------------------------------------------
# Pure-JAX f32 reference (mirrors PyTorch semantics) for verification
# ---------------------------------------------------------------------------
def _attention_ref(x, y, mask, w):
    sx = jnp.maximum(jnp.einsum("bld,de->ble", x, w), 0.0)
    sy = jnp.maximum(jnp.einsum("bld,de->ble", y, w), 0.0)
    s = jnp.einsum("bld,bmd->blm", sx, sy)
    a_max = jnp.max(s, axis=1, keepdims=True)
    a_exp = jnp.exp(s - a_max) * mask[:, None, :]
    denom = jnp.sum(a_exp, axis=1, keepdims=True) + 1e-10
    return jnp.einsum("blm,bmd->bld", a_exp / denom, y)


def _bigru_ref(x, params):
    wif, whf, bif, bhf, wib, whb, bib, bhb = params
    B, L, _ = x.shape
    H = whf.shape[0]

    def cell(x_t, h, wi, wh, bi, bh):
        xp = x_t @ wi + bi
        hp = h @ wh + bh
        r = jax.nn.sigmoid(xp[:, :H] + hp[:, :H])
        z = jax.nn.sigmoid(xp[:, H:2 * H] + hp[:, H:2 * H])
        n = jnp.tanh(xp[:, 2 * H:] + r * hp[:, 2 * H:])
        return (1.0 - z) * n + z * h

    hf = jnp.zeros((B, H), jnp.float32)
    outs_f = []
    for t in range(L):
        hf = cell(x[:, t, :], hf, wif, whf, bif, bhf)
        outs_f.append(hf)
    hb = jnp.zeros((B, H), jnp.float32)
    outs_b = [None] * L
    for t in range(L - 1, -1, -1):
        hb = cell(x[:, t, :], hb, wib, whb, bib, bhb)
        outs_b[t] = hb
    return jnp.concatenate([jnp.stack(outs_f, 1), jnp.stack(outs_b, 1)], -1)


def model_reference(params, context_ids, context_masks, aspect_ids, aspect_masks):
    wordmat = params["wordmat"]
    context = jnp.take(wordmat, context_ids, axis=0)
    aspect = jnp.take(wordmat, aspect_ids, axis=0)
    att_out = _attention_ref(context, aspect, aspect_masks, params["att_W"])
    gate_input = jnp.concatenate([context, att_out], axis=-1)
    sentiment = _bigru_ref(context, params["context_gru"])
    gate = _bigru_ref(gate_input, params["gate_gru"])
    pooled = jnp.max(sentiment * gate, axis=1)
    return pooled @ params["lin_W"] + params["lin_b"]


# ---------------------------------------------------------------------------
# Deterministic parameter init + driver
# ---------------------------------------------------------------------------
def _make_gru_params(key, din, h, scale=0.15):
    ks = jax.random.split(key, 8)
    return (
        scale * jax.random.normal(ks[0], (din, 3 * h), jnp.float32),   # W_ih^T fwd
        scale * jax.random.normal(ks[1], (h, 3 * h), jnp.float32),     # W_hh^T fwd
        scale * jax.random.normal(ks[2], (1, 3 * h), jnp.float32),     # b_ih  fwd
        scale * jax.random.normal(ks[3], (1, 3 * h), jnp.float32),     # b_hh  fwd
        scale * jax.random.normal(ks[4], (din, 3 * h), jnp.float32),   # W_ih^T bwd
        scale * jax.random.normal(ks[5], (h, 3 * h), jnp.float32),     # W_hh^T bwd
        scale * jax.random.normal(ks[6], (1, 3 * h), jnp.float32),     # b_ih  bwd
        scale * jax.random.normal(ks[7], (1, 3 * h), jnp.float32),     # b_hh  bwd
    )


if __name__ == "__main__":
    B, L1, L2 = 2, 8, 8
    dim_word, dim_hidden, num_class, vocab = 32, 32, 3, 40

    key = jax.random.PRNGKey(0)
    k = jax.random.split(key, 10)

    params = {
        "wordmat": 0.5 * jax.random.normal(k[0], (vocab, dim_word), jnp.float32),
        "att_W": 0.2 * jax.random.normal(k[1], (dim_word, dim_word), jnp.float32),
        "context_gru": _make_gru_params(k[2], dim_word, dim_hidden),
        "gate_gru": _make_gru_params(k[3], 2 * dim_word, dim_hidden),
        "lin_W": 0.2 * jax.random.normal(k[4], (2 * dim_hidden, num_class), jnp.float32),
        "lin_b": 0.1 * jax.random.normal(k[5], (num_class,), jnp.float32),
    }

    context_ids = jax.random.randint(k[6], (B, L1), 0, vocab)
    aspect_ids = jax.random.randint(k[7], (B, L2), 0, vocab)
    context_masks = jnp.ones((B, L1), jnp.float32)           # unused by forward
    aspect_masks = jnp.ones((B, L2), jnp.float32).at[1, 5:].set(0.0)

    out = model_forward(params, context_ids, context_masks, aspect_ids, aspect_masks)
    out = jax.block_until_ready(out)

    ref = model_reference(params, context_ids, context_masks, aspect_ids, aspect_masks)
    # Tolerance accounts for bf16 MXU operands (f32 accumulate / f32 state),
    # per the perf review; f32-only variant matched at 2e-3.
    np.testing.assert_allclose(np.asarray(out), np.asarray(ref), rtol=2e-2, atol=2e-2)
    assert out.shape == (B, num_class)

    print("KERNEL_OK")
</pallas_src>

<mosaic_0001>
module attributes {stable_mosaic.version = 11 : i64} {
  func.func @_fused_forward_kernel(%arg0: i32, %arg1: memref<2x8x32xbf16, #tpu.memory_space<vmem>>, %arg2: memref<2x8x32xbf16, #tpu.memory_space<vmem>>, %arg3: memref<2x1x8xf32, #tpu.memory_space<vmem>>, %arg4: memref<32x32xbf16, #tpu.memory_space<vmem>>, %arg5: memref<32x384xbf16, #tpu.memory_space<vmem>>, %arg6: memref<128x384xbf16, #tpu.memory_space<vmem>>, %arg7: memref<1x384xf32, #tpu.memory_space<vmem>>, %arg8: memref<1x128xf32, #tpu.memory_space<vmem>>, %arg9: memref<32x384xbf16, #tpu.memory_space<vmem>>, %arg10: memref<128x384xbf16, #tpu.memory_space<vmem>>, %arg11: memref<1x384xf32, #tpu.memory_space<vmem>>, %arg12: memref<1x128xf32, #tpu.memory_space<vmem>>, %arg13: memref<32x384xbf16, #tpu.memory_space<vmem>>, %arg14: memref<32x384xbf16, #tpu.memory_space<vmem>>, %arg15: memref<128x384xbf16, #tpu.memory_space<vmem>>, %arg16: memref<1x384xf32, #tpu.memory_space<vmem>>, %arg17: memref<1x128xf32, #tpu.memory_space<vmem>>, %arg18: memref<32x384xbf16, #tpu.memory_space<vmem>>, %arg19: memref<32x384xbf16, #tpu.memory_space<vmem>>, %arg20: memref<128x384xbf16, #tpu.memory_space<vmem>>, %arg21: memref<1x384xf32, #tpu.memory_space<vmem>>, %arg22: memref<1x128xf32, #tpu.memory_space<vmem>>, %arg23: memref<128x128xf32, #tpu.memory_space<vmem>>, %arg24: memref<128x128xf32, #tpu.memory_space<vmem>>, %arg25: memref<1x128xf32, #tpu.memory_space<vmem>>, %arg26: memref<2x128xf32, #tpu.memory_space<vmem>>) attributes {dimension_semantics = [#tpu.dimension_semantics<parallel>], iteration_bounds = array<i64: 1>, scalar_prefetch = 0 : i64, scratch_operands = 0 : i64, tpu.core_type = #tpu.core_type<tc>, window_params = [{transform_indices = @transform_0, window_bounds = array<i64: 2, 8, 32>}, {transform_indices = @transform_1, window_bounds = array<i64: 2, 8, 32>}, {transform_indices = @transform_2, window_bounds = array<i64: 2, 1, 8>}, {pipeline_mode = #tpu.pipeline_mode<synchronous>, transform_indices = @transform_3, window_bounds = array<i64: 32, 32>}, {pipeline_mode = #tpu.pipeline_mode<synchronous>, transform_indices = @transform_4, window_bounds = array<i64: 32, 384>}, {pipeline_mode = #tpu.pipeline_mode<synchronous>, transform_indices = @transform_5, window_bounds = array<i64: 128, 384>}, {pipeline_mode = #tpu.pipeline_mode<synchronous>, transform_indices = @transform_6, window_bounds = array<i64: 1, 384>}, {pipeline_mode = #tpu.pipeline_mode<synchronous>, transform_indices = @transform_7, window_bounds = array<i64: 1, 128>}, {pipeline_mode = #tpu.pipeline_mode<synchronous>, transform_indices = @transform_8, window_bounds = array<i64: 32, 384>}, {pipeline_mode = #tpu.pipeline_mode<synchronous>, transform_indices = @transform_9, window_bounds = array<i64: 128, 384>}, {pipeline_mode = #tpu.pipeline_mode<synchronous>, transform_indices = @transform_10, window_bounds = array<i64: 1, 384>}, {pipeline_mode = #tpu.pipeline_mode<synchronous>, transform_indices = @transform_11, window_bounds = array<i64: 1, 128>}, {pipeline_mode = #tpu.pipeline_mode<synchronous>, transform_indices = @transform_12, window_bounds = array<i64: 32, 384>}, {pipeline_mode = #tpu.pipeline_mode<synchronous>, transform_indices = @transform_13, window_bounds = array<i64: 32, 384>}, {pipeline_mode = #tpu.pipeline_mode<synchronous>, transform_indices = @transform_14, window_bounds = array<i64: 128, 384>}, {pipeline_mode = #tpu.pipeline_mode<synchronous>, transform_indices = @transform_15, window_bounds = array<i64: 1, 384>}, {pipeline_mode = #tpu.pipeline_mode<synchronous>, transform_indices = @transform_16, window_bounds = array<i64: 1, 128>}, {pipeline_mode = #tpu.pipeline_mode<synchronous>, transform_indices = @transform_17, window_bounds = array<i64: 32, 384>}, {pipeline_mode = #tpu.pipeline_mode<synchronous>, transform_indices = @transform_18, window_bounds = array<i64: 32, 384>}, {pipeline_mode = #tpu.pipeline_mode<synchronous>, transform_indices = @transform_19, window_bounds = array<i64: 128, 384>}, {pipeline_mode = #tpu.pipeline_mode<synchronous>, transform_indices = @transform_20, window_bounds = array<i64: 1, 384>}, {pipeline_mode = #tpu.pipeline_mode<synchronous>, transform_indices = @transform_21, window_bounds = array<i64: 1, 128>}, {pipeline_mode = #tpu.pipeline_mode<synchronous>, transform_indices = @transform_22, window_bounds = array<i64: 128, 128>}, {pipeline_mode = #tpu.pipeline_mode<synchronous>, transform_indices = @transform_23, window_bounds = array<i64: 128, 128>}, {pipeline_mode = #tpu.pipeline_mode<synchronous>, transform_indices = @transform_24, window_bounds = array<i64: 1, 128>}, {transform_indices = @transform_25, window_bounds = array<i64: 2, 128>}]} {
    %c0 = arith.constant 0 : index
    %c0_0 = arith.constant 0 : index
    %c0_1 = arith.constant 0 : index
    %0 = vector.load %arg1[%c0, %c0_0, %c0_1] : memref<2x8x32xbf16, #tpu.memory_space<vmem>>, vector<2x8x32xbf16>
    %c0_2 = arith.constant 0 : index
    %c0_3 = arith.constant 0 : index
    %c0_4 = arith.constant 0 : index
    %1 = vector.load %arg2[%c0_2, %c0_3, %c0_4] : memref<2x8x32xbf16, #tpu.memory_space<vmem>>, vector<2x8x32xbf16>
    %c0_5 = arith.constant 0 : index
    %c0_6 = arith.constant 0 : index
    %2 = vector.load %arg4[%c0_5, %c0_6] : memref<32x32xbf16, #tpu.memory_space<vmem>>, vector<32x32xbf16>
    %3 = vector.shape_cast %0 : vector<2x8x32xbf16> to vector<16x32xbf16>
    %4 = vector.shape_cast %1 : vector<2x8x32xbf16> to vector<16x32xbf16>
    %cst = arith.constant dense<0.000000e+00> : vector<16x32xf32>
    %5 = tpu.matmul %3, %2, %cst {dimension_numbers = #tpu.dot_dimension_numbers<[1], [0], [0], [1], [0, 0, 1, 1], [], []>} : vector<16x32xbf16>, vector<32x32xbf16>, vector<16x32xf32> -> vector<16x32xf32>
    %cst_7 = arith.constant 0.000000e+00 : f32
    %6 = vector.broadcast %cst_7 : f32 to vector<16x32xf32>
    %7 = arith.maximumf %5, %6 : vector<16x32xf32>
    %cst_8 = arith.constant dense<0.000000e+00> : vector<16x32xf32>
    %8 = tpu.matmul %4, %2, %cst_8 {dimension_numbers = #tpu.dot_dimension_numbers<[1], [0], [0], [1], [0, 0, 1, 1], [], []>} : vector<16x32xbf16>, vector<32x32xbf16>, vector<16x32xf32> -> vector<16x32xf32>
    %cst_9 = arith.constant 0.000000e+00 : f32
    %9 = vector.broadcast %cst_9 : f32 to vector<16x32xf32>
    %10 = arith.maximumf %8, %9 : vector<16x32xf32>
    %11 = vector.shape_cast %7 : vector<16x32xf32> to vector<2x8x32xf32>
    %12 = arith.truncf %11 : vector<2x8x32xf32> to vector<2x8x32xbf16>
    %13 = vector.shape_cast %10 : vector<16x32xf32> to vector<2x8x32xf32>
    %14 = arith.truncf %13 : vector<2x8x32xf32> to vector<2x8x32xbf16>
    "tpu.trace_start"() <{level = 10 : i32, message = "bld,bmd->blm"}> : () -> ()
    %cst_10 = arith.constant dense<0.000000e+00> : vector<2x8x8xf32>
    %15 = tpu.matmul %12, %14, %cst_10 {dimension_numbers = #tpu.dot_dimension_numbers<[2], [2], [1], [1], [0, 0, 0, 1, 1, 1], [0], [0]>} : vector<2x8x32xbf16>, vector<2x8x32xbf16>, vector<2x8x8xf32> -> vector<2x8x8xf32>
    "tpu.trace_stop"() : () -> ()
    %cst_11 = arith.constant dense<0xFF800000> : vector<2x8xf32>
    %16 = vector.multi_reduction <maximumf>, %15, %cst_11 [1] : vector<2x8x8xf32> to vector<2x8xf32>
    %17 = vector.shape_cast %16 : vector<2x8xf32> to vector<2x1x8xf32>
    %18 = vector.broadcast %17 : vector<2x1x8xf32> to vector<2x8x8xf32>
    %19 = arith.subf %15, %18 : vector<2x8x8xf32>
    %20 = math.exp %19 : vector<2x8x8xf32>
    %c0_12 = arith.constant 0 : index
    %c0_13 = arith.constant 0 : index
    %c0_14 = arith.constant 0 : index
    %21 = vector.load %arg3[%c0_12, %c0_13, %c0_14] : memref<2x1x8xf32, #tpu.memory_space<vmem>>, vector<2x1x8xf32>
    %22 = vector.broadcast %21 : vector<2x1x8xf32> to vector<2x8x8xf32>
    %23 = arith.mulf %20, %22 : vector<2x8x8xf32>
    %cst_15 = arith.constant dense<0.000000e+00> : vector<2x8xf32>
    %24 = vector.multi_reduction <add>, %23, %cst_15 [1] : vector<2x8x8xf32> to vector<2x8xf32>
    %25 = vector.shape_cast %24 : vector<2x8xf32> to vector<2x1x8xf32>
    %cst_16 = arith.constant 1.000000e-10 : f32
    %26 = vector.broadcast %cst_16 : f32 to vector<2x1x8xf32>
    %27 = arith.addf %25, %26 : vector<2x1x8xf32>
    %28 = tpu.reciprocal %27 {approx = true} : vector<2x1x8xf32> -> vector<2x1x8xf32>
    %29 = vector.broadcast %28 : vector<2x1x8xf32> to vector<2x8x8xf32>
    %30 = arith.mulf %23, %29 : vector<2x8x8xf32>
    %31 = arith.truncf %30 : vector<2x8x8xf32> to vector<2x8x8xbf16>
    "tpu.trace_start"() <{level = 10 : i32, message = "blm,bmd->bld"}> : () -> ()
    %cst_17 = arith.constant dense<0.000000e+00> : vector<2x8x32xf32>
    %32 = tpu.matmul %31, %1, %cst_17 {dimension_numbers = #tpu.dot_dimension_numbers<[2], [1], [1], [2], [0, 0, 0, 1, 1, 2], [0], [0]>} : vector<2x8x8xbf16>, vector<2x8x32xbf16>, vector<2x8x32xf32> -> vector<2x8x32xf32>
    "tpu.trace_stop"() : () -> ()
    %33 = vector.shape_cast %32 : vector<2x8x32xf32> to vector<16x32xf32>
    %34 = arith.truncf %33 : vector<16x32xf32> to vector<16x32xbf16>
    %c0_18 = arith.constant 0 : index
    %c0_19 = arith.constant 0 : index
    %35 = vector.load %arg5[%c0_18, %c0_19] : memref<32x384xbf16, #tpu.memory_space<vmem>>, vector<32x384xbf16>
    %cst_20 = arith.constant dense<0.000000e+00> : vector<16x384xf32>
    %36 = tpu.matmul %3, %35, %cst_20 {dimension_numbers = #tpu.dot_dimension_numbers<[1], [0], [0], [1], [0, 0, 1, 1], [], []>} : vector<16x32xbf16>, vector<32x384xbf16>, vector<16x384xf32> -> vector<16x384xf32>
    %c0_21 = arith.constant 0 : index
    %c0_22 = arith.constant 0 : index
    %37 = vector.load %arg7[%c0_21, %c0_22] : memref<1x384xf32, #tpu.memory_space<vmem>>, vector<1x384xf32>
    %38 = vector.broadcast %37 : vector<1x384xf32> to vector<16x384xf32>
    %39 = arith.addf %36, %38 : vector<16x384xf32>
    %40 = vector.shape_cast %39 : vector<16x384xf32> to vector<2x8x384xf32>
    %c0_23 = arith.constant 0 : index
    %c0_24 = arith.constant 0 : index
    %41 = vector.load %arg9[%c0_23, %c0_24] : memref<32x384xbf16, #tpu.memory_space<vmem>>, vector<32x384xbf16>
    %cst_25 = arith.constant dense<0.000000e+00> : vector<16x384xf32>
    %42 = tpu.matmul %3, %41, %cst_25 {dimension_numbers = #tpu.dot_dimension_numbers<[1], [0], [0], [1], [0, 0, 1, 1], [], []>} : vector<16x32xbf16>, vector<32x384xbf16>, vector<16x384xf32> -> vector<16x384xf32>
    %c0_26 = arith.constant 0 : index
    %c0_27 = arith.constant 0 : index
    %43 = vector.load %arg11[%c0_26, %c0_27] : memref<1x384xf32, #tpu.memory_space<vmem>>, vector<1x384xf32>
    %44 = vector.broadcast %43 : vector<1x384xf32> to vector<16x384xf32>
    %45 = arith.addf %42, %44 : vector<16x384xf32>
    %46 = vector.shape_cast %45 : vector<16x384xf32> to vector<2x8x384xf32>
    %c0_28 = arith.constant 0 : index
    %c0_29 = arith.constant 0 : index
    %47 = vector.load %arg13[%c0_28, %c0_29] : memref<32x384xbf16, #tpu.memory_space<vmem>>, vector<32x384xbf16>
    %cst_30 = arith.constant dense<0.000000e+00> : vector<16x384xf32>
    %48 = tpu.matmul %3, %47, %cst_30 {dimension_numbers = #tpu.dot_dimension_numbers<[1], [0], [0], [1], [0, 0, 1, 1], [], []>} : vector<16x32xbf16>, vector<32x384xbf16>, vector<16x384xf32> -> vector<16x384xf32>
    %c0_31 = arith.constant 0 : index
    %c0_32 = arith.constant 0 : index
    %49 = vector.load %arg14[%c0_31, %c0_32] : memref<32x384xbf16, #tpu.memory_space<vmem>>, vector<32x384xbf16>
    %cst_33 = arith.constant dense<0.000000e+00> : vector<16x384xf32>
    %50 = tpu.matmul %34, %49, %cst_33 {dimension_numbers = #tpu.dot_dimension_numbers<[1], [0], [0], [1], [0, 0, 1, 1], [], []>} : vector<16x32xbf16>, vector<32x384xbf16>, vector<16x384xf32> -> vector<16x384xf32>
    %51 = arith.addf %48, %50 : vector<16x384xf32>
    %c0_34 = arith.constant 0 : index
    %c0_35 = arith.constant 0 : index
    %52 = vector.load %arg16[%c0_34, %c0_35] : memref<1x384xf32, #tpu.memory_space<vmem>>, vector<1x384xf32>
    %53 = vector.broadcast %52 : vector<1x384xf32> to vector<16x384xf32>
    %54 = arith.addf %51, %53 : vector<16x384xf32>
    %55 = vector.shape_cast %54 : vector<16x384xf32> to vector<2x8x384xf32>
    %c0_36 = arith.constant 0 : index
    %c0_37 = arith.constant 0 : index
    %56 = vector.load %arg18[%c0_36, %c0_37] : memref<32x384xbf16, #tpu.memory_space<vmem>>, vector<32x384xbf16>
    %cst_38 = arith.constant dense<0.000000e+00> : vector<16x384xf32>
    %57 = tpu.matmul %3, %56, %cst_38 {dimension_numbers = #tpu.dot_dimension_numbers<[1], [0], [0], [1], [0, 0, 1, 1], [], []>} : vector<16x32xbf16>, vector<32x384xbf16>, vector<16x384xf32> -> vector<16x384xf32>
    %c0_39 = arith.constant 0 : index
    %c0_40 = arith.constant 0 : index
    %58 = vector.load %arg19[%c0_39, %c0_40] : memref<32x384xbf16, #tpu.memory_space<vmem>>, vector<32x384xbf16>
    %cst_41 = arith.constant dense<0.000000e+00> : vector<16x384xf32>
    %59 = tpu.matmul %34, %58, %cst_41 {dimension_numbers = #tpu.dot_dimension_numbers<[1], [0], [0], [1], [0, 0, 1, 1], [], []>} : vector<16x32xbf16>, vector<32x384xbf16>, vector<16x384xf32> -> vector<16x384xf32>
    %60 = arith.addf %57, %59 : vector<16x384xf32>
    %c0_42 = arith.constant 0 : index
    %c0_43 = arith.constant 0 : index
    %61 = vector.load %arg21[%c0_42, %c0_43] : memref<1x384xf32, #tpu.memory_space<vmem>>, vector<1x384xf32>
    %62 = vector.broadcast %61 : vector<1x384xf32> to vector<16x384xf32>
    %63 = arith.addf %60, %62 : vector<16x384xf32>
    %64 = vector.shape_cast %63 : vector<16x384xf32> to vector<2x8x384xf32>
    %c0_44 = arith.constant 0 : index
    %c0_45 = arith.constant 0 : index
    %65 = vector.load %arg6[%c0_44, %c0_45] : memref<128x384xbf16, #tpu.memory_space<vmem>>, vector<128x384xbf16>
    %c0_46 = arith.constant 0 : index
    %c0_47 = arith.constant 0 : index
    %66 = vector.load %arg10[%c0_46, %c0_47] : memref<128x384xbf16, #tpu.memory_space<vmem>>, vector<128x384xbf16>
    %c0_48 = arith.constant 0 : index
    %c0_49 = arith.constant 0 : index
    %67 = vector.load %arg15[%c0_48, %c0_49] : memref<128x384xbf16, #tpu.memory_space<vmem>>, vector<128x384xbf16>
    %c0_50 = arith.constant 0 : index
    %c0_51 = arith.constant 0 : index
    %68 = vector.load %arg20[%c0_50, %c0_51] : memref<128x384xbf16, #tpu.memory_space<vmem>>, vector<128x384xbf16>
    %c0_52 = arith.constant 0 : index
    %c0_53 = arith.constant 0 : index
    %69 = vector.load %arg8[%c0_52, %c0_53] : memref<1x128xf32, #tpu.memory_space<vmem>>, vector<1x128xf32>
    %70 = vector.shape_cast %69 : vector<1x128xf32> to vector<1x128xf32>
    %71 = vector.broadcast %70 : vector<1x128xf32> to vector<2x128xf32>
    %c0_54 = arith.constant 0 : index
    %c0_55 = arith.constant 0 : index
    %72 = vector.load %arg12[%c0_54, %c0_55] : memref<1x128xf32, #tpu.memory_space<vmem>>, vector<1x128xf32>
    %73 = vector.shape_cast %72 : vector<1x128xf32> to vector<1x128xf32>
    %74 = vector.broadcast %73 : vector<1x128xf32> to vector<2x128xf32>
    %c0_56 = arith.constant 0 : index
    %c0_57 = arith.constant 0 : index
    %75 = vector.load %arg17[%c0_56, %c0_57] : memref<1x128xf32, #tpu.memory_space<vmem>>, vector<1x128xf32>
    %76 = vector.shape_cast %75 : vector<1x128xf32> to vector<1x128xf32>
    %77 = vector.broadcast %76 : vector<1x128xf32> to vector<2x128xf32>
    %c0_58 = arith.constant 0 : index
    %c0_59 = arith.constant 0 : index
    %78 = vector.load %arg22[%c0_58, %c0_59] : memref<1x128xf32, #tpu.memory_space<vmem>>, vector<1x128xf32>
    %79 = vector.shape_cast %78 : vector<1x128xf32> to vector<1x128xf32>
    %80 = vector.broadcast %79 : vector<1x128xf32> to vector<2x128xf32>
    %cst_60 = arith.constant 0.000000e+00 : f32
    %81 = vector.broadcast %cst_60 : f32 to vector<2x128xf32>
    %cst_61 = arith.constant 0xFF800000 : f32
    %82 = vector.broadcast %cst_61 : f32 to vector<2x128xf32>
    %cst_62 = arith.constant 0xFF800000 : f32
    %83 = vector.broadcast %cst_62 : f32 to vector<2x128xf32>
    %84 = vector.extract_strided_slice %40 {offsets = [0, 0, 0], sizes = [2, 1, 384], strides = [1, 1, 1]} : vector<2x8x384xf32> to vector<2x1x384xf32>
    %85 = vector.shape_cast %84 : vector<2x1x384xf32> to vector<2x384xf32>
    %86 = arith.truncf %81 : vector<2x128xf32> to vector<2x128xbf16>
    %cst_63 = arith.constant dense<0.000000e+00> : vector<2x384xf32>
    %87 = tpu.matmul %86, %65, %cst_63 {dimension_numbers = #tpu.dot_dimension_numbers<[1], [0], [0], [1], [0, 0, 1, 1], [], []>} : vector<2x128xbf16>, vector<128x384xbf16>, vector<2x384xf32> -> vector<2x384xf32>
    %88 = vector.extract_strided_slice %85 {offsets = [0, 0], sizes = [2, 128], strides = [1, 1]} : vector<2x384xf32> to vector<2x128xf32>
    %89 = vector.extract_strided_slice %87 {offsets = [0, 0], sizes = [2, 128], strides = [1, 1]} : vector<2x384xf32> to vector<2x128xf32>
    %90 = arith.addf %88, %89 : vector<2x128xf32>
    %91 = arith.negf %90 : vector<2x128xf32>
    %92 = math.exp %91 : vector<2x128xf32>
    %cst_64 = arith.constant 1.000000e+00 : f32
    %93 = vector.broadcast %cst_64 : f32 to vector<2x128xf32>
    %94 = arith.addf %93, %92 : vector<2x128xf32>
    %95 = arith.divf %93, %94 : vector<2x128xf32>
    %96 = vector.extract_strided_slice %85 {offsets = [0, 128], sizes = [2, 128], strides = [1, 1]} : vector<2x384xf32> to vector<2x128xf32>
    %97 = vector.extract_strided_slice %87 {offsets = [0, 128], sizes = [2, 128], strides = [1, 1]} : vector<2x384xf32> to vector<2x128xf32>
    %98 = arith.addf %96, %97 : vector<2x128xf32>
    %99 = arith.negf %98 : vector<2x128xf32>
    %100 = math.exp %99 : vector<2x128xf32>
    %cst_65 = arith.constant 1.000000e+00 : f32
    %101 = vector.broadcast %cst_65 : f32 to vector<2x128xf32>
    %102 = arith.addf %101, %100 : vector<2x128xf32>
    %103 = arith.divf %101, %102 : vector<2x128xf32>
    %104 = vector.extract_strided_slice %85 {offsets = [0, 256], sizes = [2, 128], strides = [1, 1]} : vector<2x384xf32> to vector<2x128xf32>
    %105 = vector.extract_strided_slice %87 {offsets = [0, 256], sizes = [2, 128], strides = [1, 1]} : vector<2x384xf32> to vector<2x128xf32>
    %106 = arith.addf %105, %71 : vector<2x128xf32>
    %107 = arith.mulf %95, %106 : vector<2x128xf32>
    %108 = arith.addf %104, %107 : vector<2x128xf32>
    %109 = math.tanh %108 : vector<2x128xf32>
    %cst_66 = arith.constant 1.000000e+00 : f32
    %110 = vector.broadcast %cst_66 : f32 to vector<2x128xf32>
    %111 = arith.subf %110, %103 : vector<2x128xf32>
    %112 = arith.mulf %111, %109 : vector<2x128xf32>
    %113 = arith.mulf %103, %81 : vector<2x128xf32>
    %114 = arith.addf %112, %113 : vector<2x128xf32>
    %115 = vector.extract_strided_slice %55 {offsets = [0, 0, 0], sizes = [2, 1, 384], strides = [1, 1, 1]} : vector<2x8x384xf32> to vector<2x1x384xf32>
    %116 = vector.shape_cast %115 : vector<2x1x384xf32> to vector<2x384xf32>
    %117 = arith.truncf %81 : vector<2x128xf32> to vector<2x128xbf16>
    %cst_67 = arith.constant dense<0.000000e+00> : vector<2x384xf32>
    %118 = tpu.matmul %117, %67, %cst_67 {dimension_numbers = #tpu.dot_dimension_numbers<[1], [0], [0], [1], [0, 0, 1, 1], [], []>} : vector<2x128xbf16>, vector<128x384xbf16>, vector<2x384xf32> -> vector<2x384xf32>
    %119 = vector.extract_strided_slice %116 {offsets = [0, 0], sizes = [2, 128], strides = [1, 1]} : vector<2x384xf32> to vector<2x128xf32>
    %120 = vector.extract_strided_slice %118 {offsets = [0, 0], sizes = [2, 128], strides = [1, 1]} : vector<2x384xf32> to vector<2x128xf32>
    %121 = arith.addf %119, %120 : vector<2x128xf32>
    %122 = arith.negf %121 : vector<2x128xf32>
    %123 = math.exp %122 : vector<2x128xf32>
    %cst_68 = arith.constant 1.000000e+00 : f32
    %124 = vector.broadcast %cst_68 : f32 to vector<2x128xf32>
    %125 = arith.addf %124, %123 : vector<2x128xf32>
    %126 = arith.divf %124, %125 : vector<2x128xf32>
    %127 = vector.extract_strided_slice %116 {offsets = [0, 128], sizes = [2, 128], strides = [1, 1]} : vector<2x384xf32> to vector<2x128xf32>
    %128 = vector.extract_strided_slice %118 {offsets = [0, 128], sizes = [2, 128], strides = [1, 1]} : vector<2x384xf32> to vector<2x128xf32>
    %129 = arith.addf %127, %128 : vector<2x128xf32>
    %130 = arith.negf %129 : vector<2x128xf32>
    %131 = math.exp %130 : vector<2x128xf32>
    %cst_69 = arith.constant 1.000000e+00 : f32
    %132 = vector.broadcast %cst_69 : f32 to vector<2x128xf32>
    %133 = arith.addf %132, %131 : vector<2x128xf32>
    %134 = arith.divf %132, %133 : vector<2x128xf32>
    %135 = vector.extract_strided_slice %116 {offsets = [0, 256], sizes = [2, 128], strides = [1, 1]} : vector<2x384xf32> to vector<2x128xf32>
    %136 = vector.extract_strided_slice %118 {offsets = [0, 256], sizes = [2, 128], strides = [1, 1]} : vector<2x384xf32> to vector<2x128xf32>
    %137 = arith.addf %136, %77 : vector<2x128xf32>
    %138 = arith.mulf %126, %137 : vector<2x128xf32>
    %139 = arith.addf %135, %138 : vector<2x128xf32>
    %140 = math.tanh %139 : vector<2x128xf32>
    %cst_70 = arith.constant 1.000000e+00 : f32
    %141 = vector.broadcast %cst_70 : f32 to vector<2x128xf32>
    %142 = arith.subf %141, %134 : vector<2x128xf32>
    %143 = arith.mulf %142, %140 : vector<2x128xf32>
    %144 = arith.mulf %134, %81 : vector<2x128xf32>
    %145 = arith.addf %143, %144 : vector<2x128xf32>
    %146 = vector.extract_strided_slice %46 {offsets = [0, 7, 0], sizes = [2, 1, 384], strides = [1, 1, 1]} : vector<2x8x384xf32> to vector<2x1x384xf32>
    %147 = vector.shape_cast %146 : vector<2x1x384xf32> to vector<2x384xf32>
    %148 = arith.truncf %81 : vector<2x128xf32> to vector<2x128xbf16>
    %cst_71 = arith.constant dense<0.000000e+00> : vector<2x384xf32>
    %149 = tpu.matmul %148, %66, %cst_71 {dimension_numbers = #tpu.dot_dimension_numbers<[1], [0], [0], [1], [0, 0, 1, 1], [], []>} : vector<2x128xbf16>, vector<128x384xbf16>, vector<2x384xf32> -> vector<2x384xf32>
    %150 = vector.extract_strided_slice %147 {offsets = [0, 0], sizes = [2, 128], strides = [1, 1]} : vector<2x384xf32> to vector<2x128xf32>
    %151 = vector.extract_strided_slice %149 {offsets = [0, 0], sizes = [2, 128], strides = [1, 1]} : vector<2x384xf32> to vector<2x128xf32>
    %152 = arith.addf %150, %151 : vector<2x128xf32>
    %153 = arith.negf %152 : vector<2x128xf32>
    %154 = math.exp %153 : vector<2x128xf32>
    %cst_72 = arith.constant 1.000000e+00 : f32
    %155 = vector.broadcast %cst_72 : f32 to vector<2x128xf32>
    %156 = arith.addf %155, %154 : vector<2x128xf32>
    %157 = arith.divf %155, %156 : vector<2x128xf32>
    %158 = vector.extract_strided_slice %147 {offsets = [0, 128], sizes = [2, 128], strides = [1, 1]} : vector<2x384xf32> to vector<2x128xf32>
    %159 = vector.extract_strided_slice %149 {offsets = [0, 128], sizes = [2, 128], strides = [1, 1]} : vector<2x384xf32> to vector<2x128xf32>
    %160 = arith.addf %158, %159 : vector<2x128xf32>
    %161 = arith.negf %160 : vector<2x128xf32>
    %162 = math.exp %161 : vector<2x128xf32>
    %cst_73 = arith.constant 1.000000e+00 : f32
    %163 = vector.broadcast %cst_73 : f32 to vector<2x128xf32>
    %164 = arith.addf %163, %162 : vector<2x128xf32>
    %165 = arith.divf %163, %164 : vector<2x128xf32>
    %166 = vector.extract_strided_slice %147 {offsets = [0, 256], sizes = [2, 128], strides = [1, 1]} : vector<2x384xf32> to vector<2x128xf32>
    %167 = vector.extract_strided_slice %149 {offsets = [0, 256], sizes = [2, 128], strides = [1, 1]} : vector<2x384xf32> to vector<2x128xf32>
    %168 = arith.addf %167, %74 : vector<2x128xf32>
    %169 = arith.mulf %157, %168 : vector<2x128xf32>
    %170 = arith.addf %166, %169 : vector<2x128xf32>
    %171 = math.tanh %170 : vector<2x128xf32>
    %cst_74 = arith.constant 1.000000e+00 : f32
    %172 = vector.broadcast %cst_74 : f32 to vector<2x128xf32>
    %173 = arith.subf %172, %165 : vector<2x128xf32>
    %174 = arith.mulf %173, %171 : vector<2x128xf32>
    %175 = arith.mulf %165, %81 : vector<2x128xf32>
    %176 = arith.addf %174, %175 : vector<2x128xf32>
    %177 = vector.extract_strided_slice %64 {offsets = [0, 7, 0], sizes = [2, 1, 384], strides = [1, 1, 1]} : vector<2x8x384xf32> to vector<2x1x384xf32>
    %178 = vector.shape_cast %177 : vector<2x1x384xf32> to vector<2x384xf32>
    %179 = arith.truncf %81 : vector<2x128xf32> to vector<2x128xbf16>
    %cst_75 = arith.constant dense<0.000000e+00> : vector<2x384xf32>
    %180 = tpu.matmul %179, %68, %cst_75 {dimension_numbers = #tpu.dot_dimension_numbers<[1], [0], [0], [1], [0, 0, 1, 1], [], []>} : vector<2x128xbf16>, vector<128x384xbf16>, vector<2x384xf32> -> vector<2x384xf32>
    %181 = vector.extract_strided_slice %178 {offsets = [0, 0], sizes = [2, 128], strides = [1, 1]} : vector<2x384xf32> to vector<2x128xf32>
    %182 = vector.extract_strided_slice %180 {offsets = [0, 0], sizes = [2, 128], strides = [1, 1]} : vector<2x384xf32> to vector<2x128xf32>
    %183 = arith.addf %181, %182 : vector<2x128xf32>
    %184 = arith.negf %183 : vector<2x128xf32>
    %185 = math.exp %184 : vector<2x128xf32>
    %cst_76 = arith.constant 1.000000e+00 : f32
    %186 = vector.broadcast %cst_76 : f32 to vector<2x128xf32>
    %187 = arith.addf %186, %185 : vector<2x128xf32>
    %188 = arith.divf %186, %187 : vector<2x128xf32>
    %189 = vector.extract_strided_slice %178 {offsets = [0, 128], sizes = [2, 128], strides = [1, 1]} : vector<2x384xf32> to vector<2x128xf32>
    %190 = vector.extract_strided_slice %180 {offsets = [0, 128], sizes = [2, 128], strides = [1, 1]} : vector<2x384xf32> to vector<2x128xf32>
    %191 = arith.addf %189, %190 : vector<2x128xf32>
    %192 = arith.negf %191 : vector<2x128xf32>
    %193 = math.exp %192 : vector<2x128xf32>
    %cst_77 = arith.constant 1.000000e+00 : f32
    %194 = vector.broadcast %cst_77 : f32 to vector<2x128xf32>
    %195 = arith.addf %194, %193 : vector<2x128xf32>
    %196 = arith.divf %194, %195 : vector<2x128xf32>
    %197 = vector.extract_strided_slice %178 {offsets = [0, 256], sizes = [2, 128], strides = [1, 1]} : vector<2x384xf32> to vector<2x128xf32>
    %198 = vector.extract_strided_slice %180 {offsets = [0, 256], sizes = [2, 128], strides = [1, 1]} : vector<2x384xf32> to vector<2x128xf32>
    %199 = arith.addf %198, %80 : vector<2x128xf32>
    %200 = arith.mulf %188, %199 : vector<2x128xf32>
    %201 = arith.addf %197, %200 : vector<2x128xf32>
    %202 = math.tanh %201 : vector<2x128xf32>
    %cst_78 = arith.constant 1.000000e+00 : f32
    %203 = vector.broadcast %cst_78 : f32 to vector<2x128xf32>
    %204 = arith.subf %203, %196 : vector<2x128xf32>
    %205 = arith.mulf %204, %202 : vector<2x128xf32>
    %206 = arith.mulf %196, %81 : vector<2x128xf32>
    %207 = arith.addf %205, %206 : vector<2x128xf32>
    %208 = arith.mulf %114, %145 : vector<2x128xf32>
    %209 = arith.maximumf %82, %208 : vector<2x128xf32>
    %210 = arith.mulf %176, %207 : vector<2x128xf32>
    %211 = arith.maximumf %83, %210 : vector<2x128xf32>
    %212 = vector.extract_strided_slice %40 {offsets = [0, 1, 0], sizes = [2, 1, 384], strides = [1, 1, 1]} : vector<2x8x384xf32> to vector<2x1x384xf32>
    %213 = vector.shape_cast %212 : vector<2x1x384xf32> to vector<2x384xf32>
    %214 = arith.truncf %114 : vector<2x128xf32> to vector<2x128xbf16>
    %cst_79 = arith.constant dense<0.000000e+00> : vector<2x384xf32>
    %215 = tpu.matmul %214, %65, %cst_79 {dimension_numbers = #tpu.dot_dimension_numbers<[1], [0], [0], [1], [0, 0, 1, 1], [], []>} : vector<2x128xbf16>, vector<128x384xbf16>, vector<2x384xf32> -> vector<2x384xf32>
    %216 = vector.extract_strided_slice %213 {offsets = [0, 0], sizes = [2, 128], strides = [1, 1]} : vector<2x384xf32> to vector<2x128xf32>
    %217 = vector.extract_strided_slice %215 {offsets = [0, 0], sizes = [2, 128], strides = [1, 1]} : vector<2x384xf32> to vector<2x128xf32>
    %218 = arith.addf %216, %217 : vector<2x128xf32>
    %219 = arith.negf %218 : vector<2x128xf32>
    %220 = math.exp %219 : vector<2x128xf32>
    %cst_80 = arith.constant 1.000000e+00 : f32
    %221 = vector.broadcast %cst_80 : f32 to vector<2x128xf32>
    %222 = arith.addf %221, %220 : vector<2x128xf32>
    %223 = arith.divf %221, %222 : vector<2x128xf32>
    %224 = vector.extract_strided_slice %213 {offsets = [0, 128], sizes = [2, 128], strides = [1, 1]} : vector<2x384xf32> to vector<2x128xf32>
    %225 = vector.extract_strided_slice %215 {offsets = [0, 128], sizes = [2, 128], strides = [1, 1]} : vector<2x384xf32> to vector<2x128xf32>
    %226 = arith.addf %224, %225 : vector<2x128xf32>
    %227 = arith.negf %226 : vector<2x128xf32>
    %228 = math.exp %227 : vector<2x128xf32>
    %cst_81 = arith.constant 1.000000e+00 : f32
    %229 = vector.broadcast %cst_81 : f32 to vector<2x128xf32>
    %230 = arith.addf %229, %228 : vector<2x128xf32>
    %231 = arith.divf %229, %230 : vector<2x128xf32>
    %232 = vector.extract_strided_slice %213 {offsets = [0, 256], sizes = [2, 128], strides = [1, 1]} : vector<2x384xf32> to vector<2x128xf32>
    %233 = vector.extract_strided_slice %215 {offsets = [0, 256], sizes = [2, 128], strides = [1, 1]} : vector<2x384xf32> to vector<2x128xf32>
    %234 = arith.addf %233, %71 : vector<2x128xf32>
    %235 = arith.mulf %223, %234 : vector<2x128xf32>
    %236 = arith.addf %232, %235 : vector<2x128xf32>
    %237 = math.tanh %236 : vector<2x128xf32>
    %cst_82 = arith.constant 1.000000e+00 : f32
    %238 = vector.broadcast %cst_82 : f32 to vector<2x128xf32>
    %239 = arith.subf %238, %231 : vector<2x128xf32>
    %240 = arith.mulf %239, %237 : vector<2x128xf32>
    %241 = arith.mulf %231, %114 : vector<2x128xf32>
    %242 = arith.addf %240, %241 : vector<2x128xf32>
    %243 = vector.extract_strided_slice %55 {offsets = [0, 1, 0], sizes = [2, 1, 384], strides = [1, 1, 1]} : vector<2x8x384xf32> to vector<2x1x384xf32>
    %244 = vector.shape_cast %243 : vector<2x1x384xf32> to vector<2x384xf32>
    %245 = arith.truncf %145 : vector<2x128xf32> to vector<2x128xbf16>
    %cst_83 = arith.constant dense<0.000000e+00> : vector<2x384xf32>
    %246 = tpu.matmul %245, %67, %cst_83 {dimension_numbers = #tpu.dot_dimension_numbers<[1], [0], [0], [1], [0, 0, 1, 1], [], []>} : vector<2x128xbf16>, vector<128x384xbf16>, vector<2x384xf32> -> vector<2x384xf32>
    %247 = vector.extract_strided_slice %244 {offsets = [0, 0], sizes = [2, 128], strides = [1, 1]} : vector<2x384xf32> to vector<2x128xf32>
    %248 = vector.extract_strided_slice %246 {offsets = [0, 0], sizes = [2, 128], strides = [1, 1]} : vector<2x384xf32> to vector<2x128xf32>
    %249 = arith.addf %247, %248 : vector<2x128xf32>
    %250 = arith.negf %249 : vector<2x128xf32>
    %251 = math.exp %250 : vector<2x128xf32>
    %cst_84 = arith.constant 1.000000e+00 : f32
    %252 = vector.broadcast %cst_84 : f32 to vector<2x128xf32>
    %253 = arith.addf %252, %251 : vector<2x128xf32>
    %254 = arith.divf %252, %253 : vector<2x128xf32>
    %255 = vector.extract_strided_slice %244 {offsets = [0, 128], sizes = [2, 128], strides = [1, 1]} : vector<2x384xf32> to vector<2x128xf32>
    %256 = vector.extract_strided_slice %246 {offsets = [0, 128], sizes = [2, 128], strides = [1, 1]} : vector<2x384xf32> to vector<2x128xf32>
    %257 = arith.addf %255, %256 : vector<2x128xf32>
    %258 = arith.negf %257 : vector<2x128xf32>
    %259 = math.exp %258 : vector<2x128xf32>
    %cst_85 = arith.constant 1.000000e+00 : f32
    %260 = vector.broadcast %cst_85 : f32 to vector<2x128xf32>
    %261 = arith.addf %260, %259 : vector<2x128xf32>
    %262 = arith.divf %260, %261 : vector<2x128xf32>
    %263 = vector.extract_strided_slice %244 {offsets = [0, 256], sizes = [2, 128], strides = [1, 1]} : vector<2x384xf32> to vector<2x128xf32>
    %264 = vector.extract_strided_slice %246 {offsets = [0, 256], sizes = [2, 128], strides = [1, 1]} : vector<2x384xf32> to vector<2x128xf32>
    %265 = arith.addf %264, %77 : vector<2x128xf32>
    %266 = arith.mulf %254, %265 : vector<2x128xf32>
    %267 = arith.addf %263, %266 : vector<2x128xf32>
    %268 = math.tanh %267 : vector<2x128xf32>
    %cst_86 = arith.constant 1.000000e+00 : f32
    %269 = vector.broadcast %cst_86 : f32 to vector<2x128xf32>
    %270 = arith.subf %269, %262 : vector<2x128xf32>
    %271 = arith.mulf %270, %268 : vector<2x128xf32>
    %272 = arith.mulf %262, %145 : vector<2x128xf32>
    %273 = arith.addf %271, %272 : vector<2x128xf32>
    %274 = vector.extract_strided_slice %46 {offsets = [0, 6, 0], sizes = [2, 1, 384], strides = [1, 1, 1]} : vector<2x8x384xf32> to vector<2x1x384xf32>
    %275 = vector.shape_cast %274 : vector<2x1x384xf32> to vector<2x384xf32>
    %276 = arith.truncf %176 : vector<2x128xf32> to vector<2x128xbf16>
    %cst_87 = arith.constant dense<0.000000e+00> : vector<2x384xf32>
    %277 = tpu.matmul %276, %66, %cst_87 {dimension_numbers = #tpu.dot_dimension_numbers<[1], [0], [0], [1], [0, 0, 1, 1], [], []>} : vector<2x128xbf16>, vector<128x384xbf16>, vector<2x384xf32> -> vector<2x384xf32>
    %278 = vector.extract_strided_slice %275 {offsets = [0, 0], sizes = [2, 128], strides = [1, 1]} : vector<2x384xf32> to vector<2x128xf32>
    %279 = vector.extract_strided_slice %277 {offsets = [0, 0], sizes = [2, 128], strides = [1, 1]} : vector<2x384xf32> to vector<2x128xf32>
    %280 = arith.addf %278, %279 : vector<2x128xf32>
    %281 = arith.negf %280 : vector<2x128xf32>
    %282 = math.exp %281 : vector<2x128xf32>
    %cst_88 = arith.constant 1.000000e+00 : f32
    %283 = vector.broadcast %cst_88 : f32 to vector<2x128xf32>
    %284 = arith.addf %283, %282 : vector<2x128xf32>
    %285 = arith.divf %283, %284 : vector<2x128xf32>
    %286 = vector.extract_strided_slice %275 {offsets = [0, 128], sizes = [2, 128], strides = [1, 1]} : vector<2x384xf32> to vector<2x128xf32>
    %287 = vector.extract_strided_slice %277 {offsets = [0, 128], sizes = [2, 128], strides = [1, 1]} : vector<2x384xf32> to vector<2x128xf32>
    %288 = arith.addf %286, %287 : vector<2x128xf32>
    %289 = arith.negf %288 : vector<2x128xf32>
    %290 = math.exp %289 : vector<2x128xf32>
    %cst_89 = arith.constant 1.000000e+00 : f32
    %291 = vector.broadcast %cst_89 : f32 to vector<2x128xf32>
    %292 = arith.addf %291, %290 : vector<2x128xf32>
    %293 = arith.divf %291, %292 : vector<2x128xf32>
    %294 = vector.extract_strided_slice %275 {offsets = [0, 256], sizes = [2, 128], strides = [1, 1]} : vector<2x384xf32> to vector<2x128xf32>
    %295 = vector.extract_strided_slice %277 {offsets = [0, 256], sizes = [2, 128], strides = [1, 1]} : vector<2x384xf32> to vector<2x128xf32>
    %296 = arith.addf %295, %74 : vector<2x128xf32>
    %297 = arith.mulf %285, %296 : vector<2x128xf32>
    %298 = arith.addf %294, %297 : vector<2x128xf32>
    %299 = math.tanh %298 : vector<2x128xf32>
    %cst_90 = arith.constant 1.000000e+00 : f32
    %300 = vector.broadcast %cst_90 : f32 to vector<2x128xf32>
    %301 = arith.subf %300, %293 : vector<2x128xf32>
    %302 = arith.mulf %301, %299 : vector<2x128xf32>
    %303 = arith.mulf %293, %176 : vector<2x128xf32>
    %304 = arith.addf %302, %303 : vector<2x128xf32>
    %305 = vector.extract_strided_slice %64 {offsets = [0, 6, 0], sizes = [2, 1, 384], strides = [1, 1, 1]} : vector<2x8x384xf32> to vector<2x1x384xf32>
    %306 = vector.shape_cast %305 : vector<2x1x384xf32> to vector<2x384xf32>
    %307 = arith.truncf %207 : vector<2x128xf32> to vector<2x128xbf16>
    %cst_91 = arith.constant dense<0.000000e+00> : vector<2x384xf32>
    %308 = tpu.matmul %307, %68, %cst_91 {dimension_numbers = #tpu.dot_dimension_numbers<[1], [0], [0], [1], [0, 0, 1, 1], [], []>} : vector<2x128xbf16>, vector<128x384xbf16>, vector<2x384xf32> -> vector<2x384xf32>
    %309 = vector.extract_strided_slice %306 {offsets = [0, 0], sizes = [2, 128], strides = [1, 1]} : vector<2x384xf32> to vector<2x128xf32>
    %310 = vector.extract_strided_slice %308 {offsets = [0, 0], sizes = [2, 128], strides = [1, 1]} : vector<2x384xf32> to vector<2x128xf32>
    %311 = arith.addf %309, %310 : vector<2x128xf32>
    %312 = arith.negf %311 : vector<2x128xf32>
    %313 = math.exp %312 : vector<2x128xf32>
    %cst_92 = arith.constant 1.000000e+00 : f32
    %314 = vector.broadcast %cst_92 : f32 to vector<2x128xf32>
    %315 = arith.addf %314, %313 : vector<2x128xf32>
    %316 = arith.divf %314, %315 : vector<2x128xf32>
    %317 = vector.extract_strided_slice %306 {offsets = [0, 128], sizes = [2, 128], strides = [1, 1]} : vector<2x384xf32> to vector<2x128xf32>
    %318 = vector.extract_strided_slice %308 {offsets = [0, 128], sizes = [2, 128], strides = [1, 1]} : vector<2x384xf32> to vector<2x128xf32>
    %319 = arith.addf %317, %318 : vector<2x128xf32>
    %320 = arith.negf %319 : vector<2x128xf32>
    %321 = math.exp %320 : vector<2x128xf32>
    %cst_93 = arith.constant 1.000000e+00 : f32
    %322 = vector.broadcast %cst_93 : f32 to vector<2x128xf32>
    %323 = arith.addf %322, %321 : vector<2x128xf32>
    %324 = arith.divf %322, %323 : vector<2x128xf32>
    %325 = vector.extract_strided_slice %306 {offsets = [0, 256], sizes = [2, 128], strides = [1, 1]} : vector<2x384xf32> to vector<2x128xf32>
    %326 = vector.extract_strided_slice %308 {offsets = [0, 256], sizes = [2, 128], strides = [1, 1]} : vector<2x384xf32> to vector<2x128xf32>
    %327 = arith.addf %326, %80 : vector<2x128xf32>
    %328 = arith.mulf %316, %327 : vector<2x128xf32>
    %329 = arith.addf %325, %328 : vector<2x128xf32>
    %330 = math.tanh %329 : vector<2x128xf32>
    %cst_94 = arith.constant 1.000000e+00 : f32
    %331 = vector.broadcast %cst_94 : f32 to vector<2x128xf32>
    %332 = arith.subf %331, %324 : vector<2x128xf32>
    %333 = arith.mulf %332, %330 : vector<2x128xf32>
    %334 = arith.mulf %324, %207 : vector<2x128xf32>
    %335 = arith.addf %333, %334 : vector<2x128xf32>
    %336 = arith.mulf %242, %273 : vector<2x128xf32>
    %337 = arith.maximumf %209, %336 : vector<2x128xf32>
    %338 = arith.mulf %304, %335 : vector<2x128xf32>
    %339 = arith.maximumf %211, %338 : vector<2x128xf32>
    %340 = vector.extract_strided_slice %40 {offsets = [0, 2, 0], sizes = [2, 1, 384], strides = [1, 1, 1]} : vector<2x8x384xf32> to vector<2x1x384xf32>
    %341 = vector.shape_cast %340 : vector<2x1x384xf32> to vector<2x384xf32>
    %342 = arith.truncf %242 : vector<2x128xf32> to vector<2x128xbf16>
    %cst_95 = arith.constant dense<0.000000e+00> : vector<2x384xf32>
    %343 = tpu.matmul %342, %65, %cst_95 {dimension_numbers = #tpu.dot_dimension_numbers<[1], [0], [0], [1], [0, 0, 1, 1], [], []>} : vector<2x128xbf16>, vector<128x384xbf16>, vector<2x384xf32> -> vector<2x384xf32>
    %344 = vector.extract_strided_slice %341 {offsets = [0, 0], sizes = [2, 128], strides = [1, 1]} : vector<2x384xf32> to vector<2x128xf32>
    %345 = vector.extract_strided_slice %343 {offsets = [0, 0], sizes = [2, 128], strides = [1, 1]} : vector<2x384xf32> to vector<2x128xf32>
    %346 = arith.addf %344, %345 : vector<2x128xf32>
    %347 = arith.negf %346 : vector<2x128xf32>
    %348 = math.exp %347 : vector<2x128xf32>
    %cst_96 = arith.constant 1.000000e+00 : f32
    %349 = vector.broadcast %cst_96 : f32 to vector<2x128xf32>
    %350 = arith.addf %349, %348 : vector<2x128xf32>
    %351 = arith.divf %349, %350 : vector<2x128xf32>
    %352 = vector.extract_strided_slice %341 {offsets = [0, 128], sizes = [2, 128], strides = [1, 1]} : vector<2x384xf32> to vector<2x128xf32>
    %353 = vector.extract_strided_slice %343 {offsets = [0, 128], sizes = [2, 128], strides = [1, 1]} : vector<2x384xf32> to vector<2x128xf32>
    %354 = arith.addf %352, %353 : vector<2x128xf32>
    %355 = arith.negf %354 : vector<2x128xf32>
    %356 = math.exp %355 : vector<2x128xf32>
    %cst_97 = arith.constant 1.000000e+00 : f32
    %357 = vector.broadcast %cst_97 : f32 to vector<2x128xf32>
    %358 = arith.addf %357, %356 : vector<2x128xf32>
    %359 = arith.divf %357, %358 : vector<2x128xf32>
    %360 = vector.extract_strided_slice %341 {offsets = [0, 256], sizes = [2, 128], strides = [1, 1]} : vector<2x384xf32> to vector<2x128xf32>
    %361 = vector.extract_strided_slice %343 {offsets = [0, 256], sizes = [2, 128], strides = [1, 1]} : vector<2x384xf32> to vector<2x128xf32>
    %362 = arith.addf %361, %71 : vector<2x128xf32>
    %363 = arith.mulf %351, %362 : vector<2x128xf32>
    %364 = arith.addf %360, %363 : vector<2x128xf32>
    %365 = math.tanh %364 : vector<2x128xf32>
    %cst_98 = arith.constant 1.000000e+00 : f32
    %366 = vector.broadcast %cst_98 : f32 to vector<2x128xf32>
    %367 = arith.subf %366, %359 : vector<2x128xf32>
    %368 = arith.mulf %367, %365 : vector<2x128xf32>
    %369 = arith.mulf %359, %242 : vector<2x128xf32>
    %370 = arith.addf %368, %369 : vector<2x128xf32>
    %371 = vector.extract_strided_slice %55 {offsets = [0, 2, 0], sizes = [2, 1, 384], strides = [1, 1, 1]} : vector<2x8x384xf32> to vector<2x1x384xf32>
    %372 = vector.shape_cast %371 : vector<2x1x384xf32> to vector<2x384xf32>
    %373 = arith.truncf %273 : vector<2x128xf32> to vector<2x128xbf16>
    %cst_99 = arith.constant dense<0.000000e+00> : vector<2x384xf32>
    %374 = tpu.matmul %373, %67, %cst_99 {dimension_numbers = #tpu.dot_dimension_numbers<[1], [0], [0], [1], [0, 0, 1, 1], [], []>} : vector<2x128xbf16>, vector<128x384xbf16>, vector<2x384xf32> -> vector<2x384xf32>
    %375 = vector.extract_strided_slice %372 {offsets = [0, 0], sizes = [2, 128], strides = [1, 1]} : vector<2x384xf32> to vector<2x128xf32>
    %376 = vector.extract_strided_slice %374 {offsets = [0, 0], sizes = [2, 128], strides = [1, 1]} : vector<2x384xf32> to vector<2x128xf32>
    %377 = arith.addf %375, %376 : vector<2x128xf32>
    %378 = arith.negf %377 : vector<2x128xf32>
    %379 = math.exp %378 : vector<2x128xf32>
    %cst_100 = arith.constant 1.000000e+00 : f32
    %380 = vector.broadcast %cst_100 : f32 to vector<2x128xf32>
    %381 = arith.addf %380, %379 : vector<2x128xf32>
    %382 = arith.divf %380, %381 : vector<2x128xf32>
    %383 = vector.extract_strided_slice %372 {offsets = [0, 128], sizes = [2, 128], strides = [1, 1]} : vector<2x384xf32> to vector<2x128xf32>
    %384 = vector.extract_strided_slice %374 {offsets = [0, 128], sizes = [2, 128], strides = [1, 1]} : vector<2x384xf32> to vector<2x128xf32>
    %385 = arith.addf %383, %384 : vector<2x128xf32>
    %386 = arith.negf %385 : vector<2x128xf32>
    %387 = math.exp %386 : vector<2x128xf32>
    %cst_101 = arith.constant 1.000000e+00 : f32
    %388 = vector.broadcast %cst_101 : f32 to vector<2x128xf32>
    %389 = arith.addf %388, %387 : vector<2x128xf32>
    %390 = arith.divf %388, %389 : vector<2x128xf32>
    %391 = vector.extract_strided_slice %372 {offsets = [0, 256], sizes = [2, 128], strides = [1, 1]} : vector<2x384xf32> to vector<2x128xf32>
    %392 = vector.extract_strided_slice %374 {offsets = [0, 256], sizes = [2, 128], strides = [1, 1]} : vector<2x384xf32> to vector<2x128xf32>
    %393 = arith.addf %392, %77 : vector<2x128xf32>
    %394 = arith.mulf %382, %393 : vector<2x128xf32>
    %395 = arith.addf %391, %394 : vector<2x128xf32>
    %396 = math.tanh %395 : vector<2x128xf32>
    %cst_102 = arith.constant 1.000000e+00 : f32
    %397 = vector.broadcast %cst_102 : f32 to vector<2x128xf32>
    %398 = arith.subf %397, %390 : vector<2x128xf32>
    %399 = arith.mulf %398, %396 : vector<2x128xf32>
    %400 = arith.mulf %390, %273 : vector<2x128xf32>
    %401 = arith.addf %399, %400 : vector<2x128xf32>
    %402 = vector.extract_strided_slice %46 {offsets = [0, 5, 0], sizes = [2, 1, 384], strides = [1, 1, 1]} : vector<2x8x384xf32> to vector<2x1x384xf32>
    %403 = vector.shape_cast %402 : vector<2x1x384xf32> to vector<2x384xf32>
    %404 = arith.truncf %304 : vector<2x128xf32> to vector<2x128xbf16>
    %cst_103 = arith.constant dense<0.000000e+00> : vector<2x384xf32>
    %405 = tpu.matmul %404, %66, %cst_103 {dimension_numbers = #tpu.dot_dimension_numbers<[1], [0], [0], [1], [0, 0, 1, 1], [], []>} : vector<2x128xbf16>, vector<128x384xbf16>, vector<2x384xf32> -> vector<2x384xf32>
    %406 = vector.extract_strided_slice %403 {offsets = [0, 0], sizes = [2, 128], strides = [1, 1]} : vector<2x384xf32> to vector<2x128xf32>
    %407 = vector.extract_strided_slice %405 {offsets = [0, 0], sizes = [2, 128], strides = [1, 1]} : vector<2x384xf32> to vector<2x128xf32>
    %408 = arith.addf %406, %407 : vector<2x128xf32>
    %409 = arith.negf %408 : vector<2x128xf32>
    %410 = math.exp %409 : vector<2x128xf32>
    %cst_104 = arith.constant 1.000000e+00 : f32
    %411 = vector.broadcast %cst_104 : f32 to vector<2x128xf32>
    %412 = arith.addf %411, %410 : vector<2x128xf32>
    %413 = arith.divf %411, %412 : vector<2x128xf32>
    %414 = vector.extract_strided_slice %403 {offsets = [0, 128], sizes = [2, 128], strides = [1, 1]} : vector<2x384xf32> to vector<2x128xf32>
    %415 = vector.extract_strided_slice %405 {offsets = [0, 128], sizes = [2, 128], strides = [1, 1]} : vector<2x384xf32> to vector<2x128xf32>
    %416 = arith.addf %414, %415 : vector<2x128xf32>
    %417 = arith.negf %416 : vector<2x128xf32>
    %418 = math.exp %417 : vector<2x128xf32>
    %cst_105 = arith.constant 1.000000e+00 : f32
    %419 = vector.broadcast %cst_105 : f32 to vector<2x128xf32>
    %420 = arith.addf %419, %418 : vector<2x128xf32>
    %421 = arith.divf %419, %420 : vector<2x128xf32>
    %422 = vector.extract_strided_slice %403 {offsets = [0, 256], sizes = [2, 128], strides = [1, 1]} : vector<2x384xf32> to vector<2x128xf32>
    %423 = vector.extract_strided_slice %405 {offsets = [0, 256], sizes = [2, 128], strides = [1, 1]} : vector<2x384xf32> to vector<2x128xf32>
    %424 = arith.addf %423, %74 : vector<2x128xf32>
    %425 = arith.mulf %413, %424 : vector<2x128xf32>
    %426 = arith.addf %422, %425 : vector<2x128xf32>
    %427 = math.tanh %426 : vector<2x128xf32>
    %cst_106 = arith.constant 1.000000e+00 : f32
    %428 = vector.broadcast %cst_106 : f32 to vector<2x128xf32>
    %429 = arith.subf %428, %421 : vector<2x128xf32>
    %430 = arith.mulf %429, %427 : vector<2x128xf32>
    %431 = arith.mulf %421, %304 : vector<2x128xf32>
    %432 = arith.addf %430, %431 : vector<2x128xf32>
    %433 = vector.extract_strided_slice %64 {offsets = [0, 5, 0], sizes = [2, 1, 384], strides = [1, 1, 1]} : vector<2x8x384xf32> to vector<2x1x384xf32>
    %434 = vector.shape_cast %433 : vector<2x1x384xf32> to vector<2x384xf32>
    %435 = arith.truncf %335 : vector<2x128xf32> to vector<2x128xbf16>
    %cst_107 = arith.constant dense<0.000000e+00> : vector<2x384xf32>
    %436 = tpu.matmul %435, %68, %cst_107 {dimension_numbers = #tpu.dot_dimension_numbers<[1], [0], [0], [1], [0, 0, 1, 1], [], []>} : vector<2x128xbf16>, vector<128x384xbf16>, vector<2x384xf32> -> vector<2x384xf32>
    %437 = vector.extract_strided_slice %434 {offsets = [0, 0], sizes = [2, 128], strides = [1, 1]} : vector<2x384xf32> to vector<2x128xf32>
    %438 = vector.extract_strided_slice %436 {offsets = [0, 0], sizes = [2, 128], strides = [1, 1]} : vector<2x384xf32> to vector<2x128xf32>
    %439 = arith.addf %437, %438 : vector<2x128xf32>
    %440 = arith.negf %439 : vector<2x128xf32>
    %441 = math.exp %440 : vector<2x128xf32>
    %cst_108 = arith.constant 1.000000e+00 : f32
    %442 = vector.broadcast %cst_108 : f32 to vector<2x128xf32>
    %443 = arith.addf %442, %441 : vector<2x128xf32>
    %444 = arith.divf %442, %443 : vector<2x128xf32>
    %445 = vector.extract_strided_slice %434 {offsets = [0, 128], sizes = [2, 128], strides = [1, 1]} : vector<2x384xf32> to vector<2x128xf32>
    %446 = vector.extract_strided_slice %436 {offsets = [0, 128], sizes = [2, 128], strides = [1, 1]} : vector<2x384xf32> to vector<2x128xf32>
    %447 = arith.addf %445, %446 : vector<2x128xf32>
    %448 = arith.negf %447 : vector<2x128xf32>
    %449 = math.exp %448 : vector<2x128xf32>
    %cst_109 = arith.constant 1.000000e+00 : f32
    %450 = vector.broadcast %cst_109 : f32 to vector<2x128xf32>
    %451 = arith.addf %450, %449 : vector<2x128xf32>
    %452 = arith.divf %450, %451 : vector<2x128xf32>
    %453 = vector.extract_strided_slice %434 {offsets = [0, 256], sizes = [2, 128], strides = [1, 1]} : vector<2x384xf32> to vector<2x128xf32>
    %454 = vector.extract_strided_slice %436 {offsets = [0, 256], sizes = [2, 128], strides = [1, 1]} : vector<2x384xf32> to vector<2x128xf32>
    %455 = arith.addf %454, %80 : vector<2x128xf32>
    %456 = arith.mulf %444, %455 : vector<2x128xf32>
    %457 = arith.addf %453, %456 : vector<2x128xf32>
    %458 = math.tanh %457 : vector<2x128xf32>
    %cst_110 = arith.constant 1.000000e+00 : f32
    %459 = vector.broadcast %cst_110 : f32 to vector<2x128xf32>
    %460 = arith.subf %459, %452 : vector<2x128xf32>
    %461 = arith.mulf %460, %458 : vector<2x128xf32>
    %462 = arith.mulf %452, %335 : vector<2x128xf32>
    %463 = arith.addf %461, %462 : vector<2x128xf32>
    %464 = arith.mulf %370, %401 : vector<2x128xf32>
    %465 = arith.maximumf %337, %464 : vector<2x128xf32>
    %466 = arith.mulf %432, %463 : vector<2x128xf32>
    %467 = arith.maximumf %339, %466 : vector<2x128xf32>
    %468 = vector.extract_strided_slice %40 {offsets = [0, 3, 0], sizes = [2, 1, 384], strides = [1, 1, 1]} : vector<2x8x384xf32> to vector<2x1x384xf32>
    %469 = vector.shape_cast %468 : vector<2x1x384xf32> to vector<2x384xf32>
    %470 = arith.truncf %370 : vector<2x128xf32> to vector<2x128xbf16>
    %cst_111 = arith.constant dense<0.000000e+00> : vector<2x384xf32>
    %471 = tpu.matmul %470, %65, %cst_111 {dimension_numbers = #tpu.dot_dimension_numbers<[1], [0], [0], [1], [0, 0, 1, 1], [], []>} : vector<2x128xbf16>, vector<128x384xbf16>, vector<2x384xf32> -> vector<2x384xf32>
    %472 = vector.extract_strided_slice %469 {offsets = [0, 0], sizes = [2, 128], strides = [1, 1]} : vector<2x384xf32> to vector<2x128xf32>
    %473 = vector.extract_strided_slice %471 {offsets = [0, 0], sizes = [2, 128], strides = [1, 1]} : vector<2x384xf32> to vector<2x128xf32>
    %474 = arith.addf %472, %473 : vector<2x128xf32>
    %475 = arith.negf %474 : vector<2x128xf32>
    %476 = math.exp %475 : vector<2x128xf32>
    %cst_112 = arith.constant 1.000000e+00 : f32
    %477 = vector.broadcast %cst_112 : f32 to vector<2x128xf32>
    %478 = arith.addf %477, %476 : vector<2x128xf32>
    %479 = arith.divf %477, %478 : vector<2x128xf32>
    %480 = vector.extract_strided_slice %469 {offsets = [0, 128], sizes = [2, 128], strides = [1, 1]} : vector<2x384xf32> to vector<2x128xf32>
    %481 = vector.extract_strided_slice %471 {offsets = [0, 128], sizes = [2, 128], strides = [1, 1]} : vector<2x384xf32> to vector<2x128xf32>
    %482 = arith.addf %480, %481 : vector<2x128xf32>
    %483 = arith.negf %482 : vector<2x128xf32>
    %484 = math.exp %483 : vector<2x128xf32>
    %cst_113 = arith.constant 1.000000e+00 : f32
    %485 = vector.broadcast %cst_113 : f32 to vector<2x128xf32>
    %486 = arith.addf %485, %484 : vector<2x128xf32>
    %487 = arith.divf %485, %486 : vector<2x128xf32>
    %488 = vector.extract_strided_slice %469 {offsets = [0, 256], sizes = [2, 128], strides = [1, 1]} : vector<2x384xf32> to vector<2x128xf32>
    %489 = vector.extract_strided_slice %471 {offsets = [0, 256], sizes = [2, 128], strides = [1, 1]} : vector<2x384xf32> to vector<2x128xf32>
    %490 = arith.addf %489, %71 : vector<2x128xf32>
    %491 = arith.mulf %479, %490 : vector<2x128xf32>
    %492 = arith.addf %488, %491 : vector<2x128xf32>
    %493 = math.tanh %492 : vector<2x128xf32>
    %cst_114 = arith.constant 1.000000e+00 : f32
    %494 = vector.broadcast %cst_114 : f32 to vector<2x128xf32>
    %495 = arith.subf %494, %487 : vector<2x128xf32>
    %496 = arith.mulf %495, %493 : vector<2x128xf32>
    %497 = arith.mulf %487, %370 : vector<2x128xf32>
    %498 = arith.addf %496, %497 : vector<2x128xf32>
    %499 = vector.extract_strided_slice %55 {offsets = [0, 3, 0], sizes = [2, 1, 384], strides = [1, 1, 1]} : vector<2x8x384xf32> to vector<2x1x384xf32>
    %500 = vector.shape_cast %499 : vector<2x1x384xf32> to vector<2x384xf32>
    %501 = arith.truncf %401 : vector<2x128xf32> to vector<2x128xbf16>
    %cst_115 = arith.constant dense<0.000000e+00> : vector<2x384xf32>
    %502 = tpu.matmul %501, %67, %cst_115 {dimension_numbers = #tpu.dot_dimension_numbers<[1], [0], [0], [1], [0, 0, 1, 1], [], []>} : vector<2x128xbf16>, vector<128x384xbf16>, vector<2x384xf32> -> vector<2x384xf32>
    %503 = vector.extract_strided_slice %500 {offsets = [0, 0], sizes = [2, 128], strides = [1, 1]} : vector<2x384xf32> to vector<2x128xf32>
    %504 = vector.extract_strided_slice %502 {offsets = [0, 0], sizes = [2, 128], strides = [1, 1]} : vector<2x384xf32> to vector<2x128xf32>
    %505 = arith.addf %503, %504 : vector<2x128xf32>
    %506 = arith.negf %505 : vector<2x128xf32>
    %507 = math.exp %506 : vector<2x128xf32>
    %cst_116 = arith.constant 1.000000e+00 : f32
    %508 = vector.broadcast %cst_116 : f32 to vector<2x128xf32>
    %509 = arith.addf %508, %507 : vector<2x128xf32>
    %510 = arith.divf %508, %509 : vector<2x128xf32>
    %511 = vector.extract_strided_slice %500 {offsets = [0, 128], sizes = [2, 128], strides = [1, 1]} : vector<2x384xf32> to vector<2x128xf32>
    %512 = vector.extract_strided_slice %502 {offsets = [0, 128], sizes = [2, 128], strides = [1, 1]} : vector<2x384xf32> to vector<2x128xf32>
    %513 = arith.addf %511, %512 : vector<2x128xf32>
    %514 = arith.negf %513 : vector<2x128xf32>
    %515 = math.exp %514 : vector<2x128xf32>
    %cst_117 = arith.constant 1.000000e+00 : f32
    %516 = vector.broadcast %cst_117 : f32 to vector<2x128xf32>
    %517 = arith.addf %516, %515 : vector<2x128xf32>
    %518 = arith.divf %516, %517 : vector<2x128xf32>
    %519 = vector.extract_strided_slice %500 {offsets = [0, 256], sizes = [2, 128], strides = [1, 1]} : vector<2x384xf32> to vector<2x128xf32>
    %520 = vector.extract_strided_slice %502 {offsets = [0, 256], sizes = [2, 128], strides = [1, 1]} : vector<2x384xf32> to vector<2x128xf32>
    %521 = arith.addf %520, %77 : vector<2x128xf32>
    %522 = arith.mulf %510, %521 : vector<2x128xf32>
    %523 = arith.addf %519, %522 : vector<2x128xf32>
    %524 = math.tanh %523 : vector<2x128xf32>
    %cst_118 = arith.constant 1.000000e+00 : f32
    %525 = vector.broadcast %cst_118 : f32 to vector<2x128xf32>
    %526 = arith.subf %525, %518 : vector<2x128xf32>
    %527 = arith.mulf %526, %524 : vector<2x128xf32>
    %528 = arith.mulf %518, %401 : vector<2x128xf32>
    %529 = arith.addf %527, %528 : vector<2x128xf32>
    %530 = vector.extract_strided_slice %46 {offsets = [0, 4, 0], sizes = [2, 1, 384], strides = [1, 1, 1]} : vector<2x8x384xf32> to vector<2x1x384xf32>
    %531 = vector.shape_cast %530 : vector<2x1x384xf32> to vector<2x384xf32>
    %532 = arith.truncf %432 : vector<2x128xf32> to vector<2x128xbf16>
    %cst_119 = arith.constant dense<0.000000e+00> : vector<2x384xf32>
    %533 = tpu.matmul %532, %66, %cst_119 {dimension_numbers = #tpu.dot_dimension_numbers<[1], [0], [0], [1], [0, 0, 1, 1], [], []>} : vector<2x128xbf16>, vector<128x384xbf16>, vector<2x384xf32> -> vector<2x384xf32>
    %534 = vector.extract_strided_slice %531 {offsets = [0, 0], sizes = [2, 128], strides = [1, 1]} : vector<2x384xf32> to vector<2x128xf32>
    %535 = vector.extract_strided_slice %533 {offsets = [0, 0], sizes = [2, 128], strides = [1, 1]} : vector<2x384xf32> to vector<2x128xf32>
    %536 = arith.addf %534, %535 : vector<2x128xf32>
    %537 = arith.negf %536 : vector<2x128xf32>
    %538 = math.exp %537 : vector<2x128xf32>
    %cst_120 = arith.constant 1.000000e+00 : f32
    %539 = vector.broadcast %cst_120 : f32 to vector<2x128xf32>
    %540 = arith.addf %539, %538 : vector<2x128xf32>
    %541 = arith.divf %539, %540 : vector<2x128xf32>
    %542 = vector.extract_strided_slice %531 {offsets = [0, 128], sizes = [2, 128], strides = [1, 1]} : vector<2x384xf32> to vector<2x128xf32>
    %543 = vector.extract_strided_slice %533 {offsets = [0, 128], sizes = [2, 128], strides = [1, 1]} : vector<2x384xf32> to vector<2x128xf32>
    %544 = arith.addf %542, %543 : vector<2x128xf32>
    %545 = arith.negf %544 : vector<2x128xf32>
    %546 = math.exp %545 : vector<2x128xf32>
    %cst_121 = arith.constant 1.000000e+00 : f32
    %547 = vector.broadcast %cst_121 : f32 to vector<2x128xf32>
    %548 = arith.addf %547, %546 : vector<2x128xf32>
    %549 = arith.divf %547, %548 : vector<2x128xf32>
    %550 = vector.extract_strided_slice %531 {offsets = [0, 256], sizes = [2, 128], strides = [1, 1]} : vector<2x384xf32> to vector<2x128xf32>
    %551 = vector.extract_strided_slice %533 {offsets = [0, 256], sizes = [2, 128], strides = [1, 1]} : vector<2x384xf32> to vector<2x128xf32>
    %552 = arith.addf %551, %74 : vector<2x128xf32>
    %553 = arith.mulf %541, %552 : vector<2x128xf32>
    %554 = arith.addf %550, %553 : vector<2x128xf32>
    %555 = math.tanh %554 : vector<2x128xf32>
    %cst_122 = arith.constant 1.000000e+00 : f32
    %556 = vector.broadcast %cst_122 : f32 to vector<2x128xf32>
    %557 = arith.subf %556, %549 : vector<2x128xf32>
    %558 = arith.mulf %557, %555 : vector<2x128xf32>
    %559 = arith.mulf %549, %432 : vector<2x128xf32>
    %560 = arith.addf %558, %559 : vector<2x128xf32>
    %561 = vector.extract_strided_slice %64 {offsets = [0, 4, 0], sizes = [2, 1, 384], strides = [1, 1, 1]} : vector<2x8x384xf32> to vector<2x1x384xf32>
    %562 = vector.shape_cast %561 : vector<2x1x384xf32> to vector<2x384xf32>
    %563 = arith.truncf %463 : vector<2x128xf32> to vector<2x128xbf16>
    %cst_123 = arith.constant dense<0.000000e+00> : vector<2x384xf32>
    %564 = tpu.matmul %563, %68, %cst_123 {dimension_numbers = #tpu.dot_dimension_numbers<[1], [0], [0], [1], [0, 0, 1, 1], [], []>} : vector<2x128xbf16>, vector<128x384xbf16>, vector<2x384xf32> -> vector<2x384xf32>
    %565 = vector.extract_strided_slice %562 {offsets = [0, 0], sizes = [2, 128], strides = [1, 1]} : vector<2x384xf32> to vector<2x128xf32>
    %566 = vector.extract_strided_slice %564 {offsets = [0, 0], sizes = [2, 128], strides = [1, 1]} : vector<2x384xf32> to vector<2x128xf32>
    %567 = arith.addf %565, %566 : vector<2x128xf32>
    %568 = arith.negf %567 : vector<2x128xf32>
    %569 = math.exp %568 : vector<2x128xf32>
    %cst_124 = arith.constant 1.000000e+00 : f32
    %570 = vector.broadcast %cst_124 : f32 to vector<2x128xf32>
    %571 = arith.addf %570, %569 : vector<2x128xf32>
    %572 = arith.divf %570, %571 : vector<2x128xf32>
    %573 = vector.extract_strided_slice %562 {offsets = [0, 128], sizes = [2, 128], strides = [1, 1]} : vector<2x384xf32> to vector<2x128xf32>
    %574 = vector.extract_strided_slice %564 {offsets = [0, 128], sizes = [2, 128], strides = [1, 1]} : vector<2x384xf32> to vector<2x128xf32>
    %575 = arith.addf %573, %574 : vector<2x128xf32>
    %576 = arith.negf %575 : vector<2x128xf32>
    %577 = math.exp %576 : vector<2x128xf32>
    %cst_125 = arith.constant 1.000000e+00 : f32
    %578 = vector.broadcast %cst_125 : f32 to vector<2x128xf32>
    %579 = arith.addf %578, %577 : vector<2x128xf32>
    %580 = arith.divf %578, %579 : vector<2x128xf32>
    %581 = vector.extract_strided_slice %562 {offsets = [0, 256], sizes = [2, 128], strides = [1, 1]} : vector<2x384xf32> to vector<2x128xf32>
    %582 = vector.extract_strided_slice %564 {offsets = [0, 256], sizes = [2, 128], strides = [1, 1]} : vector<2x384xf32> to vector<2x128xf32>
    %583 = arith.addf %582, %80 : vector<2x128xf32>
    %584 = arith.mulf %572, %583 : vector<2x128xf32>
    %585 = arith.addf %581, %584 : vector<2x128xf32>
    %586 = math.tanh %585 : vector<2x128xf32>
    %cst_126 = arith.constant 1.000000e+00 : f32
    %587 = vector.broadcast %cst_126 : f32 to vector<2x128xf32>
    %588 = arith.subf %587, %580 : vector<2x128xf32>
    %589 = arith.mulf %588, %586 : vector<2x128xf32>
    %590 = arith.mulf %580, %463 : vector<2x128xf32>
    %591 = arith.addf %589, %590 : vector<2x128xf32>
    %592 = arith.mulf %498, %529 : vector<2x128xf32>
    %593 = arith.maximumf %465, %592 : vector<2x128xf32>
    %594 = arith.mulf %560, %591 : vector<2x128xf32>
    %595 = arith.maximumf %467, %594 : vector<2x128xf32>
    %596 = vector.extract_strided_slice %40 {offsets = [0, 4, 0], sizes = [2, 1, 384], strides = [1, 1, 1]} : vector<2x8x384xf32> to vector<2x1x384xf32>
    %597 = vector.shape_cast %596 : vector<2x1x384xf32> to vector<2x384xf32>
    %598 = arith.truncf %498 : vector<2x128xf32> to vector<2x128xbf16>
    %cst_127 = arith.constant dense<0.000000e+00> : vector<2x384xf32>
    %599 = tpu.matmul %598, %65, %cst_127 {dimension_numbers = #tpu.dot_dimension_numbers<[1], [0], [0], [1], [0, 0, 1, 1], [], []>} : vector<2x128xbf16>, vector<128x384xbf16>, vector<2x384xf32> -> vector<2x384xf32>
    %600 = vector.extract_strided_slice %597 {offsets = [0, 0], sizes = [2, 128], strides = [1, 1]} : vector<2x384xf32> to vector<2x128xf32>
    %601 = vector.extract_strided_slice %599 {offsets = [0, 0], sizes = [2, 128], strides = [1, 1]} : vector<2x384xf32> to vector<2x128xf32>
    %602 = arith.addf %600, %601 : vector<2x128xf32>
    %603 = arith.negf %602 : vector<2x128xf32>
    %604 = math.exp %603 : vector<2x128xf32>
    %cst_128 = arith.constant 1.000000e+00 : f32
    %605 = vector.broadcast %cst_128 : f32 to vector<2x128xf32>
    %606 = arith.addf %605, %604 : vector<2x128xf32>
    %607 = arith.divf %605, %606 : vector<2x128xf32>
    %608 = vector.extract_strided_slice %597 {offsets = [0, 128], sizes = [2, 128], strides = [1, 1]} : vector<2x384xf32> to vector<2x128xf32>
    %609 = vector.extract_strided_slice %599 {offsets = [0, 128], sizes = [2, 128], strides = [1, 1]} : vector<2x384xf32> to vector<2x128xf32>
    %610 = arith.addf %608, %609 : vector<2x128xf32>
    %611 = arith.negf %610 : vector<2x128xf32>
    %612 = math.exp %611 : vector<2x128xf32>
    %cst_129 = arith.constant 1.000000e+00 : f32
    %613 = vector.broadcast %cst_129 : f32 to vector<2x128xf32>
    %614 = arith.addf %613, %612 : vector<2x128xf32>
    %615 = arith.divf %613, %614 : vector<2x128xf32>
    %616 = vector.extract_strided_slice %597 {offsets = [0, 256], sizes = [2, 128], strides = [1, 1]} : vector<2x384xf32> to vector<2x128xf32>
    %617 = vector.extract_strided_slice %599 {offsets = [0, 256], sizes = [2, 128], strides = [1, 1]} : vector<2x384xf32> to vector<2x128xf32>
    %618 = arith.addf %617, %71 : vector<2x128xf32>
    %619 = arith.mulf %607, %618 : vector<2x128xf32>
    %620 = arith.addf %616, %619 : vector<2x128xf32>
    %621 = math.tanh %620 : vector<2x128xf32>
    %cst_130 = arith.constant 1.000000e+00 : f32
    %622 = vector.broadcast %cst_130 : f32 to vector<2x128xf32>
    %623 = arith.subf %622, %615 : vector<2x128xf32>
    %624 = arith.mulf %623, %621 : vector<2x128xf32>
    %625 = arith.mulf %615, %498 : vector<2x128xf32>
    %626 = arith.addf %624, %625 : vector<2x128xf32>
    %627 = vector.extract_strided_slice %55 {offsets = [0, 4, 0], sizes = [2, 1, 384], strides = [1, 1, 1]} : vector<2x8x384xf32> to vector<2x1x384xf32>
    %628 = vector.shape_cast %627 : vector<2x1x384xf32> to vector<2x384xf32>
    %629 = arith.truncf %529 : vector<2x128xf32> to vector<2x128xbf16>
    %cst_131 = arith.constant dense<0.000000e+00> : vector<2x384xf32>
    %630 = tpu.matmul %629, %67, %cst_131 {dimension_numbers = #tpu.dot_dimension_numbers<[1], [0], [0], [1], [0, 0, 1, 1], [], []>} : vector<2x128xbf16>, vector<128x384xbf16>, vector<2x384xf32> -> vector<2x384xf32>
    %631 = vector.extract_strided_slice %628 {offsets = [0, 0], sizes = [2, 128], strides = [1, 1]} : vector<2x384xf32> to vector<2x128xf32>
    %632 = vector.extract_strided_slice %630 {offsets = [0, 0], sizes = [2, 128], strides = [1, 1]} : vector<2x384xf32> to vector<2x128xf32>
    %633 = arith.addf %631, %632 : vector<2x128xf32>
    %634 = arith.negf %633 : vector<2x128xf32>
    %635 = math.exp %634 : vector<2x128xf32>
    %cst_132 = arith.constant 1.000000e+00 : f32
    %636 = vector.broadcast %cst_132 : f32 to vector<2x128xf32>
    %637 = arith.addf %636, %635 : vector<2x128xf32>
    %638 = arith.divf %636, %637 : vector<2x128xf32>
    %639 = vector.extract_strided_slice %628 {offsets = [0, 128], sizes = [2, 128], strides = [1, 1]} : vector<2x384xf32> to vector<2x128xf32>
    %640 = vector.extract_strided_slice %630 {offsets = [0, 128], sizes = [2, 128], strides = [1, 1]} : vector<2x384xf32> to vector<2x128xf32>
    %641 = arith.addf %639, %640 : vector<2x128xf32>
    %642 = arith.negf %641 : vector<2x128xf32>
    %643 = math.exp %642 : vector<2x128xf32>
    %cst_133 = arith.constant 1.000000e+00 : f32
    %644 = vector.broadcast %cst_133 : f32 to vector<2x128xf32>
    %645 = arith.addf %644, %643 : vector<2x128xf32>
    %646 = arith.divf %644, %645 : vector<2x128xf32>
    %647 = vector.extract_strided_slice %628 {offsets = [0, 256], sizes = [2, 128], strides = [1, 1]} : vector<2x384xf32> to vector<2x128xf32>
    %648 = vector.extract_strided_slice %630 {offsets = [0, 256], sizes = [2, 128], strides = [1, 1]} : vector<2x384xf32> to vector<2x128xf32>
    %649 = arith.addf %648, %77 : vector<2x128xf32>
    %650 = arith.mulf %638, %649 : vector<2x128xf32>
    %651 = arith.addf %647, %650 : vector<2x128xf32>
    %652 = math.tanh %651 : vector<2x128xf32>
    %cst_134 = arith.constant 1.000000e+00 : f32
    %653 = vector.broadcast %cst_134 : f32 to vector<2x128xf32>
    %654 = arith.subf %653, %646 : vector<2x128xf32>
    %655 = arith.mulf %654, %652 : vector<2x128xf32>
    %656 = arith.mulf %646, %529 : vector<2x128xf32>
    %657 = arith.addf %655, %656 : vector<2x128xf32>
    %658 = vector.extract_strided_slice %46 {offsets = [0, 3, 0], sizes = [2, 1, 384], strides = [1, 1, 1]} : vector<2x8x384xf32> to vector<2x1x384xf32>
    %659 = vector.shape_cast %658 : vector<2x1x384xf32> to vector<2x384xf32>
    %660 = arith.truncf %560 : vector<2x128xf32> to vector<2x128xbf16>
    %cst_135 = arith.constant dense<0.000000e+00> : vector<2x384xf32>
    %661 = tpu.matmul %660, %66, %cst_135 {dimension_numbers = #tpu.dot_dimension_numbers<[1], [0], [0], [1], [0, 0, 1, 1], [], []>} : vector<2x128xbf16>, vector<128x384xbf16>, vector<2x384xf32> -> vector<2x384xf32>
    %662 = vector.extract_strided_slice %659 {offsets = [0, 0], sizes = [2, 128], strides = [1, 1]} : vector<2x384xf32> to vector<2x128xf32>
    %663 = vector.extract_strided_slice %661 {offsets = [0, 0], sizes = [2, 128], strides = [1, 1]} : vector<2x384xf32> to vector<2x128xf32>
    %664 = arith.addf %662, %663 : vector<2x128xf32>
    %665 = arith.negf %664 : vector<2x128xf32>
    %666 = math.exp %665 : vector<2x128xf32>
    %cst_136 = arith.constant 1.000000e+00 : f32
    %667 = vector.broadcast %cst_136 : f32 to vector<2x128xf32>
    %668 = arith.addf %667, %666 : vector<2x128xf32>
    %669 = arith.divf %667, %668 : vector<2x128xf32>
    %670 = vector.extract_strided_slice %659 {offsets = [0, 128], sizes = [2, 128], strides = [1, 1]} : vector<2x384xf32> to vector<2x128xf32>
    %671 = vector.extract_strided_slice %661 {offsets = [0, 128], sizes = [2, 128], strides = [1, 1]} : vector<2x384xf32> to vector<2x128xf32>
    %672 = arith.addf %670, %671 : vector<2x128xf32>
    %673 = arith.negf %672 : vector<2x128xf32>
    %674 = math.exp %673 : vector<2x128xf32>
    %cst_137 = arith.constant 1.000000e+00 : f32
    %675 = vector.broadcast %cst_137 : f32 to vector<2x128xf32>
    %676 = arith.addf %675, %674 : vector<2x128xf32>
    %677 = arith.divf %675, %676 : vector<2x128xf32>
    %678 = vector.extract_strided_slice %659 {offsets = [0, 256], sizes = [2, 128], strides = [1, 1]} : vector<2x384xf32> to vector<2x128xf32>
    %679 = vector.extract_strided_slice %661 {offsets = [0, 256], sizes = [2, 128], strides = [1, 1]} : vector<2x384xf32> to vector<2x128xf32>
    %680 = arith.addf %679, %74 : vector<2x128xf32>
    %681 = arith.mulf %669, %680 : vector<2x128xf32>
    %682 = arith.addf %678, %681 : vector<2x128xf32>
    %683 = math.tanh %682 : vector<2x128xf32>
    %cst_138 = arith.constant 1.000000e+00 : f32
    %684 = vector.broadcast %cst_138 : f32 to vector<2x128xf32>
    %685 = arith.subf %684, %677 : vector<2x128xf32>
    %686 = arith.mulf %685, %683 : vector<2x128xf32>
    %687 = arith.mulf %677, %560 : vector<2x128xf32>
    %688 = arith.addf %686, %687 : vector<2x128xf32>
    %689 = vector.extract_strided_slice %64 {offsets = [0, 3, 0], sizes = [2, 1, 384], strides = [1, 1, 1]} : vector<2x8x384xf32> to vector<2x1x384xf32>
    %690 = vector.shape_cast %689 : vector<2x1x384xf32> to vector<2x384xf32>
    %691 = arith.truncf %591 : vector<2x128xf32> to vector<2x128xbf16>
    %cst_139 = arith.constant dense<0.000000e+00> : vector<2x384xf32>
    %692 = tpu.matmul %691, %68, %cst_139 {dimension_numbers = #tpu.dot_dimension_numbers<[1], [0], [0], [1], [0, 0, 1, 1], [], []>} : vector<2x128xbf16>, vector<128x384xbf16>, vector<2x384xf32> -> vector<2x384xf32>
    %693 = vector.extract_strided_slice %690 {offsets = [0, 0], sizes = [2, 128], strides = [1, 1]} : vector<2x384xf32> to vector<2x128xf32>
    %694 = vector.extract_strided_slice %692 {offsets = [0, 0], sizes = [2, 128], strides = [1, 1]} : vector<2x384xf32> to vector<2x128xf32>
    %695 = arith.addf %693, %694 : vector<2x128xf32>
    %696 = arith.negf %695 : vector<2x128xf32>
    %697 = math.exp %696 : vector<2x128xf32>
    %cst_140 = arith.constant 1.000000e+00 : f32
    %698 = vector.broadcast %cst_140 : f32 to vector<2x128xf32>
    %699 = arith.addf %698, %697 : vector<2x128xf32>
    %700 = arith.divf %698, %699 : vector<2x128xf32>
    %701 = vector.extract_strided_slice %690 {offsets = [0, 128], sizes = [2, 128], strides = [1, 1]} : vector<2x384xf32> to vector<2x128xf32>
    %702 = vector.extract_strided_slice %692 {offsets = [0, 128], sizes = [2, 128], strides = [1, 1]} : vector<2x384xf32> to vector<2x128xf32>
    %703 = arith.addf %701, %702 : vector<2x128xf32>
    %704 = arith.negf %703 : vector<2x128xf32>
    %705 = math.exp %704 : vector<2x128xf32>
    %cst_141 = arith.constant 1.000000e+00 : f32
    %706 = vector.broadcast %cst_141 : f32 to vector<2x128xf32>
    %707 = arith.addf %706, %705 : vector<2x128xf32>
    %708 = arith.divf %706, %707 : vector<2x128xf32>
    %709 = vector.extract_strided_slice %690 {offsets = [0, 256], sizes = [2, 128], strides = [1, 1]} : vector<2x384xf32> to vector<2x128xf32>
    %710 = vector.extract_strided_slice %692 {offsets = [0, 256], sizes = [2, 128], strides = [1, 1]} : vector<2x384xf32> to vector<2x128xf32>
    %711 = arith.addf %710, %80 : vector<2x128xf32>
    %712 = arith.mulf %700, %711 : vector<2x128xf32>
    %713 = arith.addf %709, %712 : vector<2x128xf32>
    %714 = math.tanh %713 : vector<2x128xf32>
    %cst_142 = arith.constant 1.000000e+00 : f32
    %715 = vector.broadcast %cst_142 : f32 to vector<2x128xf32>
    %716 = arith.subf %715, %708 : vector<2x128xf32>
    %717 = arith.mulf %716, %714 : vector<2x128xf32>
    %718 = arith.mulf %708, %591 : vector<2x128xf32>
    %719 = arith.addf %717, %718 : vector<2x128xf32>
    %720 = arith.mulf %626, %657 : vector<2x128xf32>
    %721 = arith.maximumf %593, %720 : vector<2x128xf32>
    %722 = arith.mulf %688, %719 : vector<2x128xf32>
    %723 = arith.maximumf %595, %722 : vector<2x128xf32>
    %724 = vector.extract_strided_slice %40 {offsets = [0, 5, 0], sizes = [2, 1, 384], strides = [1, 1, 1]} : vector<2x8x384xf32> to vector<2x1x384xf32>
    %725 = vector.shape_cast %724 : vector<2x1x384xf32> to vector<2x384xf32>
    %726 = arith.truncf %626 : vector<2x128xf32> to vector<2x128xbf16>
    %cst_143 = arith.constant dense<0.000000e+00> : vector<2x384xf32>
    %727 = tpu.matmul %726, %65, %cst_143 {dimension_numbers = #tpu.dot_dimension_numbers<[1], [0], [0], [1], [0, 0, 1, 1], [], []>} : vector<2x128xbf16>, vector<128x384xbf16>, vector<2x384xf32> -> vector<2x384xf32>
    %728 = vector.extract_strided_slice %725 {offsets = [0, 0], sizes = [2, 128], strides = [1, 1]} : vector<2x384xf32> to vector<2x128xf32>
    %729 = vector.extract_strided_slice %727 {offsets = [0, 0], sizes = [2, 128], strides = [1, 1]} : vector<2x384xf32> to vector<2x128xf32>
    %730 = arith.addf %728, %729 : vector<2x128xf32>
    %731 = arith.negf %730 : vector<2x128xf32>
    %732 = math.exp %731 : vector<2x128xf32>
    %cst_144 = arith.constant 1.000000e+00 : f32
    %733 = vector.broadcast %cst_144 : f32 to vector<2x128xf32>
    %734 = arith.addf %733, %732 : vector<2x128xf32>
    %735 = arith.divf %733, %734 : vector<2x128xf32>
    %736 = vector.extract_strided_slice %725 {offsets = [0, 128], sizes = [2, 128], strides = [1, 1]} : vector<2x384xf32> to vector<2x128xf32>
    %737 = vector.extract_strided_slice %727 {offsets = [0, 128], sizes = [2, 128], strides = [1, 1]} : vector<2x384xf32> to vector<2x128xf32>
    %738 = arith.addf %736, %737 : vector<2x128xf32>
    %739 = arith.negf %738 : vector<2x128xf32>
    %740 = math.exp %739 : vector<2x128xf32>
    %cst_145 = arith.constant 1.000000e+00 : f32
    %741 = vector.broadcast %cst_145 : f32 to vector<2x128xf32>
    %742 = arith.addf %741, %740 : vector<2x128xf32>
    %743 = arith.divf %741, %742 : vector<2x128xf32>
    %744 = vector.extract_strided_slice %725 {offsets = [0, 256], sizes = [2, 128], strides = [1, 1]} : vector<2x384xf32> to vector<2x128xf32>
    %745 = vector.extract_strided_slice %727 {offsets = [0, 256], sizes = [2, 128], strides = [1, 1]} : vector<2x384xf32> to vector<2x128xf32>
    %746 = arith.addf %745, %71 : vector<2x128xf32>
    %747 = arith.mulf %735, %746 : vector<2x128xf32>
    %748 = arith.addf %744, %747 : vector<2x128xf32>
    %749 = math.tanh %748 : vector<2x128xf32>
    %cst_146 = arith.constant 1.000000e+00 : f32
    %750 = vector.broadcast %cst_146 : f32 to vector<2x128xf32>
    %751 = arith.subf %750, %743 : vector<2x128xf32>
    %752 = arith.mulf %751, %749 : vector<2x128xf32>
    %753 = arith.mulf %743, %626 : vector<2x128xf32>
    %754 = arith.addf %752, %753 : vector<2x128xf32>
    %755 = vector.extract_strided_slice %55 {offsets = [0, 5, 0], sizes = [2, 1, 384], strides = [1, 1, 1]} : vector<2x8x384xf32> to vector<2x1x384xf32>
    %756 = vector.shape_cast %755 : vector<2x1x384xf32> to vector<2x384xf32>
    %757 = arith.truncf %657 : vector<2x128xf32> to vector<2x128xbf16>
    %cst_147 = arith.constant dense<0.000000e+00> : vector<2x384xf32>
    %758 = tpu.matmul %757, %67, %cst_147 {dimension_numbers = #tpu.dot_dimension_numbers<[1], [0], [0], [1], [0, 0, 1, 1], [], []>} : vector<2x128xbf16>, vector<128x384xbf16>, vector<2x384xf32> -> vector<2x384xf32>
    %759 = vector.extract_strided_slice %756 {offsets = [0, 0], sizes = [2, 128], strides = [1, 1]} : vector<2x384xf32> to vector<2x128xf32>
    %760 = vector.extract_strided_slice %758 {offsets = [0, 0], sizes = [2, 128], strides = [1, 1]} : vector<2x384xf32> to vector<2x128xf32>
    %761 = arith.addf %759, %760 : vector<2x128xf32>
    %762 = arith.negf %761 : vector<2x128xf32>
    %763 = math.exp %762 : vector<2x128xf32>
    %cst_148 = arith.constant 1.000000e+00 : f32
    %764 = vector.broadcast %cst_148 : f32 to vector<2x128xf32>
    %765 = arith.addf %764, %763 : vector<2x128xf32>
    %766 = arith.divf %764, %765 : vector<2x128xf32>
    %767 = vector.extract_strided_slice %756 {offsets = [0, 128], sizes = [2, 128], strides = [1, 1]} : vector<2x384xf32> to vector<2x128xf32>
    %768 = vector.extract_strided_slice %758 {offsets = [0, 128], sizes = [2, 128], strides = [1, 1]} : vector<2x384xf32> to vector<2x128xf32>
    %769 = arith.addf %767, %768 : vector<2x128xf32>
    %770 = arith.negf %769 : vector<2x128xf32>
    %771 = math.exp %770 : vector<2x128xf32>
    %cst_149 = arith.constant 1.000000e+00 : f32
    %772 = vector.broadcast %cst_149 : f32 to vector<2x128xf32>
    %773 = arith.addf %772, %771 : vector<2x128xf32>
    %774 = arith.divf %772, %773 : vector<2x128xf32>
    %775 = vector.extract_strided_slice %756 {offsets = [0, 256], sizes = [2, 128], strides = [1, 1]} : vector<2x384xf32> to vector<2x128xf32>
    %776 = vector.extract_strided_slice %758 {offsets = [0, 256], sizes = [2, 128], strides = [1, 1]} : vector<2x384xf32> to vector<2x128xf32>
    %777 = arith.addf %776, %77 : vector<2x128xf32>
    %778 = arith.mulf %766, %777 : vector<2x128xf32>
    %779 = arith.addf %775, %778 : vector<2x128xf32>
    %780 = math.tanh %779 : vector<2x128xf32>
    %cst_150 = arith.constant 1.000000e+00 : f32
    %781 = vector.broadcast %cst_150 : f32 to vector<2x128xf32>
    %782 = arith.subf %781, %774 : vector<2x128xf32>
    %783 = arith.mulf %782, %780 : vector<2x128xf32>
    %784 = arith.mulf %774, %657 : vector<2x128xf32>
    %785 = arith.addf %783, %784 : vector<2x128xf32>
    %786 = vector.extract_strided_slice %46 {offsets = [0, 2, 0], sizes = [2, 1, 384], strides = [1, 1, 1]} : vector<2x8x384xf32> to vector<2x1x384xf32>
    %787 = vector.shape_cast %786 : vector<2x1x384xf32> to vector<2x384xf32>
    %788 = arith.truncf %688 : vector<2x128xf32> to vector<2x128xbf16>
    %cst_151 = arith.constant dense<0.000000e+00> : vector<2x384xf32>
    %789 = tpu.matmul %788, %66, %cst_151 {dimension_numbers = #tpu.dot_dimension_numbers<[1], [0], [0], [1], [0, 0, 1, 1], [], []>} : vector<2x128xbf16>, vector<128x384xbf16>, vector<2x384xf32> -> vector<2x384xf32>
    %790 = vector.extract_strided_slice %787 {offsets = [0, 0], sizes = [2, 128], strides = [1, 1]} : vector<2x384xf32> to vector<2x128xf32>
    %791 = vector.extract_strided_slice %789 {offsets = [0, 0], sizes = [2, 128], strides = [1, 1]} : vector<2x384xf32> to vector<2x128xf32>
    %792 = arith.addf %790, %791 : vector<2x128xf32>
    %793 = arith.negf %792 : vector<2x128xf32>
    %794 = math.exp %793 : vector<2x128xf32>
    %cst_152 = arith.constant 1.000000e+00 : f32
    %795 = vector.broadcast %cst_152 : f32 to vector<2x128xf32>
    %796 = arith.addf %795, %794 : vector<2x128xf32>
    %797 = arith.divf %795, %796 : vector<2x128xf32>
    %798 = vector.extract_strided_slice %787 {offsets = [0, 128], sizes = [2, 128], strides = [1, 1]} : vector<2x384xf32> to vector<2x128xf32>
    %799 = vector.extract_strided_slice %789 {offsets = [0, 128], sizes = [2, 128], strides = [1, 1]} : vector<2x384xf32> to vector<2x128xf32>
    %800 = arith.addf %798, %799 : vector<2x128xf32>
    %801 = arith.negf %800 : vector<2x128xf32>
    %802 = math.exp %801 : vector<2x128xf32>
    %cst_153 = arith.constant 1.000000e+00 : f32
    %803 = vector.broadcast %cst_153 : f32 to vector<2x128xf32>
    %804 = arith.addf %803, %802 : vector<2x128xf32>
    %805 = arith.divf %803, %804 : vector<2x128xf32>
    %806 = vector.extract_strided_slice %787 {offsets = [0, 256], sizes = [2, 128], strides = [1, 1]} : vector<2x384xf32> to vector<2x128xf32>
    %807 = vector.extract_strided_slice %789 {offsets = [0, 256], sizes = [2, 128], strides = [1, 1]} : vector<2x384xf32> to vector<2x128xf32>
    %808 = arith.addf %807, %74 : vector<2x128xf32>
    %809 = arith.mulf %797, %808 : vector<2x128xf32>
    %810 = arith.addf %806, %809 : vector<2x128xf32>
    %811 = math.tanh %810 : vector<2x128xf32>
    %cst_154 = arith.constant 1.000000e+00 : f32
    %812 = vector.broadcast %cst_154 : f32 to vector<2x128xf32>
    %813 = arith.subf %812, %805 : vector<2x128xf32>
    %814 = arith.mulf %813, %811 : vector<2x128xf32>
    %815 = arith.mulf %805, %688 : vector<2x128xf32>
    %816 = arith.addf %814, %815 : vector<2x128xf32>
    %817 = vector.extract_strided_slice %64 {offsets = [0, 2, 0], sizes = [2, 1, 384], strides = [1, 1, 1]} : vector<2x8x384xf32> to vector<2x1x384xf32>
    %818 = vector.shape_cast %817 : vector<2x1x384xf32> to vector<2x384xf32>
    %819 = arith.truncf %719 : vector<2x128xf32> to vector<2x128xbf16>
    %cst_155 = arith.constant dense<0.000000e+00> : vector<2x384xf32>
    %820 = tpu.matmul %819, %68, %cst_155 {dimension_numbers = #tpu.dot_dimension_numbers<[1], [0], [0], [1], [0, 0, 1, 1], [], []>} : vector<2x128xbf16>, vector<128x384xbf16>, vector<2x384xf32> -> vector<2x384xf32>
    %821 = vector.extract_strided_slice %818 {offsets = [0, 0], sizes = [2, 128], strides = [1, 1]} : vector<2x384xf32> to vector<2x128xf32>
    %822 = vector.extract_strided_slice %820 {offsets = [0, 0], sizes = [2, 128], strides = [1, 1]} : vector<2x384xf32> to vector<2x128xf32>
    %823 = arith.addf %821, %822 : vector<2x128xf32>
    %824 = arith.negf %823 : vector<2x128xf32>
    %825 = math.exp %824 : vector<2x128xf32>
    %cst_156 = arith.constant 1.000000e+00 : f32
    %826 = vector.broadcast %cst_156 : f32 to vector<2x128xf32>
    %827 = arith.addf %826, %825 : vector<2x128xf32>
    %828 = arith.divf %826, %827 : vector<2x128xf32>
    %829 = vector.extract_strided_slice %818 {offsets = [0, 128], sizes = [2, 128], strides = [1, 1]} : vector<2x384xf32> to vector<2x128xf32>
    %830 = vector.extract_strided_slice %820 {offsets = [0, 128], sizes = [2, 128], strides = [1, 1]} : vector<2x384xf32> to vector<2x128xf32>
    %831 = arith.addf %829, %830 : vector<2x128xf32>
    %832 = arith.negf %831 : vector<2x128xf32>
    %833 = math.exp %832 : vector<2x128xf32>
    %cst_157 = arith.constant 1.000000e+00 : f32
    %834 = vector.broadcast %cst_157 : f32 to vector<2x128xf32>
    %835 = arith.addf %834, %833 : vector<2x128xf32>
    %836 = arith.divf %834, %835 : vector<2x128xf32>
    %837 = vector.extract_strided_slice %818 {offsets = [0, 256], sizes = [2, 128], strides = [1, 1]} : vector<2x384xf32> to vector<2x128xf32>
    %838 = vector.extract_strided_slice %820 {offsets = [0, 256], sizes = [2, 128], strides = [1, 1]} : vector<2x384xf32> to vector<2x128xf32>
    %839 = arith.addf %838, %80 : vector<2x128xf32>
    %840 = arith.mulf %828, %839 : vector<2x128xf32>
    %841 = arith.addf %837, %840 : vector<2x128xf32>
    %842 = math.tanh %841 : vector<2x128xf32>
    %cst_158 = arith.constant 1.000000e+00 : f32
    %843 = vector.broadcast %cst_158 : f32 to vector<2x128xf32>
    %844 = arith.subf %843, %836 : vector<2x128xf32>
    %845 = arith.mulf %844, %842 : vector<2x128xf32>
    %846 = arith.mulf %836, %719 : vector<2x128xf32>
    %847 = arith.addf %845, %846 : vector<2x128xf32>
    %848 = arith.mulf %754, %785 : vector<2x128xf32>
    %849 = arith.maximumf %721, %848 : vector<2x128xf32>
    %850 = arith.mulf %816, %847 : vector<2x128xf32>
    %851 = arith.maximumf %723, %850 : vector<2x128xf32>
    %852 = vector.extract_strided_slice %40 {offsets = [0, 6, 0], sizes = [2, 1, 384], strides = [1, 1, 1]} : vector<2x8x384xf32> to vector<2x1x384xf32>
    %853 = vector.shape_cast %852 : vector<2x1x384xf32> to vector<2x384xf32>
    %854 = arith.truncf %754 : vector<2x128xf32> to vector<2x128xbf16>
    %cst_159 = arith.constant dense<0.000000e+00> : vector<2x384xf32>
    %855 = tpu.matmul %854, %65, %cst_159 {dimension_numbers = #tpu.dot_dimension_numbers<[1], [0], [0], [1], [0, 0, 1, 1], [], []>} : vector<2x128xbf16>, vector<128x384xbf16>, vector<2x384xf32> -> vector<2x384xf32>
    %856 = vector.extract_strided_slice %853 {offsets = [0, 0], sizes = [2, 128], strides = [1, 1]} : vector<2x384xf32> to vector<2x128xf32>
    %857 = vector.extract_strided_slice %855 {offsets = [0, 0], sizes = [2, 128], strides = [1, 1]} : vector<2x384xf32> to vector<2x128xf32>
    %858 = arith.addf %856, %857 : vector<2x128xf32>
    %859 = arith.negf %858 : vector<2x128xf32>
    %860 = math.exp %859 : vector<2x128xf32>
    %cst_160 = arith.constant 1.000000e+00 : f32
    %861 = vector.broadcast %cst_160 : f32 to vector<2x128xf32>
    %862 = arith.addf %861, %860 : vector<2x128xf32>
    %863 = arith.divf %861, %862 : vector<2x128xf32>
    %864 = vector.extract_strided_slice %853 {offsets = [0, 128], sizes = [2, 128], strides = [1, 1]} : vector<2x384xf32> to vector<2x128xf32>
    %865 = vector.extract_strided_slice %855 {offsets = [0, 128], sizes = [2, 128], strides = [1, 1]} : vector<2x384xf32> to vector<2x128xf32>
    %866 = arith.addf %864, %865 : vector<2x128xf32>
    %867 = arith.negf %866 : vector<2x128xf32>
    %868 = math.exp %867 : vector<2x128xf32>
    %cst_161 = arith.constant 1.000000e+00 : f32
    %869 = vector.broadcast %cst_161 : f32 to vector<2x128xf32>
    %870 = arith.addf %869, %868 : vector<2x128xf32>
    %871 = arith.divf %869, %870 : vector<2x128xf32>
    %872 = vector.extract_strided_slice %853 {offsets = [0, 256], sizes = [2, 128], strides = [1, 1]} : vector<2x384xf32> to vector<2x128xf32>
    %873 = vector.extract_strided_slice %855 {offsets = [0, 256], sizes = [2, 128], strides = [1, 1]} : vector<2x384xf32> to vector<2x128xf32>
    %874 = arith.addf %873, %71 : vector<2x128xf32>
    %875 = arith.mulf %863, %874 : vector<2x128xf32>
    %876 = arith.addf %872, %875 : vector<2x128xf32>
    %877 = math.tanh %876 : vector<2x128xf32>
    %cst_162 = arith.constant 1.000000e+00 : f32
    %878 = vector.broadcast %cst_162 : f32 to vector<2x128xf32>
    %879 = arith.subf %878, %871 : vector<2x128xf32>
    %880 = arith.mulf %879, %877 : vector<2x128xf32>
    %881 = arith.mulf %871, %754 : vector<2x128xf32>
    %882 = arith.addf %880, %881 : vector<2x128xf32>
    %883 = vector.extract_strided_slice %55 {offsets = [0, 6, 0], sizes = [2, 1, 384], strides = [1, 1, 1]} : vector<2x8x384xf32> to vector<2x1x384xf32>
    %884 = vector.shape_cast %883 : vector<2x1x384xf32> to vector<2x384xf32>
    %885 = arith.truncf %785 : vector<2x128xf32> to vector<2x128xbf16>
    %cst_163 = arith.constant dense<0.000000e+00> : vector<2x384xf32>
    %886 = tpu.matmul %885, %67, %cst_163 {dimension_numbers = #tpu.dot_dimension_numbers<[1], [0], [0], [1], [0, 0, 1, 1], [], []>} : vector<2x128xbf16>, vector<128x384xbf16>, vector<2x384xf32> -> vector<2x384xf32>
    %887 = vector.extract_strided_slice %884 {offsets = [0, 0], sizes = [2, 128], strides = [1, 1]} : vector<2x384xf32> to vector<2x128xf32>
    %888 = vector.extract_strided_slice %886 {offsets = [0, 0], sizes = [2, 128], strides = [1, 1]} : vector<2x384xf32> to vector<2x128xf32>
    %889 = arith.addf %887, %888 : vector<2x128xf32>
    %890 = arith.negf %889 : vector<2x128xf32>
    %891 = math.exp %890 : vector<2x128xf32>
    %cst_164 = arith.constant 1.000000e+00 : f32
    %892 = vector.broadcast %cst_164 : f32 to vector<2x128xf32>
    %893 = arith.addf %892, %891 : vector<2x128xf32>
    %894 = arith.divf %892, %893 : vector<2x128xf32>
    %895 = vector.extract_strided_slice %884 {offsets = [0, 128], sizes = [2, 128], strides = [1, 1]} : vector<2x384xf32> to vector<2x128xf32>
    %896 = vector.extract_strided_slice %886 {offsets = [0, 128], sizes = [2, 128], strides = [1, 1]} : vector<2x384xf32> to vector<2x128xf32>
    %897 = arith.addf %895, %896 : vector<2x128xf32>
    %898 = arith.negf %897 : vector<2x128xf32>
    %899 = math.exp %898 : vector<2x128xf32>
    %cst_165 = arith.constant 1.000000e+00 : f32
    %900 = vector.broadcast %cst_165 : f32 to vector<2x128xf32>
    %901 = arith.addf %900, %899 : vector<2x128xf32>
    %902 = arith.divf %900, %901 : vector<2x128xf32>
    %903 = vector.extract_strided_slice %884 {offsets = [0, 256], sizes = [2, 128], strides = [1, 1]} : vector<2x384xf32> to vector<2x128xf32>
    %904 = vector.extract_strided_slice %886 {offsets = [0, 256], sizes = [2, 128], strides = [1, 1]} : vector<2x384xf32> to vector<2x128xf32>
    %905 = arith.addf %904, %77 : vector<2x128xf32>
    %906 = arith.mulf %894, %905 : vector<2x128xf32>
    %907 = arith.addf %903, %906 : vector<2x128xf32>
    %908 = math.tanh %907 : vector<2x128xf32>
    %cst_166 = arith.constant 1.000000e+00 : f32
    %909 = vector.broadcast %cst_166 : f32 to vector<2x128xf32>
    %910 = arith.subf %909, %902 : vector<2x128xf32>
    %911 = arith.mulf %910, %908 : vector<2x128xf32>
    %912 = arith.mulf %902, %785 : vector<2x128xf32>
    %913 = arith.addf %911, %912 : vector<2x128xf32>
    %914 = vector.extract_strided_slice %46 {offsets = [0, 1, 0], sizes = [2, 1, 384], strides = [1, 1, 1]} : vector<2x8x384xf32> to vector<2x1x384xf32>
    %915 = vector.shape_cast %914 : vector<2x1x384xf32> to vector<2x384xf32>
    %916 = arith.truncf %816 : vector<2x128xf32> to vector<2x128xbf16>
    %cst_167 = arith.constant dense<0.000000e+00> : vector<2x384xf32>
    %917 = tpu.matmul %916, %66, %cst_167 {dimension_numbers = #tpu.dot_dimension_numbers<[1], [0], [0], [1], [0, 0, 1, 1], [], []>} : vector<2x128xbf16>, vector<128x384xbf16>, vector<2x384xf32> -> vector<2x384xf32>
    %918 = vector.extract_strided_slice %915 {offsets = [0, 0], sizes = [2, 128], strides = [1, 1]} : vector<2x384xf32> to vector<2x128xf32>
    %919 = vector.extract_strided_slice %917 {offsets = [0, 0], sizes = [2, 128], strides = [1, 1]} : vector<2x384xf32> to vector<2x128xf32>
    %920 = arith.addf %918, %919 : vector<2x128xf32>
    %921 = arith.negf %920 : vector<2x128xf32>
    %922 = math.exp %921 : vector<2x128xf32>
    %cst_168 = arith.constant 1.000000e+00 : f32
    %923 = vector.broadcast %cst_168 : f32 to vector<2x128xf32>
    %924 = arith.addf %923, %922 : vector<2x128xf32>
    %925 = arith.divf %923, %924 : vector<2x128xf32>
    %926 = vector.extract_strided_slice %915 {offsets = [0, 128], sizes = [2, 128], strides = [1, 1]} : vector<2x384xf32> to vector<2x128xf32>
    %927 = vector.extract_strided_slice %917 {offsets = [0, 128], sizes = [2, 128], strides = [1, 1]} : vector<2x384xf32> to vector<2x128xf32>
    %928 = arith.addf %926, %927 : vector<2x128xf32>
    %929 = arith.negf %928 : vector<2x128xf32>
    %930 = math.exp %929 : vector<2x128xf32>
    %cst_169 = arith.constant 1.000000e+00 : f32
    %931 = vector.broadcast %cst_169 : f32 to vector<2x128xf32>
    %932 = arith.addf %931, %930 : vector<2x128xf32>
    %933 = arith.divf %931, %932 : vector<2x128xf32>
    %934 = vector.extract_strided_slice %915 {offsets = [0, 256], sizes = [2, 128], strides = [1, 1]} : vector<2x384xf32> to vector<2x128xf32>
    %935 = vector.extract_strided_slice %917 {offsets = [0, 256], sizes = [2, 128], strides = [1, 1]} : vector<2x384xf32> to vector<2x128xf32>
    %936 = arith.addf %935, %74 : vector<2x128xf32>
    %937 = arith.mulf %925, %936 : vector<2x128xf32>
    %938 = arith.addf %934, %937 : vector<2x128xf32>
    %939 = math.tanh %938 : vector<2x128xf32>
    %cst_170 = arith.constant 1.000000e+00 : f32
    %940 = vector.broadcast %cst_170 : f32 to vector<2x128xf32>
    %941 = arith.subf %940, %933 : vector<2x128xf32>
    %942 = arith.mulf %941, %939 : vector<2x128xf32>
    %943 = arith.mulf %933, %816 : vector<2x128xf32>
    %944 = arith.addf %942, %943 : vector<2x128xf32>
    %945 = vector.extract_strided_slice %64 {offsets = [0, 1, 0], sizes = [2, 1, 384], strides = [1, 1, 1]} : vector<2x8x384xf32> to vector<2x1x384xf32>
    %946 = vector.shape_cast %945 : vector<2x1x384xf32> to vector<2x384xf32>
    %947 = arith.truncf %847 : vector<2x128xf32> to vector<2x128xbf16>
    %cst_171 = arith.constant dense<0.000000e+00> : vector<2x384xf32>
    %948 = tpu.matmul %947, %68, %cst_171 {dimension_numbers = #tpu.dot_dimension_numbers<[1], [0], [0], [1], [0, 0, 1, 1], [], []>} : vector<2x128xbf16>, vector<128x384xbf16>, vector<2x384xf32> -> vector<2x384xf32>
    %949 = vector.extract_strided_slice %946 {offsets = [0, 0], sizes = [2, 128], strides = [1, 1]} : vector<2x384xf32> to vector<2x128xf32>
    %950 = vector.extract_strided_slice %948 {offsets = [0, 0], sizes = [2, 128], strides = [1, 1]} : vector<2x384xf32> to vector<2x128xf32>
    %951 = arith.addf %949, %950 : vector<2x128xf32>
    %952 = arith.negf %951 : vector<2x128xf32>
    %953 = math.exp %952 : vector<2x128xf32>
    %cst_172 = arith.constant 1.000000e+00 : f32
    %954 = vector.broadcast %cst_172 : f32 to vector<2x128xf32>
    %955 = arith.addf %954, %953 : vector<2x128xf32>
    %956 = arith.divf %954, %955 : vector<2x128xf32>
    %957 = vector.extract_strided_slice %946 {offsets = [0, 128], sizes = [2, 128], strides = [1, 1]} : vector<2x384xf32> to vector<2x128xf32>
    %958 = vector.extract_strided_slice %948 {offsets = [0, 128], sizes = [2, 128], strides = [1, 1]} : vector<2x384xf32> to vector<2x128xf32>
    %959 = arith.addf %957, %958 : vector<2x128xf32>
    %960 = arith.negf %959 : vector<2x128xf32>
    %961 = math.exp %960 : vector<2x128xf32>
    %cst_173 = arith.constant 1.000000e+00 : f32
    %962 = vector.broadcast %cst_173 : f32 to vector<2x128xf32>
    %963 = arith.addf %962, %961 : vector<2x128xf32>
    %964 = arith.divf %962, %963 : vector<2x128xf32>
    %965 = vector.extract_strided_slice %946 {offsets = [0, 256], sizes = [2, 128], strides = [1, 1]} : vector<2x384xf32> to vector<2x128xf32>
    %966 = vector.extract_strided_slice %948 {offsets = [0, 256], sizes = [2, 128], strides = [1, 1]} : vector<2x384xf32> to vector<2x128xf32>
    %967 = arith.addf %966, %80 : vector<2x128xf32>
    %968 = arith.mulf %956, %967 : vector<2x128xf32>
    %969 = arith.addf %965, %968 : vector<2x128xf32>
    %970 = math.tanh %969 : vector<2x128xf32>
    %cst_174 = arith.constant 1.000000e+00 : f32
    %971 = vector.broadcast %cst_174 : f32 to vector<2x128xf32>
    %972 = arith.subf %971, %964 : vector<2x128xf32>
    %973 = arith.mulf %972, %970 : vector<2x128xf32>
    %974 = arith.mulf %964, %847 : vector<2x128xf32>
    %975 = arith.addf %973, %974 : vector<2x128xf32>
    %976 = arith.mulf %882, %913 : vector<2x128xf32>
    %977 = arith.maximumf %849, %976 : vector<2x128xf32>
    %978 = arith.mulf %944, %975 : vector<2x128xf32>
    %979 = arith.maximumf %851, %978 : vector<2x128xf32>
    %980 = vector.extract_strided_slice %40 {offsets = [0, 7, 0], sizes = [2, 1, 384], strides = [1, 1, 1]} : vector<2x8x384xf32> to vector<2x1x384xf32>
    %981 = vector.shape_cast %980 : vector<2x1x384xf32> to vector<2x384xf32>
    %982 = arith.truncf %882 : vector<2x128xf32> to vector<2x128xbf16>
    %cst_175 = arith.constant dense<0.000000e+00> : vector<2x384xf32>
    %983 = tpu.matmul %982, %65, %cst_175 {dimension_numbers = #tpu.dot_dimension_numbers<[1], [0], [0], [1], [0, 0, 1, 1], [], []>} : vector<2x128xbf16>, vector<128x384xbf16>, vector<2x384xf32> -> vector<2x384xf32>
    %984 = vector.extract_strided_slice %981 {offsets = [0, 0], sizes = [2, 128], strides = [1, 1]} : vector<2x384xf32> to vector<2x128xf32>
    %985 = vector.extract_strided_slice %983 {offsets = [0, 0], sizes = [2, 128], strides = [1, 1]} : vector<2x384xf32> to vector<2x128xf32>
    %986 = arith.addf %984, %985 : vector<2x128xf32>
    %987 = arith.negf %986 : vector<2x128xf32>
    %988 = math.exp %987 : vector<2x128xf32>
    %cst_176 = arith.constant 1.000000e+00 : f32
    %989 = vector.broadcast %cst_176 : f32 to vector<2x128xf32>
    %990 = arith.addf %989, %988 : vector<2x128xf32>
    %991 = arith.divf %989, %990 : vector<2x128xf32>
    %992 = vector.extract_strided_slice %981 {offsets = [0, 128], sizes = [2, 128], strides = [1, 1]} : vector<2x384xf32> to vector<2x128xf32>
    %993 = vector.extract_strided_slice %983 {offsets = [0, 128], sizes = [2, 128], strides = [1, 1]} : vector<2x384xf32> to vector<2x128xf32>
    %994 = arith.addf %992, %993 : vector<2x128xf32>
    %995 = arith.negf %994 : vector<2x128xf32>
    %996 = math.exp %995 : vector<2x128xf32>
    %cst_177 = arith.constant 1.000000e+00 : f32
    %997 = vector.broadcast %cst_177 : f32 to vector<2x128xf32>
    %998 = arith.addf %997, %996 : vector<2x128xf32>
    %999 = arith.divf %997, %998 : vector<2x128xf32>
    %1000 = vector.extract_strided_slice %981 {offsets = [0, 256], sizes = [2, 128], strides = [1, 1]} : vector<2x384xf32> to vector<2x128xf32>
    %1001 = vector.extract_strided_slice %983 {offsets = [0, 256], sizes = [2, 128], strides = [1, 1]} : vector<2x384xf32> to vector<2x128xf32>
    %1002 = arith.addf %1001, %71 : vector<2x128xf32>
    %1003 = arith.mulf %991, %1002 : vector<2x128xf32>
    %1004 = arith.addf %1000, %1003 : vector<2x128xf32>
    %1005 = math.tanh %1004 : vector<2x128xf32>
    %cst_178 = arith.constant 1.000000e+00 : f32
    %1006 = vector.broadcast %cst_178 : f32 to vector<2x128xf32>
    %1007 = arith.subf %1006, %999 : vector<2x128xf32>
    %1008 = arith.mulf %1007, %1005 : vector<2x128xf32>
    %1009 = arith.mulf %999, %882 : vector<2x128xf32>
    %1010 = arith.addf %1008, %1009 : vector<2x128xf32>
    %1011 = vector.extract_strided_slice %55 {offsets = [0, 7, 0], sizes = [2, 1, 384], strides = [1, 1, 1]} : vector<2x8x384xf32> to vector<2x1x384xf32>
    %1012 = vector.shape_cast %1011 : vector<2x1x384xf32> to vector<2x384xf32>
    %1013 = arith.truncf %913 : vector<2x128xf32> to vector<2x128xbf16>
    %cst_179 = arith.constant dense<0.000000e+00> : vector<2x384xf32>
    %1014 = tpu.matmul %1013, %67, %cst_179 {dimension_numbers = #tpu.dot_dimension_numbers<[1], [0], [0], [1], [0, 0, 1, 1], [], []>} : vector<2x128xbf16>, vector<128x384xbf16>, vector<2x384xf32> -> vector<2x384xf32>
    %1015 = vector.extract_strided_slice %1012 {offsets = [0, 0], sizes = [2, 128], strides = [1, 1]} : vector<2x384xf32> to vector<2x128xf32>
    %1016 = vector.extract_strided_slice %1014 {offsets = [0, 0], sizes = [2, 128], strides = [1, 1]} : vector<2x384xf32> to vector<2x128xf32>
    %1017 = arith.addf %1015, %1016 : vector<2x128xf32>
    %1018 = arith.negf %1017 : vector<2x128xf32>
    %1019 = math.exp %1018 : vector<2x128xf32>
    %cst_180 = arith.constant 1.000000e+00 : f32
    %1020 = vector.broadcast %cst_180 : f32 to vector<2x128xf32>
    %1021 = arith.addf %1020, %1019 : vector<2x128xf32>
    %1022 = arith.divf %1020, %1021 : vector<2x128xf32>
    %1023 = vector.extract_strided_slice %1012 {offsets = [0, 128], sizes = [2, 128], strides = [1, 1]} : vector<2x384xf32> to vector<2x128xf32>
    %1024 = vector.extract_strided_slice %1014 {offsets = [0, 128], sizes = [2, 128], strides = [1, 1]} : vector<2x384xf32> to vector<2x128xf32>
    %1025 = arith.addf %1023, %1024 : vector<2x128xf32>
    %1026 = arith.negf %1025 : vector<2x128xf32>
    %1027 = math.exp %1026 : vector<2x128xf32>
    %cst_181 = arith.constant 1.000000e+00 : f32
    %1028 = vector.broadcast %cst_181 : f32 to vector<2x128xf32>
    %1029 = arith.addf %1028, %1027 : vector<2x128xf32>
    %1030 = arith.divf %1028, %1029 : vector<2x128xf32>
    %1031 = vector.extract_strided_slice %1012 {offsets = [0, 256], sizes = [2, 128], strides = [1, 1]} : vector<2x384xf32> to vector<2x128xf32>
    %1032 = vector.extract_strided_slice %1014 {offsets = [0, 256], sizes = [2, 128], strides = [1, 1]} : vector<2x384xf32> to vector<2x128xf32>
    %1033 = arith.addf %1032, %77 : vector<2x128xf32>
    %1034 = arith.mulf %1022, %1033 : vector<2x128xf32>
    %1035 = arith.addf %1031, %1034 : vector<2x128xf32>
    %1036 = math.tanh %1035 : vector<2x128xf32>
    %cst_182 = arith.constant 1.000000e+00 : f32
    %1037 = vector.broadcast %cst_182 : f32 to vector<2x128xf32>
    %1038 = arith.subf %1037, %1030 : vector<2x128xf32>
    %1039 = arith.mulf %1038, %1036 : vector<2x128xf32>
    %1040 = arith.mulf %1030, %913 : vector<2x128xf32>
    %1041 = arith.addf %1039, %1040 : vector<2x128xf32>
    %1042 = vector.extract_strided_slice %46 {offsets = [0, 0, 0], sizes = [2, 1, 384], strides = [1, 1, 1]} : vector<2x8x384xf32> to vector<2x1x384xf32>
    %1043 = vector.shape_cast %1042 : vector<2x1x384xf32> to vector<2x384xf32>
    %1044 = arith.truncf %944 : vector<2x128xf32> to vector<2x128xbf16>
    %cst_183 = arith.constant dense<0.000000e+00> : vector<2x384xf32>
    %1045 = tpu.matmul %1044, %66, %cst_183 {dimension_numbers = #tpu.dot_dimension_numbers<[1], [0], [0], [1], [0, 0, 1, 1], [], []>} : vector<2x128xbf16>, vector<128x384xbf16>, vector<2x384xf32> -> vector<2x384xf32>
    %1046 = vector.extract_strided_slice %1043 {offsets = [0, 0], sizes = [2, 128], strides = [1, 1]} : vector<2x384xf32> to vector<2x128xf32>
    %1047 = vector.extract_strided_slice %1045 {offsets = [0, 0], sizes = [2, 128], strides = [1, 1]} : vector<2x384xf32> to vector<2x128xf32>
    %1048 = arith.addf %1046, %1047 : vector<2x128xf32>
    %1049 = arith.negf %1048 : vector<2x128xf32>
    %1050 = math.exp %1049 : vector<2x128xf32>
    %cst_184 = arith.constant 1.000000e+00 : f32
    %1051 = vector.broadcast %cst_184 : f32 to vector<2x128xf32>
    %1052 = arith.addf %1051, %1050 : vector<2x128xf32>
    %1053 = arith.divf %1051, %1052 : vector<2x128xf32>
    %1054 = vector.extract_strided_slice %1043 {offsets = [0, 128], sizes = [2, 128], strides = [1, 1]} : vector<2x384xf32> to vector<2x128xf32>
    %1055 = vector.extract_strided_slice %1045 {offsets = [0, 128], sizes = [2, 128], strides = [1, 1]} : vector<2x384xf32> to vector<2x128xf32>
    %1056 = arith.addf %1054, %1055 : vector<2x128xf32>
    %1057 = arith.negf %1056 : vector<2x128xf32>
    %1058 = math.exp %1057 : vector<2x128xf32>
    %cst_185 = arith.constant 1.000000e+00 : f32
    %1059 = vector.broadcast %cst_185 : f32 to vector<2x128xf32>
    %1060 = arith.addf %1059, %1058 : vector<2x128xf32>
    %1061 = arith.divf %1059, %1060 : vector<2x128xf32>
    %1062 = vector.extract_strided_slice %1043 {offsets = [0, 256], sizes = [2, 128], strides = [1, 1]} : vector<2x384xf32> to vector<2x128xf32>
    %1063 = vector.extract_strided_slice %1045 {offsets = [0, 256], sizes = [2, 128], strides = [1, 1]} : vector<2x384xf32> to vector<2x128xf32>
    %1064 = arith.addf %1063, %74 : vector<2x128xf32>
    %1065 = arith.mulf %1053, %1064 : vector<2x128xf32>
    %1066 = arith.addf %1062, %1065 : vector<2x128xf32>
    %1067 = math.tanh %1066 : vector<2x128xf32>
    %cst_186 = arith.constant 1.000000e+00 : f32
    %1068 = vector.broadcast %cst_186 : f32 to vector<2x128xf32>
    %1069 = arith.subf %1068, %1061 : vector<2x128xf32>
    %1070 = arith.mulf %1069, %1067 : vector<2x128xf32>
    %1071 = arith.mulf %1061, %944 : vector<2x128xf32>
    %1072 = arith.addf %1070, %1071 : vector<2x128xf32>
    %1073 = vector.extract_strided_slice %64 {offsets = [0, 0, 0], sizes = [2, 1, 384], strides = [1, 1, 1]} : vector<2x8x384xf32> to vector<2x1x384xf32>
    %1074 = vector.shape_cast %1073 : vector<2x1x384xf32> to vector<2x384xf32>
    %1075 = arith.truncf %975 : vector<2x128xf32> to vector<2x128xbf16>
    %cst_187 = arith.constant dense<0.000000e+00> : vector<2x384xf32>
    %1076 = tpu.matmul %1075, %68, %cst_187 {dimension_numbers = #tpu.dot_dimension_numbers<[1], [0], [0], [1], [0, 0, 1, 1], [], []>} : vector<2x128xbf16>, vector<128x384xbf16>, vector<2x384xf32> -> vector<2x384xf32>
    %1077 = vector.extract_strided_slice %1074 {offsets = [0, 0], sizes = [2, 128], strides = [1, 1]} : vector<2x384xf32> to vector<2x128xf32>
    %1078 = vector.extract_strided_slice %1076 {offsets = [0, 0], sizes = [2, 128], strides = [1, 1]} : vector<2x384xf32> to vector<2x128xf32>
    %1079 = arith.addf %1077, %1078 : vector<2x128xf32>
    %1080 = arith.negf %1079 : vector<2x128xf32>
    %1081 = math.exp %1080 : vector<2x128xf32>
    %cst_188 = arith.constant 1.000000e+00 : f32
    %1082 = vector.broadcast %cst_188 : f32 to vector<2x128xf32>
    %1083 = arith.addf %1082, %1081 : vector<2x128xf32>
    %1084 = arith.divf %1082, %1083 : vector<2x128xf32>
    %1085 = vector.extract_strided_slice %1074 {offsets = [0, 128], sizes = [2, 128], strides = [1, 1]} : vector<2x384xf32> to vector<2x128xf32>
    %1086 = vector.extract_strided_slice %1076 {offsets = [0, 128], sizes = [2, 128], strides = [1, 1]} : vector<2x384xf32> to vector<2x128xf32>
    %1087 = arith.addf %1085, %1086 : vector<2x128xf32>
    %1088 = arith.negf %1087 : vector<2x128xf32>
    %1089 = math.exp %1088 : vector<2x128xf32>
    %cst_189 = arith.constant 1.000000e+00 : f32
    %1090 = vector.broadcast %cst_189 : f32 to vector<2x128xf32>
    %1091 = arith.addf %1090, %1089 : vector<2x128xf32>
    %1092 = arith.divf %1090, %1091 : vector<2x128xf32>
    %1093 = vector.extract_strided_slice %1074 {offsets = [0, 256], sizes = [2, 128], strides = [1, 1]} : vector<2x384xf32> to vector<2x128xf32>
    %1094 = vector.extract_strided_slice %1076 {offsets = [0, 256], sizes = [2, 128], strides = [1, 1]} : vector<2x384xf32> to vector<2x128xf32>
    %1095 = arith.addf %1094, %80 : vector<2x128xf32>
    %1096 = arith.mulf %1084, %1095 : vector<2x128xf32>
    %1097 = arith.addf %1093, %1096 : vector<2x128xf32>
    %1098 = math.tanh %1097 : vector<2x128xf32>
    %cst_190 = arith.constant 1.000000e+00 : f32
    %1099 = vector.broadcast %cst_190 : f32 to vector<2x128xf32>
    %1100 = arith.subf %1099, %1092 : vector<2x128xf32>
    %1101 = arith.mulf %1100, %1098 : vector<2x128xf32>
    %1102 = arith.mulf %1092, %975 : vector<2x128xf32>
    %1103 = arith.addf %1101, %1102 : vector<2x128xf32>
    %1104 = arith.mulf %1010, %1041 : vector<2x128xf32>
    %1105 = arith.maximumf %977, %1104 : vector<2x128xf32>
    %1106 = arith.mulf %1072, %1103 : vector<2x128xf32>
    %1107 = arith.maximumf %979, %1106 : vector<2x128xf32>
    %c0_191 = arith.constant 0 : index
    %c0_192 = arith.constant 0 : index
    %1108 = vector.load %arg23[%c0_191, %c0_192] : memref<128x128xf32, #tpu.memory_space<vmem>>, vector<128x128xf32>
    %cst_193 = arith.constant dense<0.000000e+00> : vector<2x128xf32>
    %1109 = tpu.matmul %1105, %1108, %cst_193 {dimension_numbers = #tpu.dot_dimension_numbers<[1], [0], [0], [1], [0, 0, 1, 1], [], []>} : vector<2x128xf32>, vector<128x128xf32>, vector<2x128xf32> -> vector<2x128xf32>
    %c0_194 = arith.constant 0 : index
    %c0_195 = arith.constant 0 : index
    %1110 = vector.load %arg24[%c0_194, %c0_195] : memref<128x128xf32, #tpu.memory_space<vmem>>, vector<128x128xf32>
    %cst_196 = arith.constant dense<0.000000e+00> : vector<2x128xf32>
    %1111 = tpu.matmul %1107, %1110, %cst_196 {dimension_numbers = #tpu.dot_dimension_numbers<[1], [0], [0], [1], [0, 0, 1, 1], [], []>} : vector<2x128xf32>, vector<128x128xf32>, vector<2x128xf32> -> vector<2x128xf32>
    %1112 = arith.addf %1109, %1111 : vector<2x128xf32>
    %c0_197 = arith.constant 0 : index
    %c0_198 = arith.constant 0 : index
    %1113 = vector.load %arg25[%c0_197, %c0_198] : memref<1x128xf32, #tpu.memory_space<vmem>>, vector<1x128xf32>
    %1114 = vector.broadcast %1113 : vector<1x128xf32> to vector<2x128xf32>
    %1115 = arith.addf %1112, %1114 : vector<2x128xf32>
    %c0_199 = arith.constant 0 : index
    %c0_200 = arith.constant 0 : index
    %1116 = vector.load %arg26[%c0_199, %c0_200] : memref<2x128xf32, #tpu.memory_space<vmem>>, vector<2x128xf32>
    tpu.vector_store %arg26[%c0_199, %c0_200], %1115 {strides = array<i32>} : memref<2x128xf32, #tpu.memory_space<vmem>>, vector<2x128xf32>,
    return
  }
  func.func @transform_0(%arg0: i32) -> (i32, i32, i32) {
    %c0_i32 = arith.constant 0 : i32
    %c0_i32_0 = arith.constant 0 : i32
    %c0_i32_1 = arith.constant 0 : i32
    return %arg0, %c0_i32, %c0_i32_0 : i32, i32, i32
  }
  func.func @transform_1(%arg0: i32) -> (i32, i32, i32) {
    %c0_i32 = arith.constant 0 : i32
    %c0_i32_0 = arith.constant 0 : i32
    %c0_i32_1 = arith.constant 0 : i32
    return %arg0, %c0_i32, %c0_i32_0 : i32, i32, i32
  }
  func.func @transform_2(%arg0: i32) -> (i32, i32, i32) {
    %c0_i32 = arith.constant 0 : i32
    %c0_i32_0 = arith.constant 0 : i32
    %c0_i32_1 = arith.constant 0 : i32
    return %arg0, %c0_i32, %c0_i32_0 : i32, i32, i32
  }
  func.func @transform_3(%arg0: i32) -> (i32, i32) {
    %c0_i32 = arith.constant 0 : i32
    %c0_i32_0 = arith.constant 0 : i32
    %c0_i32_1 = arith.constant 0 : i32
    return %c0_i32, %c0_i32_0 : i32, i32
  }
  func.func @transform_4(%arg0: i32) -> (i32, i32) {
    %c0_i32 = arith.constant 0 : i32
    %c0_i32_0 = arith.constant 0 : i32
    %c0_i32_1 = arith.constant 0 : i32
    return %c0_i32, %c0_i32_0 : i32, i32
  }
  func.func @transform_5(%arg0: i32) -> (i32, i32) {
    %c0_i32 = arith.constant 0 : i32
    %c0_i32_0 = arith.constant 0 : i32
    %c0_i32_1 = arith.constant 0 : i32
    return %c0_i32, %c0_i32_0 : i32, i32
  }
  func.func @transform_6(%arg0: i32) -> (i32, i32) {
    %c0_i32 = arith.constant 0 : i32
    %c0_i32_0 = arith.constant 0 : i32
    %c0_i32_1 = arith.constant 0 : i32
    return %c0_i32, %c0_i32_0 : i32, i32
  }
  func.func @transform_7(%arg0: i32) -> (i32, i32) {
    %c0_i32 = arith.constant 0 : i32
    %c0_i32_0 = arith.constant 0 : i32
    %c0_i32_1 = arith.constant 0 : i32
    return %c0_i32, %c0_i32_0 : i32, i32
  }
  func.func @transform_8(%arg0: i32) -> (i32, i32) {
    %c0_i32 = arith.constant 0 : i32
    %c0_i32_0 = arith.constant 0 : i32
    %c0_i32_1 = arith.constant 0 : i32
    return %c0_i32, %c0_i32_0 : i32, i32
  }
  func.func @transform_9(%arg0: i32) -> (i32, i32) {
    %c0_i32 = arith.constant 0 : i32
    %c0_i32_0 = arith.constant 0 : i32
    %c0_i32_1 = arith.constant 0 : i32
    return %c0_i32, %c0_i32_0 : i32, i32
  }
  func.func @transform_10(%arg0: i32) -> (i32, i32) {
    %c0_i32 = arith.constant 0 : i32
    %c0_i32_0 = arith.constant 0 : i32
    %c0_i32_1 = arith.constant 0 : i32
    return %c0_i32, %c0_i32_0 : i32, i32
  }
  func.func @transform_11(%arg0: i32) -> (i32, i32) {
    %c0_i32 = arith.constant 0 : i32
    %c0_i32_0 = arith.constant 0 : i32
    %c0_i32_1 = arith.constant 0 : i32
    return %c0_i32, %c0_i32_0 : i32, i32
  }
  func.func @transform_12(%arg0: i32) -> (i32, i32) {
    %c0_i32 = arith.constant 0 : i32
    %c0_i32_0 = arith.constant 0 : i32
    %c0_i32_1 = arith.constant 0 : i32
    return %c0_i32, %c0_i32_0 : i32, i32
  }
  func.func @transform_13(%arg0: i32) -> (i32, i32) {
    %c0_i32 = arith.constant 0 : i32
    %c0_i32_0 = arith.constant 0 : i32
    %c0_i32_1 = arith.constant 0 : i32
    return %c0_i32, %c0_i32_0 : i32, i32
  }
  func.func @transform_14(%arg0: i32) -> (i32, i32) {
    %c0_i32 = arith.constant 0 : i32
    %c0_i32_0 = arith.constant 0 : i32
    %c0_i32_1 = arith.constant 0 : i32
    return %c0_i32, %c0_i32_0 : i32, i32
  }
  func.func @transform_15(%arg0: i32) -> (i32, i32) {
    %c0_i32 = arith.constant 0 : i32
    %c0_i32_0 = arith.constant 0 : i32
    %c0_i32_1 = arith.constant 0 : i32
    return %c0_i32, %c0_i32_0 : i32, i32
  }
  func.func @transform_16(%arg0: i32) -> (i32, i32) {
    %c0_i32 = arith.constant 0 : i32
    %c0_i32_0 = arith.constant 0 : i32
    %c0_i32_1 = arith.constant 0 : i32
    return %c0_i32, %c0_i32_0 : i32, i32
  }
  func.func @transform_17(%arg0: i32) -> (i32, i32) {
    %c0_i32 = arith.constant 0 : i32
    %c0_i32_0 = arith.constant 0 : i32
    %c0_i32_1 = arith.constant 0 : i32
    return %c0_i32, %c0_i32_0 : i32, i32
  }
  func.func @transform_18(%arg0: i32) -> (i32, i32) {
    %c0_i32 = arith.constant 0 : i32
    %c0_i32_0 = arith.constant 0 : i32
    %c0_i32_1 = arith.constant 0 : i32
    return %c0_i32, %c0_i32_0 : i32, i32
  }
  func.func @transform_19(%arg0: i32) -> (i32, i32) {
    %c0_i32 = arith.constant 0 : i32
    %c0_i32_0 = arith.constant 0 : i32
    %c0_i32_1 = arith.constant 0 : i32
    return %c0_i32, %c0_i32_0 : i32, i32
  }
  func.func @transform_20(%arg0: i32) -> (i32, i32) {
    %c0_i32 = arith.constant 0 : i32
    %c0_i32_0 = arith.constant 0 : i32
    %c0_i32_1 = arith.constant 0 : i32
    return %c0_i32, %c0_i32_0 : i32, i32
  }
  func.func @transform_21(%arg0: i32) -> (i32, i32) {
    %c0_i32 = arith.constant 0 : i32
    %c0_i32_0 = arith.constant 0 : i32
    %c0_i32_1 = arith.constant 0 : i32
    return %c0_i32, %c0_i32_0 : i32, i32
  }
  func.func @transform_22(%arg0: i32) -> (i32, i32) {
    %c0_i32 = arith.constant 0 : i32
    %c0_i32_0 = arith.constant 0 : i32
    %c0_i32_1 = arith.constant 0 : i32
    return %c0_i32, %c0_i32_0 : i32, i32
  }
  func.func @transform_23(%arg0: i32) -> (i32, i32) {
    %c0_i32 = arith.constant 0 : i32
    %c0_i32_0 = arith.constant 0 : i32
    %c0_i32_1 = arith.constant 0 : i32
    return %c0_i32, %c0_i32_0 : i32, i32
  }
  func.func @transform_24(%arg0: i32) -> (i32, i32) {
    %c0_i32 = arith.constant 0 : i32
    %c0_i32_0 = arith.constant 0 : i32
    %c0_i32_1 = arith.constant 0 : i32
    return %c0_i32, %c0_i32_0 : i32, i32
  }
  func.func @transform_25(%arg0: i32) -> (i32, i32) {
    %c0_i32 = arith.constant 0 : i32
    %c0_i32_0 = arith.constant 0 : i32
    return %arg0, %c0_i32 : i32, i32
  }
}

</mosaic_0001>

<llo_original>
// kernel: tpu_custom_call.1
$region0: #{tpu_custom_call.1}
  #allocation0 [shape = 'u32[]', space=smem, size = 0x4, offset = 0x4, fixed_abs, tag = 'smem constant byte address 0x4 - core index']
  #allocation1 [shape = 'u32[144,128]{1,0:T(1,128)}', space=vmem, size = 0x12000, scoped, tag = 'internal scratch']
  %s0 = inlined_call_operand.hbm [shape: bf16[2,8,32], index: 0, kind: input, shape index: {}]
  %s1 = inlined_call_operand.hbm [shape: bf16[2,8,32], index: 1, kind: input, shape index: {}]
  %s2 = inlined_call_operand.hbm [shape: f32[2,1,8], index: 2, kind: input, shape index: {}]
  %s3 = inlined_call_operand.hbm [shape: bf16[32,32], index: 3, kind: input, shape index: {}]
  %s4 = inlined_call_operand.hbm [shape: bf16[32,384], index: 4, kind: input, shape index: {}]
  %s5 = inlined_call_operand.hbm [shape: bf16[128,384], index: 5, kind: input, shape index: {}]
  %s6 = inlined_call_operand.hbm [shape: f32[1,384], index: 6, kind: input, shape index: {}]
  %s7 = inlined_call_operand.hbm [shape: f32[1,128], index: 7, kind: input, shape index: {}]
  %s8 = inlined_call_operand.hbm [shape: bf16[32,384], index: 8, kind: input, shape index: {}]
  %s9 = inlined_call_operand.hbm [shape: bf16[128,384], index: 9, kind: input, shape index: {}]
  %s10 = inlined_call_operand.hbm [shape: f32[1,384], index: 10, kind: input, shape index: {}]
  %s11 = inlined_call_operand.hbm [shape: f32[1,128], index: 11, kind: input, shape index: {}]
  %s12 = inlined_call_operand.hbm [shape: bf16[32,384], index: 12, kind: input, shape index: {}]
  %s13 = inlined_call_operand.hbm [shape: bf16[32,384], index: 13, kind: input, shape index: {}]
  %s14 = inlined_call_operand.hbm [shape: bf16[128,384], index: 14, kind: input, shape index: {}]
  %s15 = inlined_call_operand.hbm [shape: f32[1,384], index: 15, kind: input, shape index: {}]
  %s16 = inlined_call_operand.hbm [shape: f32[1,128], index: 16, kind: input, shape index: {}]
  %s17 = inlined_call_operand.hbm [shape: bf16[32,384], index: 17, kind: input, shape index: {}]
  %s18 = inlined_call_operand.hbm [shape: bf16[32,384], index: 18, kind: input, shape index: {}]
  %s19 = inlined_call_operand.hbm [shape: bf16[128,384], index: 19, kind: input, shape index: {}]
  %s20 = inlined_call_operand.hbm [shape: f32[1,384], index: 20, kind: input, shape index: {}]
  %s21 = inlined_call_operand.hbm [shape: f32[1,128], index: 21, kind: input, shape index: {}]
  %s22 = inlined_call_operand.hbm [shape: f32[128,128], index: 22, kind: input, shape index: {}]
  %s23 = inlined_call_operand.hbm [shape: f32[128,128], index: 23, kind: input, shape index: {}]
  %s24 = inlined_call_operand.hbm [shape: f32[1,128], index: 24, kind: input, shape index: {}]
  %s25 = inlined_call_operand.hbm [shape: f32[2,128], index: 25, kind: output, shape index: {}]
  %s26 = sld [smem:[#allocation0]]
  $region210: #{tpu_custom_call.1} parent=0
    _
  %s28 = ssub.s32 1, %s26
  %s29 = scalar_select 0, %s28, %s26
  $region1: #{tpu_custom_call.1} parent=0
    #allocation2 [shape = 'u8[4096]{0}', space=vmem, size = 0x1000, scoped, tag = 'input window, operand 0, single buffered']
    #allocation3 [shape = 's32[1]{0}', space=sflag, size = 0x4, scoped, tag = 'scoped memory for tpu_custom_call.1']
    #allocation4 [shape = 's32[1]{0}', space=sflag, size = 0x4, scoped, tag = 'scoped memory for tpu_custom_call.1']
    #allocation5 [shape = 'u8[4096]{0}', space=vmem, size = 0x1000, scoped, tag = 'input window, operand 1, single buffered']
    #allocation6 [shape = 's32[1]{0}', space=sflag, size = 0x4, scoped, tag = 'scoped memory for tpu_custom_call.1']
    #allocation7 [shape = 'u8[1024]{0}', space=vmem, size = 0x400, scoped, tag = 'input window, operand 2, single buffered']
    #allocation8 [shape = 'u8[8192]{0}', space=vmem, size = 0x2000, scoped, tag = 'input window, operand 3, single buffered']
    #allocation9 [shape = 's32[1]{0}', space=sflag, size = 0x4, scoped, tag = 'scoped memory for tpu_custom_call.1']
    #allocation10 [shape = 'u8[24576]{0}', space=vmem, size = 0x6000, scoped, tag = 'input window, operand 4, single buffered']
    #allocation11 [shape = 'u8[98304]{0}', space=vmem, size = 0x18000, scoped, tag = 'input window, operand 5, single buffered']
    #allocation12 [shape = 's32[1]{0}', space=sflag, size = 0x4, scoped, tag = 'scoped memory for tpu_custom_call.1']
    #allocation13 [shape = 'u8[1536]{0}', space=vmem, size = 0x800, scoped, tag = 'input window, operand 6, single buffered']
    #allocation14 [shape = 'u8[512]{0}', space=vmem, size = 0x400, scoped, tag = 'input window, operand 7, single buffered']
    #allocation15 [shape = 's32[1]{0}', space=sflag, size = 0x4, scoped, tag = 'scoped memory for tpu_custom_call.1']
    #allocation16 [shape = 'u8[24576]{0}', space=vmem, size = 0x6000, scoped, tag = 'input window, operand 8, single buffered']
    #allocation17 [shape = 'u8[98304]{0}', space=vmem, size = 0x18000, scoped, tag = 'input window, operand 9, single buffered']
    #allocation18 [shape = 's32[1]{0}', space=sflag, size = 0x4, scoped, tag = 'scoped memory for tpu_custom_call.1']
    #allocation19 [shape = 'u8[1536]{0}', space=vmem, size = 0x800, scoped, tag = 'input window, operand 10, single buffered']
    #allocation20 [shape = 'u8[512]{0}', space=vmem, size = 0x400, scoped, tag = 'input window, operand 11, single buffered']
    #allocation21 [shape = 's32[1]{0}', space=sflag, size = 0x4, scoped, tag = 'scoped memory for tpu_custom_call.1']
    #allocation22 [shape = 'u8[24576]{0}', space=vmem, size = 0x6000, scoped, tag = 'input window, operand 12, single buffered']
    #allocation23 [shape = 'u8[24576]{0}', space=vmem, size = 0x6000, scoped, tag = 'input window, operand 13, single buffered']
    #allocation24 [shape = 's32[1]{0}', space=sflag, size = 0x4, scoped, tag = 'scoped memory for tpu_custom_call.1']
    #allocation25 [shape = 'u8[98304]{0}', space=vmem, size = 0x18000, scoped, tag = 'input window, operand 14, single buffered']
    #allocation26 [shape = 'u8[1536]{0}', space=vmem, size = 0x800, scoped, tag = 'input window, operand 15, single buffered']
    #allocation27 [shape = 's32[1]{0}', space=sflag, size = 0x4, scoped, tag = 'scoped memory for tpu_custom_call.1']
    #allocation28 [shape = 'u8[512]{0}', space=vmem, size = 0x400, scoped, tag = 'input window, operand 16, single buffered']
    #allocation29 [shape = 'u8[24576]{0}', space=vmem, size = 0x6000, scoped, tag = 'input window, operand 17, single buffered']
    #allocation30 [shape = 's32[1]{0}', space=sflag, size = 0x4, scoped, tag = 'scoped memory for tpu_custom_call.1']
    #allocation31 [shape = 'u8[24576]{0}', space=vmem, size = 0x6000, scoped, tag = 'input window, operand 18, single buffered']
    #allocation32 [shape = 'u8[98304]{0}', space=vmem, size = 0x18000, scoped, tag = 'input window, operand 19, single buffered']
    #allocation33 [shape = 's32[1]{0}', space=sflag, size = 0x4, scoped, tag = 'scoped memory for tpu_custom_call.1']
    #allocation34 [shape = 'u8[1536]{0}', space=vmem, size = 0x800, scoped, tag = 'input window, operand 20, single buffered']
    #allocation35 [shape = 'u8[512]{0}', space=vmem, size = 0x400, scoped, tag = 'input window, operand 21, single buffered']
    #allocation36 [shape = 's32[1]{0}', space=sflag, size = 0x4, scoped, tag = 'scoped memory for tpu_custom_call.1']
    #allocation37 [shape = 'u8[65536]{0}', space=vmem, size = 0x10000, scoped, tag = 'input window, operand 22, single buffered']
    #allocation38 [shape = 'u8[65536]{0}', space=vmem, size = 0x10000, scoped, tag = 'input window, operand 23, single buffered']
    #allocation39 [shape = 's32[1]{0}', space=sflag, size = 0x4, scoped, tag = 'scoped memory for tpu_custom_call.1']
    #allocation40 [shape = 'u8[512]{0}', space=vmem, size = 0x400, scoped, tag = 'input window, operand 24, single buffered']
    #allocation41 [shape = 'u8[1024]{0}', space=vmem, size = 0x400, scoped, tag = 'output window, operand 0, single buffered']
    %30 = vsyncpa [#allocation3], 0
    %31 = vsyncpa [#allocation6], 0
    %32 = vsyncpa [#allocation9], 0
    %33 = vsyncpa [#allocation12], 0
    %34 = vsyncpa [#allocation15], 0
    %35 = vsyncpa [#allocation18], 0
    %36 = vsyncpa [#allocation21], 0
    %37 = vsyncpa [#allocation24], 0
    %38 = vsyncpa [#allocation27], 0
    %39 = vsyncpa [#allocation30], 0
    %40 = vsyncpa [#allocation33], 0
    %41 = vsyncpa [#allocation36], 0
    %42 = vsyncpa [#allocation39], 0
    %43 = vsyncpa [#allocation4], 0
    // Predicated region
    $region2: #{tpu_custom_call.1} parent=1 // pred_check
      _
    $region3: #{tpu_custom_call.1} parent=1 // pred_check_branch
      %45 = sbr.rel (0) target = $region5
    $region4: #{tpu_custom_call.1} parent=1 // pred_region
      %s47 = ssub.s32 128, 128
      %48 = vsyncadd [#allocation3], %s47
      %s49 = sshll.u32 [#allocation2], 4
      %s50 = int_to_ptr.vmem [resolvable:$true] %s49
      %55 = dma.hbm_to_vmem [thread:$0]  %s0, 128, %s50, [#allocation3], 64, 64, 4
    $region5: #{tpu_custom_call.1} parent=1 // pred_fallthru
      _
    // Predicated region
    $region6: #{tpu_custom_call.1} parent=1 // pred_check
      _
    $region7: #{tpu_custom_call.1} parent=1 // pred_check_branch
      %57 = sbr.rel (0) target = $region9
    $region8: #{tpu_custom_call.1} parent=1 // pred_region
      %s59 = ssub.s32 128, 128
      %60 = vsyncadd [#allocation6], %s59
      %s61 = sshll.u32 [#allocation5], 4
      %s62 = int_to_ptr.vmem [resolvable:$true] %s61
      %67 = dma.hbm_to_vmem [thread:$0]  %s1, 128, %s62, [#allocation6], 64, 64, 4
    $region9: #{tpu_custom_call.1} parent=1 // pred_fallthru
      _
    // Predicated region
    $region10: #{tpu_custom_call.1} parent=1 // pred_check
      _
    $region11: #{tpu_custom_call.1} parent=1 // pred_check_branch
      %69 = sbr.rel (0) target = $region13
    $region12: #{tpu_custom_call.1} parent=1 // pred_region
      %s71 = ssub.s32 32, 32
      %72 = vsyncadd [#allocation6], %s71
      %s73 = sshll.u32 [#allocation7], 4
      %s74 = int_to_ptr.vmem [resolvable:$true] %s73
      %79 = dma.hbm_to_vmem [thread:$0]  %s2, 32, %s74, [#allocation6], 16, 16, 1
    $region13: #{tpu_custom_call.1} parent=1 // pred_fallthru
      _
    // Predicated region
    $region14: #{tpu_custom_call.1} parent=1 // pred_check
      _
    $region15: #{tpu_custom_call.1} parent=1 // pred_check_branch
      %81 = sbr.rel (0) target = $region17
    $region16: #{tpu_custom_call.1} parent=1 // pred_region
      %s83 = ssub.s32 256, 256
      %84 = vsyncadd [#allocation9], %s83
      %s85 = sshll.u32 [#allocation8], 4
      %s86 = int_to_ptr.vmem [resolvable:$true] %s85
      %91 = dma.hbm_to_vmem [thread:$0]  %s3, 256, %s86, [#allocation9], 64, 64, 4
    $region17: #{tpu_custom_call.1} parent=1 // pred_fallthru
      _
    // Predicated region
    $region18: #{tpu_custom_call.1} parent=1 // pred_check
      _
    $region19: #{tpu_custom_call.1} parent=1 // pred_check_branch
      %93 = sbr.rel (0) target = $region21
    $region20: #{tpu_custom_call.1} parent=1 // pred_region
      %s95 = ssub.s32 768, 768
      %96 = vsyncadd [#allocation9], %s95
      %s97 = sshll.u32 [#allocation10], 4
      %s98 = int_to_ptr.vmem [resolvable:$true] %s97
      %103 = dma.hbm_to_vmem [thread:$0]  %s4, 768, %s98, [#allocation9], 192, 192, 12
    $region21: #{tpu_custom_call.1} parent=1 // pred_fallthru
      _
    // Predicated region
    $region22: #{tpu_custom_call.1} parent=1 // pred_check
      _
    $region23: #{tpu_custom_call.1} parent=1 // pred_check_branch
      %105 = sbr.rel (0) target = $region25
    $region24: #{tpu_custom_call.1} parent=1 // pred_region
      %s107 = ssub.s32 3072, 3072
      %108 = vsyncadd [#allocation12], %s107
      %s109 = sshll.u32 [#allocation11], 4
      %s110 = int_to_ptr.vmem [resolvable:$true] %s109
      %115 = dma.hbm_to_vmem [thread:$0]  %s5, 3072, %s110, [#allocation12], 192, 192, 12
    $region25: #{tpu_custom_call.1} parent=1 // pred_fallthru
      _
    // Predicated region
    $region26: #{tpu_custom_call.1} parent=1 // pred_check
      _
    $region27: #{tpu_custom_call.1} parent=1 // pred_check_branch
      %117 = sbr.rel (0) target = $region29
    $region28: #{tpu_custom_call.1} parent=1 // pred_region
      %s119 = ssub.s32 48, 48
      %120 = vsyncadd [#allocation12], %s119
      %s122 = sshll.u32 [#allocation13], 4
      %s123 = int_to_ptr.vmem [resolvable:$true] %s122
      %125 = dma.hbm_to_vmem [thread:$0]  %s6, 48, %s123, [#allocation12]
    $region29: #{tpu_custom_call.1} parent=1 // pred_fallthru
      _
    // Predicated region
    $region30: #{tpu_custom_call.1} parent=1 // pred_check
      _
    $region31: #{tpu_custom_call.1} parent=1 // pred_check_branch
      %127 = sbr.rel (0) target = $region33
    $region32: #{tpu_custom_call.1} parent=1 // pred_region
      %s129 = ssub.s32 16, 16
      %130 = vsyncadd [#allocation15], %s129
      %s132 = sshll.u32 [#allocation14], 4
      %s133 = int_to_ptr.vmem [resolvable:$true] %s132
      %135 = dma.hbm_to_vmem [thread:$0]  %s7, 16, %s133, [#allocation15]
    $region33: #{tpu_custom_call.1} parent=1 // pred_fallthru
      _
    // Predicated region
    $region34: #{tpu_custom_call.1} parent=1 // pred_check
      _
    $region35: #{tpu_custom_call.1} parent=1 // pred_check_branch
      %137 = sbr.rel (0) target = $region37
    $region36: #{tpu_custom_call.1} parent=1 // pred_region
      %s139 = ssub.s32 768, 768
      %140 = vsyncadd [#allocation15], %s139
      %s141 = sshll.u32 [#allocation16], 4
      %s142 = int_to_ptr.vmem [resolvable:$true] %s141
      %147 = dma.hbm_to_vmem [thread:$0]  %s8, 768, %s142, [#allocation15], 192, 192, 12
    $region37: #{tpu_custom_call.1} parent=1 // pred_fallthru
      _
    // Predicated region
    $region38: #{tpu_custom_call.1} parent=1 // pred_check
      _
    $region39: #{tpu_custom_call.1} parent=1 // pred_check_branch
      %149 = sbr.rel (0) target = $region41
    $region40: #{tpu_custom_call.1} parent=1 // pred_region
      %s151 = ssub.s32 3072, 3072
      %152 = vsyncadd [#allocation18], %s151
      %s153 = sshll.u32 [#allocation17], 4
      %s154 = int_to_ptr.vmem [resolvable:$true] %s153
      %159 = dma.hbm_to_vmem [thread:$0]  %s9, 3072, %s154, [#allocation18], 192, 192, 12
    $region41: #{tpu_custom_call.1} parent=1 // pred_fallthru
      _
    // Predicated region
    $region42: #{tpu_custom_call.1} parent=1 // pred_check
      _
    $region43: #{tpu_custom_call.1} parent=1 // pred_check_branch
      %161 = sbr.rel (0) target = $region45
    $region44: #{tpu_custom_call.1} parent=1 // pred_region
      %s163 = ssub.s32 48, 48
      %164 = vsyncadd [#allocation18], %s163
      %s166 = sshll.u32 [#allocation19], 4
      %s167 = int_to_ptr.vmem [resolvable:$true] %s166
      %169 = dma.hbm_to_vmem [thread:$0]  %s10, 48, %s167, [#allocation18]
    $region45: #{tpu_custom_call.1} parent=1 // pred_fallthru
      _
    // Predicated region
    $region46: #{tpu_custom_call.1} parent=1 // pred_check
      _
    $region47: #{tpu_custom_call.1} parent=1 // pred_check_branch
      %171 = sbr.rel (0) target = $region49
    $region48: #{tpu_custom_call.1} parent=1 // pred_region
      %s173 = ssub.s32 16, 16
      %174 = vsyncadd [#allocation21], %s173
      %s176 = sshll.u32 [#allocation20], 4
      %s177 = int_to_ptr.vmem [resolvable:$true] %s176
      %179 = dma.hbm_to_vmem [thread:$0]  %s11, 16, %s177, [#allocation21]
    $region49: #{tpu_custom_call.1} parent=1 // pred_fallthru
      _
    // Predicated region
    $region50: #{tpu_custom_call.1} parent=1 // pred_check
      _
    $region51: #{tpu_custom_call.1} parent=1 // pred_check_branch
      %181 = sbr.rel (0) target = $region53
    $region52: #{tpu_custom_call.1} parent=1 // pred_region
      %s183 = ssub.s32 768, 768
      %184 = vsyncadd [#allocation21], %s183
      %s185 = sshll.u32 [#allocation22], 4
      %s186 = int_to_ptr.vmem [resolvable:$true] %s185
      %191 = dma.hbm_to_vmem [thread:$0]  %s12, 768, %s186, [#allocation21], 192, 192, 12
    $region53: #{tpu_custom_call.1} parent=1 // pred_fallthru
      _
    // Predicated region
    $region54: #{tpu_custom_call.1} parent=1 // pred_check
      _
    $region55: #{tpu_custom_call.1} parent=1 // pred_check_branch
      %193 = sbr.rel (0) target = $region57
    $region56: #{tpu_custom_call.1} parent=1 // pred_region
      %s195 = ssub.s32 768, 768
      %196 = vsyncadd [#allocation24], %s195
      %s197 = sshll.u32 [#allocation23], 4
      %s198 = int_to_ptr.vmem [resolvable:$true] %s197
      %203 = dma.hbm_to_vmem [thread:$0]  %s13, 768, %s198, [#allocation24], 192, 192, 12
    $region57: #{tpu_custom_call.1} parent=1 // pred_fallthru
      _
    // Predicated region
    $region58: #{tpu_custom_call.1} parent=1 // pred_check
      _
    $region59: #{tpu_custom_call.1} parent=1 // pred_check_branch
      %205 = sbr.rel (0) target = $region61
    $region60: #{tpu_custom_call.1} parent=1 // pred_region
      %s207 = ssub.s32 3072, 3072
      %208 = vsyncadd [#allocation24], %s207
      %s209 = sshll.u32 [#allocation25], 4
      %s210 = int_to_ptr.vmem [resolvable:$true] %s209
      %215 = dma.hbm_to_vmem [thread:$0]  %s14, 3072, %s210, [#allocation24], 192, 192, 12
    $region61: #{tpu_custom_call.1} parent=1 // pred_fallthru
      _
    // Predicated region
    $region62: #{tpu_custom_call.1} parent=1 // pred_check
      _
    $region63: #{tpu_custom_call.1} parent=1 // pred_check_branch
      %217 = sbr.rel (0) target = $region65
    $region64: #{tpu_custom_call.1} parent=1 // pred_region
      %s219 = ssub.s32 48, 48
      %220 = vsyncadd [#allocation27], %s219
      %s222 = sshll.u32 [#allocation26], 4
      %s223 = int_to_ptr.vmem [resolvable:$true] %s222
      %225 = dma.hbm_to_vmem [thread:$0]  %s15, 48, %s223, [#allocation27]
    $region65: #{tpu_custom_call.1} parent=1 // pred_fallthru
      _
    // Predicated region
    $region66: #{tpu_custom_call.1} parent=1 // pred_check
      _
    $region67: #{tpu_custom_call.1} parent=1 // pred_check_branch
      %227 = sbr.rel (0) target = $region69
    $region68: #{tpu_custom_call.1} parent=1 // pred_region
      %s229 = ssub.s32 16, 16
      %230 = vsyncadd [#allocation27], %s229
      %s232 = sshll.u32 [#allocation28], 4
      %s233 = int_to_ptr.vmem [resolvable:$true] %s232
      %235 = dma.hbm_to_vmem [thread:$0]  %s16, 16, %s233, [#allocation27]
    $region69: #{tpu_custom_call.1} parent=1 // pred_fallthru
      _
    // Predicated region
    $region70: #{tpu_custom_call.1} parent=1 // pred_check
      _
    $region71: #{tpu_custom_call.1} parent=1 // pred_check_branch
      %237 = sbr.rel (0) target = $region73
    $region72: #{tpu_custom_call.1} parent=1 // pred_region
      %s239 = ssub.s32 768, 768
      %240 = vsyncadd [#allocation30], %s239
      %s241 = sshll.u32 [#allocation29], 4
      %s242 = int_to_ptr.vmem [resolvable:$true] %s241
      %247 = dma.hbm_to_vmem [thread:$0]  %s17, 768, %s242, [#allocation30], 192, 192, 12
    $region73: #{tpu_custom_call.1} parent=1 // pred_fallthru
      _
    // Predicated region
    $region74: #{tpu_custom_call.1} parent=1 // pred_check
      _
    $region75: #{tpu_custom_call.1} parent=1 // pred_check_branch
      %249 = sbr.rel (0) target = $region77
    $region76: #{tpu_custom_call.1} parent=1 // pred_region
      %s251 = ssub.s32 768, 768
      %252 = vsyncadd [#allocation30], %s251
      %s253 = sshll.u32 [#allocation31], 4
      %s254 = int_to_ptr.vmem [resolvable:$true] %s253
      %259 = dma.hbm_to_vmem [thread:$0]  %s18, 768, %s254, [#allocation30], 192, 192, 12
    $region77: #{tpu_custom_call.1} parent=1 // pred_fallthru
      _
    // Predicated region
    $region78: #{tpu_custom_call.1} parent=1 // pred_check
      _
    $region79: #{tpu_custom_call.1} parent=1 // pred_check_branch
      %261 = sbr.rel (0) target = $region81
    $region80: #{tpu_custom_call.1} parent=1 // pred_region
      %s263 = ssub.s32 3072, 3072
      %264 = vsyncadd [#allocation33], %s263
      %s265 = sshll.u32 [#allocation32], 4
      %s266 = int_to_ptr.vmem [resolvable:$true] %s265
      %271 = dma.hbm_to_vmem [thread:$0]  %s19, 3072, %s266, [#allocation33], 192, 192, 12
    $region81: #{tpu_custom_call.1} parent=1 // pred_fallthru
      _
    // Predicated region
    $region82: #{tpu_custom_call.1} parent=1 // pred_check
      _
    $region83: #{tpu_custom_call.1} parent=1 // pred_check_branch
      %273 = sbr.rel (0) target = $region85
    $region84: #{tpu_custom_call.1} parent=1 // pred_region
      %s275 = ssub.s32 48, 48
      %276 = vsyncadd [#allocation33], %s275
      %s278 = sshll.u32 [#allocation34], 4
      %s279 = int_to_ptr.vmem [resolvable:$true] %s278
      %281 = dma.hbm_to_vmem [thread:$0]  %s20, 48, %s279, [#allocation33]
    $region85: #{tpu_custom_call.1} parent=1 // pred_fallthru
      _
    // Predicated region
    $region86: #{tpu_custom_call.1} parent=1 // pred_check
      _
    $region87: #{tpu_custom_call.1} parent=1 // pred_check_branch
      %283 = sbr.rel (0) target = $region89
    $region88: #{tpu_custom_call.1} parent=1 // pred_region
      %s285 = ssub.s32 16, 16
      %286 = vsyncadd [#allocation36], %s285
      %s288 = sshll.u32 [#allocation35], 4
      %s289 = int_to_ptr.vmem [resolvable:$true] %s288
      %291 = dma.hbm_to_vmem [thread:$0]  %s21, 16, %s289, [#allocation36]
    $region89: #{tpu_custom_call.1} parent=1 // pred_fallthru
      _
    // Predicated region
    $region90: #{tpu_custom_call.1} parent=1 // pred_check
      _
    $region91: #{tpu_custom_call.1} parent=1 // pred_check_branch
      %293 = sbr.rel (0) target = $region93
    $region92: #{tpu_custom_call.1} parent=1 // pred_region
      %s295 = ssub.s32 2048, 2048
      %296 = vsyncadd [#allocation36], %s295
      %s297 = sshll.u32 [#allocation37], 4
      %s298 = int_to_ptr.vmem [resolvable:$true] %s297
      %303 = dma.hbm_to_vmem [thread:$0]  %s22, 2048, %s298, [#allocation36], 128, 128, 8
    $region93: #{tpu_custom_call.1} parent=1 // pred_fallthru
      _
    // Predicated region
    $region94: #{tpu_custom_call.1} parent=1 // pred_check
      _
    $region95: #{tpu_custom_call.1} parent=1 // pred_check_branch
      %305 = sbr.rel (0) target = $region97
    $region96: #{tpu_custom_call.1} parent=1 // pred_region
      %s307 = ssub.s32 2048, 2048
      %308 = vsyncadd [#allocation39], %s307
      %s309 = sshll.u32 [#allocation38], 4
      %s310 = int_to_ptr.vmem [resolvable:$true] %s309
      %315 = dma.hbm_to_vmem [thread:$0]  %s23, 2048, %s310, [#allocation39], 128, 128, 8
    $region97: #{tpu_custom_call.1} parent=1 // pred_fallthru
      _
    // Predicated region
    $region98: #{tpu_custom_call.1} parent=1 // pred_check
      _
    $region99: #{tpu_custom_call.1} parent=1 // pred_check_branch
      %317 = sbr.rel (0) target = $region101
    $region100: #{tpu_custom_call.1} parent=1 // pred_region
      %s319 = ssub.s32 16, 16
      %320 = vsyncadd [#allocation39], %s319
      %s322 = sshll.u32 [#allocation40], 4
      %s323 = int_to_ptr.vmem [resolvable:$true] %s322
      %325 = dma.hbm_to_vmem [thread:$0]  %s24, 16, %s323, [#allocation39]
    $region101: #{tpu_custom_call.1} parent=1 // pred_fallthru
      _
    // Predicated region
    $region102: #{tpu_custom_call.1} parent=1 // pred_check
      _
    $region103: #{tpu_custom_call.1} parent=1 // pred_check_branch
      %327 = sbr.rel (0) target = $region105
    $region104: #{tpu_custom_call.1} parent=1 // pred_region
      %328 = dma.done [#allocation3], 128
    $region105: #{tpu_custom_call.1} parent=1 // pred_fallthru
      _
    // Predicated region
    $region106: #{tpu_custom_call.1} parent=1 // pred_check
      _
    $region107: #{tpu_custom_call.1} parent=1 // pred_check_branch
      %330 = sbr.rel (0) target = $region109
    $region108: #{tpu_custom_call.1} parent=1 // pred_region
      %331 = dma.done [#allocation6], 128
    $region109: #{tpu_custom_call.1} parent=1 // pred_fallthru
      _
    // Predicated region
    $region110: #{tpu_custom_call.1} parent=1 // pred_check
      _
    $region111: #{tpu_custom_call.1} parent=1 // pred_check_branch
      %333 = sbr.rel (0) target = $region113
    $region112: #{tpu_custom_call.1} parent=1 // pred_region
      %334 = dma.done [#allocation6], 32
    $region113: #{tpu_custom_call.1} parent=1 // pred_fallthru
      _
    // Predicated region
    $region114: #{tpu_custom_call.1} parent=1 // pred_check
      _
    $region115: #{tpu_custom_call.1} parent=1 // pred_check_branch
      %336 = sbr.rel (0) target = $region117
    $region116: #{tpu_custom_call.1} parent=1 // pred_region
      %337 = dma.done [#allocation9], 256
    $region117: #{tpu_custom_call.1} parent=1 // pred_fallthru
      _
    // Predicated region
    $region118: #{tpu_custom_call.1} parent=1 // pred_check
      _
    $region119: #{tpu_custom_call.1} parent=1 // pred_check_branch
      %339 = sbr.rel (0) target = $region121
    $region120: #{tpu_custom_call.1} parent=1 // pred_region
      %340 = dma.done [#allocation9], 768
    $region121: #{tpu_custom_call.1} parent=1 // pred_fallthru
      _
    // Predicated region
    $region122: #{tpu_custom_call.1} parent=1 // pred_check
      _
    $region123: #{tpu_custom_call.1} parent=1 // pred_check_branch
      %342 = sbr.rel (0) target = $region125
    $region124: #{tpu_custom_call.1} parent=1 // pred_region
      %343 = dma.done [#allocation12], 3072
    $region125: #{tpu_custom_call.1} parent=1 // pred_fallthru
      _
    // Predicated region
    $region126: #{tpu_custom_call.1} parent=1 // pred_check
      _
    $region127: #{tpu_custom_call.1} parent=1 // pred_check_branch
      %345 = sbr.rel (0) target = $region129
    $region128: #{tpu_custom_call.1} parent=1 // pred_region
      %346 = dma.done [#allocation12], 48
    $region129: #{tpu_custom_call.1} parent=1 // pred_fallthru
      _
    // Predicated region
    $region130: #{tpu_custom_call.1} parent=1 // pred_check
      _
    $region131: #{tpu_custom_call.1} parent=1 // pred_check_branch
      %348 = sbr.rel (0) target = $region133
    $region132: #{tpu_custom_call.1} parent=1 // pred_region
      %349 = dma.done [#allocation15], 16
    $region133: #{tpu_custom_call.1} parent=1 // pred_fallthru
      _
    // Predicated region
    $region134: #{tpu_custom_call.1} parent=1 // pred_check
      _
    $region135: #{tpu_custom_call.1} parent=1 // pred_check_branch
      %351 = sbr.rel (0) target = $region137
    $region136: #{tpu_custom_call.1} parent=1 // pred_region
      %352 = dma.done [#allocation15], 768
    $region137: #{tpu_custom_call.1} parent=1 // pred_fallthru
      _
    // Predicated region
    $region138: #{tpu_custom_call.1} parent=1 // pred_check
      _
    $region139: #{tpu_custom_call.1} parent=1 // pred_check_branch
      %354 = sbr.rel (0) target = $region141
    $region140: #{tpu_custom_call.1} parent=1 // pred_region
      %355 = dma.done [#allocation18], 3072
    $region141: #{tpu_custom_call.1} parent=1 // pred_fallthru
      _
    // Predicated region
    $region142: #{tpu_custom_call.1} parent=1 // pred_check
      _
    $region143: #{tpu_custom_call.1} parent=1 // pred_check_branch
      %357 = sbr.rel (0) target = $region145
    $region144: #{tpu_custom_call.1} parent=1 // pred_region
      %358 = dma.done [#allocation18], 48
    $region145: #{tpu_custom_call.1} parent=1 // pred_fallthru
      _
    // Predicated region
    $region146: #{tpu_custom_call.1} parent=1 // pred_check
      _
    $region147: #{tpu_custom_call.1} parent=1 // pred_check_branch
      %360 = sbr.rel (0) target = $region149
    $region148: #{tpu_custom_call.1} parent=1 // pred_region
      %361 = dma.done [#allocation21], 16
    $region149: #{tpu_custom_call.1} parent=1 // pred_fallthru
      _
    // Predicated region
    $region150: #{tpu_custom_call.1} parent=1 // pred_check
      _
    $region151: #{tpu_custom_call.1} parent=1 // pred_check_branch
      %363 = sbr.rel (0) target = $region153
    $region152: #{tpu_custom_call.1} parent=1 // pred_region
      %364 = dma.done [#allocation21], 768
    $region153: #{tpu_custom_call.1} parent=1 // pred_fallthru
      _
    // Predicated region
    $region154: #{tpu_custom_call.1} parent=1 // pred_check
      _
    $region155: #{tpu_custom_call.1} parent=1 // pred_check_branch
      %366 = sbr.rel (0) target = $region157
    $region156: #{tpu_custom_call.1} parent=1 // pred_region
      %367 = dma.done [#allocation24], 768
    $region157: #{tpu_custom_call.1} parent=1 // pred_fallthru
      _
    // Predicated region
    $region158: #{tpu_custom_call.1} parent=1 // pred_check
      _
    $region159: #{tpu_custom_call.1} parent=1 // pred_check_branch
      %369 = sbr.rel (0) target = $region161
    $region160: #{tpu_custom_call.1} parent=1 // pred_region
      %370 = dma.done [#allocation24], 3072
    $region161: #{tpu_custom_call.1} parent=1 // pred_fallthru
      _
    // Predicated region
    $region162: #{tpu_custom_call.1} parent=1 // pred_check
      _
    $region163: #{tpu_custom_call.1} parent=1 // pred_check_branch
      %372 = sbr.rel (0) target = $region165
    $region164: #{tpu_custom_call.1} parent=1 // pred_region
      %373 = dma.done [#allocation27], 48
    $region165: #{tpu_custom_call.1} parent=1 // pred_fallthru
      _
    // Predicated region
    $region166: #{tpu_custom_call.1} parent=1 // pred_check
      _
    $region167: #{tpu_custom_call.1} parent=1 // pred_check_branch
      %375 = sbr.rel (0) target = $region169
    $region168: #{tpu_custom_call.1} parent=1 // pred_region
      %376 = dma.done [#allocation27], 16
    $region169: #{tpu_custom_call.1} parent=1 // pred_fallthru
      _
    // Predicated region
    $region170: #{tpu_custom_call.1} parent=1 // pred_check
      _
    $region171: #{tpu_custom_call.1} parent=1 // pred_check_branch
      %378 = sbr.rel (0) target = $region173
    $region172: #{tpu_custom_call.1} parent=1 // pred_region
      %379 = dma.done [#allocation30], 768
    $region173: #{tpu_custom_call.1} parent=1 // pred_fallthru
      _
    // Predicated region
    $region174: #{tpu_custom_call.1} parent=1 // pred_check
      _
    $region175: #{tpu_custom_call.1} parent=1 // pred_check_branch
      %381 = sbr.rel (0) target = $region177
    $region176: #{tpu_custom_call.1} parent=1 // pred_region
      %382 = dma.done [#allocation30], 768
    $region177: #{tpu_custom_call.1} parent=1 // pred_fallthru
      _
    // Predicated region
    $region178: #{tpu_custom_call.1} parent=1 // pred_check
      _
    $region179: #{tpu_custom_call.1} parent=1 // pred_check_branch
      %384 = sbr.rel (0) target = $region181
    $region180: #{tpu_custom_call.1} parent=1 // pred_region
      %385 = dma.done [#allocation33], 3072
    $region181: #{tpu_custom_call.1} parent=1 // pred_fallthru
      _
    // Predicated region
    $region182: #{tpu_custom_call.1} parent=1 // pred_check
      _
    $region183: #{tpu_custom_call.1} parent=1 // pred_check_branch
      %387 = sbr.rel (0) target = $region185
    $region184: #{tpu_custom_call.1} parent=1 // pred_region
      %388 = dma.done [#allocation33], 48
    $region185: #{tpu_custom_call.1} parent=1 // pred_fallthru
      _
    // Predicated region
    $region186: #{tpu_custom_call.1} parent=1 // pred_check
      _
    $region187: #{tpu_custom_call.1} parent=1 // pred_check_branch
      %390 = sbr.rel (0) target = $region189
    $region188: #{tpu_custom_call.1} parent=1 // pred_region
      %391 = dma.done [#allocation36], 16
    $region189: #{tpu_custom_call.1} parent=1 // pred_fallthru
      _
    // Predicated region
    $region190: #{tpu_custom_call.1} parent=1 // pred_check
      _
    $region191: #{tpu_custom_call.1} parent=1 // pred_check_branch
      %393 = sbr.rel (0) target = $region193
    $region192: #{tpu_custom_call.1} parent=1 // pred_region
      %394 = dma.done [#allocation36], 2048
    $region193: #{tpu_custom_call.1} parent=1 // pred_fallthru
      _
    // Predicated region
    $region194: #{tpu_custom_call.1} parent=1 // pred_check
      _
    $region195: #{tpu_custom_call.1} parent=1 // pred_check_branch
      %396 = sbr.rel (0) target = $region197
    $region196: #{tpu_custom_call.1} parent=1 // pred_region
      %397 = dma.done [#allocation39], 2048
    $region197: #{tpu_custom_call.1} parent=1 // pred_fallthru
      _
    // Predicated region
    $region198: #{tpu_custom_call.1} parent=1 // pred_check
      _
    $region199: #{tpu_custom_call.1} parent=1 // pred_check_branch
      %399 = sbr.rel (0) target = $region201
    $region200: #{tpu_custom_call.1} parent=1 // pred_region
      %400 = dma.done [#allocation39], 16
    $region201: #{tpu_custom_call.1} parent=1 // pred_fallthru
      _
    %v402 = vld [vmem:[#allocation2] sm:$0xf]
    %v403 = vld [vmem:[#allocation2 + $0x4] sm:$0xf]
    %v404 = vld [vmem:[#allocation5] sm:$0xf]
    %v405 = vld [vmem:[#allocation5 + $0x4] sm:$0xf]
    %v406 = vld [vmem:[#allocation8] sm:$0xf]
    %v407 = vld [vmem:[#allocation8 + $0x4] sm:$0xf]
    %v408 = vld [vmem:[#allocation8 + $0x8] sm:$0xf]
    %v409 = vld [vmem:[#allocation8 + $0xc] sm:$0xf]
    %v412 = vunpack.c.l.b16 %v402
    %v413 = vunpack.c.l.b16 %v403
    %v414 = vpack.c.b16 %v413, %v412
    %v419 = vunpack.c.l.b16 %v406
    %v420 = vunpack.c.l.b16 %v407
    %v421 = vunpack.c.l.b16 %v408
    %v422 = vunpack.c.l.b16 %v409
    %v423 = vpack.c.b16 %v420, %v419
    %v424 = vpack.c.b16 %v422, %v421
    %vm427 = vcmask 261120
    %v429 = vsel %vm427, %v414, 0
    %431 = vmatprep.subr.bf16.mxu0 0
    %432 = vmatpush1.bf16.msra.mxu0 %v423
    %433 = vmatprep.subr.bf16.mxu0 0
    %434 = vmatpush1.bf16.msra.mxu0 %v424
    %435 = vmatprep.subr.bf16.mxu0 0
    %436 = vmatpush1.bf16.msra.mxu0 0
    %437 = vmatprep.subr.bf16.mxu0 0
    %438 = vmatpush1.bf16.msra.mxu0 0
    %439 = vmatprep.subr.bf16.mxu0 0
    %440 = vmatpush1.bf16.msra.mxu0 0
    %441 = vmatprep.subr.bf16.mxu0 0
    %442 = vmatpush1.bf16.msra.mxu0 0
    %443 = vmatprep.subr.bf16.mxu0 0
    %444 = vmatpush1.bf16.msra.mxu0 0
    %445 = vmatprep.subr.bf16.mxu0 0
    %446 = vmatpush1.bf16.msra.mxu0 0
    %447 = vmatprep.subr.bf16.mxu0 0
    %448 = vmatpush1.bf16.msra.mxu0 0
    %449 = vmatprep.subr.bf16.mxu0 0
    %450 = vmatpush1.bf16.msra.mxu0 0
    %451 = vmatprep.subr.bf16.mxu0 0
    %452 = vmatpush1.bf16.msra.mxu0 0
    %453 = vmatprep.subr.bf16.mxu0 0
    %454 = vmatpush1.bf16.msra.mxu0 0
    %455 = vmatprep.subr.bf16.mxu0 0
    %456 = vmatpush1.bf16.msra.mxu0 0
    %457 = vmatprep.subr.bf16.mxu0 0
    %458 = vmatpush1.bf16.msra.mxu0 0
    %459 = vmatprep.subr.bf16.mxu0 0
    %460 = vmatpush1.bf16.msra.mxu0 0
    %461 = vmatprep.subr.bf16.mxu0 0
    %462 = vmatpush1.bf16.msra.mxu0 0
    %463 = vmatprep.mubr.bf16.mxu0 0
    %464 = vmatmul.mubr.bf16.gmra.mrb[0].mxu0 %v429
    %v465 = vpop.f32.mrb[0].mxu0
    %v466 = vadd.f32 0.0, %v465
    %v467 = vpop.f32.mrb[0].mxu0
    %v468 = vpop.f32.mrb[0].mxu0
    %v469 = vadd.f32 0.0, %v468
    %v470 = vpop.f32.mrb[0].mxu0
    %471 = vdwg.mxu0
    %v472 = vmax.f32 %v466, 0.0
    %v473 = vmax.f32 %v469, 0.0
    %v476 = vunpack.c.l.b16 %v404
    %v477 = vunpack.c.l.b16 %v405
    %v478 = vpack.c.b16 %v477, %v476
    %v480 = vsel %vm427, %v478, 0
    %482 = vmatprep.subr.bf16.mxu0 0
    %483 = vmatpush1.bf16.msra.mxu0 %v423
    %484 = vmatprep.subr.bf16.mxu0 0
    %485 = vmatpush1.bf16.msra.mxu0 %v424
    %486 = vmatprep.subr.bf16.mxu0 0
    %487 = vmatpush1.bf16.msra.mxu0 0
    %488 = vmatprep.subr.bf16.mxu0 0
    %489 = vmatpush1.bf16.msra.mxu0 0
    %490 = vmatprep.subr.bf16.mxu0 0
    %491 = vmatpush1.bf16.msra.mxu0 0
    %492 = vmatprep.subr.bf16.mxu0 0
    %493 = vmatpush1.bf16.msra.mxu0 0
    %494 = vmatprep.subr.bf16.mxu0 0
    %495 = vmatpush1.bf16.msra.mxu0 0
    %496 = vmatprep.subr.bf16.mxu0 0
    %497 = vmatpush1.bf16.msra.mxu0 0
    %498 = vmatprep.subr.bf16.mxu0 0
    %499 = vmatpush1.bf16.msra.mxu0 0
    %500 = vmatprep.subr.bf16.mxu0 0
    %501 = vmatpush1.bf16.msra.mxu0 0
    %502 = vmatprep.subr.bf16.mxu0 0
    %503 = vmatpush1.bf16.msra.mxu0 0
    %504 = vmatprep.subr.bf16.mxu0 0
    %505 = vmatpush1.bf16.msra.mxu0 0
    %506 = vmatprep.subr.bf16.mxu0 0
    %507 = vmatpush1.bf16.msra.mxu0 0
    %508 = vmatprep.subr.bf16.mxu0 0
    %509 = vmatpush1.bf16.msra.mxu0 0
    %510 = vmatprep.subr.bf16.mxu0 0
    %511 = vmatpush1.bf16.msra.mxu0 0
    %512 = vmatprep.subr.bf16.mxu0 0
    %513 = vmatpush1.bf16.msra.mxu0 0
    %514 = vmatprep.mubr.bf16.mxu0 0
    %515 = vmatmul.mubr.bf16.gmra.mrb[0].mxu0 %v480
    %v516 = vpop.f32.mrb[0].mxu0
    %v517 = vadd.f32 0.0, %v516
    %v518 = vpop.f32.mrb[0].mxu0
    %v519 = vpop.f32.mrb[0].mxu0
    %v520 = vadd.f32 0.0, %v519
    %v521 = vpop.f32.mrb[0].mxu0
    %522 = vdwg.mxu0
    %v523 = vmax.f32 %v517, 0.0
    %v524 = vmax.f32 %v520, 0.0
    %v525 = vpack.c.bf16 %v472, %v472
    %v526 = vpack.c.bf16 %v473, %v473
    %v527 = vpack.c.bf16 %v523, %v523
    %v528 = vpack.c.bf16 %v524, %v524
    %v530 = vsel %vm427, %v525, 0
    %v533 = vsel %vm427, %v527, 0
    %535 = vmatprep.subr.bf16.mxu0 0
    %536 = vmatpush1.bf16.xpose.msra.mxu0 %v533
    %537 = vmatprep.subr.bf16.mxu0 0
    %538 = vmatpush1.bf16.xpose.msra.mxu0 0
    %539 = vmatprep.subr.bf16.mxu0 0
    %540 = vmatpush1.bf16.xpose.msra.mxu0 0
    %541 = vmatprep.subr.bf16.mxu0 0
    %542 = vmatpush1.bf16.xpose.msra.mxu0 0
    %543 = vmatprep.subr.bf16.mxu0 0
    %544 = vmatpush1.bf16.xpose.msra.mxu0 0
    %545 = vmatprep.subr.bf16.mxu0 0
    %546 = vmatpush1.bf16.xpose.msra.mxu0 0
    %547 = vmatprep.subr.bf16.mxu0 0
    %548 = vmatpush1.bf16.xpose.msra.mxu0 0
    %549 = vmatprep.subr.bf16.mxu0 0
    %550 = vmatpush1.bf16.xpose.msra.mxu0 0
    %551 = vmatprep.subr.bf16.mxu0 0
    %552 = vmatpush1.bf16.xpose.msra.mxu0 0
    %553 = vmatprep.subr.bf16.mxu0 0
    %554 = vmatpush1.bf16.xpose.msra.mxu0 0
    %555 = vmatprep.subr.bf16.mxu0 0
    %556 = vmatpush1.bf16.xpose.msra.mxu0 0
    %557 = vmatprep.subr.bf16.mxu0 0
    %558 = vmatpush1.bf16.xpose.msra.mxu0 0
    %559 = vmatprep.subr.bf16.mxu0 0
    %560 = vmatpush1.bf16.xpose.msra.mxu0 0
    %561 = vmatprep.subr.bf16.mxu0 0
    %562 = vmatpush1.bf16.xpose.msra.mxu0 0
    %563 = vmatprep.subr.bf16.mxu0 0
    %564 = vmatpush1.bf16.xpose.msra.mxu0 0
    %565 = vmatprep.subr.bf16.mxu0 0
    %566 = vmatpush1.bf16.xpose.msra.mxu0 0
    %567 = vmatprep.mubr.bf16.mxu0 0
    %568 = vmatmul.mubr.bf16.gmra.mrb[0].mxu0 %v530
    %v569 = vpop.f32.mrb[0].mxu0
    %v570 = vadd.f32 0.0, %v569
    %v571 = vpop.f32.mrb[0].mxu0
    %v572 = vpop.f32.mrb[0].mxu0
    %v573 = vpop.f32.mrb[0].mxu0
    %574 = vdwg.mxu0
    %v576 = vsel %vm427, %v526, 0
    %v579 = vsel %vm427, %v528, 0
    %581 = vmatprep.subr.bf16.mxu0 0
    %582 = vmatpush1.bf16.xpose.msra.mxu0 %v579
    %583 = vmatprep.subr.bf16.mxu0 0
    %584 = vmatpush1.bf16.xpose.msra.mxu0 0
    %585 = vmatprep.subr.bf16.mxu0 0
    %586 = vmatpush1.bf16.xpose.msra.mxu0 0
    %587 = vmatprep.subr.bf16.mxu0 0
    %588 = vmatpush1.bf16.xpose.msra.mxu0 0
    %589 = vmatprep.subr.bf16.mxu0 0
    %590 = vmatpush1.bf16.xpose.msra.mxu0 0
    %591 = vmatprep.subr.bf16.mxu0 0
    %592 = vmatpush1.bf16.xpose.msra.mxu0 0
    %593 = vmatprep.subr.bf16.mxu0 0
    %594 = vmatpush1.bf16.xpose.msra.mxu0 0
    %595 = vmatprep.subr.bf16.mxu0 0
    %596 = vmatpush1.bf16.xpose.msra.mxu0 0
    %597 = vmatprep.subr.bf16.mxu0 0
    %598 = vmatpush1.bf16.xpose.msra.mxu0 0
    %599 = vmatprep.subr.bf16.mxu0 0
    %600 = vmatpush1.bf16.xpose.msra.mxu0 0
    %601 = vmatprep.subr.bf16.mxu0 0
    %602 = vmatpush1.bf16.xpose.msra.mxu0 0
    %603 = vmatprep.subr.bf16.mxu0 0
    %604 = vmatpush1.bf16.xpose.msra.mxu0 0
    %605 = vmatprep.subr.bf16.mxu0 0
    %606 = vmatpush1.bf16.xpose.msra.mxu0 0
    %607 = vmatprep.subr.bf16.mxu0 0
    %608 = vmatpush1.bf16.xpose.msra.mxu0 0
    %609 = vmatprep.subr.bf16.mxu0 0
    %610 = vmatpush1.bf16.xpose.msra.mxu0 0
    %611 = vmatprep.subr.bf16.mxu0 0
    %612 = vmatpush1.bf16.xpose.msra.mxu0 0
    %613 = vmatprep.mubr.bf16.mxu0 0
    %614 = vmatmul.mubr.bf16.gmra.mrb[0].mxu0 %v576
    %v615 = vpop.f32.mrb[0].mxu0
    %v616 = vadd.f32 0.0, %v615
    %v617 = vpop.f32.mrb[0].mxu0
    %v618 = vpop.f32.mrb[0].mxu0
    %v619 = vpop.f32.mrb[0].mxu0
    %620 = vdwg.mxu0
    %vm621 = vcmask 64512
    %v622 = vsel %vm621, %v570, -inf
    %v623 = vrot.slane %v622, 4
    %v624 = vmax.f32 %v622, %v623
    %v625 = vrot.slane %v624, 2
    %v626 = vmax.f32 %v624, %v625
    %v627 = vrot.slane %v626, 1
    %v628 = vmax.f32 %v626, %v627
    %v629 = vsel %vm621, %v616, -inf
    %v630 = vrot.slane %v629, 4
    %v631 = vmax.f32 %v629, %v630
    %v632 = vrot.slane %v631, 2
    %v633 = vmax.f32 %v631, %v632
    %v634 = vrot.slane %v633, 1
    %v635 = vmax.f32 %v633, %v634
    %v636 = vsub.f32 %v570, %v628
    %v637 = vsub.f32 %v616, %v635
    %v638 = vmul.f32 %v636, 1.442695
    %v639 = vpow.pop %v638
    %v640 = vmul.f32 %v637, 1.442695
    %v641 = vpow.pop %v640
    %v642 = vld [vmem:[#allocation7] sm:$0x1]
    %v643 = vld [vmem:[#allocation7 + $0x1] sm:$0x1]
    %v646 = vlaneseq
    %v647 = vshrl.u32 %v646, 7
    %v648 = vsub.s32 0, %v647
    %v649 = vrot.slane %v642, %v648
    %v650 = vlaneseq
    %v651 = vshrl.u32 %v650, 7
    %v652 = vsub.s32 0, %v651
    %v653 = vrot.slane %v643, %v652
    %v656 = vmul.f32 %v639, %v649
    %v657 = vmul.f32 %v641, %v653
    %v658 = vsel %vm621, %v656, 0.0
    %v659 = vrot.slane %v658, 4
    %v660 = vadd.f32 %v658, %v659
    %v661 = vrot.slane %v660, 2
    %v662 = vadd.f32 %v660, %v661
    %v663 = vrot.slane %v662, 1
    %v664 = vadd.f32 %v662, %v663
    %v665 = vsel %vm621, %v657, 0.0
    %v666 = vrot.slane %v665, 4
    %v667 = vadd.f32 %v665, %v666
    %v668 = vrot.slane %v667, 2
    %v669 = vadd.f32 %v667, %v668
    %v670 = vrot.slane %v669, 1
    %v671 = vadd.f32 %v669, %v670
    %v672 = vadd.f32 %v664, 1e-10
    %v673 = vadd.f32 %v671, 1e-10
    %v674 = vrcp.pop %v672
    %v675 = vrcp.pop %v673
    %v676 = vmul.f32 %v656, %v674
    %v677 = vmul.f32 %v657, %v675
    %v678 = vpack.c.bf16 %v676, %v676
    %v679 = vpack.c.bf16 %v677, %v677
    %v681 = vsel %vm621, %v678, 0
    %vm683 = vcmask 1043456
    %v685 = vsel %vm683, %v404, 0
    %687 = vmatprep.subr.bf16.mxu0 0
    %688 = vmatpush1.bf16.msra.mxu0 %v685
    %689 = vmatprep.subr.bf16.mxu0 0
    %690 = vmatpush1.bf16.msra.mxu0 0
    %691 = vmatprep.subr.bf16.mxu0 0
    %692 = vmatpush1.bf16.msra.mxu0 0
    %693 = vmatprep.subr.bf16.mxu0 0
    %694 = vmatpush1.bf16.msra.mxu0 0
    %695 = vmatprep.subr.bf16.mxu0 0
    %696 = vmatpush1.bf16.msra.mxu0 0
    %697 = vmatprep.subr.bf16.mxu0 0
    %698 = vmatpush1.bf16.msra.mxu0 0
    %699 = vmatprep.subr.bf16.mxu0 0
    %700 = vmatpush1.bf16.msra.mxu0 0
    %701 = vmatprep.subr.bf16.mxu0 0
    %702 = vmatpush1.bf16.msra.mxu0 0
    %703 = vmatprep.subr.bf16.mxu0 0
    %704 = vmatpush1.bf16.msra.mxu0 0
    %705 = vmatprep.subr.bf16.mxu0 0
    %706 = vmatpush1.bf16.msra.mxu0 0
    %707 = vmatprep.subr.bf16.mxu0 0
    %708 = vmatpush1.bf16.msra.mxu0 0
    %709 = vmatprep.subr.bf16.mxu0 0
    %710 = vmatpush1.bf16.msra.mxu0 0
    %711 = vmatprep.subr.bf16.mxu0 0
    %712 = vmatpush1.bf16.msra.mxu0 0
    %713 = vmatprep.subr.bf16.mxu0 0
    %714 = vmatpush1.bf16.msra.mxu0 0
    %715 = vmatprep.subr.bf16.mxu0 0
    %716 = vmatpush1.bf16.msra.mxu0 0
    %717 = vmatprep.subr.bf16.mxu0 0
    %718 = vmatpush1.bf16.msra.mxu0 0
    %719 = vmatprep.mubr.bf16.mxu0 0
    %720 = vmatmul.mubr.bf16.gmra.mrb[0].mxu0 %v681
    %v721 = vpop.f32.mrb[0].mxu0
    %v722 = vadd.f32 0.0, %v721
    %v723 = vpop.f32.mrb[0].mxu0
    %v724 = vpop.f32.mrb[0].mxu0
    %v725 = vpop.f32.mrb[0].mxu0
    %726 = vdwg.mxu0
    %v728 = vsel %vm621, %v679, 0
    %v731 = vsel %vm683, %v405, 0
    %733 = vmatprep.subr.bf16.mxu0 0
    %734 = vmatpush1.bf16.msra.mxu0 %v731
    %735 = vmatprep.subr.bf16.mxu0 0
    %736 = vmatpush1.bf16.msra.mxu0 0
    %737 = vmatprep.subr.bf16.mxu0 0
    %738 = vmatpush1.bf16.msra.mxu0 0
    %739 = vmatprep.subr.bf16.mxu0 0
    %740 = vmatpush1.bf16.msra.mxu0 0
    %741 = vmatprep.subr.bf16.mxu0 0
    %742 = vmatpush1.bf16.msra.mxu0 0
    %743 = vmatprep.subr.bf16.mxu0 0
    %744 = vmatpush1.bf16.msra.mxu0 0
    %745 = vmatprep.subr.bf16.mxu0 0
    %746 = vmatpush1.bf16.msra.mxu0 0
    %747 = vmatprep.subr.bf16.mxu0 0
    %748 = vmatpush1.bf16.msra.mxu0 0
    %749 = vmatprep.subr.bf16.mxu0 0
    %750 = vmatpush1.bf16.msra.mxu0 0
    %751 = vmatprep.subr.bf16.mxu0 0
    %752 = vmatpush1.bf16.msra.mxu0 0
    %753 = vmatprep.subr.bf16.mxu0 0
    %754 = vmatpush1.bf16.msra.mxu0 0
    %755 = vmatprep.subr.bf16.mxu0 0
    %756 = vmatpush1.bf16.msra.mxu0 0
    %757 = vmatprep.subr.bf16.mxu0 0
    %758 = vmatpush1.bf16.msra.mxu0 0
    %759 = vmatprep.subr.bf16.mxu0 0
    %760 = vmatpush1.bf16.msra.mxu0 0
    %761 = vmatprep.subr.bf16.mxu0 0
    %762 = vmatpush1.bf16.msra.mxu0 0
    %763 = vmatprep.subr.bf16.mxu0 0
    %764 = vmatpush1.bf16.msra.mxu0 0
    %765 = vmatprep.mubr.bf16.mxu0 0
    %766 = vmatmul.mubr.bf16.gmra.mrb[0].mxu0 %v728
    %v767 = vpop.f32.mrb[0].mxu0
    %v768 = vadd.f32 0.0, %v767
    %v769 = vpop.f32.mrb[0].mxu0
    %v770 = vpop.f32.mrb[0].mxu0
    %v771 = vpop.f32.mrb[0].mxu0
    %772 = vdwg.mxu0
    %v773 = vpack.c.bf16 %v768, %v722
    %v774 = vld [vmem:[#allocation10] sm:$0xff]
    %v775 = vld [vmem:[#allocation10 + $0x8] sm:$0xf]
    %v776 = vld [vmem:[#allocation10 + $0xc] sm:$0xff]
    %v777 = vld [vmem:[#allocation10 + $0x14] sm:$0xf]
    %v778 = vld [vmem:[#allocation10 + $0x18] sm:$0xff]
    %v779 = vld [vmem:[#allocation10 + $0x20] sm:$0xf]
    %v780 = vld [vmem:[#allocation10 + $0x24] sm:$0xff]
    %v781 = vld [vmem:[#allocation10 + $0x2c] sm:$0xf]
    %v782 = vld [vmem:[#allocation13] sm:$0x7]
    %v784 = vlaneseq
    %v785 = vshrl.u32 %v784, 7
    %v786 = vsub.s32 0, %v785
    %v787 = vrot.slane %v782, %v786
    %v788 = vlaneseq
    %v789 = vshrl.u32 %v788, 7
    %v790 = vsub.s32 1, %v789
    %v791 = vrot.slane %v782, %v790
    %v792 = vlaneseq
    %v793 = vshrl.u32 %v792, 7
    %v794 = vsub.s32 2, %v793
    %v795 = vrot.slane %v782, %v794
    %v807 = vunpack.c.l.b16 %v774
    %v808 = vunpack.c.h.b16 %v774
    %v809 = vunpack.c.l.b16 %v775
    %v810 = vunpack.c.l.b16 %v776
    %v811 = vunpack.c.h.b16 %v776
    %v812 = vunpack.c.l.b16 %v777
    %v813 = vunpack.c.l.b16 %v778
    %v814 = vunpack.c.h.b16 %v778
    %v815 = vunpack.c.l.b16 %v779
    %v816 = vunpack.c.l.b16 %v780
    %v817 = vunpack.c.h.b16 %v780
    %v818 = vunpack.c.l.b16 %v781
    %v819 = vpack.c.b16 %v810, %v807
    %v820 = vpack.c.b16 %v811, %v808
    %v821 = vpack.c.b16 %v812, %v809
    %v822 = vpack.c.b16 %v816, %v813
    %v823 = vpack.c.b16 %v817, %v814
    %v824 = vpack.c.b16 %v818, %v815
    %831 = vmatprep.subr.bf16.mxu0 %v820
    %832 = vmatpush1.bf16.msra.mxu0 %v819
    %833 = vmatprep.subr.bf16.mxu0 %v823
    %834 = vmatpush1.bf16.msra.mxu0 %v822
    %835 = vmatprep.subr.bf16.mxu0 0
    %836 = vmatpush1.bf16.msra.mxu0 0
    %837 = vmatprep.subr.bf16.mxu0 0
    %838 = vmatpush1.bf16.msra.mxu0 0
    %839 = vmatprep.subr.bf16.mxu0 0
    %840 = vmatpush1.bf16.msra.mxu0 0
    %841 = vmatprep.subr.bf16.mxu0 0
    %842 = vmatpush1.bf16.msra.mxu0 0
    %843 = vmatprep.subr.bf16.mxu0 0
    %844 = vmatpush1.bf16.msra.mxu0 0
    %845 = vmatprep.subr.bf16.mxu0 0
    %846 = vmatpush1.bf16.msra.mxu0 0
    %847 = vmatprep.subr.bf16.mxu0 0
    %848 = vmatpush1.bf16.msra.mxu0 0
    %849 = vmatprep.subr.bf16.mxu0 0
    %850 = vmatpush1.bf16.msra.mxu0 0
    %851 = vmatprep.subr.bf16.mxu0 0
    %852 = vmatpush1.bf16.msra.mxu0 0
    %853 = vmatprep.subr.bf16.mxu0 0
    %854 = vmatpush1.bf16.msra.mxu0 0
    %855 = vmatprep.subr.bf16.mxu0 0
    %856 = vmatpush1.bf16.msra.mxu0 0
    %857 = vmatprep.subr.bf16.mxu0 0
    %858 = vmatpush1.bf16.msra.mxu0 0
    %859 = vmatprep.subr.bf16.mxu0 0
    %860 = vmatpush1.bf16.msra.mxu0 0
    %861 = vmatprep.subr.bf16.mxu0 0
    %862 = vmatpush1.bf16.msra.mxu0 0
    %863 = vmatprep.mubr.bf16.mxu0 0
    %864 = vmatmul.mubr.bf16.gmra.mrb[0].mxu0 %v429
    %v865 = vpop.f32.mrb[0].mxu0
    %v866 = vadd.f32 %v787, %v865
    %v867 = vpop.f32.mrb[0].mxu0
    %v868 = vadd.f32 %v791, %v867
    %v869 = vpop.f32.mrb[0].mxu0
    %v870 = vadd.f32 %v787, %v869
    %v871 = vpop.f32.mrb[0].mxu0
    %v872 = vadd.f32 %v791, %v871
    %873 = vdwg.mxu0
    %874 = vmatprep.subr.bf16.mxu0 0
    %875 = vmatpush1.bf16.msra.mxu0 %v821
    %876 = vmatprep.subr.bf16.mxu0 0
    %877 = vmatpush1.bf16.msra.mxu0 %v824
    %878 = vmatprep.subr.bf16.mxu0 0
    %879 = vmatpush1.bf16.msra.mxu0 0
    %880 = vmatprep.subr.bf16.mxu0 0
    %881 = vmatpush1.bf16.msra.mxu0 0
    %882 = vmatprep.subr.bf16.mxu0 0
    %883 = vmatpush1.bf16.msra.mxu0 0
    %884 = vmatprep.subr.bf16.mxu0 0
    %885 = vmatpush1.bf16.msra.mxu0 0
    %886 = vmatprep.subr.bf16.mxu0 0
    %887 = vmatpush1.bf16.msra.mxu0 0
    %888 = vmatprep.subr.bf16.mxu0 0
    %889 = vmatpush1.bf16.msra.mxu0 0
    %890 = vmatprep.subr.bf16.mxu0 0
    %891 = vmatpush1.bf16.msra.mxu0 0
    %892 = vmatprep.subr.bf16.mxu0 0
    %893 = vmatpush1.bf16.msra.mxu0 0
    %894 = vmatprep.subr.bf16.mxu0 0
    %895 = vmatpush1.bf16.msra.mxu0 0
    %896 = vmatprep.subr.bf16.mxu0 0
    %897 = vmatpush1.bf16.msra.mxu0 0
    %898 = vmatprep.subr.bf16.mxu0 0
    %899 = vmatpush1.bf16.msra.mxu0 0
    %900 = vmatprep.subr.bf16.mxu0 0
    %901 = vmatpush1.bf16.msra.mxu0 0
    %902 = vmatprep.subr.bf16.mxu0 0
    %903 = vmatpush1.bf16.msra.mxu0 0
    %904 = vmatprep.subr.bf16.mxu0 0
    %905 = vmatpush1.bf16.msra.mxu0 0
    %906 = vmatprep.mubr.bf16.mxu0 0
    %907 = vmatmul.mubr.bf16.gmra.mrb[0].mxu0 %v429
    %v908 = vpop.f32.mrb[0].mxu0
    %v909 = vadd.f32 %v795, %v908
    %v910 = vpop.f32.mrb[0].mxu0
    %v911 = vpop.f32.mrb[0].mxu0
    %v912 = vadd.f32 %v795, %v911
    %v913 = vpop.f32.mrb[0].mxu0
    %914 = vdwg.mxu0
    %v915 = vld [vmem:[#allocation16] sm:$0xff]
    %v916 = vld [vmem:[#allocation16 + $0x8] sm:$0xf]
    %v917 = vld [vmem:[#allocation16 + $0xc] sm:$0xff]
    %v918 = vld [vmem:[#allocation16 + $0x14] sm:$0xf]
    %v919 = vld [vmem:[#allocation16 + $0x18] sm:$0xff]
    %v920 = vld [vmem:[#allocation16 + $0x20] sm:$0xf]
    %v921 = vld [vmem:[#allocation16 + $0x24] sm:$0xff]
    %v922 = vld [vmem:[#allocation16 + $0x2c] sm:$0xf]
    %v923 = vld [vmem:[#allocation19] sm:$0x7]
    %v925 = vlaneseq
    %v926 = vshrl.u32 %v925, 7
    %v927 = vsub.s32 0, %v926
    %v928 = vrot.slane %v923, %v927
    %v929 = vlaneseq
    %v930 = vshrl.u32 %v929, 7
    %v931 = vsub.s32 1, %v930
    %v932 = vrot.slane %v923, %v931
    %v933 = vlaneseq
    %v934 = vshrl.u32 %v933, 7
    %v935 = vsub.s32 2, %v934
    %v936 = vrot.slane %v923, %v935
    %v948 = vunpack.c.l.b16 %v915
    %v949 = vunpack.c.h.b16 %v915
    %v950 = vunpack.c.l.b16 %v916
    %v951 = vunpack.c.l.b16 %v917
    %v952 = vunpack.c.h.b16 %v917
    %v953 = vunpack.c.l.b16 %v918
    %v954 = vunpack.c.l.b16 %v919
    %v955 = vunpack.c.h.b16 %v919
    %v956 = vunpack.c.l.b16 %v920
    %v957 = vunpack.c.l.b16 %v921
    %v958 = vunpack.c.h.b16 %v921
    %v959 = vunpack.c.l.b16 %v922
    %v960 = vpack.c.b16 %v951, %v948
    %v961 = vpack.c.b16 %v952, %v949
    %v962 = vpack.c.b16 %v953, %v950
    %v963 = vpack.c.b16 %v957, %v954
    %v964 = vpack.c.b16 %v958, %v955
    %v965 = vpack.c.b16 %v959, %v956
    %972 = vmatprep.subr.bf16.mxu0 %v961
    %973 = vmatpush1.bf16.msra.mxu0 %v960
    %974 = vmatprep.subr.bf16.mxu0 %v964
    %975 = vmatpush1.bf16.msra.mxu0 %v963
    %976 = vmatprep.subr.bf16.mxu0 0
    %977 = vmatpush1.bf16.msra.mxu0 0
    %978 = vmatprep.subr.bf16.mxu0 0
    %979 = vmatpush1.bf16.msra.mxu0 0
    %980 = vmatprep.subr.bf16.mxu0 0
    %981 = vmatpush1.bf16.msra.mxu0 0
    %982 = vmatprep.subr.bf16.mxu0 0
    %983 = vmatpush1.bf16.msra.mxu0 0
    %984 = vmatprep.subr.bf16.mxu0 0
    %985 = vmatpush1.bf16.msra.mxu0 0
    %986 = vmatprep.subr.bf16.mxu0 0
    %987 = vmatpush1.bf16.msra.mxu0 0
    %988 = vmatprep.subr.bf16.mxu0 0
    %989 = vmatpush1.bf16.msra.mxu0 0
    %990 = vmatprep.subr.bf16.mxu0 0
    %991 = vmatpush1.bf16.msra.mxu0 0
    %992 = vmatprep.subr.bf16.mxu0 0
    %993 = vmatpush1.bf16.msra.mxu0 0
    %994 = vmatprep.subr.bf16.mxu0 0
    %995 = vmatpush1.bf16.msra.mxu0 0
    %996 = vmatprep.subr.bf16.mxu0 0
    %997 = vmatpush1.bf16.msra.mxu0 0
    %998 = vmatprep.subr.bf16.mxu0 0
    %999 = vmatpush1.bf16.msra.mxu0 0
    %1000 = vmatprep.subr.bf16.mxu0 0
    %1001 = vmatpush1.bf16.msra.mxu0 0
    %1002 = vmatprep.subr.bf16.mxu0 0
    %1003 = vmatpush1.bf16.msra.mxu0 0
    %1004 = vmatprep.mubr.bf16.mxu0 0
    %1005 = vmatmul.mubr.bf16.gmra.mrb[0].mxu0 %v429
    %v1006 = vpop.f32.mrb[0].mxu0
    %v1007 = vadd.f32 %v928, %v1006
    %v1008 = vpop.f32.mrb[0].mxu0
    %v1009 = vadd.f32 %v932, %v1008
    %v1010 = vpop.f32.mrb[0].mxu0
    %v1011 = vadd.f32 %v928, %v1010
    %v1012 = vpop.f32.mrb[0].mxu0
    %v1013 = vadd.f32 %v932, %v1012
    %1014 = vdwg.mxu0
    %1015 = vmatprep.subr.bf16.mxu0 0
    %1016 = vmatpush1.bf16.msra.mxu0 %v962
    %1017 = vmatprep.subr.bf16.mxu0 0
    %1018 = vmatpush1.bf16.msra.mxu0 %v965
    %1019 = vmatprep.subr.bf16.mxu0 0
    %1020 = vmatpush1.bf16.msra.mxu0 0
    %1021 = vmatprep.subr.bf16.mxu0 0
    %1022 = vmatpush1.bf16.msra.mxu0 0
    %1023 = vmatprep.subr.bf16.mxu0 0
    %1024 = vmatpush1.bf16.msra.mxu0 0
    %1025 = vmatprep.subr.bf16.mxu0 0
    %1026 = vmatpush1.bf16.msra.mxu0 0
    %1027 = vmatprep.subr.bf16.mxu0 0
    %1028 = vmatpush1.bf16.msra.mxu0 0
    %1029 = vmatprep.subr.bf16.mxu0 0
    %1030 = vmatpush1.bf16.msra.mxu0 0
    %1031 = vmatprep.subr.bf16.mxu0 0
    %1032 = vmatpush1.bf16.msra.mxu0 0
    %1033 = vmatprep.subr.bf16.mxu0 0
    %1034 = vmatpush1.bf16.msra.mxu0 0
    %1035 = vmatprep.subr.bf16.mxu0 0
    %1036 = vmatpush1.bf16.msra.mxu0 0
    %1037 = vmatprep.subr.bf16.mxu0 0
    %1038 = vmatpush1.bf16.msra.mxu0 0
    %1039 = vmatprep.subr.bf16.mxu0 0
    %1040 = vmatpush1.bf16.msra.mxu0 0
    %1041 = vmatprep.subr.bf16.mxu0 0
    %1042 = vmatpush1.bf16.msra.mxu0 0
    %1043 = vmatprep.subr.bf16.mxu0 0
    %1044 = vmatpush1.bf16.msra.mxu0 0
    %1045 = vmatprep.subr.bf16.mxu0 0
    %1046 = vmatpush1.bf16.msra.mxu0 0
    %1047 = vmatprep.mubr.bf16.mxu0 0
    %1048 = vmatmul.mubr.bf16.gmra.mrb[0].mxu0 %v429
    %v1049 = vpop.f32.mrb[0].mxu0
    %v1050 = vadd.f32 %v936, %v1049
    %v1051 = vpop.f32.mrb[0].mxu0
    %v1052 = vpop.f32.mrb[0].mxu0
    %v1053 = vadd.f32 %v936, %v1052
    %v1054 = vpop.f32.mrb[0].mxu0
    %1055 = vdwg.mxu0
    %v1056 = vld [vmem:[#allocation22] sm:$0xff]
    %v1057 = vld [vmem:[#allocation22 + $0x8] sm:$0xf]
    %v1058 = vld [vmem:[#allocation22 + $0xc] sm:$0xff]
    %v1059 = vld [vmem:[#allocation22 + $0x14] sm:$0xf]
    %v1060 = vld [vmem:[#allocation22 + $0x18] sm:$0xff]
    %v1061 = vld [vmem:[#allocation22 + $0x20] sm:$0xf]
    %v1062 = vld [vmem:[#allocation22 + $0x24] sm:$0xff]
    %v1063 = vld [vmem:[#allocation22 + $0x2c] sm:$0xf]
    %v1064 = vld [vmem:[#allocation23] sm:$0xff]
    %v1065 = vld [vmem:[#allocation23 + $0x8] sm:$0xf]
    %v1066 = vld [vmem:[#allocation23 + $0xc] sm:$0xff]
    %v1067 = vld [vmem:[#allocation23 + $0x14] sm:$0xf]
    %v1068 = vld [vmem:[#allocation23 + $0x18] sm:$0xff]
    %v1069 = vld [vmem:[#allocation23 + $0x20] sm:$0xf]
    %v1070 = vld [vmem:[#allocation23 + $0x24] sm:$0xff]
    %v1071 = vld [vmem:[#allocation23 + $0x2c] sm:$0xf]
    %v1080 = vunpack.c.l.b16 %v1064
    %v1081 = vunpack.c.h.b16 %v1064
    %v1082 = vunpack.c.l.b16 %v1065
    %v1083 = vunpack.c.l.b16 %v1066
    %v1084 = vunpack.c.h.b16 %v1066
    %v1085 = vunpack.c.l.b16 %v1067
    %v1086 = vunpack.c.l.b16 %v1068
    %v1087 = vunpack.c.h.b16 %v1068
    %v1088 = vunpack.c.l.b16 %v1069
    %v1089 = vunpack.c.l.b16 %v1070
    %v1090 = vunpack.c.h.b16 %v1070
    %v1091 = vunpack.c.l.b16 %v1071
    %v1092 = vpack.c.b16 %v1083, %v1080
    %v1093 = vpack.c.b16 %v1084, %v1081
    %v1094 = vpack.c.b16 %v1085, %v1082
    %v1095 = vpack.c.b16 %v1089, %v1086
    %v1096 = vpack.c.b16 %v1090, %v1087
    %v1097 = vpack.c.b16 %v1091, %v1088
    %v1105 = vsel %vm427, %v773, 0
    %1107 = vmatprep.subr.bf16.mxu0 %v1093
    %1108 = vmatpush1.bf16.msra.mxu0 %v1092
    %1109 = vmatprep.subr.bf16.mxu0 %v1096
    %1110 = vmatpush1.bf16.msra.mxu0 %v1095
    %1111 = vmatprep.subr.bf16.mxu0 0
    %1112 = vmatpush1.bf16.msra.mxu0 0
    %1113 = vmatprep.subr.bf16.mxu0 0
    %1114 = vmatpush1.bf16.msra.mxu0 0
    %1115 = vmatprep.subr.bf16.mxu0 0
    %1116 = vmatpush1.bf16.msra.mxu0 0
    %1117 = vmatprep.subr.bf16.mxu0 0
    %1118 = vmatpush1.bf16.msra.mxu0 0
    %1119 = vmatprep.subr.bf16.mxu0 0
    %1120 = vmatpush1.bf16.msra.mxu0 0
    %1121 = vmatprep.subr.bf16.mxu0 0
    %1122 = vmatpush1.bf16.msra.mxu0 0
    %1123 = vmatprep.subr.bf16.mxu0 0
    %1124 = vmatpush1.bf16.msra.mxu0 0
    %1125 = vmatprep.subr.bf16.mxu0 0
    %1126 = vmatpush1.bf16.msra.mxu0 0
    %1127 = vmatprep.subr.bf16.mxu0 0
    %1128 = vmatpush1.bf16.msra.mxu0 0
    %1129 = vmatprep.subr.bf16.mxu0 0
    %1130 = vmatpush1.bf16.msra.mxu0 0
    %1131 = vmatprep.subr.bf16.mxu0 0
    %1132 = vmatpush1.bf16.msra.mxu0 0
    %1133 = vmatprep.subr.bf16.mxu0 0
    %1134 = vmatpush1.bf16.msra.mxu0 0
    %1135 = vmatprep.subr.bf16.mxu0 0
    %1136 = vmatpush1.bf16.msra.mxu0 0
    %1137 = vmatprep.subr.bf16.mxu0 0
    %1138 = vmatpush1.bf16.msra.mxu0 0
    %1139 = vmatprep.mubr.bf16.mxu0 0
    %1140 = vmatmul.mubr.bf16.gmra.mrb[0].mxu0 %v1105
    %v1141 = vpop.f32.mrb[0].mxu0
    %v1142 = vadd.f32 0.0, %v1141
    %v1143 = vpop.f32.mrb[0].mxu0
    %v1144 = vadd.f32 0.0, %v1143
    %v1145 = vpop.f32.mrb[0].mxu0
    %v1146 = vadd.f32 0.0, %v1145
    %v1147 = vpop.f32.mrb[0].mxu0
    %v1148 = vadd.f32 0.0, %v1147
    %1149 = vdwg.mxu0
    %1150 = vmatprep.subr.bf16.mxu0 0
    %1151 = vmatpush1.bf16.msra.mxu0 %v1094
    %1152 = vmatprep.subr.bf16.mxu0 0
    %1153 = vmatpush1.bf16.msra.mxu0 %v1097
    %1154 = vmatprep.subr.bf16.mxu0 0
    %1155 = vmatpush1.bf16.msra.mxu0 0
    %1156 = vmatprep.subr.bf16.mxu0 0
    %1157 = vmatpush1.bf16.msra.mxu0 0
    %1158 = vmatprep.subr.bf16.mxu0 0
    %1159 = vmatpush1.bf16.msra.mxu0 0
    %1160 = vmatprep.subr.bf16.mxu0 0
    %1161 = vmatpush1.bf16.msra.mxu0 0
    %1162 = vmatprep.subr.bf16.mxu0 0
    %1163 = vmatpush1.bf16.msra.mxu0 0
    %1164 = vmatprep.subr.bf16.mxu0 0
    %1165 = vmatpush1.bf16.msra.mxu0 0
    %1166 = vmatprep.subr.bf16.mxu0 0
    %1167 = vmatpush1.bf16.msra.mxu0 0
    %1168 = vmatprep.subr.bf16.mxu0 0
    %1169 = vmatpush1.bf16.msra.mxu0 0
    %1170 = vmatprep.subr.bf16.mxu0 0
    %1171 = vmatpush1.bf16.msra.mxu0 0
    %1172 = vmatprep.subr.bf16.mxu0 0
    %1173 = vmatpush1.bf16.msra.mxu0 0
    %1174 = vmatprep.subr.bf16.mxu0 0
    %1175 = vmatpush1.bf16.msra.mxu0 0
    %1176 = vmatprep.subr.bf16.mxu0 0
    %1177 = vmatpush1.bf16.msra.mxu0 0
    %1178 = vmatprep.subr.bf16.mxu0 0
    %1179 = vmatpush1.bf16.msra.mxu0 0
    %1180 = vmatprep.subr.bf16.mxu0 0
    %1181 = vmatpush1.bf16.msra.mxu0 0
    %1182 = vmatprep.mubr.bf16.mxu0 0
    %1183 = vmatmul.mubr.bf16.gmra.mrb[0].mxu0 %v1105
    %v1184 = vpop.f32.mrb[0].mxu0
    %v1185 = vadd.f32 0.0, %v1184
    %v1186 = vpop.f32.mrb[0].mxu0
    %v1187 = vpop.f32.mrb[0].mxu0
    %v1188 = vadd.f32 0.0, %v1187
    %v1189 = vpop.f32.mrb[0].mxu0
    %1190 = vdwg.mxu0
    %v1199 = vunpack.c.l.b16 %v1056
    %v1200 = vunpack.c.h.b16 %v1056
    %v1201 = vunpack.c.l.b16 %v1057
    %v1202 = vunpack.c.l.b16 %v1058
    %v1203 = vunpack.c.h.b16 %v1058
    %v1204 = vunpack.c.l.b16 %v1059
    %v1205 = vunpack.c.l.b16 %v1060
    %v1206 = vunpack.c.h.b16 %v1060
    %v1207 = vunpack.c.l.b16 %v1061
    %v1208 = vunpack.c.l.b16 %v1062
    %v1209 = vunpack.c.h.b16 %v1062
    %v1210 = vunpack.c.l.b16 %v1063
    %v1211 = vpack.c.b16 %v1202, %v1199
    %v1212 = vpack.c.b16 %v1203, %v1200
    %v1213 = vpack.c.b16 %v1204, %v1201
    %v1214 = vpack.c.b16 %v1208, %v1205
    %v1215 = vpack.c.b16 %v1209, %v1206
    %v1216 = vpack.c.b16 %v1210, %v1207
    %1223 = vmatprep.subr.bf16.mxu0 %v1212
    %1224 = vmatpush1.bf16.msra.mxu0 %v1211
    %1225 = vmatprep.subr.bf16.mxu0 %v1215
    %1226 = vmatpush1.bf16.msra.mxu0 %v1214
    %1227 = vmatprep.subr.bf16.mxu0 0
    %1228 = vmatpush1.bf16.msra.mxu0 0
    %1229 = vmatprep.subr.bf16.mxu0 0
    %1230 = vmatpush1.bf16.msra.mxu0 0
    %1231 = vmatprep.subr.bf16.mxu0 0
    %1232 = vmatpush1.bf16.msra.mxu0 0
    %1233 = vmatprep.subr.bf16.mxu0 0
    %1234 = vmatpush1.bf16.msra.mxu0 0
    %1235 = vmatprep.subr.bf16.mxu0 0
    %1236 = vmatpush1.bf16.msra.mxu0 0
    %1237 = vmatprep.subr.bf16.mxu0 0
    %1238 = vmatpush1.bf16.msra.mxu0 0
    %1239 = vmatprep.subr.bf16.mxu0 0
    %1240 = vmatpush1.bf16.msra.mxu0 0
    %1241 = vmatprep.subr.bf16.mxu0 0
    %1242 = vmatpush1.bf16.msra.mxu0 0
    %1243 = vmatprep.subr.bf16.mxu0 0
    %1244 = vmatpush1.bf16.msra.mxu0 0
    %1245 = vmatprep.subr.bf16.mxu0 0
    %1246 = vmatpush1.bf16.msra.mxu0 0
    %1247 = vmatprep.subr.bf16.mxu0 0
    %1248 = vmatpush1.bf16.msra.mxu0 0
    %1249 = vmatprep.subr.bf16.mxu0 0
    %1250 = vmatpush1.bf16.msra.mxu0 0
    %1251 = vmatprep.subr.bf16.mxu0 0
    %1252 = vmatpush1.bf16.msra.mxu0 0
    %1253 = vmatprep.subr.bf16.mxu0 0
    %1254 = vmatpush1.bf16.msra.mxu0 0
    %1255 = vmatprep.mubr.bf16.mxu0 0
    %1256 = vmatmul.mubr.bf16.gmra.mrb[0].mxu0 %v429
    %v1257 = vpop.f32.mrb[0].mxu0
    %v1258 = vadd.f32 %v1142, %v1257
    %v1259 = vpop.f32.mrb[0].mxu0
    %v1260 = vadd.f32 %v1144, %v1259
    %v1261 = vpop.f32.mrb[0].mxu0
    %v1262 = vadd.f32 %v1146, %v1261
    %v1263 = vpop.f32.mrb[0].mxu0
    %v1264 = vadd.f32 %v1148, %v1263
    %1265 = vdwg.mxu0
    %1266 = vmatprep.subr.bf16.mxu0 0
    %1267 = vmatpush1.bf16.msra.mxu0 %v1213
    %1268 = vmatprep.subr.bf16.mxu0 0
    %1269 = vmatpush1.bf16.msra.mxu0 %v1216
    %1270 = vmatprep.subr.bf16.mxu0 0
    %1271 = vmatpush1.bf16.msra.mxu0 0
    %1272 = vmatprep.subr.bf16.mxu0 0
    %1273 = vmatpush1.bf16.msra.mxu0 0
    %1274 = vmatprep.subr.bf16.mxu0 0
    %1275 = vmatpush1.bf16.msra.mxu0 0
    %1276 = vmatprep.subr.bf16.mxu0 0
    %1277 = vmatpush1.bf16.msra.mxu0 0
    %1278 = vmatprep.subr.bf16.mxu0 0
    %1279 = vmatpush1.bf16.msra.mxu0 0
    %1280 = vmatprep.subr.bf16.mxu0 0
    %1281 = vmatpush1.bf16.msra.mxu0 0
    %1282 = vmatprep.subr.bf16.mxu0 0
    %1283 = vmatpush1.bf16.msra.mxu0 0
    %1284 = vmatprep.subr.bf16.mxu0 0
    %1285 = vmatpush1.bf16.msra.mxu0 0
    %1286 = vmatprep.subr.bf16.mxu0 0
    %1287 = vmatpush1.bf16.msra.mxu0 0
    %1288 = vmatprep.subr.bf16.mxu0 0
    %1289 = vmatpush1.bf16.msra.mxu0 0
    %1290 = vmatprep.subr.bf16.mxu0 0
    %1291 = vmatpush1.bf16.msra.mxu0 0
    %1292 = vmatprep.subr.bf16.mxu0 0
    %1293 = vmatpush1.bf16.msra.mxu0 0
    %1294 = vmatprep.subr.bf16.mxu0 0
    %1295 = vmatpush1.bf16.msra.mxu0 0
    %1296 = vmatprep.subr.bf16.mxu0 0
    %1297 = vmatpush1.bf16.msra.mxu0 0
    %1298 = vmatprep.mubr.bf16.mxu0 0
    %1299 = vmatmul.mubr.bf16.gmra.mrb[0].mxu0 %v429
    %v1300 = vpop.f32.mrb[0].mxu0
    %v1301 = vadd.f32 %v1185, %v1300
    %v1302 = vpop.f32.mrb[0].mxu0
    %v1303 = vpop.f32.mrb[0].mxu0
    %v1304 = vadd.f32 %v1188, %v1303
    %v1305 = vpop.f32.mrb[0].mxu0
    %1306 = vdwg.mxu0
    %v1307 = vld [vmem:[#allocation26] sm:$0x7]
    %v1309 = vlaneseq
    %v1310 = vshrl.u32 %v1309, 7
    %v1311 = vsub.s32 0, %v1310
    %v1312 = vrot.slane %v1307, %v1311
    %v1313 = vlaneseq
    %v1314 = vshrl.u32 %v1313, 7
    %v1315 = vsub.s32 1, %v1314
    %v1316 = vrot.slane %v1307, %v1315
    %v1317 = vlaneseq
    %v1318 = vshrl.u32 %v1317, 7
    %v1319 = vsub.s32 2, %v1318
    %v1320 = vrot.slane %v1307, %v1319
    %v1324 = vadd.f32 %v1258, %v1312
    %v1325 = vadd.f32 %v1260, %v1316
    %v1326 = vadd.f32 %v1301, %v1320
    %v1327 = vadd.f32 %v1262, %v1312
    %v1328 = vadd.f32 %v1264, %v1316
    %v1329 = vadd.f32 %v1304, %v1320
    %v1330 = vld [vmem:[#allocation29] sm:$0xff]
    %v1331 = vld [vmem:[#allocation29 + $0x8] sm:$0xf]
    %v1332 = vld [vmem:[#allocation29 + $0xc] sm:$0xff]
    %v1333 = vld [vmem:[#allocation29 + $0x14] sm:$0xf]
    %v1334 = vld [vmem:[#allocation29 + $0x18] sm:$0xff]
    %v1335 = vld [vmem:[#allocation29 + $0x20] sm:$0xf]
    %v1336 = vld [vmem:[#allocation29 + $0x24] sm:$0xff]
    %v1337 = vld [vmem:[#allocation29 + $0x2c] sm:$0xf]
    %v1338 = vld [vmem:[#allocation31] sm:$0xff]
    %v1339 = vld [vmem:[#allocation31 + $0x8] sm:$0xf]
    %v1340 = vld [vmem:[#allocation31 + $0xc] sm:$0xff]
    %v1341 = vld [vmem:[#allocation31 + $0x14] sm:$0xf]
    %v1342 = vld [vmem:[#allocation31 + $0x18] sm:$0xff]
    %v1343 = vld [vmem:[#allocation31 + $0x20] sm:$0xf]
    %v1344 = vld [vmem:[#allocation31 + $0x24] sm:$0xff]
    %v1345 = vld [vmem:[#allocation31 + $0x2c] sm:$0xf]
    %v1354 = vunpack.c.l.b16 %v1338
    %v1355 = vunpack.c.h.b16 %v1338
    %v1356 = vunpack.c.l.b16 %v1339
    %v1357 = vunpack.c.l.b16 %v1340
    %v1358 = vunpack.c.h.b16 %v1340
    %v1359 = vunpack.c.l.b16 %v1341
    %v1360 = vunpack.c.l.b16 %v1342
    %v1361 = vunpack.c.h.b16 %v1342
    %v1362 = vunpack.c.l.b16 %v1343
    %v1363 = vunpack.c.l.b16 %v1344
    %v1364 = vunpack.c.h.b16 %v1344
    %v1365 = vunpack.c.l.b16 %v1345
    %v1366 = vpack.c.b16 %v1357, %v1354
    %v1367 = vpack.c.b16 %v1358, %v1355
    %v1368 = vpack.c.b16 %v1359, %v1356
    %v1369 = vpack.c.b16 %v1363, %v1360
    %v1370 = vpack.c.b16 %v1364, %v1361
    %v1371 = vpack.c.b16 %v1365, %v1362
    %1378 = vmatprep.subr.bf16.mxu0 %v1367
    %1379 = vmatpush1.bf16.msra.mxu0 %v1366
    %1380 = vmatprep.subr.bf16.mxu0 %v1370
    %1381 = vmatpush1.bf16.msra.mxu0 %v1369
    %1382 = vmatprep.subr.bf16.mxu0 0
    %1383 = vmatpush1.bf16.msra.mxu0 0
    %1384 = vmatprep.subr.bf16.mxu0 0
    %1385 = vmatpush1.bf16.msra.mxu0 0
    %1386 = vmatprep.subr.bf16.mxu0 0
    %1387 = vmatpush1.bf16.msra.mxu0 0
    %1388 = vmatprep.subr.bf16.mxu0 0
    %1389 = vmatpush1.bf16.msra.mxu0 0
    %1390 = vmatprep.subr.bf16.mxu0 0
    %1391 = vmatpush1.bf16.msra.mxu0 0
    %1392 = vmatprep.subr.bf16.mxu0 0
    %1393 = vmatpush1.bf16.msra.mxu0 0
    %1394 = vmatprep.subr.bf16.mxu0 0
    %1395 = vmatpush1.bf16.msra.mxu0 0
    %1396 = vmatprep.subr.bf16.mxu0 0
    %1397 = vmatpush1.bf16.msra.mxu0 0
    %1398 = vmatprep.subr.bf16.mxu0 0
    %1399 = vmatpush1.bf16.msra.mxu0 0
    %1400 = vmatprep.subr.bf16.mxu0 0
    %1401 = vmatpush1.bf16.msra.mxu0 0
    %1402 = vmatprep.subr.bf16.mxu0 0
    %1403 = vmatpush1.bf16.msra.mxu0 0
    %1404 = vmatprep.subr.bf16.mxu0 0
    %1405 = vmatpush1.bf16.msra.mxu0 0
    %1406 = vmatprep.subr.bf16.mxu0 0
    %1407 = vmatpush1.bf16.msra.mxu0 0
    %1408 = vmatprep.subr.bf16.mxu0 0
    %1409 = vmatpush1.bf16.msra.mxu0 0
    %1410 = vmatprep.mubr.bf16.mxu0 0
    %1411 = vmatmul.mubr.bf16.gmra.mrb[0].mxu0 %v1105
    %v1412 = vpop.f32.mrb[0].mxu0
    %v1413 = vadd.f32 0.0, %v1412
    %v1414 = vpop.f32.mrb[0].mxu0
    %v1415 = vadd.f32 0.0, %v1414
    %v1416 = vpop.f32.mrb[0].mxu0
    %v1417 = vadd.f32 0.0, %v1416
    %v1418 = vpop.f32.mrb[0].mxu0
    %v1419 = vadd.f32 0.0, %v1418
    %1420 = vdwg.mxu0
    %1421 = vmatprep.subr.bf16.mxu0 0
    %1422 = vmatpush1.bf16.msra.mxu0 %v1368
    %1423 = vmatprep.subr.bf16.mxu0 0
    %1424 = vmatpush1.bf16.msra.mxu0 %v1371
    %1425 = vmatprep.subr.bf16.mxu0 0
    %1426 = vmatpush1.bf16.msra.mxu0 0
    %1427 = vmatprep.subr.bf16.mxu0 0
    %1428 = vmatpush1.bf16.msra.mxu0 0
    %1429 = vmatprep.subr.bf16.mxu0 0
    %1430 = vmatpush1.bf16.msra.mxu0 0
    %1431 = vmatprep.subr.bf16.mxu0 0
    %1432 = vmatpush1.bf16.msra.mxu0 0
    %1433 = vmatprep.subr.bf16.mxu0 0
    %1434 = vmatpush1.bf16.msra.mxu0 0
    %1435 = vmatprep.subr.bf16.mxu0 0
    %1436 = vmatpush1.bf16.msra.mxu0 0
    %1437 = vmatprep.subr.bf16.mxu0 0
    %1438 = vmatpush1.bf16.msra.mxu0 0
    %1439 = vmatprep.subr.bf16.mxu0 0
    %1440 = vmatpush1.bf16.msra.mxu0 0
    %1441 = vmatprep.subr.bf16.mxu0 0
    %1442 = vmatpush1.bf16.msra.mxu0 0
    %1443 = vmatprep.subr.bf16.mxu0 0
    %1444 = vmatpush1.bf16.msra.mxu0 0
    %1445 = vmatprep.subr.bf16.mxu0 0
    %1446 = vmatpush1.bf16.msra.mxu0 0
    %1447 = vmatprep.subr.bf16.mxu0 0
    %1448 = vmatpush1.bf16.msra.mxu0 0
    %1449 = vmatprep.subr.bf16.mxu0 0
    %1450 = vmatpush1.bf16.msra.mxu0 0
    %1451 = vmatprep.subr.bf16.mxu0 0
    %1452 = vmatpush1.bf16.msra.mxu0 0
    %1453 = vmatprep.mubr.bf16.mxu0 0
    %1454 = vmatmul.mubr.bf16.gmra.mrb[0].mxu0 %v1105
    %v1455 = vpop.f32.mrb[0].mxu0
    %v1456 = vadd.f32 0.0, %v1455
    %v1457 = vpop.f32.mrb[0].mxu0
    %v1458 = vpop.f32.mrb[0].mxu0
    %v1459 = vadd.f32 0.0, %v1458
    %v1460 = vpop.f32.mrb[0].mxu0
    %1461 = vdwg.mxu0
    %v1470 = vunpack.c.l.b16 %v1330
    %v1471 = vunpack.c.h.b16 %v1330
    %v1472 = vunpack.c.l.b16 %v1331
    %v1473 = vunpack.c.l.b16 %v1332
    %v1474 = vunpack.c.h.b16 %v1332
    %v1475 = vunpack.c.l.b16 %v1333
    %v1476 = vunpack.c.l.b16 %v1334
    %v1477 = vunpack.c.h.b16 %v1334
    %v1478 = vunpack.c.l.b16 %v1335
    %v1479 = vunpack.c.l.b16 %v1336
    %v1480 = vunpack.c.h.b16 %v1336
    %v1481 = vunpack.c.l.b16 %v1337
    %v1482 = vpack.c.b16 %v1473, %v1470
    %v1483 = vpack.c.b16 %v1474, %v1471
    %v1484 = vpack.c.b16 %v1475, %v1472
    %v1485 = vpack.c.b16 %v1479, %v1476
    %v1486 = vpack.c.b16 %v1480, %v1477
    %v1487 = vpack.c.b16 %v1481, %v1478
    %1494 = vmatprep.subr.bf16.mxu0 %v1483
    %1495 = vmatpush1.bf16.msra.mxu0 %v1482
    %1496 = vmatprep.subr.bf16.mxu0 %v1486
    %1497 = vmatpush1.bf16.msra.mxu0 %v1485
    %1498 = vmatprep.subr.bf16.mxu0 0
    %1499 = vmatpush1.bf16.msra.mxu0 0
    %1500 = vmatprep.subr.bf16.mxu0 0
    %1501 = vmatpush1.bf16.msra.mxu0 0
    %1502 = vmatprep.subr.bf16.mxu0 0
    %1503 = vmatpush1.bf16.msra.mxu0 0
    %1504 = vmatprep.subr.bf16.mxu0 0
    %1505 = vmatpush1.bf16.msra.mxu0 0
    %1506 = vmatprep.subr.bf16.mxu0 0
    %1507 = vmatpush1.bf16.msra.mxu0 0
    %1508 = vmatprep.subr.bf16.mxu0 0
    %1509 = vmatpush1.bf16.msra.mxu0 0
    %1510 = vmatprep.subr.bf16.mxu0 0
    %1511 = vmatpush1.bf16.msra.mxu0 0
    %1512 = vmatprep.subr.bf16.mxu0 0
    %1513 = vmatpush1.bf16.msra.mxu0 0
    %1514 = vmatprep.subr.bf16.mxu0 0
    %1515 = vmatpush1.bf16.msra.mxu0 0
    %1516 = vmatprep.subr.bf16.mxu0 0
    %1517 = vmatpush1.bf16.msra.mxu0 0
    %1518 = vmatprep.subr.bf16.mxu0 0
    %1519 = vmatpush1.bf16.msra.mxu0 0
    %1520 = vmatprep.subr.bf16.mxu0 0
    %1521 = vmatpush1.bf16.msra.mxu0 0
    %1522 = vmatprep.subr.bf16.mxu0 0
    %1523 = vmatpush1.bf16.msra.mxu0 0
    %1524 = vmatprep.subr.bf16.mxu0 0
    %1525 = vmatpush1.bf16.msra.mxu0 0
    %1526 = vmatprep.mubr.bf16.mxu0 0
    %1527 = vmatmul.mubr.bf16.gmra.mrb[0].mxu0 %v429
    %v1528 = vpop.f32.mrb[0].mxu0
    %v1529 = vadd.f32 %v1413, %v1528
    %v1530 = vpop.f32.mrb[0].mxu0
    %v1531 = vadd.f32 %v1415, %v1530
    %v1532 = vpop.f32.mrb[0].mxu0
    %v1533 = vadd.f32 %v1417, %v1532
    %v1534 = vpop.f32.mrb[0].mxu0
    %v1535 = vadd.f32 %v1419, %v1534
    %1536 = vdwg.mxu0
    %1537 = vmatprep.subr.bf16.mxu0 0
    %1538 = vmatpush1.bf16.msra.mxu0 %v1484
    %1539 = vmatprep.subr.bf16.mxu0 0
    %1540 = vmatpush1.bf16.msra.mxu0 %v1487
    %1541 = vmatprep.subr.bf16.mxu0 0
    %1542 = vmatpush1.bf16.msra.mxu0 0
    %1543 = vmatprep.subr.bf16.mxu0 0
    %1544 = vmatpush1.bf16.msra.mxu0 0
    %1545 = vmatprep.subr.bf16.mxu0 0
    %1546 = vmatpush1.bf16.msra.mxu0 0
    %1547 = vmatprep.subr.bf16.mxu0 0
    %1548 = vmatpush1.bf16.msra.mxu0 0
    %1549 = vmatprep.subr.bf16.mxu0 0
    %1550 = vmatpush1.bf16.msra.mxu0 0
    %1551 = vmatprep.subr.bf16.mxu0 0
    %1552 = vmatpush1.bf16.msra.mxu0 0
    %1553 = vmatprep.subr.bf16.mxu0 0
    %1554 = vmatpush1.bf16.msra.mxu0 0
    %1555 = vmatprep.subr.bf16.mxu0 0
    %1556 = vmatpush1.bf16.msra.mxu0 0
    %1557 = vmatprep.subr.bf16.mxu0 0
    %1558 = vmatpush1.bf16.msra.mxu0 0
    %1559 = vmatprep.subr.bf16.mxu0 0
    %1560 = vmatpush1.bf16.msra.mxu0 0
    %1561 = vmatprep.subr.bf16.mxu0 0
    %1562 = vmatpush1.bf16.msra.mxu0 0
    %1563 = vmatprep.subr.bf16.mxu0 0
    %1564 = vmatpush1.bf16.msra.mxu0 0
    %1565 = vmatprep.subr.bf16.mxu0 0
    %1566 = vmatpush1.bf16.msra.mxu0 0
    %1567 = vmatprep.subr.bf16.mxu0 0
    %1568 = vmatpush1.bf16.msra.mxu0 0
    %1569 = vmatprep.mubr.bf16.mxu0 0
    %1570 = vmatmul.mubr.bf16.gmra.mrb[0].mxu0 %v429
    %v1571 = vpop.f32.mrb[0].mxu0
    %v1572 = vadd.f32 %v1456, %v1571
    %v1573 = vpop.f32.mrb[0].mxu0
    %v1574 = vpop.f32.mrb[0].mxu0
    %v1575 = vadd.f32 %v1459, %v1574
    %v1576 = vpop.f32.mrb[0].mxu0
    %1577 = vdwg.mxu0
    %v1578 = vld [vmem:[#allocation34] sm:$0x7]
    %v1580 = vlaneseq
    %v1581 = vshrl.u32 %v1580, 7
    %v1582 = vsub.s32 0, %v1581
    %v1583 = vrot.slane %v1578, %v1582
    %v1584 = vlaneseq
    %v1585 = vshrl.u32 %v1584, 7
    %v1586 = vsub.s32 1, %v1585
    %v1587 = vrot.slane %v1578, %v1586
    %v1588 = vlaneseq
    %v1589 = vshrl.u32 %v1588, 7
    %v1590 = vsub.s32 2, %v1589
    %v1591 = vrot.slane %v1578, %v1590
    %v1595 = vadd.f32 %v1529, %v1583
    %v1596 = vadd.f32 %v1531, %v1587
    %v1597 = vadd.f32 %v1572, %v1591
    %v1598 = vadd.f32 %v1533, %v1583
    %v1599 = vadd.f32 %v1535, %v1587
    %v1600 = vadd.f32 %v1575, %v1591
    %v1601 = vld [vmem:[#allocation11] sm:$0xff]
    %v1602 = vld [vmem:[#allocation11 + $0x8] sm:$0xf]
    %v1603 = vld [vmem:[#allocation11 + $0xc] sm:$0xff]
    %v1604 = vld [vmem:[#allocation11 + $0x14] sm:$0xf]
    %v1605 = vld [vmem:[#allocation11 + $0x18] sm:$0xff]
    %v1606 = vld [vmem:[#allocation11 + $0x20] sm:$0xf]
    %v1607 = vld [vmem:[#allocation11 + $0x24] sm:$0xff]
    %v1608 = vld [vmem:[#allocation11 + $0x2c] sm:$0xf]
    %v1609 = vld [vmem:[#allocation11 + $0x30] sm:$0xff]
    %v1610 = vld [vmem:[#allocation11 + $0x38] sm:$0xf]
    %v1611 = vld [vmem:[#allocation11 + $0x3c] sm:$0xff]
    %v1612 = vld [vmem:[#allocation11 + $0x44] sm:$0xf]
    %v1613 = vld [vmem:[#allocation11 + $0x48] sm:$0xff]
    %v1614 = vld [vmem:[#allocation11 + $0x50] sm:$0xf]
    %v1615 = vld [vmem:[#allocation11 + $0x54] sm:$0xff]
    %v1616 = vld [vmem:[#allocation11 + $0x5c] sm:$0xf]
    %v1617 = vld [vmem:[#allocation11 + $0x60] sm:$0xff]
    %v1618 = vld [vmem:[#allocation11 + $0x68] sm:$0xf]
    %v1619 = vld [vmem:[#allocation11 + $0x6c] sm:$0xff]
    %v1620 = vld [vmem:[#allocation11 + $0x74] sm:$0xf]
    %v1621 = vld [vmem:[#allocation11 + $0x78] sm:$0xff]
    %v1622 = vld [vmem:[#allocation11 + $0x80] sm:$0xf]
    %v1623 = vld [vmem:[#allocation11 + $0x84] sm:$0xff]
    %v1624 = vld [vmem:[#allocation11 + $0x8c] sm:$0xf]
    %v1625 = vld [vmem:[#allocation11 + $0x90] sm:$0xff]
    %v1626 = vld [vmem:[#allocation11 + $0x98] sm:$0xf]
    %v1627 = vld [vmem:[#allocation11 + $0x9c] sm:$0xff]
    %v1628 = vld [vmem:[#allocation11 + $0xa4] sm:$0xf]
    %v1629 = vld [vmem:[#allocation11 + $0xa8] sm:$0xff]
    %v1630 = vld [vmem:[#allocation11 + $0xb0] sm:$0xf]
    %v1631 = vld [vmem:[#allocation11 + $0xb4] sm:$0xff]
    %v1632 = vld [vmem:[#allocation11 + $0xbc] sm:$0xf]
    %v1633 = vld [vmem:[#allocation17] sm:$0xff]
    %v1634 = vld [vmem:[#allocation17 + $0x8] sm:$0xf]
    %v1635 = vld [vmem:[#allocation17 + $0xc] sm:$0xff]
    %v1636 = vld [vmem:[#allocation17 + $0x14] sm:$0xf]
    %v1637 = vld [vmem:[#allocation17 + $0x18] sm:$0xff]
    %v1638 = vld [vmem:[#allocation17 + $0x20] sm:$0xf]
    %v1639 = vld [vmem:[#allocation17 + $0x24] sm:$0xff]
    %v1640 = vld [vmem:[#allocation17 + $0x2c] sm:$0xf]
    %v1641 = vld [vmem:[#allocation17 + $0x30] sm:$0xff]
    %v1642 = vld [vmem:[#allocation17 + $0x38] sm:$0xf]
    %v1643 = vld [vmem:[#allocation17 + $0x3c] sm:$0xff]
    %v1644 = vld [vmem:[#allocation17 + $0x44] sm:$0xf]
    %v1645 = vld [vmem:[#allocation17 + $0x48] sm:$0xff]
    %v1646 = vld [vmem:[#allocation17 + $0x50] sm:$0xf]
    %v1647 = vld [vmem:[#allocation17 + $0x54] sm:$0xff]
    %v1648 = vld [vmem:[#allocation17 + $0x5c] sm:$0xf]
    %v1649 = vld [vmem:[#allocation17 + $0x60] sm:$0xff]
    %v1650 = vld [vmem:[#allocation17 + $0x68] sm:$0xf]
    %v1651 = vld [vmem:[#allocation17 + $0x6c] sm:$0xff]
    %v1652 = vld [vmem:[#allocation17 + $0x74] sm:$0xf]
    %v1653 = vld [vmem:[#allocation17 + $0x78] sm:$0xff]
    %v1654 = vld [vmem:[#allocation17 + $0x80] sm:$0xf]
    %v1655 = vld [vmem:[#allocation17 + $0x84] sm:$0xff]
    %v1656 = vld [vmem:[#allocation17 + $0x8c] sm:$0xf]
    %v1657 = vld [vmem:[#allocation17 + $0x90] sm:$0xff]
    %v1658 = vld [vmem:[#allocation17 + $0x98] sm:$0xf]
    %v1659 = vld [vmem:[#allocation17 + $0x9c] sm:$0xff]
    %v1660 = vld [vmem:[#allocation17 + $0xa4] sm:$0xf]
    %v1661 = vld [vmem:[#allocation17 + $0xa8] sm:$0xff]
    %v1662 = vld [vmem:[#allocation17 + $0xb0] sm:$0xf]
    %v1663 = vld [vmem:[#allocation17 + $0xb4] sm:$0xff]
    %v1664 = vld [vmem:[#allocation17 + $0xbc] sm:$0xf]
    %v1665 = vld [vmem:[#allocation25] sm:$0xff]
    %v1666 = vld [vmem:[#allocation25 + $0x8] sm:$0xf]
    %v1667 = vld [vmem:[#allocation25 + $0xc] sm:$0xff]
    %v1668 = vld [vmem:[#allocation25 + $0x14] sm:$0xf]
    %v1669 = vld [vmem:[#allocation25 + $0x18] sm:$0xff]
    %v1670 = vld [vmem:[#allocation25 + $0x20] sm:$0xf]
    %v1671 = vld [vmem:[#allocation25 + $0x24] sm:$0xff]
    %v1672 = vld [vmem:[#allocation25 + $0x2c] sm:$0xf]
    %v1673 = vld [vmem:[#allocation25 + $0x30] sm:$0xff]
    %v1674 = vld [vmem:[#allocation25 + $0x38] sm:$0xf]
    %v1675 = vld [vmem:[#allocation25 + $0x3c] sm:$0xff]
    %v1676 = vld [vmem:[#allocation25 + $0x44] sm:$0xf]
    %v1677 = vld [vmem:[#allocation25 + $0x48] sm:$0xff]
    %v1678 = vld [vmem:[#allocation25 + $0x50] sm:$0xf]
    %v1679 = vld [vmem:[#allocation25 + $0x54] sm:$0xff]
    %v1680 = vld [vmem:[#allocation25 + $0x5c] sm:$0xf]
    %v1681 = vld [vmem:[#allocation25 + $0x60] sm:$0xff]
    %v1682 = vld [vmem:[#allocation25 + $0x68] sm:$0xf]
    %v1683 = vld [vmem:[#allocation25 + $0x6c] sm:$0xff]
    %v1684 = vld [vmem:[#allocation25 + $0x74] sm:$0xf]
    %v1685 = vld [vmem:[#allocation25 + $0x78] sm:$0xff]
    %v1686 = vld [vmem:[#allocation25 + $0x80] sm:$0xf]
    %v1687 = vld [vmem:[#allocation25 + $0x84] sm:$0xff]
    %v1688 = vld [vmem:[#allocation25 + $0x8c] sm:$0xf]
    %v1689 = vld [vmem:[#allocation25 + $0x90] sm:$0xff]
    %v1690 = vld [vmem:[#allocation25 + $0x98] sm:$0xf]
    %v1691 = vld [vmem:[#allocation25 + $0x9c] sm:$0xff]
    %v1692 = vld [vmem:[#allocation25 + $0xa4] sm:$0xf]
    %v1693 = vld [vmem:[#allocation25 + $0xa8] sm:$0xff]
    %v1694 = vld [vmem:[#allocation25 + $0xb0] sm:$0xf]
    %v1695 = vld [vmem:[#allocation25 + $0xb4] sm:$0xff]
    %v1696 = vld [vmem:[#allocation25 + $0xbc] sm:$0xf]
    %v1697 = vld [vmem:[#allocation32] sm:$0xff]
    %v1698 = vld [vmem:[#allocation32 + $0x8] sm:$0xf]
    %v1699 = vld [vmem:[#allocation32 + $0xc] sm:$0xff]
    %v1700 = vld [vmem:[#allocation32 + $0x14] sm:$0xf]
    %v1701 = vld [vmem:[#allocation32 + $0x18] sm:$0xff]
    %v1702 = vld [vmem:[#allocation32 + $0x20] sm:$0xf]
    %v1703 = vld [vmem:[#allocation32 + $0x24] sm:$0xff]
    %v1704 = vld [vmem:[#allocation32 + $0x2c] sm:$0xf]
    %v1705 = vld [vmem:[#allocation32 + $0x30] sm:$0xff]
    %v1706 = vld [vmem:[#allocation32 + $0x38] sm:$0xf]
    %v1707 = vld [vmem:[#allocation32 + $0x3c] sm:$0xff]
    %v1708 = vld [vmem:[#allocation32 + $0x44] sm:$0xf]
    %v1709 = vld [vmem:[#allocation32 + $0x48] sm:$0xff]
    %v1710 = vld [vmem:[#allocation32 + $0x50] sm:$0xf]
    %v1711 = vld [vmem:[#allocation32 + $0x54] sm:$0xff]
    %v1712 = vld [vmem:[#allocation32 + $0x5c] sm:$0xf]
    %v1713 = vld [vmem:[#allocation32 + $0x60] sm:$0xff]
    %v1714 = vld [vmem:[#allocation32 + $0x68] sm:$0xf]
    %v1715 = vld [vmem:[#allocation32 + $0x6c] sm:$0xff]
    %v1716 = vld [vmem:[#allocation32 + $0x74] sm:$0xf]
    %v1717 = vld [vmem:[#allocation32 + $0x78] sm:$0xff]
    %v1718 = vld [vmem:[#allocation32 + $0x80] sm:$0xf]
    %v1719 = vld [vmem:[#allocation32 + $0x84] sm:$0xff]
    %v1720 = vld [vmem:[#allocation32 + $0x8c] sm:$0xf]
    %v1721 = vld [vmem:[#allocation32 + $0x90] sm:$0xff]
    %v1722 = vld [vmem:[#allocation32 + $0x98] sm:$0xf]
    %v1723 = vld [vmem:[#allocation32 + $0x9c] sm:$0xff]
    %v1724 = vld [vmem:[#allocation32 + $0xa4] sm:$0xf]
    %v1725 = vld [vmem:[#allocation32 + $0xa8] sm:$0xff]
    %v1726 = vld [vmem:[#allocation32 + $0xb0] sm:$0xf]
    %v1727 = vld [vmem:[#allocation32 + $0xb4] sm:$0xff]
    %v1728 = vld [vmem:[#allocation32 + $0xbc] sm:$0xf]
    %v1729 = vld [vmem:[#allocation14] sm:$0x1]
    %v1731 = vlaneseq
    %v1732 = vshrl.u32 %v1731, 7
    %v1733 = vsub.s32 0, %v1732
    %v1734 = vrot.slane %v1729, %v1733
    %v1736 = vld [vmem:[#allocation20] sm:$0x1]
    %v1738 = vlaneseq
    %v1739 = vshrl.u32 %v1738, 7
    %v1740 = vsub.s32 0, %v1739
    %v1741 = vrot.slane %v1736, %v1740
    %v1743 = vld [vmem:[#allocation28] sm:$0x1]
    %v1745 = vlaneseq
    %v1746 = vshrl.u32 %v1745, 7
    %v1747 = vsub.s32 0, %v1746
    %v1748 = vrot.slane %v1743, %v1747
    %v1750 = vld [vmem:[#allocation35] sm:$0x1]
    %v1752 = vlaneseq
    %v1753 = vshrl.u32 %v1752, 7
    %v1754 = vsub.s32 0, %v1753
    %v1755 = vrot.slane %v1750, %v1754
    %v1789 = vunpack.c.l.b16 %v1601
    %v1790 = vunpack.c.h.b16 %v1601
    %v1791 = vunpack.c.l.b16 %v1602
    %v1792 = vunpack.c.l.b16 %v1603
    %v1793 = vunpack.c.h.b16 %v1603
    %v1794 = vunpack.c.l.b16 %v1604
    %v1795 = vunpack.c.l.b16 %v1605
    %v1796 = vunpack.c.h.b16 %v1605
    %v1797 = vunpack.c.l.b16 %v1606
    %v1798 = vunpack.c.l.b16 %v1607
    %v1799 = vunpack.c.h.b16 %v1607
    %v1800 = vunpack.c.l.b16 %v1608
    %v1801 = vunpack.c.l.b16 %v1609
    %v1802 = vunpack.c.h.b16 %v1609
    %v1803 = vunpack.c.l.b16 %v1610
    %v1804 = vunpack.c.l.b16 %v1611
    %v1805 = vunpack.c.h.b16 %v1611
    %v1806 = vunpack.c.l.b16 %v1612
    %v1807 = vunpack.c.l.b16 %v1613
    %v1808 = vunpack.c.h.b16 %v1613
    %v1809 = vunpack.c.l.b16 %v1614
    %v1810 = vunpack.c.l.b16 %v1615
    %v1811 = vunpack.c.h.b16 %v1615
    %v1812 = vunpack.c.l.b16 %v1616
    %v1813 = vunpack.c.l.b16 %v1617
    %v1814 = vunpack.c.h.b16 %v1617
    %v1815 = vunpack.c.l.b16 %v1618
    %v1816 = vunpack.c.l.b16 %v1619
    %v1817 = vunpack.c.h.b16 %v1619
    %v1818 = vunpack.c.l.b16 %v1620
    %v1819 = vunpack.c.l.b16 %v1621
    %v1820 = vunpack.c.h.b16 %v1621
    %v1821 = vunpack.c.l.b16 %v1622
    %v1822 = vunpack.c.l.b16 %v1623
    %v1823 = vunpack.c.h.b16 %v1623
    %v1824 = vunpack.c.l.b16 %v1624
    %v1825 = vunpack.c.l.b16 %v1625
    %v1826 = vunpack.c.h.b16 %v1625
    %v1827 = vunpack.c.l.b16 %v1626
    %v1828 = vunpack.c.l.b16 %v1627
    %v1829 = vunpack.c.h.b16 %v1627
    %v1830 = vunpack.c.l.b16 %v1628
    %v1831 = vunpack.c.l.b16 %v1629
    %v1832 = vunpack.c.h.b16 %v1629
    %v1833 = vunpack.c.l.b16 %v1630
    %v1834 = vunpack.c.l.b16 %v1631
    %v1835 = vunpack.c.h.b16 %v1631
    %v1836 = vunpack.c.l.b16 %v1632
    %v1837 = vpack.c.b16 %v1792, %v1789
    %v1838 = vpack.c.b16 %v1793, %v1790
    %v1839 = vpack.c.b16 %v1794, %v1791
    %v1840 = vpack.c.b16 %v1798, %v1795
    %v1841 = vpack.c.b16 %v1799, %v1796
    %v1842 = vpack.c.b16 %v1800, %v1797
    %v1843 = vpack.c.b16 %v1804, %v1801
    %v1844 = vpack.c.b16 %v1805, %v1802
    %v1845 = vpack.c.b16 %v1806, %v1803
    %v1846 = vpack.c.b16 %v1810, %v1807
    %v1847 = vpack.c.b16 %v1811, %v1808
    %v1848 = vpack.c.b16 %v1812, %v1809
    %v1849 = vpack.c.b16 %v1816, %v1813
    %v1850 = vpack.c.b16 %v1817, %v1814
    %v1851 = vpack.c.b16 %v1818, %v1815
    %v1852 = vpack.c.b16 %v1822, %v1819
    %v1853 = vpack.c.b16 %v1823, %v1820
    %v1854 = vpack.c.b16 %v1824, %v1821
    %v1855 = vpack.c.b16 %v1828, %v1825
    %v1856 = vpack.c.b16 %v1829, %v1826
    %v1857 = vpack.c.b16 %v1830, %v1827
    %v1858 = vpack.c.b16 %v1834, %v1831
    %v1859 = vpack.c.b16 %v1835, %v1832
    %v1860 = vpack.c.b16 %v1836, %v1833
    %1885 = vmatprep.subr.bf16.mxu0 %v1838
    %1886 = vmatpush1.bf16.msra.mxu0 %v1837
    %1887 = vmatprep.subr.bf16.mxu0 %v1841
    %1888 = vmatpush1.bf16.msra.mxu0 %v1840
    %1889 = vmatprep.subr.bf16.mxu0 %v1844
    %1890 = vmatpush1.bf16.msra.mxu0 %v1843
    %1891 = vmatprep.subr.bf16.mxu0 %v1847
    %1892 = vmatpush1.bf16.msra.mxu0 %v1846
    %1893 = vmatprep.subr.bf16.mxu0 %v1850
    %1894 = vmatpush1.bf16.msra.mxu0 %v1849
    %1895 = vmatprep.subr.bf16.mxu0 %v1853
    %1896 = vmatpush1.bf16.msra.mxu0 %v1852
    %1897 = vmatprep.subr.bf16.mxu0 %v1856
    %1898 = vmatpush1.bf16.msra.mxu0 %v1855
    %1899 = vmatprep.subr.bf16.mxu0 %v1859
    %1900 = vmatpush1.bf16.msra.mxu0 %v1858
    %1901 = vmatprep.subr.bf16.mxu0 0
    %1902 = vmatpush1.bf16.msra.mxu0 0
    %1903 = vmatprep.subr.bf16.mxu0 0
    %1904 = vmatpush1.bf16.msra.mxu0 0
    %1905 = vmatprep.subr.bf16.mxu0 0
    %1906 = vmatpush1.bf16.msra.mxu0 0
    %1907 = vmatprep.subr.bf16.mxu0 0
    %1908 = vmatpush1.bf16.msra.mxu0 0
    %1909 = vmatprep.subr.bf16.mxu0 0
    %1910 = vmatpush1.bf16.msra.mxu0 0
    %1911 = vmatprep.subr.bf16.mxu0 0
    %1912 = vmatpush1.bf16.msra.mxu0 0
    %1913 = vmatprep.subr.bf16.mxu0 0
    %1914 = vmatpush1.bf16.msra.mxu0 0
    %1915 = vmatprep.subr.bf16.mxu0 0
    %1916 = vmatpush1.bf16.msra.mxu0 0
    %1917 = vmatprep.mubr.bf16.mxu0 0
    %1918 = vmatmul.mubr.bf16.gmra.mrb[0].mxu0 0
    %v1919 = vpop.f32.mrb[0].mxu0
    %v1920 = vadd.f32 0.0, %v1919
    %v1921 = vpop.f32.mrb[0].mxu0
    %v1922 = vadd.f32 0.0, %v1921
    %v1923 = vpop.f32.mrb[0].mxu0
    %v1924 = vpop.f32.mrb[0].mxu0
    %1925 = vdwg.mxu0
    %1926 = vmatprep.subr.bf16.mxu0 0
    %1927 = vmatpush1.bf16.msra.mxu0 %v1839
    %1928 = vmatprep.subr.bf16.mxu0 0
    %1929 = vmatpush1.bf16.msra.mxu0 %v1842
    %1930 = vmatprep.subr.bf16.mxu0 0
    %1931 = vmatpush1.bf16.msra.mxu0 %v1845
    %1932 = vmatprep.subr.bf16.mxu0 0
    %1933 = vmatpush1.bf16.msra.mxu0 %v1848
    %1934 = vmatprep.subr.bf16.mxu0 0
    %1935 = vmatpush1.bf16.msra.mxu0 %v1851
    %1936 = vmatprep.subr.bf16.mxu0 0
    %1937 = vmatpush1.bf16.msra.mxu0 %v1854
    %1938 = vmatprep.subr.bf16.mxu0 0
    %1939 = vmatpush1.bf16.msra.mxu0 %v1857
    %1940 = vmatprep.subr.bf16.mxu0 0
    %1941 = vmatpush1.bf16.msra.mxu0 %v1860
    %1942 = vmatprep.subr.bf16.mxu0 0
    %1943 = vmatpush1.bf16.msra.mxu0 0
    %1944 = vmatprep.subr.bf16.mxu0 0
    %1945 = vmatpush1.bf16.msra.mxu0 0
    %1946 = vmatprep.subr.bf16.mxu0 0
    %1947 = vmatpush1.bf16.msra.mxu0 0
    %1948 = vmatprep.subr.bf16.mxu0 0
    %1949 = vmatpush1.bf16.msra.mxu0 0
    %1950 = vmatprep.subr.bf16.mxu0 0
    %1951 = vmatpush1.bf16.msra.mxu0 0
    %1952 = vmatprep.subr.bf16.mxu0 0
    %1953 = vmatpush1.bf16.msra.mxu0 0
    %1954 = vmatprep.subr.bf16.mxu0 0
    %1955 = vmatpush1.bf16.msra.mxu0 0
    %1956 = vmatprep.subr.bf16.mxu0 0
    %1957 = vmatpush1.bf16.msra.mxu0 0
    %1958 = vmatprep.mubr.bf16.mxu0 0
    %1959 = vmatmul.mubr.bf16.gmra.mrb[0].mxu0 0
    %v1960 = vpop.f32.mrb[0].mxu0
    %v1961 = vadd.f32 0.0, %v1960
    %v1962 = vpop.f32.mrb[0].mxu0
    %v1963 = vpop.f32.mrb[0].mxu0
    %v1964 = vpop.f32.mrb[0].mxu0
    %1965 = vdwg.mxu0
    %v1967 = vrot.slane %v1920, 1
    %v1970 = vadd.f32 %v866, %v1920
    %v1971 = vadd.f32 %v870, %v1967
    %v1972 = vxor.u32 %v1970, 2147483648
    %v1973 = vxor.u32 %v1971, 2147483648
    %v1974 = vmul.f32 %v1972, 1.442695
    %v1975 = vpow.pop %v1974
    %v1976 = vmul.f32 %v1973, 1.442695
    %v1977 = vpow.pop %v1976
    %v1978 = vadd.f32 %v1975, 1.0
    %v1979 = vadd.f32 %v1977, 1.0
    %v1980 = vrcp.pop %v1978
    %v1981 = vmul.f32 1.0, %v1980
    %v1982 = vrcp.pop %v1979
    %v1983 = vmul.f32 1.0, %v1982
    %v1985 = vrot.slane %v1922, 1
    %v1988 = vadd.f32 %v868, %v1922
    %v1989 = vadd.f32 %v872, %v1985
    %v1990 = vxor.u32 %v1988, 2147483648
    %v1991 = vxor.u32 %v1989, 2147483648
    %v1992 = vmul.f32 %v1990, 1.442695
    %v1993 = vpow.pop %v1992
    %v1994 = vmul.f32 %v1991, 1.442695
    %v1995 = vpow.pop %v1994
    %v1996 = vadd.f32 %v1993, 1.0
    %v1997 = vadd.f32 %v1995, 1.0
    %v1998 = vrcp.pop %v1996
    %v1999 = vmul.f32 1.0, %v1998
    %v2000 = vrcp.pop %v1997
    %v2001 = vmul.f32 1.0, %v2000
    %v2002 = vadd.f32 %v1961, %v1734
    %v2004 = vrot.slane %v2002, 1
    %v2007 = vmul.f32 %v1981, %v2002
    %v2008 = vmul.f32 %v1983, %v2004
    %v2009 = vadd.f32 %v909, %v2007
    %v2010 = vadd.f32 %v912, %v2008
    %v2011 = vtanh.pop %v2009
    %v2012 = vtanh.pop %v2010
    %v2013 = vsub.f32 1.0, %v1999
    %v2014 = vsub.f32 1.0, %v2001
    %v2015 = vmul.f32 %v2013, %v2011
    %v2016 = vmul.f32 %v2014, %v2012
    %v2017 = vmul.f32 %v1999, 0.0
    %v2018 = vmul.f32 %v2001, 0.0
    %v2019 = vadd.f32 %v2015, %v2017
    %v2020 = vadd.f32 %v2016, %v2018
    %v2053 = vunpack.c.l.b16 %v1665
    %v2054 = vunpack.c.h.b16 %v1665
    %v2055 = vunpack.c.l.b16 %v1666
    %v2056 = vunpack.c.l.b16 %v1667
    %v2057 = vunpack.c.h.b16 %v1667
    %v2058 = vunpack.c.l.b16 %v1668
    %v2059 = vunpack.c.l.b16 %v1669
    %v2060 = vunpack.c.h.b16 %v1669
    %v2061 = vunpack.c.l.b16 %v1670
    %v2062 = vunpack.c.l.b16 %v1671
    %v2063 = vunpack.c.h.b16 %v1671
    %v2064 = vunpack.c.l.b16 %v1672
    %v2065 = vunpack.c.l.b16 %v1673
    %v2066 = vunpack.c.h.b16 %v1673
    %v2067 = vunpack.c.l.b16 %v1674
    %v2068 = vunpack.c.l.b16 %v1675
    %v2069 = vunpack.c.h.b16 %v1675
    %v2070 = vunpack.c.l.b16 %v1676
    %v2071 = vunpack.c.l.b16 %v1677
    %v2072 = vunpack.c.h.b16 %v1677
    %v2073 = vunpack.c.l.b16 %v1678
    %v2074 = vunpack.c.l.b16 %v1679
    %v2075 = vunpack.c.h.b16 %v1679
    %v2076 = vunpack.c.l.b16 %v1680
    %v2077 = vunpack.c.l.b16 %v1681
    %v2078 = vunpack.c.h.b16 %v1681
    %v2079 = vunpack.c.l.b16 %v1682
    %v2080 = vunpack.c.l.b16 %v1683
    %v2081 = vunpack.c.h.b16 %v1683
    %v2082 = vunpack.c.l.b16 %v1684
    %v2083 = vunpack.c.l.b16 %v1685
    %v2084 = vunpack.c.h.b16 %v1685
    %v2085 = vunpack.c.l.b16 %v1686
    %v2086 = vunpack.c.l.b16 %v1687
    %v2087 = vunpack.c.h.b16 %v1687
    %v2088 = vunpack.c.l.b16 %v1688
    %v2089 = vunpack.c.l.b16 %v1689
    %v2090 = vunpack.c.h.b16 %v1689
    %v2091 = vunpack.c.l.b16 %v1690
    %v2092 = vunpack.c.l.b16 %v1691
    %v2093 = vunpack.c.h.b16 %v1691
    %v2094 = vunpack.c.l.b16 %v1692
    %v2095 = vunpack.c.l.b16 %v1693
    %v2096 = vunpack.c.h.b16 %v1693
    %v2097 = vunpack.c.l.b16 %v1694
    %v2098 = vunpack.c.l.b16 %v1695
    %v2099 = vunpack.c.h.b16 %v1695
    %v2100 = vunpack.c.l.b16 %v1696
    %v2101 = vpack.c.b16 %v2056, %v2053
    %v2102 = vpack.c.b16 %v2057, %v2054
    %v2103 = vpack.c.b16 %v2058, %v2055
    %v2104 = vpack.c.b16 %v2062, %v2059
    %v2105 = vpack.c.b16 %v2063, %v2060
    %v2106 = vpack.c.b16 %v2064, %v2061
    %v2107 = vpack.c.b16 %v2068, %v2065
    %v2108 = vpack.c.b16 %v2069, %v2066
    %v2109 = vpack.c.b16 %v2070, %v2067
    %v2110 = vpack.c.b16 %v2074, %v2071
    %v2111 = vpack.c.b16 %v2075, %v2072
    %v2112 = vpack.c.b16 %v2076, %v2073
    %v2113 = vpack.c.b16 %v2080, %v2077
    %v2114 = vpack.c.b16 %v2081, %v2078
    %v2115 = vpack.c.b16 %v2082, %v2079
    %v2116 = vpack.c.b16 %v2086, %v2083
    %v2117 = vpack.c.b16 %v2087, %v2084
    %v2118 = vpack.c.b16 %v2088, %v2085
    %v2119 = vpack.c.b16 %v2092, %v2089
    %v2120 = vpack.c.b16 %v2093, %v2090
    %v2121 = vpack.c.b16 %v2094, %v2091
    %v2122 = vpack.c.b16 %v2098, %v2095
    %v2123 = vpack.c.b16 %v2099, %v2096
    %v2124 = vpack.c.b16 %v2100, %v2097
    %2149 = vmatprep.subr.bf16.mxu0 %v2102
    %2150 = vmatpush1.bf16.msra.mxu0 %v2101
    %2151 = vmatprep.subr.bf16.mxu0 %v2105
    %2152 = vmatpush1.bf16.msra.mxu0 %v2104
    %2153 = vmatprep.subr.bf16.mxu0 %v2108
    %2154 = vmatpush1.bf16.msra.mxu0 %v2107
    %2155 = vmatprep.subr.bf16.mxu0 %v2111
    %2156 = vmatpush1.bf16.msra.mxu0 %v2110
    %2157 = vmatprep.subr.bf16.mxu0 %v2114
    %2158 = vmatpush1.bf16.msra.mxu0 %v2113
    %2159 = vmatprep.subr.bf16.mxu0 %v2117
    %2160 = vmatpush1.bf16.msra.mxu0 %v2116
    %2161 = vmatprep.subr.bf16.mxu0 %v2120
    %2162 = vmatpush1.bf16.msra.mxu0 %v2119
    %2163 = vmatprep.subr.bf16.mxu0 %v2123
    %2164 = vmatpush1.bf16.msra.mxu0 %v2122
    %2165 = vmatprep.subr.bf16.mxu0 0
    %2166 = vmatpush1.bf16.msra.mxu0 0
    %2167 = vmatprep.subr.bf16.mxu0 0
    %2168 = vmatpush1.bf16.msra.mxu0 0
    %2169 = vmatprep.subr.bf16.mxu0 0
    %2170 = vmatpush1.bf16.msra.mxu0 0
    %2171 = vmatprep.subr.bf16.mxu0 0
    %2172 = vmatpush1.bf16.msra.mxu0 0
    %2173 = vmatprep.subr.bf16.mxu0 0
    %2174 = vmatpush1.bf16.msra.mxu0 0
    %2175 = vmatprep.subr.bf16.mxu0 0
    %2176 = vmatpush1.bf16.msra.mxu0 0
    %2177 = vmatprep.subr.bf16.mxu0 0
    %2178 = vmatpush1.bf16.msra.mxu0 0
    %2179 = vmatprep.subr.bf16.mxu0 0
    %2180 = vmatpush1.bf16.msra.mxu0 0
    %2181 = vmatprep.mubr.bf16.mxu0 0
    %2182 = vmatmul.mubr.bf16.gmra.mrb[0].mxu0 0
    %v2183 = vpop.f32.mrb[0].mxu0
    %v2184 = vadd.f32 0.0, %v2183
    %v2185 = vpop.f32.mrb[0].mxu0
    %v2186 = vadd.f32 0.0, %v2185
    %v2187 = vpop.f32.mrb[0].mxu0
    %v2188 = vpop.f32.mrb[0].mxu0
    %2189 = vdwg.mxu0
    %2190 = vmatprep.subr.bf16.mxu0 0
    %2191 = vmatpush1.bf16.msra.mxu0 %v2103
    %2192 = vmatprep.subr.bf16.mxu0 0
    %2193 = vmatpush1.bf16.msra.mxu0 %v2106
    %2194 = vmatprep.subr.bf16.mxu0 0
    %2195 = vmatpush1.bf16.msra.mxu0 %v2109
    %2196 = vmatprep.subr.bf16.mxu0 0
    %2197 = vmatpush1.bf16.msra.mxu0 %v2112
    %2198 = vmatprep.subr.bf16.mxu0 0
    %2199 = vmatpush1.bf16.msra.mxu0 %v2115
    %2200 = vmatprep.subr.bf16.mxu0 0
    %2201 = vmatpush1.bf16.msra.mxu0 %v2118
    %2202 = vmatprep.subr.bf16.mxu0 0
    %2203 = vmatpush1.bf16.msra.mxu0 %v2121
    %2204 = vmatprep.subr.bf16.mxu0 0
    %2205 = vmatpush1.bf16.msra.mxu0 %v2124
    %2206 = vmatprep.subr.bf16.mxu0 0
    %2207 = vmatpush1.bf16.msra.mxu0 0
    %2208 = vmatprep.subr.bf16.mxu0 0
    %2209 = vmatpush1.bf16.msra.mxu0 0
    %2210 = vmatprep.subr.bf16.mxu0 0
    %2211 = vmatpush1.bf16.msra.mxu0 0
    %2212 = vmatprep.subr.bf16.mxu0 0
    %2213 = vmatpush1.bf16.msra.mxu0 0
    %2214 = vmatprep.subr.bf16.mxu0 0
    %2215 = vmatpush1.bf16.msra.mxu0 0
    %2216 = vmatprep.subr.bf16.mxu0 0
    %2217 = vmatpush1.bf16.msra.mxu0 0
    %2218 = vmatprep.subr.bf16.mxu0 0
    %2219 = vmatpush1.bf16.msra.mxu0 0
    %2220 = vmatprep.subr.bf16.mxu0 0
    %2221 = vmatpush1.bf16.msra.mxu0 0
    %2222 = vmatprep.mubr.bf16.mxu0 0
    %2223 = vmatmul.mubr.bf16.gmra.mrb[0].mxu0 0
    %v2224 = vpop.f32.mrb[0].mxu0
    %v2225 = vadd.f32 0.0, %v2224
    %v2226 = vpop.f32.mrb[0].mxu0
    %v2227 = vpop.f32.mrb[0].mxu0
    %v2228 = vpop.f32.mrb[0].mxu0
    %2229 = vdwg.mxu0
    %v2231 = vrot.slane %v2184, 1
    %v2234 = vadd.f32 %v1324, %v2184
    %v2235 = vadd.f32 %v1327, %v2231
    %v2236 = vxor.u32 %v2234, 2147483648
    %v2237 = vxor.u32 %v2235, 2147483648
    %v2238 = vmul.f32 %v2236, 1.442695
    %v2239 = vpow.pop %v2238
    %v2240 = vmul.f32 %v2237, 1.442695
    %v2241 = vpow.pop %v2240
    %v2242 = vadd.f32 %v2239, 1.0
    %v2243 = vadd.f32 %v2241, 1.0
    %v2244 = vrcp.pop %v2242
    %v2245 = vmul.f32 1.0, %v2244
    %v2246 = vrcp.pop %v2243
    %v2247 = vmul.f32 1.0, %v2246
    %v2249 = vrot.slane %v2186, 1
    %v2252 = vadd.f32 %v1325, %v2186
    %v2253 = vadd.f32 %v1328, %v2249
    %v2254 = vxor.u32 %v2252, 2147483648
    %v2255 = vxor.u32 %v2253, 2147483648
    %v2256 = vmul.f32 %v2254, 1.442695
    %v2257 = vpow.pop %v2256
    %v2258 = vmul.f32 %v2255, 1.442695
    %v2259 = vpow.pop %v2258
    %v2260 = vadd.f32 %v2257, 1.0
    %v2261 = vadd.f32 %v2259, 1.0
    %v2262 = vrcp.pop %v2260
    %v2263 = vmul.f32 1.0, %v2262
    %v2264 = vrcp.pop %v2261
    %v2265 = vmul.f32 1.0, %v2264
    %v2266 = vadd.f32 %v2225, %v1748
    %v2268 = vrot.slane %v2266, 1
    %v2271 = vmul.f32 %v2245, %v2266
    %v2272 = vmul.f32 %v2247, %v2268
    %v2273 = vadd.f32 %v1326, %v2271
    %v2274 = vadd.f32 %v1329, %v2272
    %v2275 = vtanh.pop %v2273
    %v2276 = vtanh.pop %v2274
    %v2277 = vsub.f32 1.0, %v2263
    %v2278 = vsub.f32 1.0, %v2265
    %v2279 = vmul.f32 %v2277, %v2275
    %v2280 = vmul.f32 %v2278, %v2276
    %v2281 = vmul.f32 %v2263, 0.0
    %v2282 = vmul.f32 %v2265, 0.0
    %v2283 = vadd.f32 %v2279, %v2281
    %v2284 = vadd.f32 %v2280, %v2282
    %v2317 = vunpack.c.l.b16 %v1633
    %v2318 = vunpack.c.h.b16 %v1633
    %v2319 = vunpack.c.l.b16 %v1634
    %v2320 = vunpack.c.l.b16 %v1635
    %v2321 = vunpack.c.h.b16 %v1635
    %v2322 = vunpack.c.l.b16 %v1636
    %v2323 = vunpack.c.l.b16 %v1637
    %v2324 = vunpack.c.h.b16 %v1637
    %v2325 = vunpack.c.l.b16 %v1638
    %v2326 = vunpack.c.l.b16 %v1639
    %v2327 = vunpack.c.h.b16 %v1639
    %v2328 = vunpack.c.l.b16 %v1640
    %v2329 = vunpack.c.l.b16 %v1641
    %v2330 = vunpack.c.h.b16 %v1641
    %v2331 = vunpack.c.l.b16 %v1642
    %v2332 = vunpack.c.l.b16 %v1643
    %v2333 = vunpack.c.h.b16 %v1643
    %v2334 = vunpack.c.l.b16 %v1644
    %v2335 = vunpack.c.l.b16 %v1645
    %v2336 = vunpack.c.h.b16 %v1645
    %v2337 = vunpack.c.l.b16 %v1646
    %v2338 = vunpack.c.l.b16 %v1647
    %v2339 = vunpack.c.h.b16 %v1647
    %v2340 = vunpack.c.l.b16 %v1648
    %v2341 = vunpack.c.l.b16 %v1649
    %v2342 = vunpack.c.h.b16 %v1649
    %v2343 = vunpack.c.l.b16 %v1650
    %v2344 = vunpack.c.l.b16 %v1651
    %v2345 = vunpack.c.h.b16 %v1651
    %v2346 = vunpack.c.l.b16 %v1652
    %v2347 = vunpack.c.l.b16 %v1653
    %v2348 = vunpack.c.h.b16 %v1653
    %v2349 = vunpack.c.l.b16 %v1654
    %v2350 = vunpack.c.l.b16 %v1655
    %v2351 = vunpack.c.h.b16 %v1655
    %v2352 = vunpack.c.l.b16 %v1656
    %v2353 = vunpack.c.l.b16 %v1657
    %v2354 = vunpack.c.h.b16 %v1657
    %v2355 = vunpack.c.l.b16 %v1658
    %v2356 = vunpack.c.l.b16 %v1659
    %v2357 = vunpack.c.h.b16 %v1659
    %v2358 = vunpack.c.l.b16 %v1660
    %v2359 = vunpack.c.l.b16 %v1661
    %v2360 = vunpack.c.h.b16 %v1661
    %v2361 = vunpack.c.l.b16 %v1662
    %v2362 = vunpack.c.l.b16 %v1663
    %v2363 = vunpack.c.h.b16 %v1663
    %v2364 = vunpack.c.l.b16 %v1664
    %v2365 = vpack.c.b16 %v2320, %v2317
    %v2366 = vpack.c.b16 %v2321, %v2318
    %v2367 = vpack.c.b16 %v2322, %v2319
    %v2368 = vpack.c.b16 %v2326, %v2323
    %v2369 = vpack.c.b16 %v2327, %v2324
    %v2370 = vpack.c.b16 %v2328, %v2325
    %v2371 = vpack.c.b16 %v2332, %v2329
    %v2372 = vpack.c.b16 %v2333, %v2330
    %v2373 = vpack.c.b16 %v2334, %v2331
    %v2374 = vpack.c.b16 %v2338, %v2335
    %v2375 = vpack.c.b16 %v2339, %v2336
    %v2376 = vpack.c.b16 %v2340, %v2337
    %v2377 = vpack.c.b16 %v2344, %v2341
    %v2378 = vpack.c.b16 %v2345, %v2342
    %v2379 = vpack.c.b16 %v2346, %v2343
    %v2380 = vpack.c.b16 %v2350, %v2347
    %v2381 = vpack.c.b16 %v2351, %v2348
    %v2382 = vpack.c.b16 %v2352, %v2349
    %v2383 = vpack.c.b16 %v2356, %v2353
    %v2384 = vpack.c.b16 %v2357, %v2354
    %v2385 = vpack.c.b16 %v2358, %v2355
    %v2386 = vpack.c.b16 %v2362, %v2359
    %v2387 = vpack.c.b16 %v2363, %v2360
    %v2388 = vpack.c.b16 %v2364, %v2361
    %2413 = vmatprep.subr.bf16.mxu0 %v2366
    %2414 = vmatpush1.bf16.msra.mxu0 %v2365
    %2415 = vmatprep.subr.bf16.mxu0 %v2369
    %2416 = vmatpush1.bf16.msra.mxu0 %v2368
    %2417 = vmatprep.subr.bf16.mxu0 %v2372
    %2418 = vmatpush1.bf16.msra.mxu0 %v2371
    %2419 = vmatprep.subr.bf16.mxu0 %v2375
    %2420 = vmatpush1.bf16.msra.mxu0 %v2374
    %2421 = vmatprep.subr.bf16.mxu0 %v2378
    %2422 = vmatpush1.bf16.msra.mxu0 %v2377
    %2423 = vmatprep.subr.bf16.mxu0 %v2381
    %2424 = vmatpush1.bf16.msra.mxu0 %v2380
    %2425 = vmatprep.subr.bf16.mxu0 %v2384
    %2426 = vmatpush1.bf16.msra.mxu0 %v2383
    %2427 = vmatprep.subr.bf16.mxu0 %v2387
    %2428 = vmatpush1.bf16.msra.mxu0 %v2386
    %2429 = vmatprep.subr.bf16.mxu0 0
    %2430 = vmatpush1.bf16.msra.mxu0 0
    %2431 = vmatprep.subr.bf16.mxu0 0
    %2432 = vmatpush1.bf16.msra.mxu0 0
    %2433 = vmatprep.subr.bf16.mxu0 0
    %2434 = vmatpush1.bf16.msra.mxu0 0
    %2435 = vmatprep.subr.bf16.mxu0 0
    %2436 = vmatpush1.bf16.msra.mxu0 0
    %2437 = vmatprep.subr.bf16.mxu0 0
    %2438 = vmatpush1.bf16.msra.mxu0 0
    %2439 = vmatprep.subr.bf16.mxu0 0
    %2440 = vmatpush1.bf16.msra.mxu0 0
    %2441 = vmatprep.subr.bf16.mxu0 0
    %2442 = vmatpush1.bf16.msra.mxu0 0
    %2443 = vmatprep.subr.bf16.mxu0 0
    %2444 = vmatpush1.bf16.msra.mxu0 0
    %2445 = vmatprep.mubr.bf16.mxu0 0
    %2446 = vmatmul.mubr.bf16.gmra.mrb[0].mxu0 0
    %v2447 = vpop.f32.mrb[0].mxu0
    %v2448 = vadd.f32 0.0, %v2447
    %v2449 = vpop.f32.mrb[0].mxu0
    %v2450 = vadd.f32 0.0, %v2449
    %v2451 = vpop.f32.mrb[0].mxu0
    %v2452 = vpop.f32.mrb[0].mxu0
    %2453 = vdwg.mxu0
    %2454 = vmatprep.subr.bf16.mxu0 0
    %2455 = vmatpush1.bf16.msra.mxu0 %v2367
    %2456 = vmatprep.subr.bf16.mxu0 0
    %2457 = vmatpush1.bf16.msra.mxu0 %v2370
    %2458 = vmatprep.subr.bf16.mxu0 0
    %2459 = vmatpush1.bf16.msra.mxu0 %v2373
    %2460 = vmatprep.subr.bf16.mxu0 0
    %2461 = vmatpush1.bf16.msra.mxu0 %v2376
    %2462 = vmatprep.subr.bf16.mxu0 0
    %2463 = vmatpush1.bf16.msra.mxu0 %v2379
    %2464 = vmatprep.subr.bf16.mxu0 0
    %2465 = vmatpush1.bf16.msra.mxu0 %v2382
    %2466 = vmatprep.subr.bf16.mxu0 0
    %2467 = vmatpush1.bf16.msra.mxu0 %v2385
    %2468 = vmatprep.subr.bf16.mxu0 0
    %2469 = vmatpush1.bf16.msra.mxu0 %v2388
    %2470 = vmatprep.subr.bf16.mxu0 0
    %2471 = vmatpush1.bf16.msra.mxu0 0
    %2472 = vmatprep.subr.bf16.mxu0 0
    %2473 = vmatpush1.bf16.msra.mxu0 0
    %2474 = vmatprep.subr.bf16.mxu0 0
    %2475 = vmatpush1.bf16.msra.mxu0 0
    %2476 = vmatprep.subr.bf16.mxu0 0
    %2477 = vmatpush1.bf16.msra.mxu0 0
    %2478 = vmatprep.subr.bf16.mxu0 0
    %2479 = vmatpush1.bf16.msra.mxu0 0
    %2480 = vmatprep.subr.bf16.mxu0 0
    %2481 = vmatpush1.bf16.msra.mxu0 0
    %2482 = vmatprep.subr.bf16.mxu0 0
    %2483 = vmatpush1.bf16.msra.mxu0 0
    %2484 = vmatprep.subr.bf16.mxu0 0
    %2485 = vmatpush1.bf16.msra.mxu0 0
    %2486 = vmatprep.mubr.bf16.mxu0 0
    %2487 = vmatmul.mubr.bf16.gmra.mrb[0].mxu0 0
    %v2488 = vpop.f32.mrb[0].mxu0
    %v2489 = vadd.f32 0.0, %v2488
    %v2490 = vpop.f32.mrb[0].mxu0
    %v2491 = vpop.f32.mrb[0].mxu0
    %v2492 = vpop.f32.mrb[0].mxu0
    %2493 = vdwg.mxu0
    %v2495 = vrot.slane %v2448, 1
    %v2496 = vrot.slane %v2448, 2
    %v2499 = vadd.f32 %v1007, %v2495
    %v2500 = vadd.f32 %v1011, %v2496
    %v2501 = vxor.u32 %v2499, 2147483648
    %v2502 = vxor.u32 %v2500, 2147483648
    %v2503 = vmul.f32 %v2501, 1.442695
    %v2504 = vpow.pop %v2503
    %v2505 = vmul.f32 %v2502, 1.442695
    %v2506 = vpow.pop %v2505
    %v2507 = vadd.f32 %v2504, 1.0
    %v2508 = vadd.f32 %v2506, 1.0
    %v2509 = vrcp.pop %v2507
    %v2510 = vmul.f32 1.0, %v2509
    %v2511 = vrcp.pop %v2508
    %v2512 = vmul.f32 1.0, %v2511
    %v2514 = vrot.slane %v2450, 1
    %v2515 = vrot.slane %v2450, 2
    %v2518 = vadd.f32 %v1009, %v2514
    %v2519 = vadd.f32 %v1013, %v2515
    %v2520 = vxor.u32 %v2518, 2147483648
    %v2521 = vxor.u32 %v2519, 2147483648
    %v2522 = vmul.f32 %v2520, 1.442695
    %v2523 = vpow.pop %v2522
    %v2524 = vmul.f32 %v2521, 1.442695
    %v2525 = vpow.pop %v2524
    %v2526 = vadd.f32 %v2523, 1.0
    %v2527 = vadd.f32 %v2525, 1.0
    %v2528 = vrcp.pop %v2526
    %v2529 = vmul.f32 1.0, %v2528
    %v2530 = vrcp.pop %v2527
    %v2531 = vmul.f32 1.0, %v2530
    %v2532 = vadd.f32 %v2489, %v1741
    %v2534 = vrot.slane %v2532, 1
    %v2535 = vrot.slane %v2532, 2
    %v2538 = vmul.f32 %v2510, %v2534
    %v2539 = vmul.f32 %v2512, %v2535
    %v2540 = vadd.f32 %v1050, %v2538
    %v2541 = vadd.f32 %v1053, %v2539
    %v2542 = vtanh.pop %v2540
    %v2543 = vtanh.pop %v2541
    %v2544 = vsub.f32 1.0, %v2529
    %v2545 = vsub.f32 1.0, %v2531
    %v2546 = vmul.f32 %v2544, %v2542
    %v2547 = vmul.f32 %v2545, %v2543
    %v2548 = vmul.f32 %v2529, 0.0
    %v2549 = vmul.f32 %v2531, 0.0
    %v2550 = vadd.f32 %v2546, %v2548
    %v2551 = vadd.f32 %v2547, %v2549
    %v2584 = vunpack.c.l.b16 %v1697
    %v2585 = vunpack.c.h.b16 %v1697
    %v2586 = vunpack.c.l.b16 %v1698
    %v2587 = vunpack.c.l.b16 %v1699
    %v2588 = vunpack.c.h.b16 %v1699
    %v2589 = vunpack.c.l.b16 %v1700
    %v2590 = vunpack.c.l.b16 %v1701
    %v2591 = vunpack.c.h.b16 %v1701
    %v2592 = vunpack.c.l.b16 %v1702
    %v2593 = vunpack.c.l.b16 %v1703
    %v2594 = vunpack.c.h.b16 %v1703
    %v2595 = vunpack.c.l.b16 %v1704
    %v2596 = vunpack.c.l.b16 %v1705
    %v2597 = vunpack.c.h.b16 %v1705
    %v2598 = vunpack.c.l.b16 %v1706
    %v2599 = vunpack.c.l.b16 %v1707
    %v2600 = vunpack.c.h.b16 %v1707
    %v2601 = vunpack.c.l.b16 %v1708
    %v2602 = vunpack.c.l.b16 %v1709
    %v2603 = vunpack.c.h.b16 %v1709
    %v2604 = vunpack.c.l.b16 %v1710
    %v2605 = vunpack.c.l.b16 %v1711
    %v2606 = vunpack.c.h.b16 %v1711
    %v2607 = vunpack.c.l.b16 %v1712
    %v2608 = vunpack.c.l.b16 %v1713
    %v2609 = vunpack.c.h.b16 %v1713
    %v2610 = vunpack.c.l.b16 %v1714
    %v2611 = vunpack.c.l.b16 %v1715
    %v2612 = vunpack.c.h.b16 %v1715
    %v2613 = vunpack.c.l.b16 %v1716
    %v2614 = vunpack.c.l.b16 %v1717
    %v2615 = vunpack.c.h.b16 %v1717
    %v2616 = vunpack.c.l.b16 %v1718
    %v2617 = vunpack.c.l.b16 %v1719
    %v2618 = vunpack.c.h.b16 %v1719
    %v2619 = vunpack.c.l.b16 %v1720
    %v2620 = vunpack.c.l.b16 %v1721
    %v2621 = vunpack.c.h.b16 %v1721
    %v2622 = vunpack.c.l.b16 %v1722
    %v2623 = vunpack.c.l.b16 %v1723
    %v2624 = vunpack.c.h.b16 %v1723
    %v2625 = vunpack.c.l.b16 %v1724
    %v2626 = vunpack.c.l.b16 %v1725
    %v2627 = vunpack.c.h.b16 %v1725
    %v2628 = vunpack.c.l.b16 %v1726
    %v2629 = vunpack.c.l.b16 %v1727
    %v2630 = vunpack.c.h.b16 %v1727
    %v2631 = vunpack.c.l.b16 %v1728
    %v2632 = vpack.c.b16 %v2587, %v2584
    %v2633 = vpack.c.b16 %v2588, %v2585
    %v2634 = vpack.c.b16 %v2589, %v2586
    %v2635 = vpack.c.b16 %v2593, %v2590
    %v2636 = vpack.c.b16 %v2594, %v2591
    %v2637 = vpack.c.b16 %v2595, %v2592
    %v2638 = vpack.c.b16 %v2599, %v2596
    %v2639 = vpack.c.b16 %v2600, %v2597
    %v2640 = vpack.c.b16 %v2601, %v2598
    %v2641 = vpack.c.b16 %v2605, %v2602
    %v2642 = vpack.c.b16 %v2606, %v2603
    %v2643 = vpack.c.b16 %v2607, %v2604
    %v2644 = vpack.c.b16 %v2611, %v2608
    %v2645 = vpack.c.b16 %v2612, %v2609
    %v2646 = vpack.c.b16 %v2613, %v2610
    %v2647 = vpack.c.b16 %v2617, %v2614
    %v2648 = vpack.c.b16 %v2618, %v2615
    %v2649 = vpack.c.b16 %v2619, %v2616
    %v2650 = vpack.c.b16 %v2623, %v2620
    %v2651 = vpack.c.b16 %v2624, %v2621
    %v2652 = vpack.c.b16 %v2625, %v2622
    %v2653 = vpack.c.b16 %v2629, %v2626
    %v2654 = vpack.c.b16 %v2630, %v2627
    %v2655 = vpack.c.b16 %v2631, %v2628
    %2680 = vmatprep.subr.bf16.mxu0 %v2633
    %2681 = vmatpush1.bf16.msra.mxu0 %v2632
    %2682 = vmatprep.subr.bf16.mxu0 %v2636
    %2683 = vmatpush1.bf16.msra.mxu0 %v2635
    %2684 = vmatprep.subr.bf16.mxu0 %v2639
    %2685 = vmatpush1.bf16.msra.mxu0 %v2638
    %2686 = vmatprep.subr.bf16.mxu0 %v2642
    %2687 = vmatpush1.bf16.msra.mxu0 %v2641
    %2688 = vmatprep.subr.bf16.mxu0 %v2645
    %2689 = vmatpush1.bf16.msra.mxu0 %v2644
    %2690 = vmatprep.subr.bf16.mxu0 %v2648
    %2691 = vmatpush1.bf16.msra.mxu0 %v2647
    %2692 = vmatprep.subr.bf16.mxu0 %v2651
    %2693 = vmatpush1.bf16.msra.mxu0 %v2650
    %2694 = vmatprep.subr.bf16.mxu0 %v2654
    %2695 = vmatpush1.bf16.msra.mxu0 %v2653
    %2696 = vmatprep.subr.bf16.mxu0 0
    %2697 = vmatpush1.bf16.msra.mxu0 0
    %2698 = vmatprep.subr.bf16.mxu0 0
    %2699 = vmatpush1.bf16.msra.mxu0 0
    %2700 = vmatprep.subr.bf16.mxu0 0
    %2701 = vmatpush1.bf16.msra.mxu0 0
    %2702 = vmatprep.subr.bf16.mxu0 0
    %2703 = vmatpush1.bf16.msra.mxu0 0
    %2704 = vmatprep.subr.bf16.mxu0 0
    %2705 = vmatpush1.bf16.msra.mxu0 0
    %2706 = vmatprep.subr.bf16.mxu0 0
    %2707 = vmatpush1.bf16.msra.mxu0 0
    %2708 = vmatprep.subr.bf16.mxu0 0
    %2709 = vmatpush1.bf16.msra.mxu0 0
    %2710 = vmatprep.subr.bf16.mxu0 0
    %2711 = vmatpush1.bf16.msra.mxu0 0
    %2712 = vmatprep.mubr.bf16.mxu0 0
    %2713 = vmatmul.mubr.bf16.gmra.mrb[0].mxu0 0
    %v2714 = vpop.f32.mrb[0].mxu0
    %v2715 = vadd.f32 0.0, %v2714
    %v2716 = vpop.f32.mrb[0].mxu0
    %v2717 = vadd.f32 0.0, %v2716
    %v2718 = vpop.f32.mrb[0].mxu0
    %v2719 = vpop.f32.mrb[0].mxu0
    %2720 = vdwg.mxu0
    %2721 = vmatprep.subr.bf16.mxu0 0
    %2722 = vmatpush1.bf16.msra.mxu0 %v2634
    %2723 = vmatprep.subr.bf16.mxu0 0
    %2724 = vmatpush1.bf16.msra.mxu0 %v2637
    %2725 = vmatprep.subr.bf16.mxu0 0
    %2726 = vmatpush1.bf16.msra.mxu0 %v2640
    %2727 = vmatprep.subr.bf16.mxu0 0
    %2728 = vmatpush1.bf16.msra.mxu0 %v2643
    %2729 = vmatprep.subr.bf16.mxu0 0
    %2730 = vmatpush1.bf16.msra.mxu0 %v2646
    %2731 = vmatprep.subr.bf16.mxu0 0
    %2732 = vmatpush1.bf16.msra.mxu0 %v2649
    %2733 = vmatprep.subr.bf16.mxu0 0
    %2734 = vmatpush1.bf16.msra.mxu0 %v2652
    %2735 = vmatprep.subr.bf16.mxu0 0
    %2736 = vmatpush1.bf16.msra.mxu0 %v2655
    %2737 = vmatprep.subr.bf16.mxu0 0
    %2738 = vmatpush1.bf16.msra.mxu0 0
    %2739 = vmatprep.subr.bf16.mxu0 0
    %2740 = vmatpush1.bf16.msra.mxu0 0
    %2741 = vmatprep.subr.bf16.mxu0 0
    %2742 = vmatpush1.bf16.msra.mxu0 0
    %2743 = vmatprep.subr.bf16.mxu0 0
    %2744 = vmatpush1.bf16.msra.mxu0 0
    %2745 = vmatprep.subr.bf16.mxu0 0
    %2746 = vmatpush1.bf16.msra.mxu0 0
    %2747 = vmatprep.subr.bf16.mxu0 0
    %2748 = vmatpush1.bf16.msra.mxu0 0
    %2749 = vmatprep.subr.bf16.mxu0 0
    %2750 = vmatpush1.bf16.msra.mxu0 0
    %2751 = vmatprep.subr.bf16.mxu0 0
    %2752 = vmatpush1.bf16.msra.mxu0 0
    %2753 = vmatprep.mubr.bf16.mxu0 0
    %2754 = vmatmul.mubr.bf16.gmra.mrb[0].mxu0 0
    %v2755 = vpop.f32.mrb[0].mxu0
    %v2756 = vadd.f32 0.0, %v2755
    %v2757 = vpop.f32.mrb[0].mxu0
    %v2758 = vpop.f32.mrb[0].mxu0
    %v2759 = vpop.f32.mrb[0].mxu0
    %2760 = vdwg.mxu0
    %v2762 = vrot.slane %v2715, 1
    %v2763 = vrot.slane %v2715, 2
    %v2766 = vadd.f32 %v1595, %v2762
    %v2767 = vadd.f32 %v1598, %v2763
    %v2768 = vxor.u32 %v2766, 2147483648
    %v2769 = vxor.u32 %v2767, 2147483648
    %v2770 = vmul.f32 %v2768, 1.442695
    %v2771 = vpow.pop %v2770
    %v2772 = vmul.f32 %v2769, 1.442695
    %v2773 = vpow.pop %v2772
    %v2774 = vadd.f32 %v2771, 1.0
    %v2775 = vadd.f32 %v2773, 1.0
    %v2776 = vrcp.pop %v2774
    %v2777 = vmul.f32 1.0, %v2776
    %v2778 = vrcp.pop %v2775
    %v2779 = vmul.f32 1.0, %v2778
    %v2781 = vrot.slane %v2717, 1
    %v2782 = vrot.slane %v2717, 2
    %v2785 = vadd.f32 %v1596, %v2781
    %v2786 = vadd.f32 %v1599, %v2782
    %v2787 = vxor.u32 %v2785, 2147483648
    %v2788 = vxor.u32 %v2786, 2147483648
    %v2789 = vmul.f32 %v2787, 1.442695
    %v2790 = vpow.pop %v2789
    %v2791 = vmul.f32 %v2788, 1.442695
    %v2792 = vpow.pop %v2791
    %v2793 = vadd.f32 %v2790, 1.0
    %v2794 = vadd.f32 %v2792, 1.0
    %v2795 = vrcp.pop %v2793
    %v2796 = vmul.f32 1.0, %v2795
    %v2797 = vrcp.pop %v2794
    %v2798 = vmul.f32 1.0, %v2797
    %v2799 = vadd.f32 %v2756, %v1755
    %v2801 = vrot.slane %v2799, 1
    %v2802 = vrot.slane %v2799, 2
    %v2805 = vmul.f32 %v2777, %v2801
    %v2806 = vmul.f32 %v2779, %v2802
    %v2807 = vadd.f32 %v1597, %v2805
    %v2808 = vadd.f32 %v1600, %v2806
    %v2809 = vtanh.pop %v2807
    %v2810 = vtanh.pop %v2808
    %v2811 = vsub.f32 1.0, %v2796
    %v2812 = vsub.f32 1.0, %v2798
    %v2813 = vmul.f32 %v2811, %v2809
    %v2814 = vmul.f32 %v2812, %v2810
    %v2815 = vmul.f32 %v2796, 0.0
    %v2816 = vmul.f32 %v2798, 0.0
    %v2817 = vadd.f32 %v2813, %v2815
    %v2818 = vadd.f32 %v2814, %v2816
    %v2819 = vmul.f32 %v2019, %v2283
    %v2820 = vmul.f32 %v2020, %v2284
    %v2821 = vmul.f32 %v2550, %v2817
    %v2822 = vmul.f32 %v2551, %v2818
    %v2823 = vpack.c.bf16 %v2019, %v2019
    %v2824 = vpack.c.bf16 %v2020, %v2020
    %v2827 = vunpack.c.l.b16 %v2823
    %v2828 = vunpack.c.l.b16 %v2824
    %v2829 = vrot.slane %v2828, 7
    %vm2830 = vcmask 1041409
    %v2831 = vsel %vm2830, %v2829, %v2827
    %v2832 = vpack.c.b16 %v2831, %v2831
    %2834 = vmatprep.subr.bf16.mxu0 %v1838
    %2835 = vmatpush1.bf16.msra.mxu0 %v1837
    %2836 = vmatprep.subr.bf16.mxu0 %v1841
    %2837 = vmatpush1.bf16.msra.mxu0 %v1840
    %2838 = vmatprep.subr.bf16.mxu0 %v1844
    %2839 = vmatpush1.bf16.msra.mxu0 %v1843
    %2840 = vmatprep.subr.bf16.mxu0 %v1847
    %2841 = vmatpush1.bf16.msra.mxu0 %v1846
    %2842 = vmatprep.subr.bf16.mxu0 %v1850
    %2843 = vmatpush1.bf16.msra.mxu0 %v1849
    %2844 = vmatprep.subr.bf16.mxu0 %v1853
    %2845 = vmatpush1.bf16.msra.mxu0 %v1852
    %2846 = vmatprep.subr.bf16.mxu0 %v1856
    %2847 = vmatpush1.bf16.msra.mxu0 %v1855
    %2848 = vmatprep.subr.bf16.mxu0 %v1859
    %2849 = vmatpush1.bf16.msra.mxu0 %v1858
    %2850 = vmatprep.subr.bf16.mxu0 0
    %2851 = vmatpush1.bf16.msra.mxu0 0
    %2852 = vmatprep.subr.bf16.mxu0 0
    %2853 = vmatpush1.bf16.msra.mxu0 0
    %2854 = vmatprep.subr.bf16.mxu0 0
    %2855 = vmatpush1.bf16.msra.mxu0 0
    %2856 = vmatprep.subr.bf16.mxu0 0
    %2857 = vmatpush1.bf16.msra.mxu0 0
    %2858 = vmatprep.subr.bf16.mxu0 0
    %2859 = vmatpush1.bf16.msra.mxu0 0
    %2860 = vmatprep.subr.bf16.mxu0 0
    %2861 = vmatpush1.bf16.msra.mxu0 0
    %2862 = vmatprep.subr.bf16.mxu0 0
    %2863 = vmatpush1.bf16.msra.mxu0 0
    %2864 = vmatprep.subr.bf16.mxu0 0
    %2865 = vmatpush1.bf16.msra.mxu0 0
    %2866 = vmatprep.mubr.bf16.mxu0 0
    %2867 = vmatmul.mubr.bf16.gmra.mrb[0].mxu0 %v2832
    %v2868 = vpop.f32.mrb[0].mxu0
    %v2869 = vadd.f32 0.0, %v2868
    %v2870 = vpop.f32.mrb[0].mxu0
    %v2871 = vadd.f32 0.0, %v2870
    %v2872 = vpop.f32.mrb[0].mxu0
    %v2873 = vpop.f32.mrb[0].mxu0
    %2874 = vdwg.mxu0
    %2875 = vmatprep.subr.bf16.mxu0 0
    %2876 = vmatpush1.bf16.msra.mxu0 %v1839
    %2877 = vmatprep.subr.bf16.mxu0 0
    %2878 = vmatpush1.bf16.msra.mxu0 %v1842
    %2879 = vmatprep.subr.bf16.mxu0 0
    %2880 = vmatpush1.bf16.msra.mxu0 %v1845
    %2881 = vmatprep.subr.bf16.mxu0 0
    %2882 = vmatpush1.bf16.msra.mxu0 %v1848
    %2883 = vmatprep.subr.bf16.mxu0 0
    %2884 = vmatpush1.bf16.msra.mxu0 %v1851
    %2885 = vmatprep.subr.bf16.mxu0 0
    %2886 = vmatpush1.bf16.msra.mxu0 %v1854
    %2887 = vmatprep.subr.bf16.mxu0 0
    %2888 = vmatpush1.bf16.msra.mxu0 %v1857
    %2889 = vmatprep.subr.bf16.mxu0 0
    %2890 = vmatpush1.bf16.msra.mxu0 %v1860
    %2891 = vmatprep.subr.bf16.mxu0 0
    %2892 = vmatpush1.bf16.msra.mxu0 0
    %2893 = vmatprep.subr.bf16.mxu0 0
    %2894 = vmatpush1.bf16.msra.mxu0 0
    %2895 = vmatprep.subr.bf16.mxu0 0
    %2896 = vmatpush1.bf16.msra.mxu0 0
    %2897 = vmatprep.subr.bf16.mxu0 0
    %2898 = vmatpush1.bf16.msra.mxu0 0
    %2899 = vmatprep.subr.bf16.mxu0 0
    %2900 = vmatpush1.bf16.msra.mxu0 0
    %2901 = vmatprep.subr.bf16.mxu0 0
    %2902 = vmatpush1.bf16.msra.mxu0 0
    %2903 = vmatprep.subr.bf16.mxu0 0
    %2904 = vmatpush1.bf16.msra.mxu0 0
    %2905 = vmatprep.subr.bf16.mxu0 0
    %2906 = vmatpush1.bf16.msra.mxu0 0
    %2907 = vmatprep.mubr.bf16.mxu0 0
    %2908 = vmatmul.mubr.bf16.gmra.mrb[0].mxu0 %v2832
    %v2909 = vpop.f32.mrb[0].mxu0
    %v2910 = vadd.f32 0.0, %v2909
    %v2911 = vpop.f32.mrb[0].mxu0
    %v2912 = vpop.f32.mrb[0].mxu0
    %v2913 = vpop.f32.mrb[0].mxu0
    %2914 = vdwg.mxu0
    %v2916 = vrot.slane %v2869, 7
    %v2919 = vadd.f32 %v866, %v2916
    %v2920 = vadd.f32 %v870, %v2869
    %v2921 = vxor.u32 %v2919, 2147483648
    %v2922 = vxor.u32 %v2920, 2147483648
    %v2923 = vmul.f32 %v2921, 1.442695
    %v2924 = vpow.pop %v2923
    %v2925 = vmul.f32 %v2922, 1.442695
    %v2926 = vpow.pop %v2925
    %v2927 = vadd.f32 %v2924, 1.0
    %v2928 = vadd.f32 %v2926, 1.0
    %v2929 = vrcp.pop %v2927
    %v2930 = vmul.f32 1.0, %v2929
    %v2931 = vrcp.pop %v2928
    %v2932 = vmul.f32 1.0, %v2931
    %v2934 = vrot.slane %v2871, 7
    %v2937 = vadd.f32 %v868, %v2934
    %v2938 = vadd.f32 %v872, %v2871
    %v2939 = vxor.u32 %v2937, 2147483648
    %v2940 = vxor.u32 %v2938, 2147483648
    %v2941 = vmul.f32 %v2939, 1.442695
    %v2942 = vpow.pop %v2941
    %v2943 = vmul.f32 %v2940, 1.442695
    %v2944 = vpow.pop %v2943
    %v2945 = vadd.f32 %v2942, 1.0
    %v2946 = vadd.f32 %v2944, 1.0
    %v2947 = vrcp.pop %v2945
    %v2948 = vmul.f32 1.0, %v2947
    %v2949 = vrcp.pop %v2946
    %v2950 = vmul.f32 1.0, %v2949
    %v2951 = vadd.f32 %v2910, %v1734
    %v2953 = vrot.slane %v2951, 7
    %v2956 = vmul.f32 %v2930, %v2953
    %v2957 = vmul.f32 %v2932, %v2951
    %v2958 = vadd.f32 %v909, %v2956
    %v2959 = vadd.f32 %v912, %v2957
    %v2960 = vtanh.pop %v2958
    %v2961 = vtanh.pop %v2959
    %v2962 = vsub.f32 1.0, %v2948
    %v2963 = vsub.f32 1.0, %v2950
    %v2964 = vmul.f32 %v2962, %v2960
    %v2965 = vmul.f32 %v2963, %v2961
    %v2968 = vrot.slane %v2019, 7
    %v2969 = vrot.slane %v2020, 7
    %v2972 = vmul.f32 %v2948, %v2968
    %v2973 = vmul.f32 %v2950, %v2969
    %v2974 = vadd.f32 %v2964, %v2972
    %v2975 = vadd.f32 %v2965, %v2973
    %v2976 = vpack.c.bf16 %v2283, %v2283
    %v2977 = vpack.c.bf16 %v2284, %v2284
    %v2980 = vunpack.c.l.b16 %v2976
    %v2981 = vunpack.c.l.b16 %v2977
    %v2982 = vrot.slane %v2981, 7
    %v2983 = vsel %vm2830, %v2982, %v2980
    %v2984 = vpack.c.b16 %v2983, %v2983
    %2986 = vmatprep.subr.bf16.mxu0 %v2102
    %2987 = vmatpush1.bf16.msra.mxu0 %v2101
    %2988 = vmatprep.subr.bf16.mxu0 %v2105
    %2989 = vmatpush1.bf16.msra.mxu0 %v2104
    %2990 = vmatprep.subr.bf16.mxu0 %v2108
    %2991 = vmatpush1.bf16.msra.mxu0 %v2107
    %2992 = vmatprep.subr.bf16.mxu0 %v2111
    %2993 = vmatpush1.bf16.msra.mxu0 %v2110
    %2994 = vmatprep.subr.bf16.mxu0 %v2114
    %2995 = vmatpush1.bf16.msra.mxu0 %v2113
    %2996 = vmatprep.subr.bf16.mxu0 %v2117
    %2997 = vmatpush1.bf16.msra.mxu0 %v2116
    %2998 = vmatprep.subr.bf16.mxu0 %v2120
    %2999 = vmatpush1.bf16.msra.mxu0 %v2119
    %3000 = vmatprep.subr.bf16.mxu0 %v2123
    %3001 = vmatpush1.bf16.msra.mxu0 %v2122
    %3002 = vmatprep.subr.bf16.mxu0 0
    %3003 = vmatpush1.bf16.msra.mxu0 0
    %3004 = vmatprep.subr.bf16.mxu0 0
    %3005 = vmatpush1.bf16.msra.mxu0 0
    %3006 = vmatprep.subr.bf16.mxu0 0
    %3007 = vmatpush1.bf16.msra.mxu0 0
    %3008 = vmatprep.subr.bf16.mxu0 0
    %3009 = vmatpush1.bf16.msra.mxu0 0
    %3010 = vmatprep.subr.bf16.mxu0 0
    %3011 = vmatpush1.bf16.msra.mxu0 0
    %3012 = vmatprep.subr.bf16.mxu0 0
    %3013 = vmatpush1.bf16.msra.mxu0 0
    %3014 = vmatprep.subr.bf16.mxu0 0
    %3015 = vmatpush1.bf16.msra.mxu0 0
    %3016 = vmatprep.subr.bf16.mxu0 0
    %3017 = vmatpush1.bf16.msra.mxu0 0
    %3018 = vmatprep.mubr.bf16.mxu0 0
    %3019 = vmatmul.mubr.bf16.gmra.mrb[0].mxu0 %v2984
    %v3020 = vpop.f32.mrb[0].mxu0
    %v3021 = vadd.f32 0.0, %v3020
    %v3022 = vpop.f32.mrb[0].mxu0
    %v3023 = vadd.f32 0.0, %v3022
    %v3024 = vpop.f32.mrb[0].mxu0
    %v3025 = vpop.f32.mrb[0].mxu0
    %3026 = vdwg.mxu0
    %3027 = vmatprep.subr.bf16.mxu0 0
    %3028 = vmatpush1.bf16.msra.mxu0 %v2103
    %3029 = vmatprep.subr.bf16.mxu0 0
    %3030 = vmatpush1.bf16.msra.mxu0 %v2106
    %3031 = vmatprep.subr.bf16.mxu0 0
    %3032 = vmatpush1.bf16.msra.mxu0 %v2109
    %3033 = vmatprep.subr.bf16.mxu0 0
    %3034 = vmatpush1.bf16.msra.mxu0 %v2112
    %3035 = vmatprep.subr.bf16.mxu0 0
    %3036 = vmatpush1.bf16.msra.mxu0 %v2115
    %3037 = vmatprep.subr.bf16.mxu0 0
    %3038 = vmatpush1.bf16.msra.mxu0 %v2118
    %3039 = vmatprep.subr.bf16.mxu0 0
    %3040 = vmatpush1.bf16.msra.mxu0 %v2121
    %3041 = vmatprep.subr.bf16.mxu0 0
    %3042 = vmatpush1.bf16.msra.mxu0 %v2124
    %3043 = vmatprep.subr.bf16.mxu0 0
    %3044 = vmatpush1.bf16.msra.mxu0 0
    %3045 = vmatprep.subr.bf16.mxu0 0
    %3046 = vmatpush1.bf16.msra.mxu0 0
    %3047 = vmatprep.subr.bf16.mxu0 0
    %3048 = vmatpush1.bf16.msra.mxu0 0
    %3049 = vmatprep.subr.bf16.mxu0 0
    %3050 = vmatpush1.bf16.msra.mxu0 0
    %3051 = vmatprep.subr.bf16.mxu0 0
    %3052 = vmatpush1.bf16.msra.mxu0 0
    %3053 = vmatprep.subr.bf16.mxu0 0
    %3054 = vmatpush1.bf16.msra.mxu0 0
    %3055 = vmatprep.subr.bf16.mxu0 0
    %3056 = vmatpush1.bf16.msra.mxu0 0
    %3057 = vmatprep.subr.bf16.mxu0 0
    %3058 = vmatpush1.bf16.msra.mxu0 0
    %3059 = vmatprep.mubr.bf16.mxu0 0
    %3060 = vmatmul.mubr.bf16.gmra.mrb[0].mxu0 %v2984
    %v3061 = vpop.f32.mrb[0].mxu0
    %v3062 = vadd.f32 0.0, %v3061
    %v3063 = vpop.f32.mrb[0].mxu0
    %v3064 = vpop.f32.mrb[0].mxu0
    %v3065 = vpop.f32.mrb[0].mxu0
    %3066 = vdwg.mxu0
    %v3068 = vrot.slane %v3021, 7
    %v3071 = vadd.f32 %v1324, %v3068
    %v3072 = vadd.f32 %v1327, %v3021
    %v3073 = vxor.u32 %v3071, 2147483648
    %v3074 = vxor.u32 %v3072, 2147483648
    %v3075 = vmul.f32 %v3073, 1.442695
    %v3076 = vpow.pop %v3075
    %v3077 = vmul.f32 %v3074, 1.442695
    %v3078 = vpow.pop %v3077
    %v3079 = vadd.f32 %v3076, 1.0
    %v3080 = vadd.f32 %v3078, 1.0
    %v3081 = vrcp.pop %v3079
    %v3082 = vmul.f32 1.0, %v3081
    %v3083 = vrcp.pop %v3080
    %v3084 = vmul.f32 1.0, %v3083
    %v3086 = vrot.slane %v3023, 7
    %v3089 = vadd.f32 %v1325, %v3086
    %v3090 = vadd.f32 %v1328, %v3023
    %v3091 = vxor.u32 %v3089, 2147483648
    %v3092 = vxor.u32 %v3090, 2147483648
    %v3093 = vmul.f32 %v3091, 1.442695
    %v3094 = vpow.pop %v3093
    %v3095 = vmul.f32 %v3092, 1.442695
    %v3096 = vpow.pop %v3095
    %v3097 = vadd.f32 %v3094, 1.0
    %v3098 = vadd.f32 %v3096, 1.0
    %v3099 = vrcp.pop %v3097
    %v3100 = vmul.f32 1.0, %v3099
    %v3101 = vrcp.pop %v3098
    %v3102 = vmul.f32 1.0, %v3101
    %v3103 = vadd.f32 %v3062, %v1748
    %v3105 = vrot.slane %v3103, 7
    %v3108 = vmul.f32 %v3082, %v3105
    %v3109 = vmul.f32 %v3084, %v3103
    %v3110 = vadd.f32 %v1326, %v3108
    %v3111 = vadd.f32 %v1329, %v3109
    %v3112 = vtanh.pop %v3110
    %v3113 = vtanh.pop %v3111
    %v3114 = vsub.f32 1.0, %v3100
    %v3115 = vsub.f32 1.0, %v3102
    %v3116 = vmul.f32 %v3114, %v3112
    %v3117 = vmul.f32 %v3115, %v3113
    %v3120 = vrot.slane %v2283, 7
    %v3121 = vrot.slane %v2284, 7
    %v3124 = vmul.f32 %v3100, %v3120
    %v3125 = vmul.f32 %v3102, %v3121
    %v3126 = vadd.f32 %v3116, %v3124
    %v3127 = vadd.f32 %v3117, %v3125
    %v3128 = vpack.c.bf16 %v2550, %v2550
    %v3129 = vpack.c.bf16 %v2551, %v2551
    %v3132 = vunpack.c.l.b16 %v3128
    %v3133 = vunpack.c.l.b16 %v3129
    %v3134 = vrot.slane %v3132, 7
    %v3135 = vrot.slane %v3133, 6
    %v3136 = vsel %vm2830, %v3135, %v3134
    %v3137 = vpack.c.b16 %v3136, %v3136
    %3139 = vmatprep.subr.bf16.mxu0 %v2366
    %3140 = vmatpush1.bf16.msra.mxu0 %v2365
    %3141 = vmatprep.subr.bf16.mxu0 %v2369
    %3142 = vmatpush1.bf16.msra.mxu0 %v2368
    %3143 = vmatprep.subr.bf16.mxu0 %v2372
    %3144 = vmatpush1.bf16.msra.mxu0 %v2371
    %3145 = vmatprep.subr.bf16.mxu0 %v2375
    %3146 = vmatpush1.bf16.msra.mxu0 %v2374
    %3147 = vmatprep.subr.bf16.mxu0 %v2378
    %3148 = vmatpush1.bf16.msra.mxu0 %v2377
    %3149 = vmatprep.subr.bf16.mxu0 %v2381
    %3150 = vmatpush1.bf16.msra.mxu0 %v2380
    %3151 = vmatprep.subr.bf16.mxu0 %v2384
    %3152 = vmatpush1.bf16.msra.mxu0 %v2383
    %3153 = vmatprep.subr.bf16.mxu0 %v2387
    %3154 = vmatpush1.bf16.msra.mxu0 %v2386
    %3155 = vmatprep.subr.bf16.mxu0 0
    %3156 = vmatpush1.bf16.msra.mxu0 0
    %3157 = vmatprep.subr.bf16.mxu0 0
    %3158 = vmatpush1.bf16.msra.mxu0 0
    %3159 = vmatprep.subr.bf16.mxu0 0
    %3160 = vmatpush1.bf16.msra.mxu0 0
    %3161 = vmatprep.subr.bf16.mxu0 0
    %3162 = vmatpush1.bf16.msra.mxu0 0
    %3163 = vmatprep.subr.bf16.mxu0 0
    %3164 = vmatpush1.bf16.msra.mxu0 0
    %3165 = vmatprep.subr.bf16.mxu0 0
    %3166 = vmatpush1.bf16.msra.mxu0 0
    %3167 = vmatprep.subr.bf16.mxu0 0
    %3168 = vmatpush1.bf16.msra.mxu0 0
    %3169 = vmatprep.subr.bf16.mxu0 0
    %3170 = vmatpush1.bf16.msra.mxu0 0
    %3171 = vmatprep.mubr.bf16.mxu0 0
    %3172 = vmatmul.mubr.bf16.gmra.mrb[0].mxu0 %v3137
    %v3173 = vpop.f32.mrb[0].mxu0
    %v3174 = vadd.f32 0.0, %v3173
    %v3175 = vpop.f32.mrb[0].mxu0
    %v3176 = vadd.f32 0.0, %v3175
    %v3177 = vpop.f32.mrb[0].mxu0
    %v3178 = vpop.f32.mrb[0].mxu0
    %3179 = vdwg.mxu0
    %3180 = vmatprep.subr.bf16.mxu0 0
    %3181 = vmatpush1.bf16.msra.mxu0 %v2367
    %3182 = vmatprep.subr.bf16.mxu0 0
    %3183 = vmatpush1.bf16.msra.mxu0 %v2370
    %3184 = vmatprep.subr.bf16.mxu0 0
    %3185 = vmatpush1.bf16.msra.mxu0 %v2373
    %3186 = vmatprep.subr.bf16.mxu0 0
    %3187 = vmatpush1.bf16.msra.mxu0 %v2376
    %3188 = vmatprep.subr.bf16.mxu0 0
    %3189 = vmatpush1.bf16.msra.mxu0 %v2379
    %3190 = vmatprep.subr.bf16.mxu0 0
    %3191 = vmatpush1.bf16.msra.mxu0 %v2382
    %3192 = vmatprep.subr.bf16.mxu0 0
    %3193 = vmatpush1.bf16.msra.mxu0 %v2385
    %3194 = vmatprep.subr.bf16.mxu0 0
    %3195 = vmatpush1.bf16.msra.mxu0 %v2388
    %3196 = vmatprep.subr.bf16.mxu0 0
    %3197 = vmatpush1.bf16.msra.mxu0 0
    %3198 = vmatprep.subr.bf16.mxu0 0
    %3199 = vmatpush1.bf16.msra.mxu0 0
    %3200 = vmatprep.subr.bf16.mxu0 0
    %3201 = vmatpush1.bf16.msra.mxu0 0
    %3202 = vmatprep.subr.bf16.mxu0 0
    %3203 = vmatpush1.bf16.msra.mxu0 0
    %3204 = vmatprep.subr.bf16.mxu0 0
    %3205 = vmatpush1.bf16.msra.mxu0 0
    %3206 = vmatprep.subr.bf16.mxu0 0
    %3207 = vmatpush1.bf16.msra.mxu0 0
    %3208 = vmatprep.subr.bf16.mxu0 0
    %3209 = vmatpush1.bf16.msra.mxu0 0
    %3210 = vmatprep.subr.bf16.mxu0 0
    %3211 = vmatpush1.bf16.msra.mxu0 0
    %3212 = vmatprep.mubr.bf16.mxu0 0
    %3213 = vmatmul.mubr.bf16.gmra.mrb[0].mxu0 %v3137
    %v3214 = vpop.f32.mrb[0].mxu0
    %v3215 = vadd.f32 0.0, %v3214
    %v3216 = vpop.f32.mrb[0].mxu0
    %v3217 = vpop.f32.mrb[0].mxu0
    %v3218 = vpop.f32.mrb[0].mxu0
    %3219 = vdwg.mxu0
    %v3221 = vrot.slane %v3174, 2
    %v3222 = vrot.slane %v3174, 3
    %v3225 = vadd.f32 %v1007, %v3221
    %v3226 = vadd.f32 %v1011, %v3222
    %v3227 = vxor.u32 %v3225, 2147483648
    %v3228 = vxor.u32 %v3226, 2147483648
    %v3229 = vmul.f32 %v3227, 1.442695
    %v3230 = vpow.pop %v3229
    %v3231 = vmul.f32 %v3228, 1.442695
    %v3232 = vpow.pop %v3231
    %v3233 = vadd.f32 %v3230, 1.0
    %v3234 = vadd.f32 %v3232, 1.0
    %v3235 = vrcp.pop %v3233
    %v3236 = vmul.f32 1.0, %v3235
    %v3237 = vrcp.pop %v3234
    %v3238 = vmul.f32 1.0, %v3237
    %v3240 = vrot.slane %v3176, 2
    %v3241 = vrot.slane %v3176, 3
    %v3244 = vadd.f32 %v1009, %v3240
    %v3245 = vadd.f32 %v1013, %v3241
    %v3246 = vxor.u32 %v3244, 2147483648
    %v3247 = vxor.u32 %v3245, 2147483648
    %v3248 = vmul.f32 %v3246, 1.442695
    %v3249 = vpow.pop %v3248
    %v3250 = vmul.f32 %v3247, 1.442695
    %v3251 = vpow.pop %v3250
    %v3252 = vadd.f32 %v3249, 1.0
    %v3253 = vadd.f32 %v3251, 1.0
    %v3254 = vrcp.pop %v3252
    %v3255 = vmul.f32 1.0, %v3254
    %v3256 = vrcp.pop %v3253
    %v3257 = vmul.f32 1.0, %v3256
    %v3258 = vadd.f32 %v3215, %v1741
    %v3260 = vrot.slane %v3258, 2
    %v3261 = vrot.slane %v3258, 3
    %v3264 = vmul.f32 %v3236, %v3260
    %v3265 = vmul.f32 %v3238, %v3261
    %v3266 = vadd.f32 %v1050, %v3264
    %v3267 = vadd.f32 %v1053, %v3265
    %v3268 = vtanh.pop %v3266
    %v3269 = vtanh.pop %v3267
    %v3270 = vsub.f32 1.0, %v3255
    %v3271 = vsub.f32 1.0, %v3257
    %v3272 = vmul.f32 %v3270, %v3268
    %v3273 = vmul.f32 %v3271, %v3269
    %v3276 = vrot.slane %v2550, 1
    %v3277 = vrot.slane %v2551, 1
    %v3280 = vmul.f32 %v3255, %v3276
    %v3281 = vmul.f32 %v3257, %v3277
    %v3282 = vadd.f32 %v3272, %v3280
    %v3283 = vadd.f32 %v3273, %v3281
    %v3284 = vpack.c.bf16 %v2817, %v2817
    %v3285 = vpack.c.bf16 %v2818, %v2818
    %v3288 = vunpack.c.l.b16 %v3284
    %v3289 = vunpack.c.l.b16 %v3285
    %v3290 = vrot.slane %v3288, 7
    %v3291 = vrot.slane %v3289, 6
    %v3292 = vsel %vm2830, %v3291, %v3290
    %v3293 = vpack.c.b16 %v3292, %v3292
    %3295 = vmatprep.subr.bf16.mxu0 %v2633
    %3296 = vmatpush1.bf16.msra.mxu0 %v2632
    %3297 = vmatprep.subr.bf16.mxu0 %v2636
    %3298 = vmatpush1.bf16.msra.mxu0 %v2635
    %3299 = vmatprep.subr.bf16.mxu0 %v2639
    %3300 = vmatpush1.bf16.msra.mxu0 %v2638
    %3301 = vmatprep.subr.bf16.mxu0 %v2642
    %3302 = vmatpush1.bf16.msra.mxu0 %v2641
    %3303 = vmatprep.subr.bf16.mxu0 %v2645
    %3304 = vmatpush1.bf16.msra.mxu0 %v2644
    %3305 = vmatprep.subr.bf16.mxu0 %v2648
    %3306 = vmatpush1.bf16.msra.mxu0 %v2647
    %3307 = vmatprep.subr.bf16.mxu0 %v2651
    %3308 = vmatpush1.bf16.msra.mxu0 %v2650
    %3309 = vmatprep.subr.bf16.mxu0 %v2654
    %3310 = vmatpush1.bf16.msra.mxu0 %v2653
    %3311 = vmatprep.subr.bf16.mxu0 0
    %3312 = vmatpush1.bf16.msra.mxu0 0
    %3313 = vmatprep.subr.bf16.mxu0 0
    %3314 = vmatpush1.bf16.msra.mxu0 0
    %3315 = vmatprep.subr.bf16.mxu0 0
    %3316 = vmatpush1.bf16.msra.mxu0 0
    %3317 = vmatprep.subr.bf16.mxu0 0
    %3318 = vmatpush1.bf16.msra.mxu0 0
    %3319 = vmatprep.subr.bf16.mxu0 0
    %3320 = vmatpush1.bf16.msra.mxu0 0
    %3321 = vmatprep.subr.bf16.mxu0 0
    %3322 = vmatpush1.bf16.msra.mxu0 0
    %3323 = vmatprep.subr.bf16.mxu0 0
    %3324 = vmatpush1.bf16.msra.mxu0 0
    %3325 = vmatprep.subr.bf16.mxu0 0
    %3326 = vmatpush1.bf16.msra.mxu0 0
    %3327 = vmatprep.mubr.bf16.mxu0 0
    %3328 = vmatmul.mubr.bf16.gmra.mrb[0].mxu0 %v3293
    %v3329 = vpop.f32.mrb[0].mxu0
    %v3330 = vadd.f32 0.0, %v3329
    %v3331 = vpop.f32.mrb[0].mxu0
    %v3332 = vadd.f32 0.0, %v3331
    %v3333 = vpop.f32.mrb[0].mxu0
    %v3334 = vpop.f32.mrb[0].mxu0
    %3335 = vdwg.mxu0
    %3336 = vmatprep.subr.bf16.mxu0 0
    %3337 = vmatpush1.bf16.msra.mxu0 %v2634
    %3338 = vmatprep.subr.bf16.mxu0 0
    %3339 = vmatpush1.bf16.msra.mxu0 %v2637
    %3340 = vmatprep.subr.bf16.mxu0 0
    %3341 = vmatpush1.bf16.msra.mxu0 %v2640
    %3342 = vmatprep.subr.bf16.mxu0 0
    %3343 = vmatpush1.bf16.msra.mxu0 %v2643
    %3344 = vmatprep.subr.bf16.mxu0 0
    %3345 = vmatpush1.bf16.msra.mxu0 %v2646
    %3346 = vmatprep.subr.bf16.mxu0 0
    %3347 = vmatpush1.bf16.msra.mxu0 %v2649
    %3348 = vmatprep.subr.bf16.mxu0 0
    %3349 = vmatpush1.bf16.msra.mxu0 %v2652
    %3350 = vmatprep.subr.bf16.mxu0 0
    %3351 = vmatpush1.bf16.msra.mxu0 %v2655
    %3352 = vmatprep.subr.bf16.mxu0 0
    %3353 = vmatpush1.bf16.msra.mxu0 0
    %3354 = vmatprep.subr.bf16.mxu0 0
    %3355 = vmatpush1.bf16.msra.mxu0 0
    %3356 = vmatprep.subr.bf16.mxu0 0
    %3357 = vmatpush1.bf16.msra.mxu0 0
    %3358 = vmatprep.subr.bf16.mxu0 0
    %3359 = vmatpush1.bf16.msra.mxu0 0
    %3360 = vmatprep.subr.bf16.mxu0 0
    %3361 = vmatpush1.bf16.msra.mxu0 0
    %3362 = vmatprep.subr.bf16.mxu0 0
    %3363 = vmatpush1.bf16.msra.mxu0 0
    %3364 = vmatprep.subr.bf16.mxu0 0
    %3365 = vmatpush1.bf16.msra.mxu0 0
    %3366 = vmatprep.subr.bf16.mxu0 0
    %3367 = vmatpush1.bf16.msra.mxu0 0
    %3368 = vmatprep.mubr.bf16.mxu0 0
    %3369 = vmatmul.mubr.bf16.gmra.mrb[0].mxu0 %v3293
    %v3370 = vpop.f32.mrb[0].mxu0
    %v3371 = vadd.f32 0.0, %v3370
    %v3372 = vpop.f32.mrb[0].mxu0
    %v3373 = vpop.f32.mrb[0].mxu0
    %v3374 = vpop.f32.mrb[0].mxu0
    %3375 = vdwg.mxu0
    %v3377 = vrot.slane %v3330, 2
    %v3378 = vrot.slane %v3330, 3
    %v3381 = vadd.f32 %v1595, %v3377
    %v3382 = vadd.f32 %v1598, %v3378
    %v3383 = vxor.u32 %v3381, 2147483648
    %v3384 = vxor.u32 %v3382, 2147483648
    %v3385 = vmul.f32 %v3383, 1.442695
    %v3386 = vpow.pop %v3385
    %v3387 = vmul.f32 %v3384, 1.442695
    %v3388 = vpow.pop %v3387
    %v3389 = vadd.f32 %v3386, 1.0
    %v3390 = vadd.f32 %v3388, 1.0
    %v3391 = vrcp.pop %v3389
    %v3392 = vmul.f32 1.0, %v3391
    %v3393 = vrcp.pop %v3390
    %v3394 = vmul.f32 1.0, %v3393
    %v3396 = vrot.slane %v3332, 2
    %v3397 = vrot.slane %v3332, 3
    %v3400 = vadd.f32 %v1596, %v3396
    %v3401 = vadd.f32 %v1599, %v3397
    %v3402 = vxor.u32 %v3400, 2147483648
    %v3403 = vxor.u32 %v3401, 2147483648
    %v3404 = vmul.f32 %v3402, 1.442695
    %v3405 = vpow.pop %v3404
    %v3406 = vmul.f32 %v3403, 1.442695
    %v3407 = vpow.pop %v3406
    %v3408 = vadd.f32 %v3405, 1.0
    %v3409 = vadd.f32 %v3407, 1.0
    %v3410 = vrcp.pop %v3408
    %v3411 = vmul.f32 1.0, %v3410
    %v3412 = vrcp.pop %v3409
    %v3413 = vmul.f32 1.0, %v3412
    %v3414 = vadd.f32 %v3371, %v1755
    %v3416 = vrot.slane %v3414, 2
    %v3417 = vrot.slane %v3414, 3
    %v3420 = vmul.f32 %v3392, %v3416
    %v3421 = vmul.f32 %v3394, %v3417
    %v3422 = vadd.f32 %v1597, %v3420
    %v3423 = vadd.f32 %v1600, %v3421
    %v3424 = vtanh.pop %v3422
    %v3425 = vtanh.pop %v3423
    %v3426 = vsub.f32 1.0, %v3411
    %v3427 = vsub.f32 1.0, %v3413
    %v3428 = vmul.f32 %v3426, %v3424
    %v3429 = vmul.f32 %v3427, %v3425
    %v3432 = vrot.slane %v2817, 1
    %v3433 = vrot.slane %v2818, 1
    %v3436 = vmul.f32 %v3411, %v3432
    %v3437 = vmul.f32 %v3413, %v3433
    %v3438 = vadd.f32 %v3428, %v3436
    %v3439 = vadd.f32 %v3429, %v3437
    %v3440 = vmul.f32 %v2974, %v3126
    %v3441 = vmul.f32 %v2975, %v3127
    %v3444 = vrot.slane %v3440, 1
    %v3445 = vrot.slane %v3441, 1
    %v3448 = vmax.f32 %v2819, %v3444
    %v3449 = vmax.f32 %v2820, %v3445
    %v3450 = vmul.f32 %v3282, %v3438
    %v3451 = vmul.f32 %v3283, %v3439
    %v3454 = vrot.slane %v3450, 7
    %v3455 = vrot.slane %v3451, 7
    %v3458 = vmax.f32 %v2821, %v3454
    %v3459 = vmax.f32 %v2822, %v3455
    %v3460 = vpack.c.bf16 %v2974, %v2974
    %v3461 = vpack.c.bf16 %v2975, %v2975
    %v3464 = vunpack.c.l.b16 %v3460
    %v3465 = vunpack.c.l.b16 %v3461
    %v3466 = vrot.slane %v3464, 1
    %v3467 = vsel %vm2830, %v3465, %v3466
    %v3468 = vpack.c.b16 %v3467, %v3467
    %3470 = vmatprep.subr.bf16.mxu0 %v1838
    %3471 = vmatpush1.bf16.msra.mxu0 %v1837
    %3472 = vmatprep.subr.bf16.mxu0 %v1841
    %3473 = vmatpush1.bf16.msra.mxu0 %v1840
    %3474 = vmatprep.subr.bf16.mxu0 %v1844
    %3475 = vmatpush1.bf16.msra.mxu0 %v1843
    %3476 = vmatprep.subr.bf16.mxu0 %v1847
    %3477 = vmatpush1.bf16.msra.mxu0 %v1846
    %3478 = vmatprep.subr.bf16.mxu0 %v1850
    %3479 = vmatpush1.bf16.msra.mxu0 %v1849
    %3480 = vmatprep.subr.bf16.mxu0 %v1853
    %3481 = vmatpush1.bf16.msra.mxu0 %v1852
    %3482 = vmatprep.subr.bf16.mxu0 %v1856
    %3483 = vmatpush1.bf16.msra.mxu0 %v1855
    %3484 = vmatprep.subr.bf16.mxu0 %v1859
    %3485 = vmatpush1.bf16.msra.mxu0 %v1858
    %3486 = vmatprep.subr.bf16.mxu0 0
    %3487 = vmatpush1.bf16.msra.mxu0 0
    %3488 = vmatprep.subr.bf16.mxu0 0
    %3489 = vmatpush1.bf16.msra.mxu0 0
    %3490 = vmatprep.subr.bf16.mxu0 0
    %3491 = vmatpush1.bf16.msra.mxu0 0
    %3492 = vmatprep.subr.bf16.mxu0 0
    %3493 = vmatpush1.bf16.msra.mxu0 0
    %3494 = vmatprep.subr.bf16.mxu0 0
    %3495 = vmatpush1.bf16.msra.mxu0 0
    %3496 = vmatprep.subr.bf16.mxu0 0
    %3497 = vmatpush1.bf16.msra.mxu0 0
    %3498 = vmatprep.subr.bf16.mxu0 0
    %3499 = vmatpush1.bf16.msra.mxu0 0
    %3500 = vmatprep.subr.bf16.mxu0 0
    %3501 = vmatpush1.bf16.msra.mxu0 0
    %3502 = vmatprep.mubr.bf16.mxu0 0
    %3503 = vmatmul.mubr.bf16.gmra.mrb[0].mxu0 %v3468
    %v3504 = vpop.f32.mrb[0].mxu0
    %v3505 = vadd.f32 0.0, %v3504
    %v3506 = vpop.f32.mrb[0].mxu0
    %v3507 = vadd.f32 0.0, %v3506
    %v3508 = vpop.f32.mrb[0].mxu0
    %v3509 = vpop.f32.mrb[0].mxu0
    %3510 = vdwg.mxu0
    %3511 = vmatprep.subr.bf16.mxu0 0
    %3512 = vmatpush1.bf16.msra.mxu0 %v1839
    %3513 = vmatprep.subr.bf16.mxu0 0
    %3514 = vmatpush1.bf16.msra.mxu0 %v1842
    %3515 = vmatprep.subr.bf16.mxu0 0
    %3516 = vmatpush1.bf16.msra.mxu0 %v1845
    %3517 = vmatprep.subr.bf16.mxu0 0
    %3518 = vmatpush1.bf16.msra.mxu0 %v1848
    %3519 = vmatprep.subr.bf16.mxu0 0
    %3520 = vmatpush1.bf16.msra.mxu0 %v1851
    %3521 = vmatprep.subr.bf16.mxu0 0
    %3522 = vmatpush1.bf16.msra.mxu0 %v1854
    %3523 = vmatprep.subr.bf16.mxu0 0
    %3524 = vmatpush1.bf16.msra.mxu0 %v1857
    %3525 = vmatprep.subr.bf16.mxu0 0
    %3526 = vmatpush1.bf16.msra.mxu0 %v1860
    %3527 = vmatprep.subr.bf16.mxu0 0
    %3528 = vmatpush1.bf16.msra.mxu0 0
    %3529 = vmatprep.subr.bf16.mxu0 0
    %3530 = vmatpush1.bf16.msra.mxu0 0
    %3531 = vmatprep.subr.bf16.mxu0 0
    %3532 = vmatpush1.bf16.msra.mxu0 0
    %3533 = vmatprep.subr.bf16.mxu0 0
    %3534 = vmatpush1.bf16.msra.mxu0 0
    %3535 = vmatprep.subr.bf16.mxu0 0
    %3536 = vmatpush1.bf16.msra.mxu0 0
    %3537 = vmatprep.subr.bf16.mxu0 0
    %3538 = vmatpush1.bf16.msra.mxu0 0
    %3539 = vmatprep.subr.bf16.mxu0 0
    %3540 = vmatpush1.bf16.msra.mxu0 0
    %3541 = vmatprep.subr.bf16.mxu0 0
    %3542 = vmatpush1.bf16.msra.mxu0 0
    %3543 = vmatprep.mubr.bf16.mxu0 0
    %3544 = vmatmul.mubr.bf16.gmra.mrb[0].mxu0 %v3468
    %v3545 = vpop.f32.mrb[0].mxu0
    %v3546 = vadd.f32 0.0, %v3545
    %v3547 = vpop.f32.mrb[0].mxu0
    %v3548 = vpop.f32.mrb[0].mxu0
    %v3549 = vpop.f32.mrb[0].mxu0
    %3550 = vdwg.mxu0
    %v3552 = vrot.slane %v3505, 6
    %v3553 = vrot.slane %v3505, 7
    %v3556 = vadd.f32 %v866, %v3552
    %v3557 = vadd.f32 %v870, %v3553
    %v3558 = vxor.u32 %v3556, 2147483648
    %v3559 = vxor.u32 %v3557, 2147483648
    %v3560 = vmul.f32 %v3558, 1.442695
    %v3561 = vpow.pop %v3560
    %v3562 = vmul.f32 %v3559, 1.442695
    %v3563 = vpow.pop %v3562
    %v3564 = vadd.f32 %v3561, 1.0
    %v3565 = vadd.f32 %v3563, 1.0
    %v3566 = vrcp.pop %v3564
    %v3567 = vmul.f32 1.0, %v3566
    %v3568 = vrcp.pop %v3565
    %v3569 = vmul.f32 1.0, %v3568
    %v3571 = vrot.slane %v3507, 6
    %v3572 = vrot.slane %v3507, 7
    %v3575 = vadd.f32 %v868, %v3571
    %v3576 = vadd.f32 %v872, %v3572
    %v3577 = vxor.u32 %v3575, 2147483648
    %v3578 = vxor.u32 %v3576, 2147483648
    %v3579 = vmul.f32 %v3577, 1.442695
    %v3580 = vpow.pop %v3579
    %v3581 = vmul.f32 %v3578, 1.442695
    %v3582 = vpow.pop %v3581
    %v3583 = vadd.f32 %v3580, 1.0
    %v3584 = vadd.f32 %v3582, 1.0
    %v3585 = vrcp.pop %v3583
    %v3586 = vmul.f32 1.0, %v3585
    %v3587 = vrcp.pop %v3584
    %v3588 = vmul.f32 1.0, %v3587
    %v3589 = vadd.f32 %v3546, %v1734
    %v3591 = vrot.slane %v3589, 6
    %v3592 = vrot.slane %v3589, 7
    %v3595 = vmul.f32 %v3567, %v3591
    %v3596 = vmul.f32 %v3569, %v3592
    %v3597 = vadd.f32 %v909, %v3595
    %v3598 = vadd.f32 %v912, %v3596
    %v3599 = vtanh.pop %v3597
    %v3600 = vtanh.pop %v3598
    %v3601 = vsub.f32 1.0, %v3586
    %v3602 = vsub.f32 1.0, %v3588
    %v3603 = vmul.f32 %v3601, %v3599
    %v3604 = vmul.f32 %v3602, %v3600
    %v3607 = vrot.slane %v2974, 7
    %v3608 = vrot.slane %v2975, 7
    %v3611 = vmul.f32 %v3586, %v3607
    %v3612 = vmul.f32 %v3588, %v3608
    %v3613 = vadd.f32 %v3603, %v3611
    %v3614 = vadd.f32 %v3604, %v3612
    %v3615 = vpack.c.bf16 %v3126, %v3126
    %v3616 = vpack.c.bf16 %v3127, %v3127
    %v3619 = vunpack.c.l.b16 %v3615
    %v3620 = vunpack.c.l.b16 %v3616
    %v3621 = vrot.slane %v3619, 1
    %v3622 = vsel %vm2830, %v3620, %v3621
    %v3623 = vpack.c.b16 %v3622, %v3622
    %3625 = vmatprep.subr.bf16.mxu0 %v2102
    %3626 = vmatpush1.bf16.msra.mxu0 %v2101
    %3627 = vmatprep.subr.bf16.mxu0 %v2105
    %3628 = vmatpush1.bf16.msra.mxu0 %v2104
    %3629 = vmatprep.subr.bf16.mxu0 %v2108
    %3630 = vmatpush1.bf16.msra.mxu0 %v2107
    %3631 = vmatprep.subr.bf16.mxu0 %v2111
    %3632 = vmatpush1.bf16.msra.mxu0 %v2110
    %3633 = vmatprep.subr.bf16.mxu0 %v2114
    %3634 = vmatpush1.bf16.msra.mxu0 %v2113
    %3635 = vmatprep.subr.bf16.mxu0 %v2117
    %3636 = vmatpush1.bf16.msra.mxu0 %v2116
    %3637 = vmatprep.subr.bf16.mxu0 %v2120
    %3638 = vmatpush1.bf16.msra.mxu0 %v2119
    %3639 = vmatprep.subr.bf16.mxu0 %v2123
    %3640 = vmatpush1.bf16.msra.mxu0 %v2122
    %3641 = vmatprep.subr.bf16.mxu0 0
    %3642 = vmatpush1.bf16.msra.mxu0 0
    %3643 = vmatprep.subr.bf16.mxu0 0
    %3644 = vmatpush1.bf16.msra.mxu0 0
    %3645 = vmatprep.subr.bf16.mxu0 0
    %3646 = vmatpush1.bf16.msra.mxu0 0
    %3647 = vmatprep.subr.bf16.mxu0 0
    %3648 = vmatpush1.bf16.msra.mxu0 0
    %3649 = vmatprep.subr.bf16.mxu0 0
    %3650 = vmatpush1.bf16.msra.mxu0 0
    %3651 = vmatprep.subr.bf16.mxu0 0
    %3652 = vmatpush1.bf16.msra.mxu0 0
    %3653 = vmatprep.subr.bf16.mxu0 0
    %3654 = vmatpush1.bf16.msra.mxu0 0
    %3655 = vmatprep.subr.bf16.mxu0 0
    %3656 = vmatpush1.bf16.msra.mxu0 0
    %3657 = vmatprep.mubr.bf16.mxu0 0
    %3658 = vmatmul.mubr.bf16.gmra.mrb[0].mxu0 %v3623
    %v3659 = vpop.f32.mrb[0].mxu0
    %v3660 = vadd.f32 0.0, %v3659
    %v3661 = vpop.f32.mrb[0].mxu0
    %v3662 = vadd.f32 0.0, %v3661
    %v3663 = vpop.f32.mrb[0].mxu0
    %v3664 = vpop.f32.mrb[0].mxu0
    %3665 = vdwg.mxu0
    %3666 = vmatprep.subr.bf16.mxu0 0
    %3667 = vmatpush1.bf16.msra.mxu0 %v2103
    %3668 = vmatprep.subr.bf16.mxu0 0
    %3669 = vmatpush1.bf16.msra.mxu0 %v2106
    %3670 = vmatprep.subr.bf16.mxu0 0
    %3671 = vmatpush1.bf16.msra.mxu0 %v2109
    %3672 = vmatprep.subr.bf16.mxu0 0
    %3673 = vmatpush1.bf16.msra.mxu0 %v2112
    %3674 = vmatprep.subr.bf16.mxu0 0
    %3675 = vmatpush1.bf16.msra.mxu0 %v2115
    %3676 = vmatprep.subr.bf16.mxu0 0
    %3677 = vmatpush1.bf16.msra.mxu0 %v2118
    %3678 = vmatprep.subr.bf16.mxu0 0
    %3679 = vmatpush1.bf16.msra.mxu0 %v2121
    %3680 = vmatprep.subr.bf16.mxu0 0
    %3681 = vmatpush1.bf16.msra.mxu0 %v2124
    %3682 = vmatprep.subr.bf16.mxu0 0
    %3683 = vmatpush1.bf16.msra.mxu0 0
    %3684 = vmatprep.subr.bf16.mxu0 0
    %3685 = vmatpush1.bf16.msra.mxu0 0
    %3686 = vmatprep.subr.bf16.mxu0 0
    %3687 = vmatpush1.bf16.msra.mxu0 0
    %3688 = vmatprep.subr.bf16.mxu0 0
    %3689 = vmatpush1.bf16.msra.mxu0 0
    %3690 = vmatprep.subr.bf16.mxu0 0
    %3691 = vmatpush1.bf16.msra.mxu0 0
    %3692 = vmatprep.subr.bf16.mxu0 0
    %3693 = vmatpush1.bf16.msra.mxu0 0
    %3694 = vmatprep.subr.bf16.mxu0 0
    %3695 = vmatpush1.bf16.msra.mxu0 0
    %3696 = vmatprep.subr.bf16.mxu0 0
    %3697 = vmatpush1.bf16.msra.mxu0 0
    %3698 = vmatprep.mubr.bf16.mxu0 0
    %3699 = vmatmul.mubr.bf16.gmra.mrb[0].mxu0 %v3623
    %v3700 = vpop.f32.mrb[0].mxu0
    %v3701 = vadd.f32 0.0, %v3700
    %v3702 = vpop.f32.mrb[0].mxu0
    %v3703 = vpop.f32.mrb[0].mxu0
    %v3704 = vpop.f32.mrb[0].mxu0
    %3705 = vdwg.mxu0
    %v3707 = vrot.slane %v3660, 6
    %v3708 = vrot.slane %v3660, 7
    %v3711 = vadd.f32 %v1324, %v3707
    %v3712 = vadd.f32 %v1327, %v3708
    %v3713 = vxor.u32 %v3711, 2147483648
    %v3714 = vxor.u32 %v3712, 2147483648
    %v3715 = vmul.f32 %v3713, 1.442695
    %v3716 = vpow.pop %v3715
    %v3717 = vmul.f32 %v3714, 1.442695
    %v3718 = vpow.pop %v3717
    %v3719 = vadd.f32 %v3716, 1.0
    %v3720 = vadd.f32 %v3718, 1.0
    %v3721 = vrcp.pop %v3719
    %v3722 = vmul.f32 1.0, %v3721
    %v3723 = vrcp.pop %v3720
    %v3724 = vmul.f32 1.0, %v3723
    %v3726 = vrot.slane %v3662, 6
    %v3727 = vrot.slane %v3662, 7
    %v3730 = vadd.f32 %v1325, %v3726
    %v3731 = vadd.f32 %v1328, %v3727
    %v3732 = vxor.u32 %v3730, 2147483648
    %v3733 = vxor.u32 %v3731, 2147483648
    %v3734 = vmul.f32 %v3732, 1.442695
    %v3735 = vpow.pop %v3734
    %v3736 = vmul.f32 %v3733, 1.442695
    %v3737 = vpow.pop %v3736
    %v3738 = vadd.f32 %v3735, 1.0
    %v3739 = vadd.f32 %v3737, 1.0
    %v3740 = vrcp.pop %v3738
    %v3741 = vmul.f32 1.0, %v3740
    %v3742 = vrcp.pop %v3739
    %v3743 = vmul.f32 1.0, %v3742
    %v3744 = vadd.f32 %v3701, %v1748
    %v3746 = vrot.slane %v3744, 6
    %v3747 = vrot.slane %v3744, 7
    %v3750 = vmul.f32 %v3722, %v3746
    %v3751 = vmul.f32 %v3724, %v3747
    %v3752 = vadd.f32 %v1326, %v3750
    %v3753 = vadd.f32 %v1329, %v3751
    %v3754 = vtanh.pop %v3752
    %v3755 = vtanh.pop %v3753
    %v3756 = vsub.f32 1.0, %v3741
    %v3757 = vsub.f32 1.0, %v3743
    %v3758 = vmul.f32 %v3756, %v3754
    %v3759 = vmul.f32 %v3757, %v3755
    %v3762 = vrot.slane %v3126, 7
    %v3763 = vrot.slane %v3127, 7
    %v3766 = vmul.f32 %v3741, %v3762
    %v3767 = vmul.f32 %v3743, %v3763
    %v3768 = vadd.f32 %v3758, %v3766
    %v3769 = vadd.f32 %v3759, %v3767
    %v3770 = vpack.c.bf16 %v3282, %v3282
    %v3771 = vpack.c.bf16 %v3283, %v3283
    %v3774 = vunpack.c.l.b16 %v3770
    %v3775 = vunpack.c.l.b16 %v3771
    %v3776 = vrot.slane %v3774, 6
    %v3777 = vrot.slane %v3775, 5
    %v3778 = vsel %vm2830, %v3777, %v3776
    %v3779 = vpack.c.b16 %v3778, %v3778
    %3781 = vmatprep.subr.bf16.mxu0 %v2366
    %3782 = vmatpush1.bf16.msra.mxu0 %v2365
    %3783 = vmatprep.subr.bf16.mxu0 %v2369
    %3784 = vmatpush1.bf16.msra.mxu0 %v2368
    %3785 = vmatprep.subr.bf16.mxu0 %v2372
    %3786 = vmatpush1.bf16.msra.mxu0 %v2371
    %3787 = vmatprep.subr.bf16.mxu0 %v2375
    %3788 = vmatpush1.bf16.msra.mxu0 %v2374
    %3789 = vmatprep.subr.bf16.mxu0 %v2378
    %3790 = vmatpush1.bf16.msra.mxu0 %v2377
    %3791 = vmatprep.subr.bf16.mxu0 %v2381
    %3792 = vmatpush1.bf16.msra.mxu0 %v2380
    %3793 = vmatprep.subr.bf16.mxu0 %v2384
    %3794 = vmatpush1.bf16.msra.mxu0 %v2383
    %3795 = vmatprep.subr.bf16.mxu0 %v2387
    %3796 = vmatpush1.bf16.msra.mxu0 %v2386
    %3797 = vmatprep.subr.bf16.mxu0 0
    %3798 = vmatpush1.bf16.msra.mxu0 0
    %3799 = vmatprep.subr.bf16.mxu0 0
    %3800 = vmatpush1.bf16.msra.mxu0 0
    %3801 = vmatprep.subr.bf16.mxu0 0
    %3802 = vmatpush1.bf16.msra.mxu0 0
    %3803 = vmatprep.subr.bf16.mxu0 0
    %3804 = vmatpush1.bf16.msra.mxu0 0
    %3805 = vmatprep.subr.bf16.mxu0 0
    %3806 = vmatpush1.bf16.msra.mxu0 0
    %3807 = vmatprep.subr.bf16.mxu0 0
    %3808 = vmatpush1.bf16.msra.mxu0 0
    %3809 = vmatprep.subr.bf16.mxu0 0
    %3810 = vmatpush1.bf16.msra.mxu0 0
    %3811 = vmatprep.subr.bf16.mxu0 0
    %3812 = vmatpush1.bf16.msra.mxu0 0
    %3813 = vmatprep.mubr.bf16.mxu0 0
    %3814 = vmatmul.mubr.bf16.gmra.mrb[0].mxu0 %v3779
    %v3815 = vpop.f32.mrb[0].mxu0
    %v3816 = vadd.f32 0.0, %v3815
    %v3817 = vpop.f32.mrb[0].mxu0
    %v3818 = vadd.f32 0.0, %v3817
    %v3819 = vpop.f32.mrb[0].mxu0
    %v3820 = vpop.f32.mrb[0].mxu0
    %3821 = vdwg.mxu0
    %3822 = vmatprep.subr.bf16.mxu0 0
    %3823 = vmatpush1.bf16.msra.mxu0 %v2367
    %3824 = vmatprep.subr.bf16.mxu0 0
    %3825 = vmatpush1.bf16.msra.mxu0 %v2370
    %3826 = vmatprep.subr.bf16.mxu0 0
    %3827 = vmatpush1.bf16.msra.mxu0 %v2373
    %3828 = vmatprep.subr.bf16.mxu0 0
    %3829 = vmatpush1.bf16.msra.mxu0 %v2376
    %3830 = vmatprep.subr.bf16.mxu0 0
    %3831 = vmatpush1.bf16.msra.mxu0 %v2379
    %3832 = vmatprep.subr.bf16.mxu0 0
    %3833 = vmatpush1.bf16.msra.mxu0 %v2382
    %3834 = vmatprep.subr.bf16.mxu0 0
    %3835 = vmatpush1.bf16.msra.mxu0 %v2385
    %3836 = vmatprep.subr.bf16.mxu0 0
    %3837 = vmatpush1.bf16.msra.mxu0 %v2388
    %3838 = vmatprep.subr.bf16.mxu0 0
    %3839 = vmatpush1.bf16.msra.mxu0 0
    %3840 = vmatprep.subr.bf16.mxu0 0
    %3841 = vmatpush1.bf16.msra.mxu0 0
    %3842 = vmatprep.subr.bf16.mxu0 0
    %3843 = vmatpush1.bf16.msra.mxu0 0
    %3844 = vmatprep.subr.bf16.mxu0 0
    %3845 = vmatpush1.bf16.msra.mxu0 0
    %3846 = vmatprep.subr.bf16.mxu0 0
    %3847 = vmatpush1.bf16.msra.mxu0 0
    %3848 = vmatprep.subr.bf16.mxu0 0
    %3849 = vmatpush1.bf16.msra.mxu0 0
    %3850 = vmatprep.subr.bf16.mxu0 0
    %3851 = vmatpush1.bf16.msra.mxu0 0
    %3852 = vmatprep.subr.bf16.mxu0 0
    %3853 = vmatpush1.bf16.msra.mxu0 0
    %3854 = vmatprep.mubr.bf16.mxu0 0
    %3855 = vmatmul.mubr.bf16.gmra.mrb[0].mxu0 %v3779
    %v3856 = vpop.f32.mrb[0].mxu0
    %v3857 = vadd.f32 0.0, %v3856
    %v3858 = vpop.f32.mrb[0].mxu0
    %v3859 = vpop.f32.mrb[0].mxu0
    %v3860 = vpop.f32.mrb[0].mxu0
    %3861 = vdwg.mxu0
    %v3863 = vrot.slane %v3816, 3
    %v3864 = vrot.slane %v3816, 4
    %v3867 = vadd.f32 %v1007, %v3863
    %v3868 = vadd.f32 %v1011, %v3864
    %v3869 = vxor.u32 %v3867, 2147483648
    %v3870 = vxor.u32 %v3868, 2147483648
    %v3871 = vmul.f32 %v3869, 1.442695
    %v3872 = vpow.pop %v3871
    %v3873 = vmul.f32 %v3870, 1.442695
    %v3874 = vpow.pop %v3873
    %v3875 = vadd.f32 %v3872, 1.0
    %v3876 = vadd.f32 %v3874, 1.0
    %v3877 = vrcp.pop %v3875
    %v3878 = vmul.f32 1.0, %v3877
    %v3879 = vrcp.pop %v3876
    %v3880 = vmul.f32 1.0, %v3879
    %v3882 = vrot.slane %v3818, 3
    %v3883 = vrot.slane %v3818, 4
    %v3886 = vadd.f32 %v1009, %v3882
    %v3887 = vadd.f32 %v1013, %v3883
    %v3888 = vxor.u32 %v3886, 2147483648
    %v3889 = vxor.u32 %v3887, 2147483648
    %v3890 = vmul.f32 %v3888, 1.442695
    %v3891 = vpow.pop %v3890
    %v3892 = vmul.f32 %v3889, 1.442695
    %v3893 = vpow.pop %v3892
    %v3894 = vadd.f32 %v3891, 1.0
    %v3895 = vadd.f32 %v3893, 1.0
    %v3896 = vrcp.pop %v3894
    %v3897 = vmul.f32 1.0, %v3896
    %v3898 = vrcp.pop %v3895
    %v3899 = vmul.f32 1.0, %v3898
    %v3900 = vadd.f32 %v3857, %v1741
    %v3902 = vrot.slane %v3900, 3
    %v3903 = vrot.slane %v3900, 4
    %v3906 = vmul.f32 %v3878, %v3902
    %v3907 = vmul.f32 %v3880, %v3903
    %v3908 = vadd.f32 %v1050, %v3906
    %v3909 = vadd.f32 %v1053, %v3907
    %v3910 = vtanh.pop %v3908
    %v3911 = vtanh.pop %v3909
    %v3912 = vsub.f32 1.0, %v3897
    %v3913 = vsub.f32 1.0, %v3899
    %v3914 = vmul.f32 %v3912, %v3910
    %v3915 = vmul.f32 %v3913, %v3911
    %v3918 = vrot.slane %v3282, 1
    %v3919 = vrot.slane %v3283, 1
    %v3922 = vmul.f32 %v3897, %v3918
    %v3923 = vmul.f32 %v3899, %v3919
    %v3924 = vadd.f32 %v3914, %v3922
    %v3925 = vadd.f32 %v3915, %v3923
    %v3926 = vpack.c.bf16 %v3438, %v3438
    %v3927 = vpack.c.bf16 %v3439, %v3439
    %v3930 = vunpack.c.l.b16 %v3926
    %v3931 = vunpack.c.l.b16 %v3927
    %v3932 = vrot.slane %v3930, 6
    %v3933 = vrot.slane %v3931, 5
    %v3934 = vsel %vm2830, %v3933, %v3932
    %v3935 = vpack.c.b16 %v3934, %v3934
    %3937 = vmatprep.subr.bf16.mxu0 %v2633
    %3938 = vmatpush1.bf16.msra.mxu0 %v2632
    %3939 = vmatprep.subr.bf16.mxu0 %v2636
    %3940 = vmatpush1.bf16.msra.mxu0 %v2635
    %3941 = vmatprep.subr.bf16.mxu0 %v2639
    %3942 = vmatpush1.bf16.msra.mxu0 %v2638
    %3943 = vmatprep.subr.bf16.mxu0 %v2642
    %3944 = vmatpush1.bf16.msra.mxu0 %v2641
    %3945 = vmatprep.subr.bf16.mxu0 %v2645
    %3946 = vmatpush1.bf16.msra.mxu0 %v2644
    %3947 = vmatprep.subr.bf16.mxu0 %v2648
    %3948 = vmatpush1.bf16.msra.mxu0 %v2647
    %3949 = vmatprep.subr.bf16.mxu0 %v2651
    %3950 = vmatpush1.bf16.msra.mxu0 %v2650
    %3951 = vmatprep.subr.bf16.mxu0 %v2654
    %3952 = vmatpush1.bf16.msra.mxu0 %v2653
    %3953 = vmatprep.subr.bf16.mxu0 0
    %3954 = vmatpush1.bf16.msra.mxu0 0
    %3955 = vmatprep.subr.bf16.mxu0 0
    %3956 = vmatpush1.bf16.msra.mxu0 0
    %3957 = vmatprep.subr.bf16.mxu0 0
    %3958 = vmatpush1.bf16.msra.mxu0 0
    %3959 = vmatprep.subr.bf16.mxu0 0
    %3960 = vmatpush1.bf16.msra.mxu0 0
    %3961 = vmatprep.subr.bf16.mxu0 0
    %3962 = vmatpush1.bf16.msra.mxu0 0
    %3963 = vmatprep.subr.bf16.mxu0 0
    %3964 = vmatpush1.bf16.msra.mxu0 0
    %3965 = vmatprep.subr.bf16.mxu0 0
    %3966 = vmatpush1.bf16.msra.mxu0 0
    %3967 = vmatprep.subr.bf16.mxu0 0
    %3968 = vmatpush1.bf16.msra.mxu0 0
    %3969 = vmatprep.mubr.bf16.mxu0 0
    %3970 = vmatmul.mubr.bf16.gmra.mrb[0].mxu0 %v3935
    %v3971 = vpop.f32.mrb[0].mxu0
    %v3972 = vadd.f32 0.0, %v3971
    %v3973 = vpop.f32.mrb[0].mxu0
    %v3974 = vadd.f32 0.0, %v3973
    %v3975 = vpop.f32.mrb[0].mxu0
    %v3976 = vpop.f32.mrb[0].mxu0
    %3977 = vdwg.mxu0
    %3978 = vmatprep.subr.bf16.mxu0 0
    %3979 = vmatpush1.bf16.msra.mxu0 %v2634
    %3980 = vmatprep.subr.bf16.mxu0 0
    %3981 = vmatpush1.bf16.msra.mxu0 %v2637
    %3982 = vmatprep.subr.bf16.mxu0 0
    %3983 = vmatpush1.bf16.msra.mxu0 %v2640
    %3984 = vmatprep.subr.bf16.mxu0 0
    %3985 = vmatpush1.bf16.msra.mxu0 %v2643
    %3986 = vmatprep.subr.bf16.mxu0 0
    %3987 = vmatpush1.bf16.msra.mxu0 %v2646
    %3988 = vmatprep.subr.bf16.mxu0 0
    %3989 = vmatpush1.bf16.msra.mxu0 %v2649
    %3990 = vmatprep.subr.bf16.mxu0 0
    %3991 = vmatpush1.bf16.msra.mxu0 %v2652
    %3992 = vmatprep.subr.bf16.mxu0 0
    %3993 = vmatpush1.bf16.msra.mxu0 %v2655
    %3994 = vmatprep.subr.bf16.mxu0 0
    %3995 = vmatpush1.bf16.msra.mxu0 0
    %3996 = vmatprep.subr.bf16.mxu0 0
    %3997 = vmatpush1.bf16.msra.mxu0 0
    %3998 = vmatprep.subr.bf16.mxu0 0
    %3999 = vmatpush1.bf16.msra.mxu0 0
    %4000 = vmatprep.subr.bf16.mxu0 0
    %4001 = vmatpush1.bf16.msra.mxu0 0
    %4002 = vmatprep.subr.bf16.mxu0 0
    %4003 = vmatpush1.bf16.msra.mxu0 0
    %4004 = vmatprep.subr.bf16.mxu0 0
    %4005 = vmatpush1.bf16.msra.mxu0 0
    %4006 = vmatprep.subr.bf16.mxu0 0
    %4007 = vmatpush1.bf16.msra.mxu0 0
    %4008 = vmatprep.subr.bf16.mxu0 0
    %4009 = vmatpush1.bf16.msra.mxu0 0
    %4010 = vmatprep.mubr.bf16.mxu0 0
    %4011 = vmatmul.mubr.bf16.gmra.mrb[0].mxu0 %v3935
    %v4012 = vpop.f32.mrb[0].mxu0
    %v4013 = vadd.f32 0.0, %v4012
    %v4014 = vpop.f32.mrb[0].mxu0
    %v4015 = vpop.f32.mrb[0].mxu0
    %v4016 = vpop.f32.mrb[0].mxu0
    %4017 = vdwg.mxu0
    %v4019 = vrot.slane %v3972, 3
    %v4020 = vrot.slane %v3972, 4
    %v4023 = vadd.f32 %v1595, %v4019
    %v4024 = vadd.f32 %v1598, %v4020
    %v4025 = vxor.u32 %v4023, 2147483648
    %v4026 = vxor.u32 %v4024, 2147483648
    %v4027 = vmul.f32 %v4025, 1.442695
    %v4028 = vpow.pop %v4027
    %v4029 = vmul.f32 %v4026, 1.442695
    %v4030 = vpow.pop %v4029
    %v4031 = vadd.f32 %v4028, 1.0
    %v4032 = vadd.f32 %v4030, 1.0
    %v4033 = vrcp.pop %v4031
    %v4034 = vmul.f32 1.0, %v4033
    %v4035 = vrcp.pop %v4032
    %v4036 = vmul.f32 1.0, %v4035
    %v4038 = vrot.slane %v3974, 3
    %v4039 = vrot.slane %v3974, 4
    %v4042 = vadd.f32 %v1596, %v4038
    %v4043 = vadd.f32 %v1599, %v4039
    %v4044 = vxor.u32 %v4042, 2147483648
    %v4045 = vxor.u32 %v4043, 2147483648
    %v4046 = vmul.f32 %v4044, 1.442695
    %v4047 = vpow.pop %v4046
    %v4048 = vmul.f32 %v4045, 1.442695
    %v4049 = vpow.pop %v4048
    %v4050 = vadd.f32 %v4047, 1.0
    %v4051 = vadd.f32 %v4049, 1.0
    %v4052 = vrcp.pop %v4050
    %v4053 = vmul.f32 1.0, %v4052
    %v4054 = vrcp.pop %v4051
    %v4055 = vmul.f32 1.0, %v4054
    %v4056 = vadd.f32 %v4013, %v1755
    %v4058 = vrot.slane %v4056, 3
    %v4059 = vrot.slane %v4056, 4
    %v4062 = vmul.f32 %v4034, %v4058
    %v4063 = vmul.f32 %v4036, %v4059
    %v4064 = vadd.f32 %v1597, %v4062
    %v4065 = vadd.f32 %v1600, %v4063
    %v4066 = vtanh.pop %v4064
    %v4067 = vtanh.pop %v4065
    %v4068 = vsub.f32 1.0, %v4053
    %v4069 = vsub.f32 1.0, %v4055
    %v4070 = vmul.f32 %v4068, %v4066
    %v4071 = vmul.f32 %v4069, %v4067
    %v4074 = vrot.slane %v3438, 1
    %v4075 = vrot.slane %v3439, 1
    %v4078 = vmul.f32 %v4053, %v4074
    %v4079 = vmul.f32 %v4055, %v4075
    %v4080 = vadd.f32 %v4070, %v4078
    %v4081 = vadd.f32 %v4071, %v4079
    %v4082 = vmul.f32 %v3613, %v3768
    %v4083 = vmul.f32 %v3614, %v3769
    %v4086 = vrot.slane %v4082, 2
    %v4087 = vrot.slane %v4083, 2
    %v4090 = vmax.f32 %v3448, %v4086
    %v4091 = vmax.f32 %v3449, %v4087
    %v4092 = vmul.f32 %v3924, %v4080
    %v4093 = vmul.f32 %v3925, %v4081
    %v4096 = vrot.slane %v4092, 6
    %v4097 = vrot.slane %v4093, 6
    %v4100 = vmax.f32 %v3458, %v4096
    %v4101 = vmax.f32 %v3459, %v4097
    %v4102 = vpack.c.bf16 %v3613, %v3613
    %v4103 = vpack.c.bf16 %v3614, %v3614
    %v4106 = vunpack.c.l.b16 %v4102
    %v4107 = vunpack.c.l.b16 %v4103
    %v4108 = vrot.slane %v4106, 2
    %v4109 = vrot.slane %v4107, 1
    %v4110 = vsel %vm2830, %v4109, %v4108
    %v4111 = vpack.c.b16 %v4110, %v4110
    %4113 = vmatprep.subr.bf16.mxu0 %v1838
    %4114 = vmatpush1.bf16.msra.mxu0 %v1837
    %4115 = vmatprep.subr.bf16.mxu0 %v1841
    %4116 = vmatpush1.bf16.msra.mxu0 %v1840
    %4117 = vmatprep.subr.bf16.mxu0 %v1844
    %4118 = vmatpush1.bf16.msra.mxu0 %v1843
    %4119 = vmatprep.subr.bf16.mxu0 %v1847
    %4120 = vmatpush1.bf16.msra.mxu0 %v1846
    %4121 = vmatprep.subr.bf16.mxu0 %v1850
    %4122 = vmatpush1.bf16.msra.mxu0 %v1849
    %4123 = vmatprep.subr.bf16.mxu0 %v1853
    %4124 = vmatpush1.bf16.msra.mxu0 %v1852
    %4125 = vmatprep.subr.bf16.mxu0 %v1856
    %4126 = vmatpush1.bf16.msra.mxu0 %v1855
    %4127 = vmatprep.subr.bf16.mxu0 %v1859
    %4128 = vmatpush1.bf16.msra.mxu0 %v1858
    %4129 = vmatprep.subr.bf16.mxu0 0
    %4130 = vmatpush1.bf16.msra.mxu0 0
    %4131 = vmatprep.subr.bf16.mxu0 0
    %4132 = vmatpush1.bf16.msra.mxu0 0
    %4133 = vmatprep.subr.bf16.mxu0 0
    %4134 = vmatpush1.bf16.msra.mxu0 0
    %4135 = vmatprep.subr.bf16.mxu0 0
    %4136 = vmatpush1.bf16.msra.mxu0 0
    %4137 = vmatprep.subr.bf16.mxu0 0
    %4138 = vmatpush1.bf16.msra.mxu0 0
    %4139 = vmatprep.subr.bf16.mxu0 0
    %4140 = vmatpush1.bf16.msra.mxu0 0
    %4141 = vmatprep.subr.bf16.mxu0 0
    %4142 = vmatpush1.bf16.msra.mxu0 0
    %4143 = vmatprep.subr.bf16.mxu0 0
    %4144 = vmatpush1.bf16.msra.mxu0 0
    %4145 = vmatprep.mubr.bf16.mxu0 0
    %4146 = vmatmul.mubr.bf16.gmra.mrb[0].mxu0 %v4111
    %v4147 = vpop.f32.mrb[0].mxu0
    %v4148 = vadd.f32 0.0, %v4147
    %v4149 = vpop.f32.mrb[0].mxu0
    %v4150 = vadd.f32 0.0, %v4149
    %v4151 = vpop.f32.mrb[0].mxu0
    %v4152 = vpop.f32.mrb[0].mxu0
    %4153 = vdwg.mxu0
    %4154 = vmatprep.subr.bf16.mxu0 0
    %4155 = vmatpush1.bf16.msra.mxu0 %v1839
    %4156 = vmatprep.subr.bf16.mxu0 0
    %4157 = vmatpush1.bf16.msra.mxu0 %v1842
    %4158 = vmatprep.subr.bf16.mxu0 0
    %4159 = vmatpush1.bf16.msra.mxu0 %v1845
    %4160 = vmatprep.subr.bf16.mxu0 0
    %4161 = vmatpush1.bf16.msra.mxu0 %v1848
    %4162 = vmatprep.subr.bf16.mxu0 0
    %4163 = vmatpush1.bf16.msra.mxu0 %v1851
    %4164 = vmatprep.subr.bf16.mxu0 0
    %4165 = vmatpush1.bf16.msra.mxu0 %v1854
    %4166 = vmatprep.subr.bf16.mxu0 0
    %4167 = vmatpush1.bf16.msra.mxu0 %v1857
    %4168 = vmatprep.subr.bf16.mxu0 0
    %4169 = vmatpush1.bf16.msra.mxu0 %v1860
    %4170 = vmatprep.subr.bf16.mxu0 0
    %4171 = vmatpush1.bf16.msra.mxu0 0
    %4172 = vmatprep.subr.bf16.mxu0 0
    %4173 = vmatpush1.bf16.msra.mxu0 0
    %4174 = vmatprep.subr.bf16.mxu0 0
    %4175 = vmatpush1.bf16.msra.mxu0 0
    %4176 = vmatprep.subr.bf16.mxu0 0
    %4177 = vmatpush1.bf16.msra.mxu0 0
    %4178 = vmatprep.subr.bf16.mxu0 0
    %4179 = vmatpush1.bf16.msra.mxu0 0
    %4180 = vmatprep.subr.bf16.mxu0 0
    %4181 = vmatpush1.bf16.msra.mxu0 0
    %4182 = vmatprep.subr.bf16.mxu0 0
    %4183 = vmatpush1.bf16.msra.mxu0 0
    %4184 = vmatprep.subr.bf16.mxu0 0
    %4185 = vmatpush1.bf16.msra.mxu0 0
    %4186 = vmatprep.mubr.bf16.mxu0 0
    %4187 = vmatmul.mubr.bf16.gmra.mrb[0].mxu0 %v4111
    %v4188 = vpop.f32.mrb[0].mxu0
    %v4189 = vadd.f32 0.0, %v4188
    %v4190 = vpop.f32.mrb[0].mxu0
    %v4191 = vpop.f32.mrb[0].mxu0
    %v4192 = vpop.f32.mrb[0].mxu0
    %4193 = vdwg.mxu0
    %v4195 = vrot.slane %v4148, 5
    %v4196 = vrot.slane %v4148, 6
    %v4199 = vadd.f32 %v866, %v4195
    %v4200 = vadd.f32 %v870, %v4196
    %v4201 = vxor.u32 %v4199, 2147483648
    %v4202 = vxor.u32 %v4200, 2147483648
    %v4203 = vmul.f32 %v4201, 1.442695
    %v4204 = vpow.pop %v4203
    %v4205 = vmul.f32 %v4202, 1.442695
    %v4206 = vpow.pop %v4205
    %v4207 = vadd.f32 %v4204, 1.0
    %v4208 = vadd.f32 %v4206, 1.0
    %v4209 = vrcp.pop %v4207
    %v4210 = vmul.f32 1.0, %v4209
    %v4211 = vrcp.pop %v4208
    %v4212 = vmul.f32 1.0, %v4211
    %v4214 = vrot.slane %v4150, 5
    %v4215 = vrot.slane %v4150, 6
    %v4218 = vadd.f32 %v868, %v4214
    %v4219 = vadd.f32 %v872, %v4215
    %v4220 = vxor.u32 %v4218, 2147483648
    %v4221 = vxor.u32 %v4219, 2147483648
    %v4222 = vmul.f32 %v4220, 1.442695
    %v4223 = vpow.pop %v4222
    %v4224 = vmul.f32 %v4221, 1.442695
    %v4225 = vpow.pop %v4224
    %v4226 = vadd.f32 %v4223, 1.0
    %v4227 = vadd.f32 %v4225, 1.0
    %v4228 = vrcp.pop %v4226
    %v4229 = vmul.f32 1.0, %v4228
    %v4230 = vrcp.pop %v4227
    %v4231 = vmul.f32 1.0, %v4230
    %v4232 = vadd.f32 %v4189, %v1734
    %v4234 = vrot.slane %v4232, 5
    %v4235 = vrot.slane %v4232, 6
    %v4238 = vmul.f32 %v4210, %v4234
    %v4239 = vmul.f32 %v4212, %v4235
    %v4240 = vadd.f32 %v909, %v4238
    %v4241 = vadd.f32 %v912, %v4239
    %v4242 = vtanh.pop %v4240
    %v4243 = vtanh.pop %v4241
    %v4244 = vsub.f32 1.0, %v4229
    %v4245 = vsub.f32 1.0, %v4231
    %v4246 = vmul.f32 %v4244, %v4242
    %v4247 = vmul.f32 %v4245, %v4243
    %v4250 = vrot.slane %v3613, 7
    %v4251 = vrot.slane %v3614, 7
    %v4254 = vmul.f32 %v4229, %v4250
    %v4255 = vmul.f32 %v4231, %v4251
    %v4256 = vadd.f32 %v4246, %v4254
    %v4257 = vadd.f32 %v4247, %v4255
    %v4258 = vpack.c.bf16 %v3768, %v3768
    %v4259 = vpack.c.bf16 %v3769, %v3769
    %v4262 = vunpack.c.l.b16 %v4258
    %v4263 = vunpack.c.l.b16 %v4259
    %v4264 = vrot.slane %v4262, 2
    %v4265 = vrot.slane %v4263, 1
    %v4266 = vsel %vm2830, %v4265, %v4264
    %v4267 = vpack.c.b16 %v4266, %v4266
    %4269 = vmatprep.subr.bf16.mxu0 %v2102
    %4270 = vmatpush1.bf16.msra.mxu0 %v2101
    %4271 = vmatprep.subr.bf16.mxu0 %v2105
    %4272 = vmatpush1.bf16.msra.mxu0 %v2104
    %4273 = vmatprep.subr.bf16.mxu0 %v2108
    %4274 = vmatpush1.bf16.msra.mxu0 %v2107
    %4275 = vmatprep.subr.bf16.mxu0 %v2111
    %4276 = vmatpush1.bf16.msra.mxu0 %v2110
    %4277 = vmatprep.subr.bf16.mxu0 %v2114
    %4278 = vmatpush1.bf16.msra.mxu0 %v2113
    %4279 = vmatprep.subr.bf16.mxu0 %v2117
    %4280 = vmatpush1.bf16.msra.mxu0 %v2116
    %4281 = vmatprep.subr.bf16.mxu0 %v2120
    %4282 = vmatpush1.bf16.msra.mxu0 %v2119
    %4283 = vmatprep.subr.bf16.mxu0 %v2123
    %4284 = vmatpush1.bf16.msra.mxu0 %v2122
    %4285 = vmatprep.subr.bf16.mxu0 0
    %4286 = vmatpush1.bf16.msra.mxu0 0
    %4287 = vmatprep.subr.bf16.mxu0 0
    %4288 = vmatpush1.bf16.msra.mxu0 0
    %4289 = vmatprep.subr.bf16.mxu0 0
    %4290 = vmatpush1.bf16.msra.mxu0 0
    %4291 = vmatprep.subr.bf16.mxu0 0
    %4292 = vmatpush1.bf16.msra.mxu0 0
    %4293 = vmatprep.subr.bf16.mxu0 0
    %4294 = vmatpush1.bf16.msra.mxu0 0
    %4295 = vmatprep.subr.bf16.mxu0 0
    %4296 = vmatpush1.bf16.msra.mxu0 0
    %4297 = vmatprep.subr.bf16.mxu0 0
    %4298 = vmatpush1.bf16.msra.mxu0 0
    %4299 = vmatprep.subr.bf16.mxu0 0
    %4300 = vmatpush1.bf16.msra.mxu0 0
    %4301 = vmatprep.mubr.bf16.mxu0 0
    %4302 = vmatmul.mubr.bf16.gmra.mrb[0].mxu0 %v4267
    %v4303 = vpop.f32.mrb[0].mxu0
    %v4304 = vadd.f32 0.0, %v4303
    %v4305 = vpop.f32.mrb[0].mxu0
    %v4306 = vadd.f32 0.0, %v4305
    %v4307 = vpop.f32.mrb[0].mxu0
    %v4308 = vpop.f32.mrb[0].mxu0
    %4309 = vdwg.mxu0
    %4310 = vmatprep.subr.bf16.mxu0 0
    %4311 = vmatpush1.bf16.msra.mxu0 %v2103
    %4312 = vmatprep.subr.bf16.mxu0 0
    %4313 = vmatpush1.bf16.msra.mxu0 %v2106
    %4314 = vmatprep.subr.bf16.mxu0 0
    %4315 = vmatpush1.bf16.msra.mxu0 %v2109
    %4316 = vmatprep.subr.bf16.mxu0 0
    %4317 = vmatpush1.bf16.msra.mxu0 %v2112
    %4318 = vmatprep.subr.bf16.mxu0 0
    %4319 = vmatpush1.bf16.msra.mxu0 %v2115
    %4320 = vmatprep.subr.bf16.mxu0 0
    %4321 = vmatpush1.bf16.msra.mxu0 %v2118
    %4322 = vmatprep.subr.bf16.mxu0 0
    %4323 = vmatpush1.bf16.msra.mxu0 %v2121
    %4324 = vmatprep.subr.bf16.mxu0 0
    %4325 = vmatpush1.bf16.msra.mxu0 %v2124
    %4326 = vmatprep.subr.bf16.mxu0 0
    %4327 = vmatpush1.bf16.msra.mxu0 0
    %4328 = vmatprep.subr.bf16.mxu0 0
    %4329 = vmatpush1.bf16.msra.mxu0 0
    %4330 = vmatprep.subr.bf16.mxu0 0
    %4331 = vmatpush1.bf16.msra.mxu0 0
    %4332 = vmatprep.subr.bf16.mxu0 0
    %4333 = vmatpush1.bf16.msra.mxu0 0
    %4334 = vmatprep.subr.bf16.mxu0 0
    %4335 = vmatpush1.bf16.msra.mxu0 0
    %4336 = vmatprep.subr.bf16.mxu0 0
    %4337 = vmatpush1.bf16.msra.mxu0 0
    %4338 = vmatprep.subr.bf16.mxu0 0
    %4339 = vmatpush1.bf16.msra.mxu0 0
    %4340 = vmatprep.subr.bf16.mxu0 0
    %4341 = vmatpush1.bf16.msra.mxu0 0
    %4342 = vmatprep.mubr.bf16.mxu0 0
    %4343 = vmatmul.mubr.bf16.gmra.mrb[0].mxu0 %v4267
    %v4344 = vpop.f32.mrb[0].mxu0
    %v4345 = vadd.f32 0.0, %v4344
    %v4346 = vpop.f32.mrb[0].mxu0
    %v4347 = vpop.f32.mrb[0].mxu0
    %v4348 = vpop.f32.mrb[0].mxu0
    %4349 = vdwg.mxu0
    %v4351 = vrot.slane %v4304, 5
    %v4352 = vrot.slane %v4304, 6
    %v4355 = vadd.f32 %v1324, %v4351
    %v4356 = vadd.f32 %v1327, %v4352
    %v4357 = vxor.u32 %v4355, 2147483648
    %v4358 = vxor.u32 %v4356, 2147483648
    %v4359 = vmul.f32 %v4357, 1.442695
    %v4360 = vpow.pop %v4359
    %v4361 = vmul.f32 %v4358, 1.442695
    %v4362 = vpow.pop %v4361
    %v4363 = vadd.f32 %v4360, 1.0
    %v4364 = vadd.f32 %v4362, 1.0
    %v4365 = vrcp.pop %v4363
    %v4366 = vmul.f32 1.0, %v4365
    %v4367 = vrcp.pop %v4364
    %v4368 = vmul.f32 1.0, %v4367
    %v4370 = vrot.slane %v4306, 5
    %v4371 = vrot.slane %v4306, 6
    %v4374 = vadd.f32 %v1325, %v4370
    %v4375 = vadd.f32 %v1328, %v4371
    %v4376 = vxor.u32 %v4374, 2147483648
    %v4377 = vxor.u32 %v4375, 2147483648
    %v4378 = vmul.f32 %v4376, 1.442695
    %v4379 = vpow.pop %v4378
    %v4380 = vmul.f32 %v4377, 1.442695
    %v4381 = vpow.pop %v4380
    %v4382 = vadd.f32 %v4379, 1.0
    %v4383 = vadd.f32 %v4381, 1.0
    %v4384 = vrcp.pop %v4382
    %v4385 = vmul.f32 1.0, %v4384
    %v4386 = vrcp.pop %v4383
    %v4387 = vmul.f32 1.0, %v4386
    %v4388 = vadd.f32 %v4345, %v1748
    %v4390 = vrot.slane %v4388, 5
    %v4391 = vrot.slane %v4388, 6
    %v4394 = vmul.f32 %v4366, %v4390
    %v4395 = vmul.f32 %v4368, %v4391
    %v4396 = vadd.f32 %v1326, %v4394
    %v4397 = vadd.f32 %v1329, %v4395
    %v4398 = vtanh.pop %v4396
    %v4399 = vtanh.pop %v4397
    %v4400 = vsub.f32 1.0, %v4385
    %v4401 = vsub.f32 1.0, %v4387
    %v4402 = vmul.f32 %v4400, %v4398
    %v4403 = vmul.f32 %v4401, %v4399
    %v4406 = vrot.slane %v3768, 7
    %v4407 = vrot.slane %v3769, 7
    %v4410 = vmul.f32 %v4385, %v4406
    %v4411 = vmul.f32 %v4387, %v4407
    %v4412 = vadd.f32 %v4402, %v4410
    %v4413 = vadd.f32 %v4403, %v4411
    %v4414 = vpack.c.bf16 %v3924, %v3924
    %v4415 = vpack.c.bf16 %v3925, %v3925
    %v4418 = vunpack.c.l.b16 %v4414
    %v4419 = vunpack.c.l.b16 %v4415
    %v4420 = vrot.slane %v4418, 5
    %v4421 = vrot.slane %v4419, 4
    %v4422 = vsel %vm2830, %v4421, %v4420
    %v4423 = vpack.c.b16 %v4422, %v4422
    %4425 = vmatprep.subr.bf16.mxu0 %v2366
    %4426 = vmatpush1.bf16.msra.mxu0 %v2365
    %4427 = vmatprep.subr.bf16.mxu0 %v2369
    %4428 = vmatpush1.bf16.msra.mxu0 %v2368
    %4429 = vmatprep.subr.bf16.mxu0 %v2372
    %4430 = vmatpush1.bf16.msra.mxu0 %v2371
    %4431 = vmatprep.subr.bf16.mxu0 %v2375
    %4432 = vmatpush1.bf16.msra.mxu0 %v2374
    %4433 = vmatprep.subr.bf16.mxu0 %v2378
    %4434 = vmatpush1.bf16.msra.mxu0 %v2377
    %4435 = vmatprep.subr.bf16.mxu0 %v2381
    %4436 = vmatpush1.bf16.msra.mxu0 %v2380
    %4437 = vmatprep.subr.bf16.mxu0 %v2384
    %4438 = vmatpush1.bf16.msra.mxu0 %v2383
    %4439 = vmatprep.subr.bf16.mxu0 %v2387
    %4440 = vmatpush1.bf16.msra.mxu0 %v2386
    %4441 = vmatprep.subr.bf16.mxu0 0
    %4442 = vmatpush1.bf16.msra.mxu0 0
    %4443 = vmatprep.subr.bf16.mxu0 0
    %4444 = vmatpush1.bf16.msra.mxu0 0
    %4445 = vmatprep.subr.bf16.mxu0 0
    %4446 = vmatpush1.bf16.msra.mxu0 0
    %4447 = vmatprep.subr.bf16.mxu0 0
    %4448 = vmatpush1.bf16.msra.mxu0 0
    %4449 = vmatprep.subr.bf16.mxu0 0
    %4450 = vmatpush1.bf16.msra.mxu0 0
    %4451 = vmatprep.subr.bf16.mxu0 0
    %4452 = vmatpush1.bf16.msra.mxu0 0
    %4453 = vmatprep.subr.bf16.mxu0 0
    %4454 = vmatpush1.bf16.msra.mxu0 0
    %4455 = vmatprep.subr.bf16.mxu0 0
    %4456 = vmatpush1.bf16.msra.mxu0 0
    %4457 = vmatprep.mubr.bf16.mxu0 0
    %4458 = vmatmul.mubr.bf16.gmra.mrb[0].mxu0 %v4423
    %v4459 = vpop.f32.mrb[0].mxu0
    %v4460 = vadd.f32 0.0, %v4459
    %v4461 = vpop.f32.mrb[0].mxu0
    %v4462 = vadd.f32 0.0, %v4461
    %v4463 = vpop.f32.mrb[0].mxu0
    %v4464 = vpop.f32.mrb[0].mxu0
    %4465 = vdwg.mxu0
    %4466 = vmatprep.subr.bf16.mxu0 0
    %4467 = vmatpush1.bf16.msra.mxu0 %v2367
    %4468 = vmatprep.subr.bf16.mxu0 0
    %4469 = vmatpush1.bf16.msra.mxu0 %v2370
    %4470 = vmatprep.subr.bf16.mxu0 0
    %4471 = vmatpush1.bf16.msra.mxu0 %v2373
    %4472 = vmatprep.subr.bf16.mxu0 0
    %4473 = vmatpush1.bf16.msra.mxu0 %v2376
    %4474 = vmatprep.subr.bf16.mxu0 0
    %4475 = vmatpush1.bf16.msra.mxu0 %v2379
    %4476 = vmatprep.subr.bf16.mxu0 0
    %4477 = vmatpush1.bf16.msra.mxu0 %v2382
    %4478 = vmatprep.subr.bf16.mxu0 0
    %4479 = vmatpush1.bf16.msra.mxu0 %v2385
    %4480 = vmatprep.subr.bf16.mxu0 0
    %4481 = vmatpush1.bf16.msra.mxu0 %v2388
    %4482 = vmatprep.subr.bf16.mxu0 0
    %4483 = vmatpush1.bf16.msra.mxu0 0
    %4484 = vmatprep.subr.bf16.mxu0 0
    %4485 = vmatpush1.bf16.msra.mxu0 0
    %4486 = vmatprep.subr.bf16.mxu0 0
    %4487 = vmatpush1.bf16.msra.mxu0 0
    %4488 = vmatprep.subr.bf16.mxu0 0
    %4489 = vmatpush1.bf16.msra.mxu0 0
    %4490 = vmatprep.subr.bf16.mxu0 0
    %4491 = vmatpush1.bf16.msra.mxu0 0
    %4492 = vmatprep.subr.bf16.mxu0 0
    %4493 = vmatpush1.bf16.msra.mxu0 0
    %4494 = vmatprep.subr.bf16.mxu0 0
    %4495 = vmatpush1.bf16.msra.mxu0 0
    %4496 = vmatprep.subr.bf16.mxu0 0
    %4497 = vmatpush1.bf16.msra.mxu0 0
    %4498 = vmatprep.mubr.bf16.mxu0 0
    %4499 = vmatmul.mubr.bf16.gmra.mrb[0].mxu0 %v4423
    %v4500 = vpop.f32.mrb[0].mxu0
    %v4501 = vadd.f32 0.0, %v4500
    %v4502 = vpop.f32.mrb[0].mxu0
    %v4503 = vpop.f32.mrb[0].mxu0
    %v4504 = vpop.f32.mrb[0].mxu0
    %4505 = vdwg.mxu0
    %v4507 = vrot.slane %v4460, 4
    %v4508 = vrot.slane %v4460, 5
    %v4511 = vadd.f32 %v1007, %v4507
    %v4512 = vadd.f32 %v1011, %v4508
    %v4513 = vxor.u32 %v4511, 2147483648
    %v4514 = vxor.u32 %v4512, 2147483648
    %v4515 = vmul.f32 %v4513, 1.442695
    %v4516 = vpow.pop %v4515
    %v4517 = vmul.f32 %v4514, 1.442695
    %v4518 = vpow.pop %v4517
    %v4519 = vadd.f32 %v4516, 1.0
    %v4520 = vadd.f32 %v4518, 1.0
    %v4521 = vrcp.pop %v4519
    %v4522 = vmul.f32 1.0, %v4521
    %v4523 = vrcp.pop %v4520
    %v4524 = vmul.f32 1.0, %v4523
    %v4526 = vrot.slane %v4462, 4
    %v4527 = vrot.slane %v4462, 5
    %v4530 = vadd.f32 %v1009, %v4526
    %v4531 = vadd.f32 %v1013, %v4527
    %v4532 = vxor.u32 %v4530, 2147483648
    %v4533 = vxor.u32 %v4531, 2147483648
    %v4534 = vmul.f32 %v4532, 1.442695
    %v4535 = vpow.pop %v4534
    %v4536 = vmul.f32 %v4533, 1.442695
    %v4537 = vpow.pop %v4536
    %v4538 = vadd.f32 %v4535, 1.0
    %v4539 = vadd.f32 %v4537, 1.0
    %v4540 = vrcp.pop %v4538
    %v4541 = vmul.f32 1.0, %v4540
    %v4542 = vrcp.pop %v4539
    %v4543 = vmul.f32 1.0, %v4542
    %v4544 = vadd.f32 %v4501, %v1741
    %v4546 = vrot.slane %v4544, 4
    %v4547 = vrot.slane %v4544, 5
    %v4550 = vmul.f32 %v4522, %v4546
    %v4551 = vmul.f32 %v4524, %v4547
    %v4552 = vadd.f32 %v1050, %v4550
    %v4553 = vadd.f32 %v1053, %v4551
    %v4554 = vtanh.pop %v4552
    %v4555 = vtanh.pop %v4553
    %v4556 = vsub.f32 1.0, %v4541
    %v4557 = vsub.f32 1.0, %v4543
    %v4558 = vmul.f32 %v4556, %v4554
    %v4559 = vmul.f32 %v4557, %v4555
    %v4562 = vrot.slane %v3924, 1
    %v4563 = vrot.slane %v3925, 1
    %v4566 = vmul.f32 %v4541, %v4562
    %v4567 = vmul.f32 %v4543, %v4563
    %v4568 = vadd.f32 %v4558, %v4566
    %v4569 = vadd.f32 %v4559, %v4567
    %v4570 = vpack.c.bf16 %v4080, %v4080
    %v4571 = vpack.c.bf16 %v4081, %v4081
    %v4574 = vunpack.c.l.b16 %v4570
    %v4575 = vunpack.c.l.b16 %v4571
    %v4576 = vrot.slane %v4574, 5
    %v4577 = vrot.slane %v4575, 4
    %v4578 = vsel %vm2830, %v4577, %v4576
    %v4579 = vpack.c.b16 %v4578, %v4578
    %4581 = vmatprep.subr.bf16.mxu0 %v2633
    %4582 = vmatpush1.bf16.msra.mxu0 %v2632
    %4583 = vmatprep.subr.bf16.mxu0 %v2636
    %4584 = vmatpush1.bf16.msra.mxu0 %v2635
    %4585 = vmatprep.subr.bf16.mxu0 %v2639
    %4586 = vmatpush1.bf16.msra.mxu0 %v2638
    %4587 = vmatprep.subr.bf16.mxu0 %v2642
    %4588 = vmatpush1.bf16.msra.mxu0 %v2641
    %4589 = vmatprep.subr.bf16.mxu0 %v2645
    %4590 = vmatpush1.bf16.msra.mxu0 %v2644
    %4591 = vmatprep.subr.bf16.mxu0 %v2648
    %4592 = vmatpush1.bf16.msra.mxu0 %v2647
    %4593 = vmatprep.subr.bf16.mxu0 %v2651
    %4594 = vmatpush1.bf16.msra.mxu0 %v2650
    %4595 = vmatprep.subr.bf16.mxu0 %v2654
    %4596 = vmatpush1.bf16.msra.mxu0 %v2653
    %4597 = vmatprep.subr.bf16.mxu0 0
    %4598 = vmatpush1.bf16.msra.mxu0 0
    %4599 = vmatprep.subr.bf16.mxu0 0
    %4600 = vmatpush1.bf16.msra.mxu0 0
    %4601 = vmatprep.subr.bf16.mxu0 0
    %4602 = vmatpush1.bf16.msra.mxu0 0
    %4603 = vmatprep.subr.bf16.mxu0 0
    %4604 = vmatpush1.bf16.msra.mxu0 0
    %4605 = vmatprep.subr.bf16.mxu0 0
    %4606 = vmatpush1.bf16.msra.mxu0 0
    %4607 = vmatprep.subr.bf16.mxu0 0
    %4608 = vmatpush1.bf16.msra.mxu0 0
    %4609 = vmatprep.subr.bf16.mxu0 0
    %4610 = vmatpush1.bf16.msra.mxu0 0
    %4611 = vmatprep.subr.bf16.mxu0 0
    %4612 = vmatpush1.bf16.msra.mxu0 0
    %4613 = vmatprep.mubr.bf16.mxu0 0
    %4614 = vmatmul.mubr.bf16.gmra.mrb[0].mxu0 %v4579
    %v4615 = vpop.f32.mrb[0].mxu0
    %v4616 = vadd.f32 0.0, %v4615
    %v4617 = vpop.f32.mrb[0].mxu0
    %v4618 = vadd.f32 0.0, %v4617
    %v4619 = vpop.f32.mrb[0].mxu0
    %v4620 = vpop.f32.mrb[0].mxu0
    %4621 = vdwg.mxu0
    %4622 = vmatprep.subr.bf16.mxu0 0
    %4623 = vmatpush1.bf16.msra.mxu0 %v2634
    %4624 = vmatprep.subr.bf16.mxu0 0
    %4625 = vmatpush1.bf16.msra.mxu0 %v2637
    %4626 = vmatprep.subr.bf16.mxu0 0
    %4627 = vmatpush1.bf16.msra.mxu0 %v2640
    %4628 = vmatprep.subr.bf16.mxu0 0
    %4629 = vmatpush1.bf16.msra.mxu0 %v2643
    %4630 = vmatprep.subr.bf16.mxu0 0
    %4631 = vmatpush1.bf16.msra.mxu0 %v2646
    %4632 = vmatprep.subr.bf16.mxu0 0
    %4633 = vmatpush1.bf16.msra.mxu0 %v2649
    %4634 = vmatprep.subr.bf16.mxu0 0
    %4635 = vmatpush1.bf16.msra.mxu0 %v2652
    %4636 = vmatprep.subr.bf16.mxu0 0
    %4637 = vmatpush1.bf16.msra.mxu0 %v2655
    %4638 = vmatprep.subr.bf16.mxu0 0
    %4639 = vmatpush1.bf16.msra.mxu0 0
    %4640 = vmatprep.subr.bf16.mxu0 0
    %4641 = vmatpush1.bf16.msra.mxu0 0
    %4642 = vmatprep.subr.bf16.mxu0 0
    %4643 = vmatpush1.bf16.msra.mxu0 0
    %4644 = vmatprep.subr.bf16.mxu0 0
    %4645 = vmatpush1.bf16.msra.mxu0 0
    %4646 = vmatprep.subr.bf16.mxu0 0
    %4647 = vmatpush1.bf16.msra.mxu0 0
    %4648 = vmatprep.subr.bf16.mxu0 0
    %4649 = vmatpush1.bf16.msra.mxu0 0
    %4650 = vmatprep.subr.bf16.mxu0 0
    %4651 = vmatpush1.bf16.msra.mxu0 0
    %4652 = vmatprep.subr.bf16.mxu0 0
    %4653 = vmatpush1.bf16.msra.mxu0 0
    %4654 = vmatprep.mubr.bf16.mxu0 0
    %4655 = vmatmul.mubr.bf16.gmra.mrb[0].mxu0 %v4579
    %v4656 = vpop.f32.mrb[0].mxu0
    %v4657 = vadd.f32 0.0, %v4656
    %v4658 = vpop.f32.mrb[0].mxu0
    %v4659 = vpop.f32.mrb[0].mxu0
    %v4660 = vpop.f32.mrb[0].mxu0
    %4661 = vdwg.mxu0
    %v4663 = vrot.slane %v4616, 4
    %v4664 = vrot.slane %v4616, 5
    %v4667 = vadd.f32 %v1595, %v4663
    %v4668 = vadd.f32 %v1598, %v4664
    %v4669 = vxor.u32 %v4667, 2147483648
    %v4670 = vxor.u32 %v4668, 2147483648
    %v4671 = vmul.f32 %v4669, 1.442695
    %v4672 = vpow.pop %v4671
    %v4673 = vmul.f32 %v4670, 1.442695
    %v4674 = vpow.pop %v4673
    %v4675 = vadd.f32 %v4672, 1.0
    %v4676 = vadd.f32 %v4674, 1.0
    %v4677 = vrcp.pop %v4675
    %v4678 = vmul.f32 1.0, %v4677
    %v4679 = vrcp.pop %v4676
    %v4680 = vmul.f32 1.0, %v4679
    %v4682 = vrot.slane %v4618, 4
    %v4683 = vrot.slane %v4618, 5
    %v4686 = vadd.f32 %v1596, %v4682
    %v4687 = vadd.f32 %v1599, %v4683
    %v4688 = vxor.u32 %v4686, 2147483648
    %v4689 = vxor.u32 %v4687, 2147483648
    %v4690 = vmul.f32 %v4688, 1.442695
    %v4691 = vpow.pop %v4690
    %v4692 = vmul.f32 %v4689, 1.442695
    %v4693 = vpow.pop %v4692
    %v4694 = vadd.f32 %v4691, 1.0
    %v4695 = vadd.f32 %v4693, 1.0
    %v4696 = vrcp.pop %v4694
    %v4697 = vmul.f32 1.0, %v4696
    %v4698 = vrcp.pop %v4695
    %v4699 = vmul.f32 1.0, %v4698
    %v4700 = vadd.f32 %v4657, %v1755
    %v4702 = vrot.slane %v4700, 4
    %v4703 = vrot.slane %v4700, 5
    %v4706 = vmul.f32 %v4678, %v4702
    %v4707 = vmul.f32 %v4680, %v4703
    %v4708 = vadd.f32 %v1597, %v4706
    %v4709 = vadd.f32 %v1600, %v4707
    %v4710 = vtanh.pop %v4708
    %v4711 = vtanh.pop %v4709
    %v4712 = vsub.f32 1.0, %v4697
    %v4713 = vsub.f32 1.0, %v4699
    %v4714 = vmul.f32 %v4712, %v4710
    %v4715 = vmul.f32 %v4713, %v4711
    %v4718 = vrot.slane %v4080, 1
    %v4719 = vrot.slane %v4081, 1
    %v4722 = vmul.f32 %v4697, %v4718
    %v4723 = vmul.f32 %v4699, %v4719
    %v4724 = vadd.f32 %v4714, %v4722
    %v4725 = vadd.f32 %v4715, %v4723
    %v4726 = vmul.f32 %v4256, %v4412
    %v4727 = vmul.f32 %v4257, %v4413
    %v4730 = vrot.slane %v4726, 3
    %v4731 = vrot.slane %v4727, 3
    %v4734 = vmax.f32 %v4090, %v4730
    %v4735 = vmax.f32 %v4091, %v4731
    %v4736 = vmul.f32 %v4568, %v4724
    %v4737 = vmul.f32 %v4569, %v4725
    %v4740 = vrot.slane %v4736, 5
    %v4741 = vrot.slane %v4737, 5
    %v4744 = vmax.f32 %v4100, %v4740
    %v4745 = vmax.f32 %v4101, %v4741
    %v4746 = vpack.c.bf16 %v4256, %v4256
    %v4747 = vpack.c.bf16 %v4257, %v4257
    %v4750 = vunpack.c.l.b16 %v4746
    %v4751 = vunpack.c.l.b16 %v4747
    %v4752 = vrot.slane %v4750, 3
    %v4753 = vrot.slane %v4751, 2
    %v4754 = vsel %vm2830, %v4753, %v4752
    %v4755 = vpack.c.b16 %v4754, %v4754
    %4757 = vmatprep.subr.bf16.mxu0 %v1838
    %4758 = vmatpush1.bf16.msra.mxu0 %v1837
    %4759 = vmatprep.subr.bf16.mxu0 %v1841
    %4760 = vmatpush1.bf16.msra.mxu0 %v1840
    %4761 = vmatprep.subr.bf16.mxu0 %v1844
    %4762 = vmatpush1.bf16.msra.mxu0 %v1843
    %4763 = vmatprep.subr.bf16.mxu0 %v1847
    %4764 = vmatpush1.bf16.msra.mxu0 %v1846
    %4765 = vmatprep.subr.bf16.mxu0 %v1850
    %4766 = vmatpush1.bf16.msra.mxu0 %v1849
    %4767 = vmatprep.subr.bf16.mxu0 %v1853
    %4768 = vmatpush1.bf16.msra.mxu0 %v1852
    %4769 = vmatprep.subr.bf16.mxu0 %v1856
    %4770 = vmatpush1.bf16.msra.mxu0 %v1855
    %4771 = vmatprep.subr.bf16.mxu0 %v1859
    %4772 = vmatpush1.bf16.msra.mxu0 %v1858
    %4773 = vmatprep.subr.bf16.mxu0 0
    %4774 = vmatpush1.bf16.msra.mxu0 0
    %4775 = vmatprep.subr.bf16.mxu0 0
    %4776 = vmatpush1.bf16.msra.mxu0 0
    %4777 = vmatprep.subr.bf16.mxu0 0
    %4778 = vmatpush1.bf16.msra.mxu0 0
    %4779 = vmatprep.subr.bf16.mxu0 0
    %4780 = vmatpush1.bf16.msra.mxu0 0
    %4781 = vmatprep.subr.bf16.mxu0 0
    %4782 = vmatpush1.bf16.msra.mxu0 0
    %4783 = vmatprep.subr.bf16.mxu0 0
    %4784 = vmatpush1.bf16.msra.mxu0 0
    %4785 = vmatprep.subr.bf16.mxu0 0
    %4786 = vmatpush1.bf16.msra.mxu0 0
    %4787 = vmatprep.subr.bf16.mxu0 0
    %4788 = vmatpush1.bf16.msra.mxu0 0
    %4789 = vmatprep.mubr.bf16.mxu0 0
    %4790 = vmatmul.mubr.bf16.gmra.mrb[0].mxu0 %v4755
    %v4791 = vpop.f32.mrb[0].mxu0
    %v4792 = vadd.f32 0.0, %v4791
    %v4793 = vpop.f32.mrb[0].mxu0
    %v4794 = vadd.f32 0.0, %v4793
    %v4795 = vpop.f32.mrb[0].mxu0
    %v4796 = vpop.f32.mrb[0].mxu0
    %4797 = vdwg.mxu0
    %4798 = vmatprep.subr.bf16.mxu0 0
    %4799 = vmatpush1.bf16.msra.mxu0 %v1839
    %4800 = vmatprep.subr.bf16.mxu0 0
    %4801 = vmatpush1.bf16.msra.mxu0 %v1842
    %4802 = vmatprep.subr.bf16.mxu0 0
    %4803 = vmatpush1.bf16.msra.mxu0 %v1845
    %4804 = vmatprep.subr.bf16.mxu0 0
    %4805 = vmatpush1.bf16.msra.mxu0 %v1848
    %4806 = vmatprep.subr.bf16.mxu0 0
    %4807 = vmatpush1.bf16.msra.mxu0 %v1851
    %4808 = vmatprep.subr.bf16.mxu0 0
    %4809 = vmatpush1.bf16.msra.mxu0 %v1854
    %4810 = vmatprep.subr.bf16.mxu0 0
    %4811 = vmatpush1.bf16.msra.mxu0 %v1857
    %4812 = vmatprep.subr.bf16.mxu0 0
    %4813 = vmatpush1.bf16.msra.mxu0 %v1860
    %4814 = vmatprep.subr.bf16.mxu0 0
    %4815 = vmatpush1.bf16.msra.mxu0 0
    %4816 = vmatprep.subr.bf16.mxu0 0
    %4817 = vmatpush1.bf16.msra.mxu0 0
    %4818 = vmatprep.subr.bf16.mxu0 0
    %4819 = vmatpush1.bf16.msra.mxu0 0
    %4820 = vmatprep.subr.bf16.mxu0 0
    %4821 = vmatpush1.bf16.msra.mxu0 0
    %4822 = vmatprep.subr.bf16.mxu0 0
    %4823 = vmatpush1.bf16.msra.mxu0 0
    %4824 = vmatprep.subr.bf16.mxu0 0
    %4825 = vmatpush1.bf16.msra.mxu0 0
    %4826 = vmatprep.subr.bf16.mxu0 0
    %4827 = vmatpush1.bf16.msra.mxu0 0
    %4828 = vmatprep.subr.bf16.mxu0 0
    %4829 = vmatpush1.bf16.msra.mxu0 0
    %4830 = vmatprep.mubr.bf16.mxu0 0
    %4831 = vmatmul.mubr.bf16.gmra.mrb[0].mxu0 %v4755
    %v4832 = vpop.f32.mrb[0].mxu0
    %v4833 = vadd.f32 0.0, %v4832
    %v4834 = vpop.f32.mrb[0].mxu0
    %v4835 = vpop.f32.mrb[0].mxu0
    %v4836 = vpop.f32.mrb[0].mxu0
    %4837 = vdwg.mxu0
    %v4839 = vrot.slane %v4792, 4
    %v4840 = vrot.slane %v4792, 5
    %v4843 = vadd.f32 %v866, %v4839
    %v4844 = vadd.f32 %v870, %v4840
    %v4845 = vxor.u32 %v4843, 2147483648
    %v4846 = vxor.u32 %v4844, 2147483648
    %v4847 = vmul.f32 %v4845, 1.442695
    %v4848 = vpow.pop %v4847
    %v4849 = vmul.f32 %v4846, 1.442695
    %v4850 = vpow.pop %v4849
    %v4851 = vadd.f32 %v4848, 1.0
    %v4852 = vadd.f32 %v4850, 1.0
    %v4853 = vrcp.pop %v4851
    %v4854 = vmul.f32 1.0, %v4853
    %v4855 = vrcp.pop %v4852
    %v4856 = vmul.f32 1.0, %v4855
    %v4858 = vrot.slane %v4794, 4
    %v4859 = vrot.slane %v4794, 5
    %v4862 = vadd.f32 %v868, %v4858
    %v4863 = vadd.f32 %v872, %v4859
    %v4864 = vxor.u32 %v4862, 2147483648
    %v4865 = vxor.u32 %v4863, 2147483648
    %v4866 = vmul.f32 %v4864, 1.442695
    %v4867 = vpow.pop %v4866
    %v4868 = vmul.f32 %v4865, 1.442695
    %v4869 = vpow.pop %v4868
    %v4870 = vadd.f32 %v4867, 1.0
    %v4871 = vadd.f32 %v4869, 1.0
    %v4872 = vrcp.pop %v4870
    %v4873 = vmul.f32 1.0, %v4872
    %v4874 = vrcp.pop %v4871
    %v4875 = vmul.f32 1.0, %v4874
    %v4876 = vadd.f32 %v4833, %v1734
    %v4878 = vrot.slane %v4876, 4
    %v4879 = vrot.slane %v4876, 5
    %v4882 = vmul.f32 %v4854, %v4878
    %v4883 = vmul.f32 %v4856, %v4879
    %v4884 = vadd.f32 %v909, %v4882
    %v4885 = vadd.f32 %v912, %v4883
    %v4886 = vtanh.pop %v4884
    %v4887 = vtanh.pop %v4885
    %v4888 = vsub.f32 1.0, %v4873
    %v4889 = vsub.f32 1.0, %v4875
    %v4890 = vmul.f32 %v4888, %v4886
    %v4891 = vmul.f32 %v4889, %v4887
    %v4894 = vrot.slane %v4256, 7
    %v4895 = vrot.slane %v4257, 7
    %v4898 = vmul.f32 %v4873, %v4894
    %v4899 = vmul.f32 %v4875, %v4895
    %v4900 = vadd.f32 %v4890, %v4898
    %v4901 = vadd.f32 %v4891, %v4899
    %v4902 = vpack.c.bf16 %v4412, %v4412
    %v4903 = vpack.c.bf16 %v4413, %v4413
    %v4906 = vunpack.c.l.b16 %v4902
    %v4907 = vunpack.c.l.b16 %v4903
    %v4908 = vrot.slane %v4906, 3
    %v4909 = vrot.slane %v4907, 2
    %v4910 = vsel %vm2830, %v4909, %v4908
    %v4911 = vpack.c.b16 %v4910, %v4910
    %4913 = vmatprep.subr.bf16.mxu0 %v2102
    %4914 = vmatpush1.bf16.msra.mxu0 %v2101
    %4915 = vmatprep.subr.bf16.mxu0 %v2105
    %4916 = vmatpush1.bf16.msra.mxu0 %v2104
    %4917 = vmatprep.subr.bf16.mxu0 %v2108
    %4918 = vmatpush1.bf16.msra.mxu0 %v2107
    %4919 = vmatprep.subr.bf16.mxu0 %v2111
    %4920 = vmatpush1.bf16.msra.mxu0 %v2110
    %4921 = vmatprep.subr.bf16.mxu0 %v2114
    %4922 = vmatpush1.bf16.msra.mxu0 %v2113
    %4923 = vmatprep.subr.bf16.mxu0 %v2117
    %4924 = vmatpush1.bf16.msra.mxu0 %v2116
    %4925 = vmatprep.subr.bf16.mxu0 %v2120
    %4926 = vmatpush1.bf16.msra.mxu0 %v2119
    %4927 = vmatprep.subr.bf16.mxu0 %v2123
    %4928 = vmatpush1.bf16.msra.mxu0 %v2122
    %4929 = vmatprep.subr.bf16.mxu0 0
    %4930 = vmatpush1.bf16.msra.mxu0 0
    %4931 = vmatprep.subr.bf16.mxu0 0
    %4932 = vmatpush1.bf16.msra.mxu0 0
    %4933 = vmatprep.subr.bf16.mxu0 0
    %4934 = vmatpush1.bf16.msra.mxu0 0
    %4935 = vmatprep.subr.bf16.mxu0 0
    %4936 = vmatpush1.bf16.msra.mxu0 0
    %4937 = vmatprep.subr.bf16.mxu0 0
    %4938 = vmatpush1.bf16.msra.mxu0 0
    %4939 = vmatprep.subr.bf16.mxu0 0
    %4940 = vmatpush1.bf16.msra.mxu0 0
    %4941 = vmatprep.subr.bf16.mxu0 0
    %4942 = vmatpush1.bf16.msra.mxu0 0
    %4943 = vmatprep.subr.bf16.mxu0 0
    %4944 = vmatpush1.bf16.msra.mxu0 0
    %4945 = vmatprep.mubr.bf16.mxu0 0
    %4946 = vmatmul.mubr.bf16.gmra.mrb[0].mxu0 %v4911
    %v4947 = vpop.f32.mrb[0].mxu0
    %v4948 = vadd.f32 0.0, %v4947
    %v4949 = vpop.f32.mrb[0].mxu0
    %v4950 = vadd.f32 0.0, %v4949
    %v4951 = vpop.f32.mrb[0].mxu0
    %v4952 = vpop.f32.mrb[0].mxu0
    %4953 = vdwg.mxu0
    %4954 = vmatprep.subr.bf16.mxu0 0
    %4955 = vmatpush1.bf16.msra.mxu0 %v2103
    %4956 = vmatprep.subr.bf16.mxu0 0
    %4957 = vmatpush1.bf16.msra.mxu0 %v2106
    %4958 = vmatprep.subr.bf16.mxu0 0
    %4959 = vmatpush1.bf16.msra.mxu0 %v2109
    %4960 = vmatprep.subr.bf16.mxu0 0
    %4961 = vmatpush1.bf16.msra.mxu0 %v2112
    %4962 = vmatprep.subr.bf16.mxu0 0
    %4963 = vmatpush1.bf16.msra.mxu0 %v2115
    %4964 = vmatprep.subr.bf16.mxu0 0
    %4965 = vmatpush1.bf16.msra.mxu0 %v2118
    %4966 = vmatprep.subr.bf16.mxu0 0
    %4967 = vmatpush1.bf16.msra.mxu0 %v2121
    %4968 = vmatprep.subr.bf16.mxu0 0
    %4969 = vmatpush1.bf16.msra.mxu0 %v2124
    %4970 = vmatprep.subr.bf16.mxu0 0
    %4971 = vmatpush1.bf16.msra.mxu0 0
    %4972 = vmatprep.subr.bf16.mxu0 0
    %4973 = vmatpush1.bf16.msra.mxu0 0
    %4974 = vmatprep.subr.bf16.mxu0 0
    %4975 = vmatpush1.bf16.msra.mxu0 0
    %4976 = vmatprep.subr.bf16.mxu0 0
    %4977 = vmatpush1.bf16.msra.mxu0 0
    %4978 = vmatprep.subr.bf16.mxu0 0
    %4979 = vmatpush1.bf16.msra.mxu0 0
    %4980 = vmatprep.subr.bf16.mxu0 0
    %4981 = vmatpush1.bf16.msra.mxu0 0
    %4982 = vmatprep.subr.bf16.mxu0 0
    %4983 = vmatpush1.bf16.msra.mxu0 0
    %4984 = vmatprep.subr.bf16.mxu0 0
    %4985 = vmatpush1.bf16.msra.mxu0 0
    %4986 = vmatprep.mubr.bf16.mxu0 0
    %4987 = vmatmul.mubr.bf16.gmra.mrb[0].mxu0 %v4911
    %v4988 = vpop.f32.mrb[0].mxu0
    %v4989 = vadd.f32 0.0, %v4988
    %v4990 = vpop.f32.mrb[0].mxu0
    %v4991 = vpop.f32.mrb[0].mxu0
    %v4992 = vpop.f32.mrb[0].mxu0
    %4993 = vdwg.mxu0
    %v4995 = vrot.slane %v4948, 4
    %v4996 = vrot.slane %v4948, 5
    %v4999 = vadd.f32 %v1324, %v4995
    %v5000 = vadd.f32 %v1327, %v4996
    %v5001 = vxor.u32 %v4999, 2147483648
    %v5002 = vxor.u32 %v5000, 2147483648
    %v5003 = vmul.f32 %v5001, 1.442695
    %v5004 = vpow.pop %v5003
    %v5005 = vmul.f32 %v5002, 1.442695
    %v5006 = vpow.pop %v5005
    %v5007 = vadd.f32 %v5004, 1.0
    %v5008 = vadd.f32 %v5006, 1.0
    %v5009 = vrcp.pop %v5007
    %v5010 = vmul.f32 1.0, %v5009
    %v5011 = vrcp.pop %v5008
    %v5012 = vmul.f32 1.0, %v5011
    %v5014 = vrot.slane %v4950, 4
    %v5015 = vrot.slane %v4950, 5
    %v5018 = vadd.f32 %v1325, %v5014
    %v5019 = vadd.f32 %v1328, %v5015
    %v5020 = vxor.u32 %v5018, 2147483648
    %v5021 = vxor.u32 %v5019, 2147483648
    %v5022 = vmul.f32 %v5020, 1.442695
    %v5023 = vpow.pop %v5022
    %v5024 = vmul.f32 %v5021, 1.442695
    %v5025 = vpow.pop %v5024
    %v5026 = vadd.f32 %v5023, 1.0
    %v5027 = vadd.f32 %v5025, 1.0
    %v5028 = vrcp.pop %v5026
    %v5029 = vmul.f32 1.0, %v5028
    %v5030 = vrcp.pop %v5027
    %v5031 = vmul.f32 1.0, %v5030
    %v5032 = vadd.f32 %v4989, %v1748
    %v5034 = vrot.slane %v5032, 4
    %v5035 = vrot.slane %v5032, 5
    %v5038 = vmul.f32 %v5010, %v5034
    %v5039 = vmul.f32 %v5012, %v5035
    %v5040 = vadd.f32 %v1326, %v5038
    %v5041 = vadd.f32 %v1329, %v5039
    %v5042 = vtanh.pop %v5040
    %v5043 = vtanh.pop %v5041
    %v5044 = vsub.f32 1.0, %v5029
    %v5045 = vsub.f32 1.0, %v5031
    %v5046 = vmul.f32 %v5044, %v5042
    %v5047 = vmul.f32 %v5045, %v5043
    %v5050 = vrot.slane %v4412, 7
    %v5051 = vrot.slane %v4413, 7
    %v5054 = vmul.f32 %v5029, %v5050
    %v5055 = vmul.f32 %v5031, %v5051
    %v5056 = vadd.f32 %v5046, %v5054
    %v5057 = vadd.f32 %v5047, %v5055
    %v5058 = vpack.c.bf16 %v4568, %v4568
    %v5059 = vpack.c.bf16 %v4569, %v4569
    %v5062 = vunpack.c.l.b16 %v5058
    %v5063 = vunpack.c.l.b16 %v5059
    %v5064 = vrot.slane %v5062, 4
    %v5065 = vrot.slane %v5063, 3
    %v5066 = vsel %vm2830, %v5065, %v5064
    %v5067 = vpack.c.b16 %v5066, %v5066
    %5069 = vmatprep.subr.bf16.mxu0 %v2366
    %5070 = vmatpush1.bf16.msra.mxu0 %v2365
    %5071 = vmatprep.subr.bf16.mxu0 %v2369
    %5072 = vmatpush1.bf16.msra.mxu0 %v2368
    %5073 = vmatprep.subr.bf16.mxu0 %v2372
    %5074 = vmatpush1.bf16.msra.mxu0 %v2371
    %5075 = vmatprep.subr.bf16.mxu0 %v2375
    %5076 = vmatpush1.bf16.msra.mxu0 %v2374
    %5077 = vmatprep.subr.bf16.mxu0 %v2378
    %5078 = vmatpush1.bf16.msra.mxu0 %v2377
    %5079 = vmatprep.subr.bf16.mxu0 %v2381
    %5080 = vmatpush1.bf16.msra.mxu0 %v2380
    %5081 = vmatprep.subr.bf16.mxu0 %v2384
    %5082 = vmatpush1.bf16.msra.mxu0 %v2383
    %5083 = vmatprep.subr.bf16.mxu0 %v2387
    %5084 = vmatpush1.bf16.msra.mxu0 %v2386
    %5085 = vmatprep.subr.bf16.mxu0 0
    %5086 = vmatpush1.bf16.msra.mxu0 0
    %5087 = vmatprep.subr.bf16.mxu0 0
    %5088 = vmatpush1.bf16.msra.mxu0 0
    %5089 = vmatprep.subr.bf16.mxu0 0
    %5090 = vmatpush1.bf16.msra.mxu0 0
    %5091 = vmatprep.subr.bf16.mxu0 0
    %5092 = vmatpush1.bf16.msra.mxu0 0
    %5093 = vmatprep.subr.bf16.mxu0 0
    %5094 = vmatpush1.bf16.msra.mxu0 0
    %5095 = vmatprep.subr.bf16.mxu0 0
    %5096 = vmatpush1.bf16.msra.mxu0 0
    %5097 = vmatprep.subr.bf16.mxu0 0
    %5098 = vmatpush1.bf16.msra.mxu0 0
    %5099 = vmatprep.subr.bf16.mxu0 0
    %5100 = vmatpush1.bf16.msra.mxu0 0
    %5101 = vmatprep.mubr.bf16.mxu0 0
    %5102 = vmatmul.mubr.bf16.gmra.mrb[0].mxu0 %v5067
    %v5103 = vpop.f32.mrb[0].mxu0
    %v5104 = vadd.f32 0.0, %v5103
    %v5105 = vpop.f32.mrb[0].mxu0
    %v5106 = vadd.f32 0.0, %v5105
    %v5107 = vpop.f32.mrb[0].mxu0
    %v5108 = vpop.f32.mrb[0].mxu0
    %5109 = vdwg.mxu0
    %5110 = vmatprep.subr.bf16.mxu0 0
    %5111 = vmatpush1.bf16.msra.mxu0 %v2367
    %5112 = vmatprep.subr.bf16.mxu0 0
    %5113 = vmatpush1.bf16.msra.mxu0 %v2370
    %5114 = vmatprep.subr.bf16.mxu0 0
    %5115 = vmatpush1.bf16.msra.mxu0 %v2373
    %5116 = vmatprep.subr.bf16.mxu0 0
    %5117 = vmatpush1.bf16.msra.mxu0 %v2376
    %5118 = vmatprep.subr.bf16.mxu0 0
    %5119 = vmatpush1.bf16.msra.mxu0 %v2379
    %5120 = vmatprep.subr.bf16.mxu0 0
    %5121 = vmatpush1.bf16.msra.mxu0 %v2382
    %5122 = vmatprep.subr.bf16.mxu0 0
    %5123 = vmatpush1.bf16.msra.mxu0 %v2385
    %5124 = vmatprep.subr.bf16.mxu0 0
    %5125 = vmatpush1.bf16.msra.mxu0 %v2388
    %5126 = vmatprep.subr.bf16.mxu0 0
    %5127 = vmatpush1.bf16.msra.mxu0 0
    %5128 = vmatprep.subr.bf16.mxu0 0
    %5129 = vmatpush1.bf16.msra.mxu0 0
    %5130 = vmatprep.subr.bf16.mxu0 0
    %5131 = vmatpush1.bf16.msra.mxu0 0
    %5132 = vmatprep.subr.bf16.mxu0 0
    %5133 = vmatpush1.bf16.msra.mxu0 0
    %5134 = vmatprep.subr.bf16.mxu0 0
    %5135 = vmatpush1.bf16.msra.mxu0 0
    %5136 = vmatprep.subr.bf16.mxu0 0
    %5137 = vmatpush1.bf16.msra.mxu0 0
    %5138 = vmatprep.subr.bf16.mxu0 0
    %5139 = vmatpush1.bf16.msra.mxu0 0
    %5140 = vmatprep.subr.bf16.mxu0 0
    %5141 = vmatpush1.bf16.msra.mxu0 0
    %5142 = vmatprep.mubr.bf16.mxu0 0
    %5143 = vmatmul.mubr.bf16.gmra.mrb[0].mxu0 %v5067
    %v5144 = vpop.f32.mrb[0].mxu0
    %v5145 = vadd.f32 0.0, %v5144
    %v5146 = vpop.f32.mrb[0].mxu0
    %v5147 = vpop.f32.mrb[0].mxu0
    %v5148 = vpop.f32.mrb[0].mxu0
    %5149 = vdwg.mxu0
    %v5151 = vrot.slane %v5104, 5
    %v5152 = vrot.slane %v5104, 6
    %v5155 = vadd.f32 %v1007, %v5151
    %v5156 = vadd.f32 %v1011, %v5152
    %v5157 = vxor.u32 %v5155, 2147483648
    %v5158 = vxor.u32 %v5156, 2147483648
    %v5159 = vmul.f32 %v5157, 1.442695
    %v5160 = vpow.pop %v5159
    %v5161 = vmul.f32 %v5158, 1.442695
    %v5162 = vpow.pop %v5161
    %v5163 = vadd.f32 %v5160, 1.0
    %v5164 = vadd.f32 %v5162, 1.0
    %v5165 = vrcp.pop %v5163
    %v5166 = vmul.f32 1.0, %v5165
    %v5167 = vrcp.pop %v5164
    %v5168 = vmul.f32 1.0, %v5167
    %v5170 = vrot.slane %v5106, 5
    %v5171 = vrot.slane %v5106, 6
    %v5174 = vadd.f32 %v1009, %v5170
    %v5175 = vadd.f32 %v1013, %v5171
    %v5176 = vxor.u32 %v5174, 2147483648
    %v5177 = vxor.u32 %v5175, 2147483648
    %v5178 = vmul.f32 %v5176, 1.442695
    %v5179 = vpow.pop %v5178
    %v5180 = vmul.f32 %v5177, 1.442695
    %v5181 = vpow.pop %v5180
    %v5182 = vadd.f32 %v5179, 1.0
    %v5183 = vadd.f32 %v5181, 1.0
    %v5184 = vrcp.pop %v5182
    %v5185 = vmul.f32 1.0, %v5184
    %v5186 = vrcp.pop %v5183
    %v5187 = vmul.f32 1.0, %v5186
    %v5188 = vadd.f32 %v5145, %v1741
    %v5190 = vrot.slane %v5188, 5
    %v5191 = vrot.slane %v5188, 6
    %v5194 = vmul.f32 %v5166, %v5190
    %v5195 = vmul.f32 %v5168, %v5191
    %v5196 = vadd.f32 %v1050, %v5194
    %v5197 = vadd.f32 %v1053, %v5195
    %v5198 = vtanh.pop %v5196
    %v5199 = vtanh.pop %v5197
    %v5200 = vsub.f32 1.0, %v5185
    %v5201 = vsub.f32 1.0, %v5187
    %v5202 = vmul.f32 %v5200, %v5198
    %v5203 = vmul.f32 %v5201, %v5199
    %v5206 = vrot.slane %v4568, 1
    %v5207 = vrot.slane %v4569, 1
    %v5210 = vmul.f32 %v5185, %v5206
    %v5211 = vmul.f32 %v5187, %v5207
    %v5212 = vadd.f32 %v5202, %v5210
    %v5213 = vadd.f32 %v5203, %v5211
    %v5214 = vpack.c.bf16 %v4724, %v4724
    %v5215 = vpack.c.bf16 %v4725, %v4725
    %v5218 = vunpack.c.l.b16 %v5214
    %v5219 = vunpack.c.l.b16 %v5215
    %v5220 = vrot.slane %v5218, 4
    %v5221 = vrot.slane %v5219, 3
    %v5222 = vsel %vm2830, %v5221, %v5220
    %v5223 = vpack.c.b16 %v5222, %v5222
    %5225 = vmatprep.subr.bf16.mxu0 %v2633
    %5226 = vmatpush1.bf16.msra.mxu0 %v2632
    %5227 = vmatprep.subr.bf16.mxu0 %v2636
    %5228 = vmatpush1.bf16.msra.mxu0 %v2635
    %5229 = vmatprep.subr.bf16.mxu0 %v2639
    %5230 = vmatpush1.bf16.msra.mxu0 %v2638
    %5231 = vmatprep.subr.bf16.mxu0 %v2642
    %5232 = vmatpush1.bf16.msra.mxu0 %v2641
    %5233 = vmatprep.subr.bf16.mxu0 %v2645
    %5234 = vmatpush1.bf16.msra.mxu0 %v2644
    %5235 = vmatprep.subr.bf16.mxu0 %v2648
    %5236 = vmatpush1.bf16.msra.mxu0 %v2647
    %5237 = vmatprep.subr.bf16.mxu0 %v2651
    %5238 = vmatpush1.bf16.msra.mxu0 %v2650
    %5239 = vmatprep.subr.bf16.mxu0 %v2654
    %5240 = vmatpush1.bf16.msra.mxu0 %v2653
    %5241 = vmatprep.subr.bf16.mxu0 0
    %5242 = vmatpush1.bf16.msra.mxu0 0
    %5243 = vmatprep.subr.bf16.mxu0 0
    %5244 = vmatpush1.bf16.msra.mxu0 0
    %5245 = vmatprep.subr.bf16.mxu0 0
    %5246 = vmatpush1.bf16.msra.mxu0 0
    %5247 = vmatprep.subr.bf16.mxu0 0
    %5248 = vmatpush1.bf16.msra.mxu0 0
    %5249 = vmatprep.subr.bf16.mxu0 0
    %5250 = vmatpush1.bf16.msra.mxu0 0
    %5251 = vmatprep.subr.bf16.mxu0 0
    %5252 = vmatpush1.bf16.msra.mxu0 0
    %5253 = vmatprep.subr.bf16.mxu0 0
    %5254 = vmatpush1.bf16.msra.mxu0 0
    %5255 = vmatprep.subr.bf16.mxu0 0
    %5256 = vmatpush1.bf16.msra.mxu0 0
    %5257 = vmatprep.mubr.bf16.mxu0 0
    %5258 = vmatmul.mubr.bf16.gmra.mrb[0].mxu0 %v5223
    %v5259 = vpop.f32.mrb[0].mxu0
    %v5260 = vadd.f32 0.0, %v5259
    %v5261 = vpop.f32.mrb[0].mxu0
    %v5262 = vadd.f32 0.0, %v5261
    %v5263 = vpop.f32.mrb[0].mxu0
    %v5264 = vpop.f32.mrb[0].mxu0
    %5265 = vdwg.mxu0
    %5266 = vmatprep.subr.bf16.mxu0 0
    %5267 = vmatpush1.bf16.msra.mxu0 %v2634
    %5268 = vmatprep.subr.bf16.mxu0 0
    %5269 = vmatpush1.bf16.msra.mxu0 %v2637
    %5270 = vmatprep.subr.bf16.mxu0 0
    %5271 = vmatpush1.bf16.msra.mxu0 %v2640
    %5272 = vmatprep.subr.bf16.mxu0 0
    %5273 = vmatpush1.bf16.msra.mxu0 %v2643
    %5274 = vmatprep.subr.bf16.mxu0 0
    %5275 = vmatpush1.bf16.msra.mxu0 %v2646
    %5276 = vmatprep.subr.bf16.mxu0 0
    %5277 = vmatpush1.bf16.msra.mxu0 %v2649
    %5278 = vmatprep.subr.bf16.mxu0 0
    %5279 = vmatpush1.bf16.msra.mxu0 %v2652
    %5280 = vmatprep.subr.bf16.mxu0 0
    %5281 = vmatpush1.bf16.msra.mxu0 %v2655
    %5282 = vmatprep.subr.bf16.mxu0 0
    %5283 = vmatpush1.bf16.msra.mxu0 0
    %5284 = vmatprep.subr.bf16.mxu0 0
    %5285 = vmatpush1.bf16.msra.mxu0 0
    %5286 = vmatprep.subr.bf16.mxu0 0
    %5287 = vmatpush1.bf16.msra.mxu0 0
    %5288 = vmatprep.subr.bf16.mxu0 0
    %5289 = vmatpush1.bf16.msra.mxu0 0
    %5290 = vmatprep.subr.bf16.mxu0 0
    %5291 = vmatpush1.bf16.msra.mxu0 0
    %5292 = vmatprep.subr.bf16.mxu0 0
    %5293 = vmatpush1.bf16.msra.mxu0 0
    %5294 = vmatprep.subr.bf16.mxu0 0
    %5295 = vmatpush1.bf16.msra.mxu0 0
    %5296 = vmatprep.subr.bf16.mxu0 0
    %5297 = vmatpush1.bf16.msra.mxu0 0
    %5298 = vmatprep.mubr.bf16.mxu0 0
    %5299 = vmatmul.mubr.bf16.gmra.mrb[0].mxu0 %v5223
    %v5300 = vpop.f32.mrb[0].mxu0
    %v5301 = vadd.f32 0.0, %v5300
    %v5302 = vpop.f32.mrb[0].mxu0
    %v5303 = vpop.f32.mrb[0].mxu0
    %v5304 = vpop.f32.mrb[0].mxu0
    %5305 = vdwg.mxu0
    %v5307 = vrot.slane %v5260, 5
    %v5308 = vrot.slane %v5260, 6
    %v5311 = vadd.f32 %v1595, %v5307
    %v5312 = vadd.f32 %v1598, %v5308
    %v5313 = vxor.u32 %v5311, 2147483648
    %v5314 = vxor.u32 %v5312, 2147483648
    %v5315 = vmul.f32 %v5313, 1.442695
    %v5316 = vpow.pop %v5315
    %v5317 = vmul.f32 %v5314, 1.442695
    %v5318 = vpow.pop %v5317
    %v5319 = vadd.f32 %v5316, 1.0
    %v5320 = vadd.f32 %v5318, 1.0
    %v5321 = vrcp.pop %v5319
    %v5322 = vmul.f32 1.0, %v5321
    %v5323 = vrcp.pop %v5320
    %v5324 = vmul.f32 1.0, %v5323
    %v5326 = vrot.slane %v5262, 5
    %v5327 = vrot.slane %v5262, 6
    %v5330 = vadd.f32 %v1596, %v5326
    %v5331 = vadd.f32 %v1599, %v5327
    %v5332 = vxor.u32 %v5330, 2147483648
    %v5333 = vxor.u32 %v5331, 2147483648
    %v5334 = vmul.f32 %v5332, 1.442695
    %v5335 = vpow.pop %v5334
    %v5336 = vmul.f32 %v5333, 1.442695
    %v5337 = vpow.pop %v5336
    %v5338 = vadd.f32 %v5335, 1.0
    %v5339 = vadd.f32 %v5337, 1.0
    %v5340 = vrcp.pop %v5338
    %v5341 = vmul.f32 1.0, %v5340
    %v5342 = vrcp.pop %v5339
    %v5343 = vmul.f32 1.0, %v5342
    %v5344 = vadd.f32 %v5301, %v1755
    %v5346 = vrot.slane %v5344, 5
    %v5347 = vrot.slane %v5344, 6
    %v5350 = vmul.f32 %v5322, %v5346
    %v5351 = vmul.f32 %v5324, %v5347
    %v5352 = vadd.f32 %v1597, %v5350
    %v5353 = vadd.f32 %v1600, %v5351
    %v5354 = vtanh.pop %v5352
    %v5355 = vtanh.pop %v5353
    %v5356 = vsub.f32 1.0, %v5341
    %v5357 = vsub.f32 1.0, %v5343
    %v5358 = vmul.f32 %v5356, %v5354
    %v5359 = vmul.f32 %v5357, %v5355
    %v5362 = vrot.slane %v4724, 1
    %v5363 = vrot.slane %v4725, 1
    %v5366 = vmul.f32 %v5341, %v5362
    %v5367 = vmul.f32 %v5343, %v5363
    %v5368 = vadd.f32 %v5358, %v5366
    %v5369 = vadd.f32 %v5359, %v5367
    %v5370 = vmul.f32 %v4900, %v5056
    %v5371 = vmul.f32 %v4901, %v5057
    %v5374 = vrot.slane %v5370, 4
    %v5375 = vrot.slane %v5371, 4
    %v5378 = vmax.f32 %v4734, %v5374
    %v5379 = vmax.f32 %v4735, %v5375
    %v5380 = vmul.f32 %v5212, %v5368
    %v5381 = vmul.f32 %v5213, %v5369
    %v5384 = vrot.slane %v5380, 4
    %v5385 = vrot.slane %v5381, 4
    %v5388 = vmax.f32 %v4744, %v5384
    %v5389 = vmax.f32 %v4745, %v5385
    %v5390 = vpack.c.bf16 %v4900, %v4900
    %v5391 = vpack.c.bf16 %v4901, %v4901
    %v5394 = vunpack.c.l.b16 %v5390
    %v5395 = vunpack.c.l.b16 %v5391
    %v5396 = vrot.slane %v5394, 4
    %v5397 = vrot.slane %v5395, 3
    %v5398 = vsel %vm2830, %v5397, %v5396
    %v5399 = vpack.c.b16 %v5398, %v5398
    %5401 = vmatprep.subr.bf16.mxu0 %v1838
    %5402 = vmatpush1.bf16.msra.mxu0 %v1837
    %5403 = vmatprep.subr.bf16.mxu0 %v1841
    %5404 = vmatpush1.bf16.msra.mxu0 %v1840
    %5405 = vmatprep.subr.bf16.mxu0 %v1844
    %5406 = vmatpush1.bf16.msra.mxu0 %v1843
    %5407 = vmatprep.subr.bf16.mxu0 %v1847
    %5408 = vmatpush1.bf16.msra.mxu0 %v1846
    %5409 = vmatprep.subr.bf16.mxu0 %v1850
    %5410 = vmatpush1.bf16.msra.mxu0 %v1849
    %5411 = vmatprep.subr.bf16.mxu0 %v1853
    %5412 = vmatpush1.bf16.msra.mxu0 %v1852
    %5413 = vmatprep.subr.bf16.mxu0 %v1856
    %5414 = vmatpush1.bf16.msra.mxu0 %v1855
    %5415 = vmatprep.subr.bf16.mxu0 %v1859
    %5416 = vmatpush1.bf16.msra.mxu0 %v1858
    %5417 = vmatprep.subr.bf16.mxu0 0
    %5418 = vmatpush1.bf16.msra.mxu0 0
    %5419 = vmatprep.subr.bf16.mxu0 0
    %5420 = vmatpush1.bf16.msra.mxu0 0
    %5421 = vmatprep.subr.bf16.mxu0 0
    %5422 = vmatpush1.bf16.msra.mxu0 0
    %5423 = vmatprep.subr.bf16.mxu0 0
    %5424 = vmatpush1.bf16.msra.mxu0 0
    %5425 = vmatprep.subr.bf16.mxu0 0
    %5426 = vmatpush1.bf16.msra.mxu0 0
    %5427 = vmatprep.subr.bf16.mxu0 0
    %5428 = vmatpush1.bf16.msra.mxu0 0
    %5429 = vmatprep.subr.bf16.mxu0 0
    %5430 = vmatpush1.bf16.msra.mxu0 0
    %5431 = vmatprep.subr.bf16.mxu0 0
    %5432 = vmatpush1.bf16.msra.mxu0 0
    %5433 = vmatprep.mubr.bf16.mxu0 0
    %5434 = vmatmul.mubr.bf16.gmra.mrb[0].mxu0 %v5399
    %v5435 = vpop.f32.mrb[0].mxu0
    %v5436 = vadd.f32 0.0, %v5435
    %v5437 = vpop.f32.mrb[0].mxu0
    %v5438 = vadd.f32 0.0, %v5437
    %v5439 = vpop.f32.mrb[0].mxu0
    %v5440 = vpop.f32.mrb[0].mxu0
    %5441 = vdwg.mxu0
    %5442 = vmatprep.subr.bf16.mxu0 0
    %5443 = vmatpush1.bf16.msra.mxu0 %v1839
    %5444 = vmatprep.subr.bf16.mxu0 0
    %5445 = vmatpush1.bf16.msra.mxu0 %v1842
    %5446 = vmatprep.subr.bf16.mxu0 0
    %5447 = vmatpush1.bf16.msra.mxu0 %v1845
    %5448 = vmatprep.subr.bf16.mxu0 0
    %5449 = vmatpush1.bf16.msra.mxu0 %v1848
    %5450 = vmatprep.subr.bf16.mxu0 0
    %5451 = vmatpush1.bf16.msra.mxu0 %v1851
    %5452 = vmatprep.subr.bf16.mxu0 0
    %5453 = vmatpush1.bf16.msra.mxu0 %v1854
    %5454 = vmatprep.subr.bf16.mxu0 0
    %5455 = vmatpush1.bf16.msra.mxu0 %v1857
    %5456 = vmatprep.subr.bf16.mxu0 0
    %5457 = vmatpush1.bf16.msra.mxu0 %v1860
    %5458 = vmatprep.subr.bf16.mxu0 0
    %5459 = vmatpush1.bf16.msra.mxu0 0
    %5460 = vmatprep.subr.bf16.mxu0 0
    %5461 = vmatpush1.bf16.msra.mxu0 0
    %5462 = vmatprep.subr.bf16.mxu0 0
    %5463 = vmatpush1.bf16.msra.mxu0 0
    %5464 = vmatprep.subr.bf16.mxu0 0
    %5465 = vmatpush1.bf16.msra.mxu0 0
    %5466 = vmatprep.subr.bf16.mxu0 0
    %5467 = vmatpush1.bf16.msra.mxu0 0
    %5468 = vmatprep.subr.bf16.mxu0 0
    %5469 = vmatpush1.bf16.msra.mxu0 0
    %5470 = vmatprep.subr.bf16.mxu0 0
    %5471 = vmatpush1.bf16.msra.mxu0 0
    %5472 = vmatprep.subr.bf16.mxu0 0
    %5473 = vmatpush1.bf16.msra.mxu0 0
    %5474 = vmatprep.mubr.bf16.mxu0 0
    %5475 = vmatmul.mubr.bf16.gmra.mrb[0].mxu0 %v5399
    %v5476 = vpop.f32.mrb[0].mxu0
    %v5477 = vadd.f32 0.0, %v5476
    %v5478 = vpop.f32.mrb[0].mxu0
    %v5479 = vpop.f32.mrb[0].mxu0
    %v5480 = vpop.f32.mrb[0].mxu0
    %5481 = vdwg.mxu0
    %v5483 = vrot.slane %v5436, 3
    %v5484 = vrot.slane %v5436, 4
    %v5487 = vadd.f32 %v866, %v5483
    %v5488 = vadd.f32 %v870, %v5484
    %v5489 = vxor.u32 %v5487, 2147483648
    %v5490 = vxor.u32 %v5488, 2147483648
    %v5491 = vmul.f32 %v5489, 1.442695
    %v5492 = vpow.pop %v5491
    %v5493 = vmul.f32 %v5490, 1.442695
    %v5494 = vpow.pop %v5493
    %v5495 = vadd.f32 %v5492, 1.0
    %v5496 = vadd.f32 %v5494, 1.0
    %v5497 = vrcp.pop %v5495
    %v5498 = vmul.f32 1.0, %v5497
    %v5499 = vrcp.pop %v5496
    %v5500 = vmul.f32 1.0, %v5499
    %v5502 = vrot.slane %v5438, 3
    %v5503 = vrot.slane %v5438, 4
    %v5506 = vadd.f32 %v868, %v5502
    %v5507 = vadd.f32 %v872, %v5503
    %v5508 = vxor.u32 %v5506, 2147483648
    %v5509 = vxor.u32 %v5507, 2147483648
    %v5510 = vmul.f32 %v5508, 1.442695
    %v5511 = vpow.pop %v5510
    %v5512 = vmul.f32 %v5509, 1.442695
    %v5513 = vpow.pop %v5512
    %v5514 = vadd.f32 %v5511, 1.0
    %v5515 = vadd.f32 %v5513, 1.0
    %v5516 = vrcp.pop %v5514
    %v5517 = vmul.f32 1.0, %v5516
    %v5518 = vrcp.pop %v5515
    %v5519 = vmul.f32 1.0, %v5518
    %v5520 = vadd.f32 %v5477, %v1734
    %v5522 = vrot.slane %v5520, 3
    %v5523 = vrot.slane %v5520, 4
    %v5526 = vmul.f32 %v5498, %v5522
    %v5527 = vmul.f32 %v5500, %v5523
    %v5528 = vadd.f32 %v909, %v5526
    %v5529 = vadd.f32 %v912, %v5527
    %v5530 = vtanh.pop %v5528
    %v5531 = vtanh.pop %v5529
    %v5532 = vsub.f32 1.0, %v5517
    %v5533 = vsub.f32 1.0, %v5519
    %v5534 = vmul.f32 %v5532, %v5530
    %v5535 = vmul.f32 %v5533, %v5531
    %v5538 = vrot.slane %v4900, 7
    %v5539 = vrot.slane %v4901, 7
    %v5542 = vmul.f32 %v5517, %v5538
    %v5543 = vmul.f32 %v5519, %v5539
    %v5544 = vadd.f32 %v5534, %v5542
    %v5545 = vadd.f32 %v5535, %v5543
    %v5546 = vpack.c.bf16 %v5056, %v5056
    %v5547 = vpack.c.bf16 %v5057, %v5057
    %v5550 = vunpack.c.l.b16 %v5546
    %v5551 = vunpack.c.l.b16 %v5547
    %v5552 = vrot.slane %v5550, 4
    %v5553 = vrot.slane %v5551, 3
    %v5554 = vsel %vm2830, %v5553, %v5552
    %v5555 = vpack.c.b16 %v5554, %v5554
    %5557 = vmatprep.subr.bf16.mxu0 %v2102
    %5558 = vmatpush1.bf16.msra.mxu0 %v2101
    %5559 = vmatprep.subr.bf16.mxu0 %v2105
    %5560 = vmatpush1.bf16.msra.mxu0 %v2104
    %5561 = vmatprep.subr.bf16.mxu0 %v2108
    %5562 = vmatpush1.bf16.msra.mxu0 %v2107
    %5563 = vmatprep.subr.bf16.mxu0 %v2111
    %5564 = vmatpush1.bf16.msra.mxu0 %v2110
    %5565 = vmatprep.subr.bf16.mxu0 %v2114
    %5566 = vmatpush1.bf16.msra.mxu0 %v2113
    %5567 = vmatprep.subr.bf16.mxu0 %v2117
    %5568 = vmatpush1.bf16.msra.mxu0 %v2116
    %5569 = vmatprep.subr.bf16.mxu0 %v2120
    %5570 = vmatpush1.bf16.msra.mxu0 %v2119
    %5571 = vmatprep.subr.bf16.mxu0 %v2123
    %5572 = vmatpush1.bf16.msra.mxu0 %v2122
    %5573 = vmatprep.subr.bf16.mxu0 0
    %5574 = vmatpush1.bf16.msra.mxu0 0
    %5575 = vmatprep.subr.bf16.mxu0 0
    %5576 = vmatpush1.bf16.msra.mxu0 0
    %5577 = vmatprep.subr.bf16.mxu0 0
    %5578 = vmatpush1.bf16.msra.mxu0 0
    %5579 = vmatprep.subr.bf16.mxu0 0
    %5580 = vmatpush1.bf16.msra.mxu0 0
    %5581 = vmatprep.subr.bf16.mxu0 0
    %5582 = vmatpush1.bf16.msra.mxu0 0
    %5583 = vmatprep.subr.bf16.mxu0 0
    %5584 = vmatpush1.bf16.msra.mxu0 0
    %5585 = vmatprep.subr.bf16.mxu0 0
    %5586 = vmatpush1.bf16.msra.mxu0 0
    %5587 = vmatprep.subr.bf16.mxu0 0
    %5588 = vmatpush1.bf16.msra.mxu0 0
    %5589 = vmatprep.mubr.bf16.mxu0 0
    %5590 = vmatmul.mubr.bf16.gmra.mrb[0].mxu0 %v5555
    %v5591 = vpop.f32.mrb[0].mxu0
    %v5592 = vadd.f32 0.0, %v5591
    %v5593 = vpop.f32.mrb[0].mxu0
    %v5594 = vadd.f32 0.0, %v5593
    %v5595 = vpop.f32.mrb[0].mxu0
    %v5596 = vpop.f32.mrb[0].mxu0
    %5597 = vdwg.mxu0
    %5598 = vmatprep.subr.bf16.mxu0 0
    %5599 = vmatpush1.bf16.msra.mxu0 %v2103
    %5600 = vmatprep.subr.bf16.mxu0 0
    %5601 = vmatpush1.bf16.msra.mxu0 %v2106
    %5602 = vmatprep.subr.bf16.mxu0 0
    %5603 = vmatpush1.bf16.msra.mxu0 %v2109
    %5604 = vmatprep.subr.bf16.mxu0 0
    %5605 = vmatpush1.bf16.msra.mxu0 %v2112
    %5606 = vmatprep.subr.bf16.mxu0 0
    %5607 = vmatpush1.bf16.msra.mxu0 %v2115
    %5608 = vmatprep.subr.bf16.mxu0 0
    %5609 = vmatpush1.bf16.msra.mxu0 %v2118
    %5610 = vmatprep.subr.bf16.mxu0 0
    %5611 = vmatpush1.bf16.msra.mxu0 %v2121
    %5612 = vmatprep.subr.bf16.mxu0 0
    %5613 = vmatpush1.bf16.msra.mxu0 %v2124
    %5614 = vmatprep.subr.bf16.mxu0 0
    %5615 = vmatpush1.bf16.msra.mxu0 0
    %5616 = vmatprep.subr.bf16.mxu0 0
    %5617 = vmatpush1.bf16.msra.mxu0 0
    %5618 = vmatprep.subr.bf16.mxu0 0
    %5619 = vmatpush1.bf16.msra.mxu0 0
    %5620 = vmatprep.subr.bf16.mxu0 0
    %5621 = vmatpush1.bf16.msra.mxu0 0
    %5622 = vmatprep.subr.bf16.mxu0 0
    %5623 = vmatpush1.bf16.msra.mxu0 0
    %5624 = vmatprep.subr.bf16.mxu0 0
    %5625 = vmatpush1.bf16.msra.mxu0 0
    %5626 = vmatprep.subr.bf16.mxu0 0
    %5627 = vmatpush1.bf16.msra.mxu0 0
    %5628 = vmatprep.subr.bf16.mxu0 0
    %5629 = vmatpush1.bf16.msra.mxu0 0
    %5630 = vmatprep.mubr.bf16.mxu0 0
    %5631 = vmatmul.mubr.bf16.gmra.mrb[0].mxu0 %v5555
    %v5632 = vpop.f32.mrb[0].mxu0
    %v5633 = vadd.f32 0.0, %v5632
    %v5634 = vpop.f32.mrb[0].mxu0
    %v5635 = vpop.f32.mrb[0].mxu0
    %v5636 = vpop.f32.mrb[0].mxu0
    %5637 = vdwg.mxu0
    %v5639 = vrot.slane %v5592, 3
    %v5640 = vrot.slane %v5592, 4
    %v5643 = vadd.f32 %v1324, %v5639
    %v5644 = vadd.f32 %v1327, %v5640
    %v5645 = vxor.u32 %v5643, 2147483648
    %v5646 = vxor.u32 %v5644, 2147483648
    %v5647 = vmul.f32 %v5645, 1.442695
    %v5648 = vpow.pop %v5647
    %v5649 = vmul.f32 %v5646, 1.442695
    %v5650 = vpow.pop %v5649
    %v5651 = vadd.f32 %v5648, 1.0
    %v5652 = vadd.f32 %v5650, 1.0
    %v5653 = vrcp.pop %v5651
    %v5654 = vmul.f32 1.0, %v5653
    %v5655 = vrcp.pop %v5652
    %v5656 = vmul.f32 1.0, %v5655
    %v5658 = vrot.slane %v5594, 3
    %v5659 = vrot.slane %v5594, 4
    %v5662 = vadd.f32 %v1325, %v5658
    %v5663 = vadd.f32 %v1328, %v5659
    %v5664 = vxor.u32 %v5662, 2147483648
    %v5665 = vxor.u32 %v5663, 2147483648
    %v5666 = vmul.f32 %v5664, 1.442695
    %v5667 = vpow.pop %v5666
    %v5668 = vmul.f32 %v5665, 1.442695
    %v5669 = vpow.pop %v5668
    %v5670 = vadd.f32 %v5667, 1.0
    %v5671 = vadd.f32 %v5669, 1.0
    %v5672 = vrcp.pop %v5670
    %v5673 = vmul.f32 1.0, %v5672
    %v5674 = vrcp.pop %v5671
    %v5675 = vmul.f32 1.0, %v5674
    %v5676 = vadd.f32 %v5633, %v1748
    %v5678 = vrot.slane %v5676, 3
    %v5679 = vrot.slane %v5676, 4
    %v5682 = vmul.f32 %v5654, %v5678
    %v5683 = vmul.f32 %v5656, %v5679
    %v5684 = vadd.f32 %v1326, %v5682
    %v5685 = vadd.f32 %v1329, %v5683
    %v5686 = vtanh.pop %v5684
    %v5687 = vtanh.pop %v5685
    %v5688 = vsub.f32 1.0, %v5673
    %v5689 = vsub.f32 1.0, %v5675
    %v5690 = vmul.f32 %v5688, %v5686
    %v5691 = vmul.f32 %v5689, %v5687
    %v5694 = vrot.slane %v5056, 7
    %v5695 = vrot.slane %v5057, 7
    %v5698 = vmul.f32 %v5673, %v5694
    %v5699 = vmul.f32 %v5675, %v5695
    %v5700 = vadd.f32 %v5690, %v5698
    %v5701 = vadd.f32 %v5691, %v5699
    %v5702 = vpack.c.bf16 %v5212, %v5212
    %v5703 = vpack.c.bf16 %v5213, %v5213
    %v5706 = vunpack.c.l.b16 %v5702
    %v5707 = vunpack.c.l.b16 %v5703
    %v5708 = vrot.slane %v5706, 3
    %v5709 = vrot.slane %v5707, 2
    %v5710 = vsel %vm2830, %v5709, %v5708
    %v5711 = vpack.c.b16 %v5710, %v5710
    %5713 = vmatprep.subr.bf16.mxu0 %v2366
    %5714 = vmatpush1.bf16.msra.mxu0 %v2365
    %5715 = vmatprep.subr.bf16.mxu0 %v2369
    %5716 = vmatpush1.bf16.msra.mxu0 %v2368
    %5717 = vmatprep.subr.bf16.mxu0 %v2372
    %5718 = vmatpush1.bf16.msra.mxu0 %v2371
    %5719 = vmatprep.subr.bf16.mxu0 %v2375
    %5720 = vmatpush1.bf16.msra.mxu0 %v2374
    %5721 = vmatprep.subr.bf16.mxu0 %v2378
    %5722 = vmatpush1.bf16.msra.mxu0 %v2377
    %5723 = vmatprep.subr.bf16.mxu0 %v2381
    %5724 = vmatpush1.bf16.msra.mxu0 %v2380
    %5725 = vmatprep.subr.bf16.mxu0 %v2384
    %5726 = vmatpush1.bf16.msra.mxu0 %v2383
    %5727 = vmatprep.subr.bf16.mxu0 %v2387
    %5728 = vmatpush1.bf16.msra.mxu0 %v2386
    %5729 = vmatprep.subr.bf16.mxu0 0
    %5730 = vmatpush1.bf16.msra.mxu0 0
    %5731 = vmatprep.subr.bf16.mxu0 0
    %5732 = vmatpush1.bf16.msra.mxu0 0
    %5733 = vmatprep.subr.bf16.mxu0 0
    %5734 = vmatpush1.bf16.msra.mxu0 0
    %5735 = vmatprep.subr.bf16.mxu0 0
    %5736 = vmatpush1.bf16.msra.mxu0 0
    %5737 = vmatprep.subr.bf16.mxu0 0
    %5738 = vmatpush1.bf16.msra.mxu0 0
    %5739 = vmatprep.subr.bf16.mxu0 0
    %5740 = vmatpush1.bf16.msra.mxu0 0
    %5741 = vmatprep.subr.bf16.mxu0 0
    %5742 = vmatpush1.bf16.msra.mxu0 0
    %5743 = vmatprep.subr.bf16.mxu0 0
    %5744 = vmatpush1.bf16.msra.mxu0 0
    %5745 = vmatprep.mubr.bf16.mxu0 0
    %5746 = vmatmul.mubr.bf16.gmra.mrb[0].mxu0 %v5711
    %v5747 = vpop.f32.mrb[0].mxu0
    %v5748 = vadd.f32 0.0, %v5747
    %v5749 = vpop.f32.mrb[0].mxu0
    %v5750 = vadd.f32 0.0, %v5749
    %v5751 = vpop.f32.mrb[0].mxu0
    %v5752 = vpop.f32.mrb[0].mxu0
    %5753 = vdwg.mxu0
    %5754 = vmatprep.subr.bf16.mxu0 0
    %5755 = vmatpush1.bf16.msra.mxu0 %v2367
    %5756 = vmatprep.subr.bf16.mxu0 0
    %5757 = vmatpush1.bf16.msra.mxu0 %v2370
    %5758 = vmatprep.subr.bf16.mxu0 0
    %5759 = vmatpush1.bf16.msra.mxu0 %v2373
    %5760 = vmatprep.subr.bf16.mxu0 0
    %5761 = vmatpush1.bf16.msra.mxu0 %v2376
    %5762 = vmatprep.subr.bf16.mxu0 0
    %5763 = vmatpush1.bf16.msra.mxu0 %v2379
    %5764 = vmatprep.subr.bf16.mxu0 0
    %5765 = vmatpush1.bf16.msra.mxu0 %v2382
    %5766 = vmatprep.subr.bf16.mxu0 0
    %5767 = vmatpush1.bf16.msra.mxu0 %v2385
    %5768 = vmatprep.subr.bf16.mxu0 0
    %5769 = vmatpush1.bf16.msra.mxu0 %v2388
    %5770 = vmatprep.subr.bf16.mxu0 0
    %5771 = vmatpush1.bf16.msra.mxu0 0
    %5772 = vmatprep.subr.bf16.mxu0 0
    %5773 = vmatpush1.bf16.msra.mxu0 0
    %5774 = vmatprep.subr.bf16.mxu0 0
    %5775 = vmatpush1.bf16.msra.mxu0 0
    %5776 = vmatprep.subr.bf16.mxu0 0
    %5777 = vmatpush1.bf16.msra.mxu0 0
    %5778 = vmatprep.subr.bf16.mxu0 0
    %5779 = vmatpush1.bf16.msra.mxu0 0
    %5780 = vmatprep.subr.bf16.mxu0 0
    %5781 = vmatpush1.bf16.msra.mxu0 0
    %5782 = vmatprep.subr.bf16.mxu0 0
    %5783 = vmatpush1.bf16.msra.mxu0 0
    %5784 = vmatprep.subr.bf16.mxu0 0
    %5785 = vmatpush1.bf16.msra.mxu0 0
    %5786 = vmatprep.mubr.bf16.mxu0 0
    %5787 = vmatmul.mubr.bf16.gmra.mrb[0].mxu0 %v5711
    %v5788 = vpop.f32.mrb[0].mxu0
    %v5789 = vadd.f32 0.0, %v5788
    %v5790 = vpop.f32.mrb[0].mxu0
    %v5791 = vpop.f32.mrb[0].mxu0
    %v5792 = vpop.f32.mrb[0].mxu0
    %5793 = vdwg.mxu0
    %v5795 = vrot.slane %v5748, 6
    %v5796 = vrot.slane %v5748, 7
    %v5799 = vadd.f32 %v1007, %v5795
    %v5800 = vadd.f32 %v1011, %v5796
    %v5801 = vxor.u32 %v5799, 2147483648
    %v5802 = vxor.u32 %v5800, 2147483648
    %v5803 = vmul.f32 %v5801, 1.442695
    %v5804 = vpow.pop %v5803
    %v5805 = vmul.f32 %v5802, 1.442695
    %v5806 = vpow.pop %v5805
    %v5807 = vadd.f32 %v5804, 1.0
    %v5808 = vadd.f32 %v5806, 1.0
    %v5809 = vrcp.pop %v5807
    %v5810 = vmul.f32 1.0, %v5809
    %v5811 = vrcp.pop %v5808
    %v5812 = vmul.f32 1.0, %v5811
    %v5814 = vrot.slane %v5750, 6
    %v5815 = vrot.slane %v5750, 7
    %v5818 = vadd.f32 %v1009, %v5814
    %v5819 = vadd.f32 %v1013, %v5815
    %v5820 = vxor.u32 %v5818, 2147483648
    %v5821 = vxor.u32 %v5819, 2147483648
    %v5822 = vmul.f32 %v5820, 1.442695
    %v5823 = vpow.pop %v5822
    %v5824 = vmul.f32 %v5821, 1.442695
    %v5825 = vpow.pop %v5824
    %v5826 = vadd.f32 %v5823, 1.0
    %v5827 = vadd.f32 %v5825, 1.0
    %v5828 = vrcp.pop %v5826
    %v5829 = vmul.f32 1.0, %v5828
    %v5830 = vrcp.pop %v5827
    %v5831 = vmul.f32 1.0, %v5830
    %v5832 = vadd.f32 %v5789, %v1741
    %v5834 = vrot.slane %v5832, 6
    %v5835 = vrot.slane %v5832, 7
    %v5838 = vmul.f32 %v5810, %v5834
    %v5839 = vmul.f32 %v5812, %v5835
    %v5840 = vadd.f32 %v1050, %v5838
    %v5841 = vadd.f32 %v1053, %v5839
    %v5842 = vtanh.pop %v5840
    %v5843 = vtanh.pop %v5841
    %v5844 = vsub.f32 1.0, %v5829
    %v5845 = vsub.f32 1.0, %v5831
    %v5846 = vmul.f32 %v5844, %v5842
    %v5847 = vmul.f32 %v5845, %v5843
    %v5850 = vrot.slane %v5212, 1
    %v5851 = vrot.slane %v5213, 1
    %v5854 = vmul.f32 %v5829, %v5850
    %v5855 = vmul.f32 %v5831, %v5851
    %v5856 = vadd.f32 %v5846, %v5854
    %v5857 = vadd.f32 %v5847, %v5855
    %v5858 = vpack.c.bf16 %v5368, %v5368
    %v5859 = vpack.c.bf16 %v5369, %v5369
    %v5862 = vunpack.c.l.b16 %v5858
    %v5863 = vunpack.c.l.b16 %v5859
    %v5864 = vrot.slane %v5862, 3
    %v5865 = vrot.slane %v5863, 2
    %v5866 = vsel %vm2830, %v5865, %v5864
    %v5867 = vpack.c.b16 %v5866, %v5866
    %5869 = vmatprep.subr.bf16.mxu0 %v2633
    %5870 = vmatpush1.bf16.msra.mxu0 %v2632
    %5871 = vmatprep.subr.bf16.mxu0 %v2636
    %5872 = vmatpush1.bf16.msra.mxu0 %v2635
    %5873 = vmatprep.subr.bf16.mxu0 %v2639
    %5874 = vmatpush1.bf16.msra.mxu0 %v2638
    %5875 = vmatprep.subr.bf16.mxu0 %v2642
    %5876 = vmatpush1.bf16.msra.mxu0 %v2641
    %5877 = vmatprep.subr.bf16.mxu0 %v2645
    %5878 = vmatpush1.bf16.msra.mxu0 %v2644
    %5879 = vmatprep.subr.bf16.mxu0 %v2648
    %5880 = vmatpush1.bf16.msra.mxu0 %v2647
    %5881 = vmatprep.subr.bf16.mxu0 %v2651
    %5882 = vmatpush1.bf16.msra.mxu0 %v2650
    %5883 = vmatprep.subr.bf16.mxu0 %v2654
    %5884 = vmatpush1.bf16.msra.mxu0 %v2653
    %5885 = vmatprep.subr.bf16.mxu0 0
    %5886 = vmatpush1.bf16.msra.mxu0 0
    %5887 = vmatprep.subr.bf16.mxu0 0
    %5888 = vmatpush1.bf16.msra.mxu0 0
    %5889 = vmatprep.subr.bf16.mxu0 0
    %5890 = vmatpush1.bf16.msra.mxu0 0
    %5891 = vmatprep.subr.bf16.mxu0 0
    %5892 = vmatpush1.bf16.msra.mxu0 0
    %5893 = vmatprep.subr.bf16.mxu0 0
    %5894 = vmatpush1.bf16.msra.mxu0 0
    %5895 = vmatprep.subr.bf16.mxu0 0
    %5896 = vmatpush1.bf16.msra.mxu0 0
    %5897 = vmatprep.subr.bf16.mxu0 0
    %5898 = vmatpush1.bf16.msra.mxu0 0
    %5899 = vmatprep.subr.bf16.mxu0 0
    %5900 = vmatpush1.bf16.msra.mxu0 0
    %5901 = vmatprep.mubr.bf16.mxu0 0
    %5902 = vmatmul.mubr.bf16.gmra.mrb[0].mxu0 %v5867
    %v5903 = vpop.f32.mrb[0].mxu0
    %v5904 = vadd.f32 0.0, %v5903
    %v5905 = vpop.f32.mrb[0].mxu0
    %v5906 = vadd.f32 0.0, %v5905
    %v5907 = vpop.f32.mrb[0].mxu0
    %v5908 = vpop.f32.mrb[0].mxu0
    %5909 = vdwg.mxu0
    %5910 = vmatprep.subr.bf16.mxu0 0
    %5911 = vmatpush1.bf16.msra.mxu0 %v2634
    %5912 = vmatprep.subr.bf16.mxu0 0
    %5913 = vmatpush1.bf16.msra.mxu0 %v2637
    %5914 = vmatprep.subr.bf16.mxu0 0
    %5915 = vmatpush1.bf16.msra.mxu0 %v2640
    %5916 = vmatprep.subr.bf16.mxu0 0
    %5917 = vmatpush1.bf16.msra.mxu0 %v2643
    %5918 = vmatprep.subr.bf16.mxu0 0
    %5919 = vmatpush1.bf16.msra.mxu0 %v2646
    %5920 = vmatprep.subr.bf16.mxu0 0
    %5921 = vmatpush1.bf16.msra.mxu0 %v2649
    %5922 = vmatprep.subr.bf16.mxu0 0
    %5923 = vmatpush1.bf16.msra.mxu0 %v2652
    %5924 = vmatprep.subr.bf16.mxu0 0
    %5925 = vmatpush1.bf16.msra.mxu0 %v2655
    %5926 = vmatprep.subr.bf16.mxu0 0
    %5927 = vmatpush1.bf16.msra.mxu0 0
    %5928 = vmatprep.subr.bf16.mxu0 0
    %5929 = vmatpush1.bf16.msra.mxu0 0
    %5930 = vmatprep.subr.bf16.mxu0 0
    %5931 = vmatpush1.bf16.msra.mxu0 0
    %5932 = vmatprep.subr.bf16.mxu0 0
    %5933 = vmatpush1.bf16.msra.mxu0 0
    %5934 = vmatprep.subr.bf16.mxu0 0
    %5935 = vmatpush1.bf16.msra.mxu0 0
    %5936 = vmatprep.subr.bf16.mxu0 0
    %5937 = vmatpush1.bf16.msra.mxu0 0
    %5938 = vmatprep.subr.bf16.mxu0 0
    %5939 = vmatpush1.bf16.msra.mxu0 0
    %5940 = vmatprep.subr.bf16.mxu0 0
    %5941 = vmatpush1.bf16.msra.mxu0 0
    %5942 = vmatprep.mubr.bf16.mxu0 0
    %5943 = vmatmul.mubr.bf16.gmra.mrb[0].mxu0 %v5867
    %v5944 = vpop.f32.mrb[0].mxu0
    %v5945 = vadd.f32 0.0, %v5944
    %v5946 = vpop.f32.mrb[0].mxu0
    %v5947 = vpop.f32.mrb[0].mxu0
    %v5948 = vpop.f32.mrb[0].mxu0
    %5949 = vdwg.mxu0
    %v5951 = vrot.slane %v5904, 6
    %v5952 = vrot.slane %v5904, 7
    %v5955 = vadd.f32 %v1595, %v5951
    %v5956 = vadd.f32 %v1598, %v5952
    %v5957 = vxor.u32 %v5955, 2147483648
    %v5958 = vxor.u32 %v5956, 2147483648
    %v5959 = vmul.f32 %v5957, 1.442695
    %v5960 = vpow.pop %v5959
    %v5961 = vmul.f32 %v5958, 1.442695
    %v5962 = vpow.pop %v5961
    %v5963 = vadd.f32 %v5960, 1.0
    %v5964 = vadd.f32 %v5962, 1.0
    %v5965 = vrcp.pop %v5963
    %v5966 = vmul.f32 1.0, %v5965
    %v5967 = vrcp.pop %v5964
    %v5968 = vmul.f32 1.0, %v5967
    %v5970 = vrot.slane %v5906, 6
    %v5971 = vrot.slane %v5906, 7
    %v5974 = vadd.f32 %v1596, %v5970
    %v5975 = vadd.f32 %v1599, %v5971
    %v5976 = vxor.u32 %v5974, 2147483648
    %v5977 = vxor.u32 %v5975, 2147483648
    %v5978 = vmul.f32 %v5976, 1.442695
    %v5979 = vpow.pop %v5978
    %v5980 = vmul.f32 %v5977, 1.442695
    %v5981 = vpow.pop %v5980
    %v5982 = vadd.f32 %v5979, 1.0
    %v5983 = vadd.f32 %v5981, 1.0
    %v5984 = vrcp.pop %v5982
    %v5985 = vmul.f32 1.0, %v5984
    %v5986 = vrcp.pop %v5983
    %v5987 = vmul.f32 1.0, %v5986
    %v5988 = vadd.f32 %v5945, %v1755
    %v5990 = vrot.slane %v5988, 6
    %v5991 = vrot.slane %v5988, 7
    %v5994 = vmul.f32 %v5966, %v5990
    %v5995 = vmul.f32 %v5968, %v5991
    %v5996 = vadd.f32 %v1597, %v5994
    %v5997 = vadd.f32 %v1600, %v5995
    %v5998 = vtanh.pop %v5996
    %v5999 = vtanh.pop %v5997
    %v6000 = vsub.f32 1.0, %v5985
    %v6001 = vsub.f32 1.0, %v5987
    %v6002 = vmul.f32 %v6000, %v5998
    %v6003 = vmul.f32 %v6001, %v5999
    %v6006 = vrot.slane %v5368, 1
    %v6007 = vrot.slane %v5369, 1
    %v6010 = vmul.f32 %v5985, %v6006
    %v6011 = vmul.f32 %v5987, %v6007
    %v6012 = vadd.f32 %v6002, %v6010
    %v6013 = vadd.f32 %v6003, %v6011
    %v6014 = vmul.f32 %v5544, %v5700
    %v6015 = vmul.f32 %v5545, %v5701
    %v6018 = vrot.slane %v6014, 5
    %v6019 = vrot.slane %v6015, 5
    %v6022 = vmax.f32 %v5378, %v6018
    %v6023 = vmax.f32 %v5379, %v6019
    %v6024 = vmul.f32 %v5856, %v6012
    %v6025 = vmul.f32 %v5857, %v6013
    %v6028 = vrot.slane %v6024, 3
    %v6029 = vrot.slane %v6025, 3
    %v6032 = vmax.f32 %v5388, %v6028
    %v6033 = vmax.f32 %v5389, %v6029
    %v6034 = vpack.c.bf16 %v5544, %v5544
    %v6035 = vpack.c.bf16 %v5545, %v5545
    %v6038 = vunpack.c.l.b16 %v6034
    %v6039 = vunpack.c.l.b16 %v6035
    %v6040 = vrot.slane %v6038, 5
    %v6041 = vrot.slane %v6039, 4
    %v6042 = vsel %vm2830, %v6041, %v6040
    %v6043 = vpack.c.b16 %v6042, %v6042
    %6045 = vmatprep.subr.bf16.mxu0 %v1838
    %6046 = vmatpush1.bf16.msra.mxu0 %v1837
    %6047 = vmatprep.subr.bf16.mxu0 %v1841
    %6048 = vmatpush1.bf16.msra.mxu0 %v1840
    %6049 = vmatprep.subr.bf16.mxu0 %v1844
    %6050 = vmatpush1.bf16.msra.mxu0 %v1843
    %6051 = vmatprep.subr.bf16.mxu0 %v1847
    %6052 = vmatpush1.bf16.msra.mxu0 %v1846
    %6053 = vmatprep.subr.bf16.mxu0 %v1850
    %6054 = vmatpush1.bf16.msra.mxu0 %v1849
    %6055 = vmatprep.subr.bf16.mxu0 %v1853
    %6056 = vmatpush1.bf16.msra.mxu0 %v1852
    %6057 = vmatprep.subr.bf16.mxu0 %v1856
    %6058 = vmatpush1.bf16.msra.mxu0 %v1855
    %6059 = vmatprep.subr.bf16.mxu0 %v1859
    %6060 = vmatpush1.bf16.msra.mxu0 %v1858
    %6061 = vmatprep.subr.bf16.mxu0 0
    %6062 = vmatpush1.bf16.msra.mxu0 0
    %6063 = vmatprep.subr.bf16.mxu0 0
    %6064 = vmatpush1.bf16.msra.mxu0 0
    %6065 = vmatprep.subr.bf16.mxu0 0
    %6066 = vmatpush1.bf16.msra.mxu0 0
    %6067 = vmatprep.subr.bf16.mxu0 0
    %6068 = vmatpush1.bf16.msra.mxu0 0
    %6069 = vmatprep.subr.bf16.mxu0 0
    %6070 = vmatpush1.bf16.msra.mxu0 0
    %6071 = vmatprep.subr.bf16.mxu0 0
    %6072 = vmatpush1.bf16.msra.mxu0 0
    %6073 = vmatprep.subr.bf16.mxu0 0
    %6074 = vmatpush1.bf16.msra.mxu0 0
    %6075 = vmatprep.subr.bf16.mxu0 0
    %6076 = vmatpush1.bf16.msra.mxu0 0
    %6077 = vmatprep.mubr.bf16.mxu0 0
    %6078 = vmatmul.mubr.bf16.gmra.mrb[0].mxu0 %v6043
    %v6079 = vpop.f32.mrb[0].mxu0
    %v6080 = vadd.f32 0.0, %v6079
    %v6081 = vpop.f32.mrb[0].mxu0
    %v6082 = vadd.f32 0.0, %v6081
    %v6083 = vpop.f32.mrb[0].mxu0
    %v6084 = vpop.f32.mrb[0].mxu0
    %6085 = vdwg.mxu0
    %6086 = vmatprep.subr.bf16.mxu0 0
    %6087 = vmatpush1.bf16.msra.mxu0 %v1839
    %6088 = vmatprep.subr.bf16.mxu0 0
    %6089 = vmatpush1.bf16.msra.mxu0 %v1842
    %6090 = vmatprep.subr.bf16.mxu0 0
    %6091 = vmatpush1.bf16.msra.mxu0 %v1845
    %6092 = vmatprep.subr.bf16.mxu0 0
    %6093 = vmatpush1.bf16.msra.mxu0 %v1848
    %6094 = vmatprep.subr.bf16.mxu0 0
    %6095 = vmatpush1.bf16.msra.mxu0 %v1851
    %6096 = vmatprep.subr.bf16.mxu0 0
    %6097 = vmatpush1.bf16.msra.mxu0 %v1854
    %6098 = vmatprep.subr.bf16.mxu0 0
    %6099 = vmatpush1.bf16.msra.mxu0 %v1857
    %6100 = vmatprep.subr.bf16.mxu0 0
    %6101 = vmatpush1.bf16.msra.mxu0 %v1860
    %6102 = vmatprep.subr.bf16.mxu0 0
    %6103 = vmatpush1.bf16.msra.mxu0 0
    %6104 = vmatprep.subr.bf16.mxu0 0
    %6105 = vmatpush1.bf16.msra.mxu0 0
    %6106 = vmatprep.subr.bf16.mxu0 0
    %6107 = vmatpush1.bf16.msra.mxu0 0
    %6108 = vmatprep.subr.bf16.mxu0 0
    %6109 = vmatpush1.bf16.msra.mxu0 0
    %6110 = vmatprep.subr.bf16.mxu0 0
    %6111 = vmatpush1.bf16.msra.mxu0 0
    %6112 = vmatprep.subr.bf16.mxu0 0
    %6113 = vmatpush1.bf16.msra.mxu0 0
    %6114 = vmatprep.subr.bf16.mxu0 0
    %6115 = vmatpush1.bf16.msra.mxu0 0
    %6116 = vmatprep.subr.bf16.mxu0 0
    %6117 = vmatpush1.bf16.msra.mxu0 0
    %6118 = vmatprep.mubr.bf16.mxu0 0
    %6119 = vmatmul.mubr.bf16.gmra.mrb[0].mxu0 %v6043
    %v6120 = vpop.f32.mrb[0].mxu0
    %v6121 = vadd.f32 0.0, %v6120
    %v6122 = vpop.f32.mrb[0].mxu0
    %v6123 = vpop.f32.mrb[0].mxu0
    %v6124 = vpop.f32.mrb[0].mxu0
    %6125 = vdwg.mxu0
    %v6127 = vrot.slane %v6080, 2
    %v6128 = vrot.slane %v6080, 3
    %v6131 = vadd.f32 %v866, %v6127
    %v6132 = vadd.f32 %v870, %v6128
    %v6133 = vxor.u32 %v6131, 2147483648
    %v6134 = vxor.u32 %v6132, 2147483648
    %v6135 = vmul.f32 %v6133, 1.442695
    %v6136 = vpow.pop %v6135
    %v6137 = vmul.f32 %v6134, 1.442695
    %v6138 = vpow.pop %v6137
    %v6139 = vadd.f32 %v6136, 1.0
    %v6140 = vadd.f32 %v6138, 1.0
    %v6141 = vrcp.pop %v6139
    %v6142 = vmul.f32 1.0, %v6141
    %v6143 = vrcp.pop %v6140
    %v6144 = vmul.f32 1.0, %v6143
    %v6146 = vrot.slane %v6082, 2
    %v6147 = vrot.slane %v6082, 3
    %v6150 = vadd.f32 %v868, %v6146
    %v6151 = vadd.f32 %v872, %v6147
    %v6152 = vxor.u32 %v6150, 2147483648
    %v6153 = vxor.u32 %v6151, 2147483648
    %v6154 = vmul.f32 %v6152, 1.442695
    %v6155 = vpow.pop %v6154
    %v6156 = vmul.f32 %v6153, 1.442695
    %v6157 = vpow.pop %v6156
    %v6158 = vadd.f32 %v6155, 1.0
    %v6159 = vadd.f32 %v6157, 1.0
    %v6160 = vrcp.pop %v6158
    %v6161 = vmul.f32 1.0, %v6160
    %v6162 = vrcp.pop %v6159
    %v6163 = vmul.f32 1.0, %v6162
    %v6164 = vadd.f32 %v6121, %v1734
    %v6166 = vrot.slane %v6164, 2
    %v6167 = vrot.slane %v6164, 3
    %v6170 = vmul.f32 %v6142, %v6166
    %v6171 = vmul.f32 %v6144, %v6167
    %v6172 = vadd.f32 %v909, %v6170
    %v6173 = vadd.f32 %v912, %v6171
    %v6174 = vtanh.pop %v6172
    %v6175 = vtanh.pop %v6173
    %v6176 = vsub.f32 1.0, %v6161
    %v6177 = vsub.f32 1.0, %v6163
    %v6178 = vmul.f32 %v6176, %v6174
    %v6179 = vmul.f32 %v6177, %v6175
    %v6182 = vrot.slane %v5544, 7
    %v6183 = vrot.slane %v5545, 7
    %v6186 = vmul.f32 %v6161, %v6182
    %v6187 = vmul.f32 %v6163, %v6183
    %v6188 = vadd.f32 %v6178, %v6186
    %v6189 = vadd.f32 %v6179, %v6187
    %v6190 = vpack.c.bf16 %v5700, %v5700
    %v6191 = vpack.c.bf16 %v5701, %v5701
    %v6194 = vunpack.c.l.b16 %v6190
    %v6195 = vunpack.c.l.b16 %v6191
    %v6196 = vrot.slane %v6194, 5
    %v6197 = vrot.slane %v6195, 4
    %v6198 = vsel %vm2830, %v6197, %v6196
    %v6199 = vpack.c.b16 %v6198, %v6198
    %6201 = vmatprep.subr.bf16.mxu0 %v2102
    %6202 = vmatpush1.bf16.msra.mxu0 %v2101
    %6203 = vmatprep.subr.bf16.mxu0 %v2105
    %6204 = vmatpush1.bf16.msra.mxu0 %v2104
    %6205 = vmatprep.subr.bf16.mxu0 %v2108
    %6206 = vmatpush1.bf16.msra.mxu0 %v2107
    %6207 = vmatprep.subr.bf16.mxu0 %v2111
    %6208 = vmatpush1.bf16.msra.mxu0 %v2110
    %6209 = vmatprep.subr.bf16.mxu0 %v2114
    %6210 = vmatpush1.bf16.msra.mxu0 %v2113
    %6211 = vmatprep.subr.bf16.mxu0 %v2117
    %6212 = vmatpush1.bf16.msra.mxu0 %v2116
    %6213 = vmatprep.subr.bf16.mxu0 %v2120
    %6214 = vmatpush1.bf16.msra.mxu0 %v2119
    %6215 = vmatprep.subr.bf16.mxu0 %v2123
    %6216 = vmatpush1.bf16.msra.mxu0 %v2122
    %6217 = vmatprep.subr.bf16.mxu0 0
    %6218 = vmatpush1.bf16.msra.mxu0 0
    %6219 = vmatprep.subr.bf16.mxu0 0
    %6220 = vmatpush1.bf16.msra.mxu0 0
    %6221 = vmatprep.subr.bf16.mxu0 0
    %6222 = vmatpush1.bf16.msra.mxu0 0
    %6223 = vmatprep.subr.bf16.mxu0 0
    %6224 = vmatpush1.bf16.msra.mxu0 0
    %6225 = vmatprep.subr.bf16.mxu0 0
    %6226 = vmatpush1.bf16.msra.mxu0 0
    %6227 = vmatprep.subr.bf16.mxu0 0
    %6228 = vmatpush1.bf16.msra.mxu0 0
    %6229 = vmatprep.subr.bf16.mxu0 0
    %6230 = vmatpush1.bf16.msra.mxu0 0
    %6231 = vmatprep.subr.bf16.mxu0 0
    %6232 = vmatpush1.bf16.msra.mxu0 0
    %6233 = vmatprep.mubr.bf16.mxu0 0
    %6234 = vmatmul.mubr.bf16.gmra.mrb[0].mxu0 %v6199
    %v6235 = vpop.f32.mrb[0].mxu0
    %v6236 = vadd.f32 0.0, %v6235
    %v6237 = vpop.f32.mrb[0].mxu0
    %v6238 = vadd.f32 0.0, %v6237
    %v6239 = vpop.f32.mrb[0].mxu0
    %v6240 = vpop.f32.mrb[0].mxu0
    %6241 = vdwg.mxu0
    %6242 = vmatprep.subr.bf16.mxu0 0
    %6243 = vmatpush1.bf16.msra.mxu0 %v2103
    %6244 = vmatprep.subr.bf16.mxu0 0
    %6245 = vmatpush1.bf16.msra.mxu0 %v2106
    %6246 = vmatprep.subr.bf16.mxu0 0
    %6247 = vmatpush1.bf16.msra.mxu0 %v2109
    %6248 = vmatprep.subr.bf16.mxu0 0
    %6249 = vmatpush1.bf16.msra.mxu0 %v2112
    %6250 = vmatprep.subr.bf16.mxu0 0
    %6251 = vmatpush1.bf16.msra.mxu0 %v2115
    %6252 = vmatprep.subr.bf16.mxu0 0
    %6253 = vmatpush1.bf16.msra.mxu0 %v2118
    %6254 = vmatprep.subr.bf16.mxu0 0
    %6255 = vmatpush1.bf16.msra.mxu0 %v2121
    %6256 = vmatprep.subr.bf16.mxu0 0
    %6257 = vmatpush1.bf16.msra.mxu0 %v2124
    %6258 = vmatprep.subr.bf16.mxu0 0
    %6259 = vmatpush1.bf16.msra.mxu0 0
    %6260 = vmatprep.subr.bf16.mxu0 0
    %6261 = vmatpush1.bf16.msra.mxu0 0
    %6262 = vmatprep.subr.bf16.mxu0 0
    %6263 = vmatpush1.bf16.msra.mxu0 0
    %6264 = vmatprep.subr.bf16.mxu0 0
    %6265 = vmatpush1.bf16.msra.mxu0 0
    %6266 = vmatprep.subr.bf16.mxu0 0
    %6267 = vmatpush1.bf16.msra.mxu0 0
    %6268 = vmatprep.subr.bf16.mxu0 0
    %6269 = vmatpush1.bf16.msra.mxu0 0
    %6270 = vmatprep.subr.bf16.mxu0 0
    %6271 = vmatpush1.bf16.msra.mxu0 0
    %6272 = vmatprep.subr.bf16.mxu0 0
    %6273 = vmatpush1.bf16.msra.mxu0 0
    %6274 = vmatprep.mubr.bf16.mxu0 0
    %6275 = vmatmul.mubr.bf16.gmra.mrb[0].mxu0 %v6199
    %v6276 = vpop.f32.mrb[0].mxu0
    %v6277 = vadd.f32 0.0, %v6276
    %v6278 = vpop.f32.mrb[0].mxu0
    %v6279 = vpop.f32.mrb[0].mxu0
    %v6280 = vpop.f32.mrb[0].mxu0
    %6281 = vdwg.mxu0
    %v6283 = vrot.slane %v6236, 2
    %v6284 = vrot.slane %v6236, 3
    %v6287 = vadd.f32 %v1324, %v6283
    %v6288 = vadd.f32 %v1327, %v6284
    %v6289 = vxor.u32 %v6287, 2147483648
    %v6290 = vxor.u32 %v6288, 2147483648
    %v6291 = vmul.f32 %v6289, 1.442695
    %v6292 = vpow.pop %v6291
    %v6293 = vmul.f32 %v6290, 1.442695
    %v6294 = vpow.pop %v6293
    %v6295 = vadd.f32 %v6292, 1.0
    %v6296 = vadd.f32 %v6294, 1.0
    %v6297 = vrcp.pop %v6295
    %v6298 = vmul.f32 1.0, %v6297
    %v6299 = vrcp.pop %v6296
    %v6300 = vmul.f32 1.0, %v6299
    %v6302 = vrot.slane %v6238, 2
    %v6303 = vrot.slane %v6238, 3
    %v6306 = vadd.f32 %v1325, %v6302
    %v6307 = vadd.f32 %v1328, %v6303
    %v6308 = vxor.u32 %v6306, 2147483648
    %v6309 = vxor.u32 %v6307, 2147483648
    %v6310 = vmul.f32 %v6308, 1.442695
    %v6311 = vpow.pop %v6310
    %v6312 = vmul.f32 %v6309, 1.442695
    %v6313 = vpow.pop %v6312
    %v6314 = vadd.f32 %v6311, 1.0
    %v6315 = vadd.f32 %v6313, 1.0
    %v6316 = vrcp.pop %v6314
    %v6317 = vmul.f32 1.0, %v6316
    %v6318 = vrcp.pop %v6315
    %v6319 = vmul.f32 1.0, %v6318
    %v6320 = vadd.f32 %v6277, %v1748
    %v6322 = vrot.slane %v6320, 2
    %v6323 = vrot.slane %v6320, 3
    %v6326 = vmul.f32 %v6298, %v6322
    %v6327 = vmul.f32 %v6300, %v6323
    %v6328 = vadd.f32 %v1326, %v6326
    %v6329 = vadd.f32 %v1329, %v6327
    %v6330 = vtanh.pop %v6328
    %v6331 = vtanh.pop %v6329
    %v6332 = vsub.f32 1.0, %v6317
    %v6333 = vsub.f32 1.0, %v6319
    %v6334 = vmul.f32 %v6332, %v6330
    %v6335 = vmul.f32 %v6333, %v6331
    %v6338 = vrot.slane %v5700, 7
    %v6339 = vrot.slane %v5701, 7
    %v6342 = vmul.f32 %v6317, %v6338
    %v6343 = vmul.f32 %v6319, %v6339
    %v6344 = vadd.f32 %v6334, %v6342
    %v6345 = vadd.f32 %v6335, %v6343
    %v6346 = vpack.c.bf16 %v5856, %v5856
    %v6347 = vpack.c.bf16 %v5857, %v5857
    %v6350 = vunpack.c.l.b16 %v6346
    %v6351 = vunpack.c.l.b16 %v6347
    %v6352 = vrot.slane %v6350, 2
    %v6353 = vrot.slane %v6351, 1
    %v6354 = vsel %vm2830, %v6353, %v6352
    %v6355 = vpack.c.b16 %v6354, %v6354
    %6357 = vmatprep.subr.bf16.mxu0 %v2366
    %6358 = vmatpush1.bf16.msra.mxu0 %v2365
    %6359 = vmatprep.subr.bf16.mxu0 %v2369
    %6360 = vmatpush1.bf16.msra.mxu0 %v2368
    %6361 = vmatprep.subr.bf16.mxu0 %v2372
    %6362 = vmatpush1.bf16.msra.mxu0 %v2371
    %6363 = vmatprep.subr.bf16.mxu0 %v2375
    %6364 = vmatpush1.bf16.msra.mxu0 %v2374
    %6365 = vmatprep.subr.bf16.mxu0 %v2378
    %6366 = vmatpush1.bf16.msra.mxu0 %v2377
    %6367 = vmatprep.subr.bf16.mxu0 %v2381
    %6368 = vmatpush1.bf16.msra.mxu0 %v2380
    %6369 = vmatprep.subr.bf16.mxu0 %v2384
    %6370 = vmatpush1.bf16.msra.mxu0 %v2383
    %6371 = vmatprep.subr.bf16.mxu0 %v2387
    %6372 = vmatpush1.bf16.msra.mxu0 %v2386
    %6373 = vmatprep.subr.bf16.mxu0 0
    %6374 = vmatpush1.bf16.msra.mxu0 0
    %6375 = vmatprep.subr.bf16.mxu0 0
    %6376 = vmatpush1.bf16.msra.mxu0 0
    %6377 = vmatprep.subr.bf16.mxu0 0
    %6378 = vmatpush1.bf16.msra.mxu0 0
    %6379 = vmatprep.subr.bf16.mxu0 0
    %6380 = vmatpush1.bf16.msra.mxu0 0
    %6381 = vmatprep.subr.bf16.mxu0 0
    %6382 = vmatpush1.bf16.msra.mxu0 0
    %6383 = vmatprep.subr.bf16.mxu0 0
    %6384 = vmatpush1.bf16.msra.mxu0 0
    %6385 = vmatprep.subr.bf16.mxu0 0
    %6386 = vmatpush1.bf16.msra.mxu0 0
    %6387 = vmatprep.subr.bf16.mxu0 0
    %6388 = vmatpush1.bf16.msra.mxu0 0
    %6389 = vmatprep.mubr.bf16.mxu0 0
    %6390 = vmatmul.mubr.bf16.gmra.mrb[0].mxu0 %v6355
    %v6391 = vpop.f32.mrb[0].mxu0
    %v6392 = vadd.f32 0.0, %v6391
    %v6393 = vpop.f32.mrb[0].mxu0
    %v6394 = vadd.f32 0.0, %v6393
    %v6395 = vpop.f32.mrb[0].mxu0
    %v6396 = vpop.f32.mrb[0].mxu0
    %6397 = vdwg.mxu0
    %6398 = vmatprep.subr.bf16.mxu0 0
    %6399 = vmatpush1.bf16.msra.mxu0 %v2367
    %6400 = vmatprep.subr.bf16.mxu0 0
    %6401 = vmatpush1.bf16.msra.mxu0 %v2370
    %6402 = vmatprep.subr.bf16.mxu0 0
    %6403 = vmatpush1.bf16.msra.mxu0 %v2373
    %6404 = vmatprep.subr.bf16.mxu0 0
    %6405 = vmatpush1.bf16.msra.mxu0 %v2376
    %6406 = vmatprep.subr.bf16.mxu0 0
    %6407 = vmatpush1.bf16.msra.mxu0 %v2379
    %6408 = vmatprep.subr.bf16.mxu0 0
    %6409 = vmatpush1.bf16.msra.mxu0 %v2382
    %6410 = vmatprep.subr.bf16.mxu0 0
    %6411 = vmatpush1.bf16.msra.mxu0 %v2385
    %6412 = vmatprep.subr.bf16.mxu0 0
    %6413 = vmatpush1.bf16.msra.mxu0 %v2388
    %6414 = vmatprep.subr.bf16.mxu0 0
    %6415 = vmatpush1.bf16.msra.mxu0 0
    %6416 = vmatprep.subr.bf16.mxu0 0
    %6417 = vmatpush1.bf16.msra.mxu0 0
    %6418 = vmatprep.subr.bf16.mxu0 0
    %6419 = vmatpush1.bf16.msra.mxu0 0
    %6420 = vmatprep.subr.bf16.mxu0 0
    %6421 = vmatpush1.bf16.msra.mxu0 0
    %6422 = vmatprep.subr.bf16.mxu0 0
    %6423 = vmatpush1.bf16.msra.mxu0 0
    %6424 = vmatprep.subr.bf16.mxu0 0
    %6425 = vmatpush1.bf16.msra.mxu0 0
    %6426 = vmatprep.subr.bf16.mxu0 0
    %6427 = vmatpush1.bf16.msra.mxu0 0
    %6428 = vmatprep.subr.bf16.mxu0 0
    %6429 = vmatpush1.bf16.msra.mxu0 0
    %6430 = vmatprep.mubr.bf16.mxu0 0
    %6431 = vmatmul.mubr.bf16.gmra.mrb[0].mxu0 %v6355
    %v6432 = vpop.f32.mrb[0].mxu0
    %v6433 = vadd.f32 0.0, %v6432
    %v6434 = vpop.f32.mrb[0].mxu0
    %v6435 = vpop.f32.mrb[0].mxu0
    %v6436 = vpop.f32.mrb[0].mxu0
    %6437 = vdwg.mxu0
    %v6439 = vrot.slane %v6392, 7
    %v6442 = vadd.f32 %v1007, %v6439
    %v6443 = vadd.f32 %v1011, %v6392
    %v6444 = vxor.u32 %v6442, 2147483648
    %v6445 = vxor.u32 %v6443, 2147483648
    %v6446 = vmul.f32 %v6444, 1.442695
    %v6447 = vpow.pop %v6446
    %v6448 = vmul.f32 %v6445, 1.442695
    %v6449 = vpow.pop %v6448
    %v6450 = vadd.f32 %v6447, 1.0
    %v6451 = vadd.f32 %v6449, 1.0
    %v6452 = vrcp.pop %v6450
    %v6453 = vmul.f32 1.0, %v6452
    %v6454 = vrcp.pop %v6451
    %v6455 = vmul.f32 1.0, %v6454
    %v6457 = vrot.slane %v6394, 7
    %v6460 = vadd.f32 %v1009, %v6457
    %v6461 = vadd.f32 %v1013, %v6394
    %v6462 = vxor.u32 %v6460, 2147483648
    %v6463 = vxor.u32 %v6461, 2147483648
    %v6464 = vmul.f32 %v6462, 1.442695
    %v6465 = vpow.pop %v6464
    %v6466 = vmul.f32 %v6463, 1.442695
    %v6467 = vpow.pop %v6466
    %v6468 = vadd.f32 %v6465, 1.0
    %v6469 = vadd.f32 %v6467, 1.0
    %v6470 = vrcp.pop %v6468
    %v6471 = vmul.f32 1.0, %v6470
    %v6472 = vrcp.pop %v6469
    %v6473 = vmul.f32 1.0, %v6472
    %v6474 = vadd.f32 %v6433, %v1741
    %v6476 = vrot.slane %v6474, 7
    %v6479 = vmul.f32 %v6453, %v6476
    %v6480 = vmul.f32 %v6455, %v6474
    %v6481 = vadd.f32 %v1050, %v6479
    %v6482 = vadd.f32 %v1053, %v6480
    %v6483 = vtanh.pop %v6481
    %v6484 = vtanh.pop %v6482
    %v6485 = vsub.f32 1.0, %v6471
    %v6486 = vsub.f32 1.0, %v6473
    %v6487 = vmul.f32 %v6485, %v6483
    %v6488 = vmul.f32 %v6486, %v6484
    %v6491 = vrot.slane %v5856, 1
    %v6492 = vrot.slane %v5857, 1
    %v6495 = vmul.f32 %v6471, %v6491
    %v6496 = vmul.f32 %v6473, %v6492
    %v6497 = vadd.f32 %v6487, %v6495
    %v6498 = vadd.f32 %v6488, %v6496
    %v6499 = vpack.c.bf16 %v6012, %v6012
    %v6500 = vpack.c.bf16 %v6013, %v6013
    %v6503 = vunpack.c.l.b16 %v6499
    %v6504 = vunpack.c.l.b16 %v6500
    %v6505 = vrot.slane %v6503, 2
    %v6506 = vrot.slane %v6504, 1
    %v6507 = vsel %vm2830, %v6506, %v6505
    %v6508 = vpack.c.b16 %v6507, %v6507
    %6510 = vmatprep.subr.bf16.mxu0 %v2633
    %6511 = vmatpush1.bf16.msra.mxu0 %v2632
    %6512 = vmatprep.subr.bf16.mxu0 %v2636
    %6513 = vmatpush1.bf16.msra.mxu0 %v2635
    %6514 = vmatprep.subr.bf16.mxu0 %v2639
    %6515 = vmatpush1.bf16.msra.mxu0 %v2638
    %6516 = vmatprep.subr.bf16.mxu0 %v2642
    %6517 = vmatpush1.bf16.msra.mxu0 %v2641
    %6518 = vmatprep.subr.bf16.mxu0 %v2645
    %6519 = vmatpush1.bf16.msra.mxu0 %v2644
    %6520 = vmatprep.subr.bf16.mxu0 %v2648
    %6521 = vmatpush1.bf16.msra.mxu0 %v2647
    %6522 = vmatprep.subr.bf16.mxu0 %v2651
    %6523 = vmatpush1.bf16.msra.mxu0 %v2650
    %6524 = vmatprep.subr.bf16.mxu0 %v2654
    %6525 = vmatpush1.bf16.msra.mxu0 %v2653
    %6526 = vmatprep.subr.bf16.mxu0 0
    %6527 = vmatpush1.bf16.msra.mxu0 0
    %6528 = vmatprep.subr.bf16.mxu0 0
    %6529 = vmatpush1.bf16.msra.mxu0 0
    %6530 = vmatprep.subr.bf16.mxu0 0
    %6531 = vmatpush1.bf16.msra.mxu0 0
    %6532 = vmatprep.subr.bf16.mxu0 0
    %6533 = vmatpush1.bf16.msra.mxu0 0
    %6534 = vmatprep.subr.bf16.mxu0 0
    %6535 = vmatpush1.bf16.msra.mxu0 0
    %6536 = vmatprep.subr.bf16.mxu0 0
    %6537 = vmatpush1.bf16.msra.mxu0 0
    %6538 = vmatprep.subr.bf16.mxu0 0
    %6539 = vmatpush1.bf16.msra.mxu0 0
    %6540 = vmatprep.subr.bf16.mxu0 0
    %6541 = vmatpush1.bf16.msra.mxu0 0
    %6542 = vmatprep.mubr.bf16.mxu0 0
    %6543 = vmatmul.mubr.bf16.gmra.mrb[0].mxu0 %v6508
    %v6544 = vpop.f32.mrb[0].mxu0
    %v6545 = vadd.f32 0.0, %v6544
    %v6546 = vpop.f32.mrb[0].mxu0
    %v6547 = vadd.f32 0.0, %v6546
    %v6548 = vpop.f32.mrb[0].mxu0
    %v6549 = vpop.f32.mrb[0].mxu0
    %6550 = vdwg.mxu0
    %6551 = vmatprep.subr.bf16.mxu0 0
    %6552 = vmatpush1.bf16.msra.mxu0 %v2634
    %6553 = vmatprep.subr.bf16.mxu0 0
    %6554 = vmatpush1.bf16.msra.mxu0 %v2637
    %6555 = vmatprep.subr.bf16.mxu0 0
    %6556 = vmatpush1.bf16.msra.mxu0 %v2640
    %6557 = vmatprep.subr.bf16.mxu0 0
    %6558 = vmatpush1.bf16.msra.mxu0 %v2643
    %6559 = vmatprep.subr.bf16.mxu0 0
    %6560 = vmatpush1.bf16.msra.mxu0 %v2646
    %6561 = vmatprep.subr.bf16.mxu0 0
    %6562 = vmatpush1.bf16.msra.mxu0 %v2649
    %6563 = vmatprep.subr.bf16.mxu0 0
    %6564 = vmatpush1.bf16.msra.mxu0 %v2652
    %6565 = vmatprep.subr.bf16.mxu0 0
    %6566 = vmatpush1.bf16.msra.mxu0 %v2655
    %6567 = vmatprep.subr.bf16.mxu0 0
    %6568 = vmatpush1.bf16.msra.mxu0 0
    %6569 = vmatprep.subr.bf16.mxu0 0
    %6570 = vmatpush1.bf16.msra.mxu0 0
    %6571 = vmatprep.subr.bf16.mxu0 0
    %6572 = vmatpush1.bf16.msra.mxu0 0
    %6573 = vmatprep.subr.bf16.mxu0 0
    %6574 = vmatpush1.bf16.msra.mxu0 0
    %6575 = vmatprep.subr.bf16.mxu0 0
    %6576 = vmatpush1.bf16.msra.mxu0 0
    %6577 = vmatprep.subr.bf16.mxu0 0
    %6578 = vmatpush1.bf16.msra.mxu0 0
    %6579 = vmatprep.subr.bf16.mxu0 0
    %6580 = vmatpush1.bf16.msra.mxu0 0
    %6581 = vmatprep.subr.bf16.mxu0 0
    %6582 = vmatpush1.bf16.msra.mxu0 0
    %6583 = vmatprep.mubr.bf16.mxu0 0
    %6584 = vmatmul.mubr.bf16.gmra.mrb[0].mxu0 %v6508
    %v6585 = vpop.f32.mrb[0].mxu0
    %v6586 = vadd.f32 0.0, %v6585
    %v6587 = vpop.f32.mrb[0].mxu0
    %v6588 = vpop.f32.mrb[0].mxu0
    %v6589 = vpop.f32.mrb[0].mxu0
    %6590 = vdwg.mxu0
    %v6592 = vrot.slane %v6545, 7
    %v6595 = vadd.f32 %v1595, %v6592
    %v6596 = vadd.f32 %v1598, %v6545
    %v6597 = vxor.u32 %v6595, 2147483648
    %v6598 = vxor.u32 %v6596, 2147483648
    %v6599 = vmul.f32 %v6597, 1.442695
    %v6600 = vpow.pop %v6599
    %v6601 = vmul.f32 %v6598, 1.442695
    %v6602 = vpow.pop %v6601
    %v6603 = vadd.f32 %v6600, 1.0
    %v6604 = vadd.f32 %v6602, 1.0
    %v6605 = vrcp.pop %v6603
    %v6606 = vmul.f32 1.0, %v6605
    %v6607 = vrcp.pop %v6604
    %v6608 = vmul.f32 1.0, %v6607
    %v6610 = vrot.slane %v6547, 7
    %v6613 = vadd.f32 %v1596, %v6610
    %v6614 = vadd.f32 %v1599, %v6547
    %v6615 = vxor.u32 %v6613, 2147483648
    %v6616 = vxor.u32 %v6614, 2147483648
    %v6617 = vmul.f32 %v6615, 1.442695
    %v6618 = vpow.pop %v6617
    %v6619 = vmul.f32 %v6616, 1.442695
    %v6620 = vpow.pop %v6619
    %v6621 = vadd.f32 %v6618, 1.0
    %v6622 = vadd.f32 %v6620, 1.0
    %v6623 = vrcp.pop %v6621
    %v6624 = vmul.f32 1.0, %v6623
    %v6625 = vrcp.pop %v6622
    %v6626 = vmul.f32 1.0, %v6625
    %v6627 = vadd.f32 %v6586, %v1755
    %v6629 = vrot.slane %v6627, 7
    %v6632 = vmul.f32 %v6606, %v6629
    %v6633 = vmul.f32 %v6608, %v6627
    %v6634 = vadd.f32 %v1597, %v6632
    %v6635 = vadd.f32 %v1600, %v6633
    %v6636 = vtanh.pop %v6634
    %v6637 = vtanh.pop %v6635
    %v6638 = vsub.f32 1.0, %v6624
    %v6639 = vsub.f32 1.0, %v6626
    %v6640 = vmul.f32 %v6638, %v6636
    %v6641 = vmul.f32 %v6639, %v6637
    %v6644 = vrot.slane %v6012, 1
    %v6645 = vrot.slane %v6013, 1
    %v6648 = vmul.f32 %v6624, %v6644
    %v6649 = vmul.f32 %v6626, %v6645
    %v6650 = vadd.f32 %v6640, %v6648
    %v6651 = vadd.f32 %v6641, %v6649
    %v6652 = vmul.f32 %v6188, %v6344
    %v6653 = vmul.f32 %v6189, %v6345
    %v6656 = vrot.slane %v6652, 6
    %v6657 = vrot.slane %v6653, 6
    %v6660 = vmax.f32 %v6022, %v6656
    %v6661 = vmax.f32 %v6023, %v6657
    %v6662 = vmul.f32 %v6497, %v6650
    %v6663 = vmul.f32 %v6498, %v6651
    %v6666 = vrot.slane %v6662, 2
    %v6667 = vrot.slane %v6663, 2
    %v6670 = vmax.f32 %v6032, %v6666
    %v6671 = vmax.f32 %v6033, %v6667
    %v6672 = vpack.c.bf16 %v6188, %v6188
    %v6673 = vpack.c.bf16 %v6189, %v6189
    %v6676 = vunpack.c.l.b16 %v6672
    %v6677 = vunpack.c.l.b16 %v6673
    %v6678 = vrot.slane %v6676, 6
    %v6679 = vrot.slane %v6677, 5
    %v6680 = vsel %vm2830, %v6679, %v6678
    %v6681 = vpack.c.b16 %v6680, %v6680
    %6683 = vmatprep.subr.bf16.mxu0 %v1838
    %6684 = vmatpush1.bf16.msra.mxu0 %v1837
    %6685 = vmatprep.subr.bf16.mxu0 %v1841
    %6686 = vmatpush1.bf16.msra.mxu0 %v1840
    %6687 = vmatprep.subr.bf16.mxu0 %v1844
    %6688 = vmatpush1.bf16.msra.mxu0 %v1843
    %6689 = vmatprep.subr.bf16.mxu0 %v1847
    %6690 = vmatpush1.bf16.msra.mxu0 %v1846
    %6691 = vmatprep.subr.bf16.mxu0 %v1850
    %6692 = vmatpush1.bf16.msra.mxu0 %v1849
    %6693 = vmatprep.subr.bf16.mxu0 %v1853
    %6694 = vmatpush1.bf16.msra.mxu0 %v1852
    %6695 = vmatprep.subr.bf16.mxu0 %v1856
    %6696 = vmatpush1.bf16.msra.mxu0 %v1855
    %6697 = vmatprep.subr.bf16.mxu0 %v1859
    %6698 = vmatpush1.bf16.msra.mxu0 %v1858
    %6699 = vmatprep.subr.bf16.mxu0 0
    %6700 = vmatpush1.bf16.msra.mxu0 0
    %6701 = vmatprep.subr.bf16.mxu0 0
    %6702 = vmatpush1.bf16.msra.mxu0 0
    %6703 = vmatprep.subr.bf16.mxu0 0
    %6704 = vmatpush1.bf16.msra.mxu0 0
    %6705 = vmatprep.subr.bf16.mxu0 0
    %6706 = vmatpush1.bf16.msra.mxu0 0
    %6707 = vmatprep.subr.bf16.mxu0 0
    %6708 = vmatpush1.bf16.msra.mxu0 0
    %6709 = vmatprep.subr.bf16.mxu0 0
    %6710 = vmatpush1.bf16.msra.mxu0 0
    %6711 = vmatprep.subr.bf16.mxu0 0
    %6712 = vmatpush1.bf16.msra.mxu0 0
    %6713 = vmatprep.subr.bf16.mxu0 0
    %6714 = vmatpush1.bf16.msra.mxu0 0
    %6715 = vmatprep.mubr.bf16.mxu0 0
    %6716 = vmatmul.mubr.bf16.gmra.mrb[0].mxu0 %v6681
    %v6717 = vpop.f32.mrb[0].mxu0
    %v6718 = vadd.f32 0.0, %v6717
    %v6719 = vpop.f32.mrb[0].mxu0
    %v6720 = vadd.f32 0.0, %v6719
    %v6721 = vpop.f32.mrb[0].mxu0
    %v6722 = vpop.f32.mrb[0].mxu0
    %6723 = vdwg.mxu0
    %6724 = vmatprep.subr.bf16.mxu0 0
    %6725 = vmatpush1.bf16.msra.mxu0 %v1839
    %6726 = vmatprep.subr.bf16.mxu0 0
    %6727 = vmatpush1.bf16.msra.mxu0 %v1842
    %6728 = vmatprep.subr.bf16.mxu0 0
    %6729 = vmatpush1.bf16.msra.mxu0 %v1845
    %6730 = vmatprep.subr.bf16.mxu0 0
    %6731 = vmatpush1.bf16.msra.mxu0 %v1848
    %6732 = vmatprep.subr.bf16.mxu0 0
    %6733 = vmatpush1.bf16.msra.mxu0 %v1851
    %6734 = vmatprep.subr.bf16.mxu0 0
    %6735 = vmatpush1.bf16.msra.mxu0 %v1854
    %6736 = vmatprep.subr.bf16.mxu0 0
    %6737 = vmatpush1.bf16.msra.mxu0 %v1857
    %6738 = vmatprep.subr.bf16.mxu0 0
    %6739 = vmatpush1.bf16.msra.mxu0 %v1860
    %6740 = vmatprep.subr.bf16.mxu0 0
    %6741 = vmatpush1.bf16.msra.mxu0 0
    %6742 = vmatprep.subr.bf16.mxu0 0
    %6743 = vmatpush1.bf16.msra.mxu0 0
    %6744 = vmatprep.subr.bf16.mxu0 0
    %6745 = vmatpush1.bf16.msra.mxu0 0
    %6746 = vmatprep.subr.bf16.mxu0 0
    %6747 = vmatpush1.bf16.msra.mxu0 0
    %6748 = vmatprep.subr.bf16.mxu0 0
    %6749 = vmatpush1.bf16.msra.mxu0 0
    %6750 = vmatprep.subr.bf16.mxu0 0
    %6751 = vmatpush1.bf16.msra.mxu0 0
    %6752 = vmatprep.subr.bf16.mxu0 0
    %6753 = vmatpush1.bf16.msra.mxu0 0
    %6754 = vmatprep.subr.bf16.mxu0 0
    %6755 = vmatpush1.bf16.msra.mxu0 0
    %6756 = vmatprep.mubr.bf16.mxu0 0
    %6757 = vmatmul.mubr.bf16.gmra.mrb[0].mxu0 %v6681
    %v6758 = vpop.f32.mrb[0].mxu0
    %v6759 = vadd.f32 0.0, %v6758
    %v6760 = vpop.f32.mrb[0].mxu0
    %v6761 = vpop.f32.mrb[0].mxu0
    %v6762 = vpop.f32.mrb[0].mxu0
    %6763 = vdwg.mxu0
    %v6765 = vrot.slane %v6718, 1
    %v6766 = vrot.slane %v6718, 2
    %v6769 = vadd.f32 %v866, %v6765
    %v6770 = vadd.f32 %v870, %v6766
    %v6771 = vxor.u32 %v6769, 2147483648
    %v6772 = vxor.u32 %v6770, 2147483648
    %v6773 = vmul.f32 %v6771, 1.442695
    %v6774 = vpow.pop %v6773
    %v6775 = vmul.f32 %v6772, 1.442695
    %v6776 = vpow.pop %v6775
    %v6777 = vadd.f32 %v6774, 1.0
    %v6778 = vadd.f32 %v6776, 1.0
    %v6779 = vrcp.pop %v6777
    %v6780 = vmul.f32 1.0, %v6779
    %v6781 = vrcp.pop %v6778
    %v6782 = vmul.f32 1.0, %v6781
    %v6784 = vrot.slane %v6720, 1
    %v6785 = vrot.slane %v6720, 2
    %v6788 = vadd.f32 %v868, %v6784
    %v6789 = vadd.f32 %v872, %v6785
    %v6790 = vxor.u32 %v6788, 2147483648
    %v6791 = vxor.u32 %v6789, 2147483648
    %v6792 = vmul.f32 %v6790, 1.442695
    %v6793 = vpow.pop %v6792
    %v6794 = vmul.f32 %v6791, 1.442695
    %v6795 = vpow.pop %v6794
    %v6796 = vadd.f32 %v6793, 1.0
    %v6797 = vadd.f32 %v6795, 1.0
    %v6798 = vrcp.pop %v6796
    %v6799 = vmul.f32 1.0, %v6798
    %v6800 = vrcp.pop %v6797
    %v6801 = vmul.f32 1.0, %v6800
    %v6802 = vadd.f32 %v6759, %v1734
    %v6804 = vrot.slane %v6802, 1
    %v6805 = vrot.slane %v6802, 2
    %v6808 = vmul.f32 %v6780, %v6804
    %v6809 = vmul.f32 %v6782, %v6805
    %v6810 = vadd.f32 %v909, %v6808
    %v6811 = vadd.f32 %v912, %v6809
    %v6812 = vtanh.pop %v6810
    %v6813 = vtanh.pop %v6811
    %v6814 = vsub.f32 1.0, %v6799
    %v6815 = vsub.f32 1.0, %v6801
    %v6816 = vmul.f32 %v6814, %v6812
    %v6817 = vmul.f32 %v6815, %v6813
    %v6820 = vrot.slane %v6188, 7
    %v6821 = vrot.slane %v6189, 7
    %v6824 = vmul.f32 %v6799, %v6820
    %v6825 = vmul.f32 %v6801, %v6821
    %v6826 = vadd.f32 %v6816, %v6824
    %v6827 = vadd.f32 %v6817, %v6825
    %v6828 = vpack.c.bf16 %v6344, %v6344
    %v6829 = vpack.c.bf16 %v6345, %v6345
    %v6832 = vunpack.c.l.b16 %v6828
    %v6833 = vunpack.c.l.b16 %v6829
    %v6834 = vrot.slane %v6832, 6
    %v6835 = vrot.slane %v6833, 5
    %v6836 = vsel %vm2830, %v6835, %v6834
    %v6837 = vpack.c.b16 %v6836, %v6836
    %6839 = vmatprep.subr.bf16.mxu0 %v2102
    %6840 = vmatpush1.bf16.msra.mxu0 %v2101
    %6841 = vmatprep.subr.bf16.mxu0 %v2105
    %6842 = vmatpush1.bf16.msra.mxu0 %v2104
    %6843 = vmatprep.subr.bf16.mxu0 %v2108
    %6844 = vmatpush1.bf16.msra.mxu0 %v2107
    %6845 = vmatprep.subr.bf16.mxu0 %v2111
    %6846 = vmatpush1.bf16.msra.mxu0 %v2110
    %6847 = vmatprep.subr.bf16.mxu0 %v2114
    %6848 = vmatpush1.bf16.msra.mxu0 %v2113
    %6849 = vmatprep.subr.bf16.mxu0 %v2117
    %6850 = vmatpush1.bf16.msra.mxu0 %v2116
    %6851 = vmatprep.subr.bf16.mxu0 %v2120
    %6852 = vmatpush1.bf16.msra.mxu0 %v2119
    %6853 = vmatprep.subr.bf16.mxu0 %v2123
    %6854 = vmatpush1.bf16.msra.mxu0 %v2122
    %6855 = vmatprep.subr.bf16.mxu0 0
    %6856 = vmatpush1.bf16.msra.mxu0 0
    %6857 = vmatprep.subr.bf16.mxu0 0
    %6858 = vmatpush1.bf16.msra.mxu0 0
    %6859 = vmatprep.subr.bf16.mxu0 0
    %6860 = vmatpush1.bf16.msra.mxu0 0
    %6861 = vmatprep.subr.bf16.mxu0 0
    %6862 = vmatpush1.bf16.msra.mxu0 0
    %6863 = vmatprep.subr.bf16.mxu0 0
    %6864 = vmatpush1.bf16.msra.mxu0 0
    %6865 = vmatprep.subr.bf16.mxu0 0
    %6866 = vmatpush1.bf16.msra.mxu0 0
    %6867 = vmatprep.subr.bf16.mxu0 0
    %6868 = vmatpush1.bf16.msra.mxu0 0
    %6869 = vmatprep.subr.bf16.mxu0 0
    %6870 = vmatpush1.bf16.msra.mxu0 0
    %6871 = vmatprep.mubr.bf16.mxu0 0
    %6872 = vmatmul.mubr.bf16.gmra.mrb[0].mxu0 %v6837
    %v6873 = vpop.f32.mrb[0].mxu0
    %v6874 = vadd.f32 0.0, %v6873
    %v6875 = vpop.f32.mrb[0].mxu0
    %v6876 = vadd.f32 0.0, %v6875
    %v6877 = vpop.f32.mrb[0].mxu0
    %v6878 = vpop.f32.mrb[0].mxu0
    %6879 = vdwg.mxu0
    %6880 = vmatprep.subr.bf16.mxu0 0
    %6881 = vmatpush1.bf16.msra.mxu0 %v2103
    %6882 = vmatprep.subr.bf16.mxu0 0
    %6883 = vmatpush1.bf16.msra.mxu0 %v2106
    %6884 = vmatprep.subr.bf16.mxu0 0
    %6885 = vmatpush1.bf16.msra.mxu0 %v2109
    %6886 = vmatprep.subr.bf16.mxu0 0
    %6887 = vmatpush1.bf16.msra.mxu0 %v2112
    %6888 = vmatprep.subr.bf16.mxu0 0
    %6889 = vmatpush1.bf16.msra.mxu0 %v2115
    %6890 = vmatprep.subr.bf16.mxu0 0
    %6891 = vmatpush1.bf16.msra.mxu0 %v2118
    %6892 = vmatprep.subr.bf16.mxu0 0
    %6893 = vmatpush1.bf16.msra.mxu0 %v2121
    %6894 = vmatprep.subr.bf16.mxu0 0
    %6895 = vmatpush1.bf16.msra.mxu0 %v2124
    %6896 = vmatprep.subr.bf16.mxu0 0
    %6897 = vmatpush1.bf16.msra.mxu0 0
    %6898 = vmatprep.subr.bf16.mxu0 0
    %6899 = vmatpush1.bf16.msra.mxu0 0
    %6900 = vmatprep.subr.bf16.mxu0 0
    %6901 = vmatpush1.bf16.msra.mxu0 0
    %6902 = vmatprep.subr.bf16.mxu0 0
    %6903 = vmatpush1.bf16.msra.mxu0 0
    %6904 = vmatprep.subr.bf16.mxu0 0
    %6905 = vmatpush1.bf16.msra.mxu0 0
    %6906 = vmatprep.subr.bf16.mxu0 0
    %6907 = vmatpush1.bf16.msra.mxu0 0
    %6908 = vmatprep.subr.bf16.mxu0 0
    %6909 = vmatpush1.bf16.msra.mxu0 0
    %6910 = vmatprep.subr.bf16.mxu0 0
    %6911 = vmatpush1.bf16.msra.mxu0 0
    %6912 = vmatprep.mubr.bf16.mxu0 0
    %6913 = vmatmul.mubr.bf16.gmra.mrb[0].mxu0 %v6837
    %v6914 = vpop.f32.mrb[0].mxu0
    %v6915 = vadd.f32 0.0, %v6914
    %v6916 = vpop.f32.mrb[0].mxu0
    %v6917 = vpop.f32.mrb[0].mxu0
    %v6918 = vpop.f32.mrb[0].mxu0
    %6919 = vdwg.mxu0
    %v6921 = vrot.slane %v6874, 1
    %v6922 = vrot.slane %v6874, 2
    %v6925 = vadd.f32 %v1324, %v6921
    %v6926 = vadd.f32 %v1327, %v6922
    %v6927 = vxor.u32 %v6925, 2147483648
    %v6928 = vxor.u32 %v6926, 2147483648
    %v6929 = vmul.f32 %v6927, 1.442695
    %v6930 = vpow.pop %v6929
    %v6931 = vmul.f32 %v6928, 1.442695
    %v6932 = vpow.pop %v6931
    %v6933 = vadd.f32 %v6930, 1.0
    %v6934 = vadd.f32 %v6932, 1.0
    %v6935 = vrcp.pop %v6933
    %v6936 = vmul.f32 1.0, %v6935
    %v6937 = vrcp.pop %v6934
    %v6938 = vmul.f32 1.0, %v6937
    %v6940 = vrot.slane %v6876, 1
    %v6941 = vrot.slane %v6876, 2
    %v6944 = vadd.f32 %v1325, %v6940
    %v6945 = vadd.f32 %v1328, %v6941
    %v6946 = vxor.u32 %v6944, 2147483648
    %v6947 = vxor.u32 %v6945, 2147483648
    %v6948 = vmul.f32 %v6946, 1.442695
    %v6949 = vpow.pop %v6948
    %v6950 = vmul.f32 %v6947, 1.442695
    %v6951 = vpow.pop %v6950
    %v6952 = vadd.f32 %v6949, 1.0
    %v6953 = vadd.f32 %v6951, 1.0
    %v6954 = vrcp.pop %v6952
    %v6955 = vmul.f32 1.0, %v6954
    %v6956 = vrcp.pop %v6953
    %v6957 = vmul.f32 1.0, %v6956
    %v6958 = vadd.f32 %v6915, %v1748
    %v6960 = vrot.slane %v6958, 1
    %v6961 = vrot.slane %v6958, 2
    %v6964 = vmul.f32 %v6936, %v6960
    %v6965 = vmul.f32 %v6938, %v6961
    %v6966 = vadd.f32 %v1326, %v6964
    %v6967 = vadd.f32 %v1329, %v6965
    %v6968 = vtanh.pop %v6966
    %v6969 = vtanh.pop %v6967
    %v6970 = vsub.f32 1.0, %v6955
    %v6971 = vsub.f32 1.0, %v6957
    %v6972 = vmul.f32 %v6970, %v6968
    %v6973 = vmul.f32 %v6971, %v6969
    %v6976 = vrot.slane %v6344, 7
    %v6977 = vrot.slane %v6345, 7
    %v6980 = vmul.f32 %v6955, %v6976
    %v6981 = vmul.f32 %v6957, %v6977
    %v6982 = vadd.f32 %v6972, %v6980
    %v6983 = vadd.f32 %v6973, %v6981
    %v6984 = vpack.c.bf16 %v6497, %v6497
    %v6985 = vpack.c.bf16 %v6498, %v6498
    %v6988 = vunpack.c.l.b16 %v6984
    %v6989 = vunpack.c.l.b16 %v6985
    %v6990 = vrot.slane %v6988, 1
    %v6991 = vsel %vm2830, %v6989, %v6990
    %v6992 = vpack.c.b16 %v6991, %v6991
    %6994 = vmatprep.subr.bf16.mxu0 %v2366
    %6995 = vmatpush1.bf16.msra.mxu0 %v2365
    %6996 = vmatprep.subr.bf16.mxu0 %v2369
    %6997 = vmatpush1.bf16.msra.mxu0 %v2368
    %6998 = vmatprep.subr.bf16.mxu0 %v2372
    %6999 = vmatpush1.bf16.msra.mxu0 %v2371
    %7000 = vmatprep.subr.bf16.mxu0 %v2375
    %7001 = vmatpush1.bf16.msra.mxu0 %v2374
    %7002 = vmatprep.subr.bf16.mxu0 %v2378
    %7003 = vmatpush1.bf16.msra.mxu0 %v2377
    %7004 = vmatprep.subr.bf16.mxu0 %v2381
    %7005 = vmatpush1.bf16.msra.mxu0 %v2380
    %7006 = vmatprep.subr.bf16.mxu0 %v2384
    %7007 = vmatpush1.bf16.msra.mxu0 %v2383
    %7008 = vmatprep.subr.bf16.mxu0 %v2387
    %7009 = vmatpush1.bf16.msra.mxu0 %v2386
    %7010 = vmatprep.subr.bf16.mxu0 0
    %7011 = vmatpush1.bf16.msra.mxu0 0
    %7012 = vmatprep.subr.bf16.mxu0 0
    %7013 = vmatpush1.bf16.msra.mxu0 0
    %7014 = vmatprep.subr.bf16.mxu0 0
    %7015 = vmatpush1.bf16.msra.mxu0 0
    %7016 = vmatprep.subr.bf16.mxu0 0
    %7017 = vmatpush1.bf16.msra.mxu0 0
    %7018 = vmatprep.subr.bf16.mxu0 0
    %7019 = vmatpush1.bf16.msra.mxu0 0
    %7020 = vmatprep.subr.bf16.mxu0 0
    %7021 = vmatpush1.bf16.msra.mxu0 0
    %7022 = vmatprep.subr.bf16.mxu0 0
    %7023 = vmatpush1.bf16.msra.mxu0 0
    %7024 = vmatprep.subr.bf16.mxu0 0
    %7025 = vmatpush1.bf16.msra.mxu0 0
    %7026 = vmatprep.mubr.bf16.mxu0 0
    %7027 = vmatmul.mubr.bf16.gmra.mrb[0].mxu0 %v6992
    %v7028 = vpop.f32.mrb[0].mxu0
    %v7029 = vadd.f32 0.0, %v7028
    %v7030 = vpop.f32.mrb[0].mxu0
    %v7031 = vadd.f32 0.0, %v7030
    %v7032 = vpop.f32.mrb[0].mxu0
    %v7033 = vpop.f32.mrb[0].mxu0
    %7034 = vdwg.mxu0
    %7035 = vmatprep.subr.bf16.mxu0 0
    %7036 = vmatpush1.bf16.msra.mxu0 %v2367
    %7037 = vmatprep.subr.bf16.mxu0 0
    %7038 = vmatpush1.bf16.msra.mxu0 %v2370
    %7039 = vmatprep.subr.bf16.mxu0 0
    %7040 = vmatpush1.bf16.msra.mxu0 %v2373
    %7041 = vmatprep.subr.bf16.mxu0 0
    %7042 = vmatpush1.bf16.msra.mxu0 %v2376
    %7043 = vmatprep.subr.bf16.mxu0 0
    %7044 = vmatpush1.bf16.msra.mxu0 %v2379
    %7045 = vmatprep.subr.bf16.mxu0 0
    %7046 = vmatpush1.bf16.msra.mxu0 %v2382
    %7047 = vmatprep.subr.bf16.mxu0 0
    %7048 = vmatpush1.bf16.msra.mxu0 %v2385
    %7049 = vmatprep.subr.bf16.mxu0 0
    %7050 = vmatpush1.bf16.msra.mxu0 %v2388
    %7051 = vmatprep.subr.bf16.mxu0 0
    %7052 = vmatpush1.bf16.msra.mxu0 0
    %7053 = vmatprep.subr.bf16.mxu0 0
    %7054 = vmatpush1.bf16.msra.mxu0 0
    %7055 = vmatprep.subr.bf16.mxu0 0
    %7056 = vmatpush1.bf16.msra.mxu0 0
    %7057 = vmatprep.subr.bf16.mxu0 0
    %7058 = vmatpush1.bf16.msra.mxu0 0
    %7059 = vmatprep.subr.bf16.mxu0 0
    %7060 = vmatpush1.bf16.msra.mxu0 0
    %7061 = vmatprep.subr.bf16.mxu0 0
    %7062 = vmatpush1.bf16.msra.mxu0 0
    %7063 = vmatprep.subr.bf16.mxu0 0
    %7064 = vmatpush1.bf16.msra.mxu0 0
    %7065 = vmatprep.subr.bf16.mxu0 0
    %7066 = vmatpush1.bf16.msra.mxu0 0
    %7067 = vmatprep.mubr.bf16.mxu0 0
    %7068 = vmatmul.mubr.bf16.gmra.mrb[0].mxu0 %v6992
    %v7069 = vpop.f32.mrb[0].mxu0
    %v7070 = vadd.f32 0.0, %v7069
    %v7071 = vpop.f32.mrb[0].mxu0
    %v7072 = vpop.f32.mrb[0].mxu0
    %v7073 = vpop.f32.mrb[0].mxu0
    %7074 = vdwg.mxu0
    %v7076 = vrot.slane %v7029, 1
    %v7079 = vadd.f32 %v1007, %v7029
    %v7080 = vadd.f32 %v1011, %v7076
    %v7081 = vxor.u32 %v7079, 2147483648
    %v7082 = vxor.u32 %v7080, 2147483648
    %v7083 = vmul.f32 %v7081, 1.442695
    %v7084 = vpow.pop %v7083
    %v7085 = vmul.f32 %v7082, 1.442695
    %v7086 = vpow.pop %v7085
    %v7087 = vadd.f32 %v7084, 1.0
    %v7088 = vadd.f32 %v7086, 1.0
    %v7089 = vrcp.pop %v7087
    %v7090 = vmul.f32 1.0, %v7089
    %v7091 = vrcp.pop %v7088
    %v7092 = vmul.f32 1.0, %v7091
    %v7094 = vrot.slane %v7031, 1
    %v7097 = vadd.f32 %v1009, %v7031
    %v7098 = vadd.f32 %v1013, %v7094
    %v7099 = vxor.u32 %v7097, 2147483648
    %v7100 = vxor.u32 %v7098, 2147483648
    %v7101 = vmul.f32 %v7099, 1.442695
    %v7102 = vpow.pop %v7101
    %v7103 = vmul.f32 %v7100, 1.442695
    %v7104 = vpow.pop %v7103
    %v7105 = vadd.f32 %v7102, 1.0
    %v7106 = vadd.f32 %v7104, 1.0
    %v7107 = vrcp.pop %v7105
    %v7108 = vmul.f32 1.0, %v7107
    %v7109 = vrcp.pop %v7106
    %v7110 = vmul.f32 1.0, %v7109
    %v7111 = vadd.f32 %v7070, %v1741
    %v7113 = vrot.slane %v7111, 1
    %v7116 = vmul.f32 %v7090, %v7111
    %v7117 = vmul.f32 %v7092, %v7113
    %v7118 = vadd.f32 %v1050, %v7116
    %v7119 = vadd.f32 %v1053, %v7117
    %v7120 = vtanh.pop %v7118
    %v7121 = vtanh.pop %v7119
    %v7122 = vsub.f32 1.0, %v7108
    %v7123 = vsub.f32 1.0, %v7110
    %v7124 = vmul.f32 %v7122, %v7120
    %v7125 = vmul.f32 %v7123, %v7121
    %v7128 = vrot.slane %v6497, 1
    %v7129 = vrot.slane %v6498, 1
    %v7132 = vmul.f32 %v7108, %v7128
    %v7133 = vmul.f32 %v7110, %v7129
    %v7134 = vadd.f32 %v7124, %v7132
    %v7135 = vadd.f32 %v7125, %v7133
    %v7136 = vpack.c.bf16 %v6650, %v6650
    %v7137 = vpack.c.bf16 %v6651, %v6651
    %v7140 = vunpack.c.l.b16 %v7136
    %v7141 = vunpack.c.l.b16 %v7137
    %v7142 = vrot.slane %v7140, 1
    %v7143 = vsel %vm2830, %v7141, %v7142
    %v7144 = vpack.c.b16 %v7143, %v7143
    %7146 = vmatprep.subr.bf16.mxu0 %v2633
    %7147 = vmatpush1.bf16.msra.mxu0 %v2632
    %7148 = vmatprep.subr.bf16.mxu0 %v2636
    %7149 = vmatpush1.bf16.msra.mxu0 %v2635
    %7150 = vmatprep.subr.bf16.mxu0 %v2639
    %7151 = vmatpush1.bf16.msra.mxu0 %v2638
    %7152 = vmatprep.subr.bf16.mxu0 %v2642
    %7153 = vmatpush1.bf16.msra.mxu0 %v2641
    %7154 = vmatprep.subr.bf16.mxu0 %v2645
    %7155 = vmatpush1.bf16.msra.mxu0 %v2644
    %7156 = vmatprep.subr.bf16.mxu0 %v2648
    %7157 = vmatpush1.bf16.msra.mxu0 %v2647
    %7158 = vmatprep.subr.bf16.mxu0 %v2651
    %7159 = vmatpush1.bf16.msra.mxu0 %v2650
    %7160 = vmatprep.subr.bf16.mxu0 %v2654
    %7161 = vmatpush1.bf16.msra.mxu0 %v2653
    %7162 = vmatprep.subr.bf16.mxu0 0
    %7163 = vmatpush1.bf16.msra.mxu0 0
    %7164 = vmatprep.subr.bf16.mxu0 0
    %7165 = vmatpush1.bf16.msra.mxu0 0
    %7166 = vmatprep.subr.bf16.mxu0 0
    %7167 = vmatpush1.bf16.msra.mxu0 0
    %7168 = vmatprep.subr.bf16.mxu0 0
    %7169 = vmatpush1.bf16.msra.mxu0 0
    %7170 = vmatprep.subr.bf16.mxu0 0
    %7171 = vmatpush1.bf16.msra.mxu0 0
    %7172 = vmatprep.subr.bf16.mxu0 0
    %7173 = vmatpush1.bf16.msra.mxu0 0
    %7174 = vmatprep.subr.bf16.mxu0 0
    %7175 = vmatpush1.bf16.msra.mxu0 0
    %7176 = vmatprep.subr.bf16.mxu0 0
    %7177 = vmatpush1.bf16.msra.mxu0 0
    %7178 = vmatprep.mubr.bf16.mxu0 0
    %7179 = vmatmul.mubr.bf16.gmra.mrb[0].mxu0 %v7144
    %v7180 = vpop.f32.mrb[0].mxu0
    %v7181 = vadd.f32 0.0, %v7180
    %v7182 = vpop.f32.mrb[0].mxu0
    %v7183 = vadd.f32 0.0, %v7182
    %v7184 = vpop.f32.mrb[0].mxu0
    %v7185 = vpop.f32.mrb[0].mxu0
    %7186 = vdwg.mxu0
    %7187 = vmatprep.subr.bf16.mxu0 0
    %7188 = vmatpush1.bf16.msra.mxu0 %v2634
    %7189 = vmatprep.subr.bf16.mxu0 0
    %7190 = vmatpush1.bf16.msra.mxu0 %v2637
    %7191 = vmatprep.subr.bf16.mxu0 0
    %7192 = vmatpush1.bf16.msra.mxu0 %v2640
    %7193 = vmatprep.subr.bf16.mxu0 0
    %7194 = vmatpush1.bf16.msra.mxu0 %v2643
    %7195 = vmatprep.subr.bf16.mxu0 0
    %7196 = vmatpush1.bf16.msra.mxu0 %v2646
    %7197 = vmatprep.subr.bf16.mxu0 0
    %7198 = vmatpush1.bf16.msra.mxu0 %v2649
    %7199 = vmatprep.subr.bf16.mxu0 0
    %7200 = vmatpush1.bf16.msra.mxu0 %v2652
    %7201 = vmatprep.subr.bf16.mxu0 0
    %7202 = vmatpush1.bf16.msra.mxu0 %v2655
    %7203 = vmatprep.subr.bf16.mxu0 0
    %7204 = vmatpush1.bf16.msra.mxu0 0
    %7205 = vmatprep.subr.bf16.mxu0 0
    %7206 = vmatpush1.bf16.msra.mxu0 0
    %7207 = vmatprep.subr.bf16.mxu0 0
    %7208 = vmatpush1.bf16.msra.mxu0 0
    %7209 = vmatprep.subr.bf16.mxu0 0
    %7210 = vmatpush1.bf16.msra.mxu0 0
    %7211 = vmatprep.subr.bf16.mxu0 0
    %7212 = vmatpush1.bf16.msra.mxu0 0
    %7213 = vmatprep.subr.bf16.mxu0 0
    %7214 = vmatpush1.bf16.msra.mxu0 0
    %7215 = vmatprep.subr.bf16.mxu0 0
    %7216 = vmatpush1.bf16.msra.mxu0 0
    %7217 = vmatprep.subr.bf16.mxu0 0
    %7218 = vmatpush1.bf16.msra.mxu0 0
    %7219 = vmatprep.mubr.bf16.mxu0 0
    %7220 = vmatmul.mubr.bf16.gmra.mrb[0].mxu0 %v7144
    %v7221 = vpop.f32.mrb[0].mxu0
    %v7222 = vadd.f32 0.0, %v7221
    %v7223 = vpop.f32.mrb[0].mxu0
    %v7224 = vpop.f32.mrb[0].mxu0
    %v7225 = vpop.f32.mrb[0].mxu0
    %7226 = vdwg.mxu0
    %v7228 = vrot.slane %v7181, 1
    %v7231 = vadd.f32 %v1595, %v7181
    %v7232 = vadd.f32 %v1598, %v7228
    %v7233 = vxor.u32 %v7231, 2147483648
    %v7234 = vxor.u32 %v7232, 2147483648
    %v7235 = vmul.f32 %v7233, 1.442695
    %v7236 = vpow.pop %v7235
    %v7237 = vmul.f32 %v7234, 1.442695
    %v7238 = vpow.pop %v7237
    %v7239 = vadd.f32 %v7236, 1.0
    %v7240 = vadd.f32 %v7238, 1.0
    %v7241 = vrcp.pop %v7239
    %v7242 = vmul.f32 1.0, %v7241
    %v7243 = vrcp.pop %v7240
    %v7244 = vmul.f32 1.0, %v7243
    %v7246 = vrot.slane %v7183, 1
    %v7249 = vadd.f32 %v1596, %v7183
    %v7250 = vadd.f32 %v1599, %v7246
    %v7251 = vxor.u32 %v7249, 2147483648
    %v7252 = vxor.u32 %v7250, 2147483648
    %v7253 = vmul.f32 %v7251, 1.442695
    %v7254 = vpow.pop %v7253
    %v7255 = vmul.f32 %v7252, 1.442695
    %v7256 = vpow.pop %v7255
    %v7257 = vadd.f32 %v7254, 1.0
    %v7258 = vadd.f32 %v7256, 1.0
    %v7259 = vrcp.pop %v7257
    %v7260 = vmul.f32 1.0, %v7259
    %v7261 = vrcp.pop %v7258
    %v7262 = vmul.f32 1.0, %v7261
    %v7263 = vadd.f32 %v7222, %v1755
    %v7265 = vrot.slane %v7263, 1
    %v7268 = vmul.f32 %v7242, %v7263
    %v7269 = vmul.f32 %v7244, %v7265
    %v7270 = vadd.f32 %v1597, %v7268
    %v7271 = vadd.f32 %v1600, %v7269
    %v7272 = vtanh.pop %v7270
    %v7273 = vtanh.pop %v7271
    %v7274 = vsub.f32 1.0, %v7260
    %v7275 = vsub.f32 1.0, %v7262
    %v7276 = vmul.f32 %v7274, %v7272
    %v7277 = vmul.f32 %v7275, %v7273
    %v7280 = vrot.slane %v6650, 1
    %v7281 = vrot.slane %v6651, 1
    %v7284 = vmul.f32 %v7260, %v7280
    %v7285 = vmul.f32 %v7262, %v7281
    %v7286 = vadd.f32 %v7276, %v7284
    %v7287 = vadd.f32 %v7277, %v7285
    %v7288 = vmul.f32 %v6826, %v6982
    %v7289 = vmul.f32 %v6827, %v6983
    %v7292 = vrot.slane %v7288, 7
    %v7293 = vrot.slane %v7289, 7
    %v7296 = vmax.f32 %v6660, %v7292
    %v7297 = vmax.f32 %v6661, %v7293
    %v7298 = vmul.f32 %v7134, %v7286
    %v7299 = vmul.f32 %v7135, %v7287
    %v7302 = vrot.slane %v7298, 1
    %v7303 = vrot.slane %v7299, 1
    %v7306 = vmax.f32 %v6670, %v7302
    %v7307 = vmax.f32 %v6671, %v7303
    %v7308 = vld [vmem:[#allocation37] sm:$0xff]
    %v7309 = vld [vmem:[#allocation37 + $0x8] sm:$0xff]
    %v7310 = vld [vmem:[#allocation37 + $0x10] sm:$0xff]
    %v7311 = vld [vmem:[#allocation37 + $0x18] sm:$0xff]
    %v7312 = vld [vmem:[#allocation37 + $0x20] sm:$0xff]
    %v7313 = vld [vmem:[#allocation37 + $0x28] sm:$0xff]
    %v7314 = vld [vmem:[#allocation37 + $0x30] sm:$0xff]
    %v7315 = vld [vmem:[#allocation37 + $0x38] sm:$0xff]
    %v7316 = vld [vmem:[#allocation37 + $0x40] sm:$0xff]
    %v7317 = vld [vmem:[#allocation37 + $0x48] sm:$0xff]
    %v7318 = vld [vmem:[#allocation37 + $0x50] sm:$0xff]
    %v7319 = vld [vmem:[#allocation37 + $0x58] sm:$0xff]
    %v7320 = vld [vmem:[#allocation37 + $0x60] sm:$0xff]
    %v7321 = vld [vmem:[#allocation37 + $0x68] sm:$0xff]
    %v7322 = vld [vmem:[#allocation37 + $0x70] sm:$0xff]
    %v7323 = vld [vmem:[#allocation37 + $0x78] sm:$0xff]
    %v7324 = vld [vmem:[#allocation38] sm:$0xff]
    %v7325 = vld [vmem:[#allocation38 + $0x8] sm:$0xff]
    %v7326 = vld [vmem:[#allocation38 + $0x10] sm:$0xff]
    %v7327 = vld [vmem:[#allocation38 + $0x18] sm:$0xff]
    %v7328 = vld [vmem:[#allocation38 + $0x20] sm:$0xff]
    %v7329 = vld [vmem:[#allocation38 + $0x28] sm:$0xff]
    %v7330 = vld [vmem:[#allocation38 + $0x30] sm:$0xff]
    %v7331 = vld [vmem:[#allocation38 + $0x38] sm:$0xff]
    %v7332 = vld [vmem:[#allocation38 + $0x40] sm:$0xff]
    %v7333 = vld [vmem:[#allocation38 + $0x48] sm:$0xff]
    %v7334 = vld [vmem:[#allocation38 + $0x50] sm:$0xff]
    %v7335 = vld [vmem:[#allocation38 + $0x58] sm:$0xff]
    %v7336 = vld [vmem:[#allocation38 + $0x60] sm:$0xff]
    %v7337 = vld [vmem:[#allocation38 + $0x68] sm:$0xff]
    %v7338 = vld [vmem:[#allocation38 + $0x70] sm:$0xff]
    %v7339 = vld [vmem:[#allocation38 + $0x78] sm:$0xff]
    %v7342 = vrot.slane %v7306, 7
    %v7343 = vrot.slane %v7307, 6
    %v7344 = vsel %vm2830, %v7343, %v7342
    %7346 = vmatprep.subr.mxu0 0.0
    %7347 = vmatpush1.msra.mxu0 %v7324
    %7348 = vmatprep.subr.mxu0 0.0
    %7349 = vmatpush1.msra.mxu0 %v7325
    %7350 = vmatprep.subr.mxu0 0.0
    %7351 = vmatpush1.msra.mxu0 %v7326
    %7352 = vmatprep.subr.mxu0 0.0
    %7353 = vmatpush1.msra.mxu0 %v7327
    %7354 = vmatprep.subr.mxu0 0.0
    %7355 = vmatpush1.msra.mxu0 %v7328
    %7356 = vmatprep.subr.mxu0 0.0
    %7357 = vmatpush1.msra.mxu0 %v7329
    %7358 = vmatprep.subr.mxu0 0.0
    %7359 = vmatpush1.msra.mxu0 %v7330
    %7360 = vmatprep.subr.mxu0 0.0
    %7361 = vmatpush1.msra.mxu0 %v7331
    %7362 = vmatprep.subr.mxu0 0.0
    %7363 = vmatpush1.msra.mxu0 %v7332
    %7364 = vmatprep.subr.mxu0 0.0
    %7365 = vmatpush1.msra.mxu0 %v7333
    %7366 = vmatprep.subr.mxu0 0.0
    %7367 = vmatpush1.msra.mxu0 %v7334
    %7368 = vmatprep.subr.mxu0 0.0
    %7369 = vmatpush1.msra.mxu0 %v7335
    %7370 = vmatprep.subr.mxu0 0.0
    %7371 = vmatpush1.msra.mxu0 %v7336
    %7372 = vmatprep.subr.mxu0 0.0
    %7373 = vmatpush1.msra.mxu0 %v7337
    %7374 = vmatprep.subr.mxu0 0.0
    %7375 = vmatpush1.msra.mxu0 %v7338
    %7376 = vmatprep.subr.mxu0 0.0
    %7377 = vmatpush1.msra.mxu0 %v7339
    %7378 = vmatprep.subr.mxu0 0.0
    %7379 = vmatpush1.msra.mxu0 0.0
    %7380 = vmatprep.subr.mxu0 0.0
    %7381 = vmatpush1.msra.mxu0 0.0
    %7382 = vmatprep.subr.mxu0 0.0
    %7383 = vmatpush1.msra.mxu0 0.0
    %7384 = vmatprep.subr.mxu0 0.0
    %7385 = vmatpush1.msra.mxu0 0.0
    %7386 = vmatprep.subr.mxu0 0.0
    %7387 = vmatpush1.msra.mxu0 0.0
    %7388 = vmatprep.subr.mxu0 0.0
    %7389 = vmatpush1.msra.mxu0 0.0
    %7390 = vmatprep.subr.mxu0 0.0
    %7391 = vmatpush1.msra.mxu0 0.0
    %7392 = vmatprep.subr.mxu0 0.0
    %7393 = vmatpush1.msra.mxu0 0.0
    %7394 = vmatprep.subr.mxu0 0.0
    %7395 = vmatpush1.msra.mxu0 0.0
    %7396 = vmatprep.subr.mxu0 0.0
    %7397 = vmatpush1.msra.mxu0 0.0
    %7398 = vmatprep.subr.mxu0 0.0
    %7399 = vmatpush1.msra.mxu0 0.0
    %7400 = vmatprep.subr.mxu0 0.0
    %7401 = vmatpush1.msra.mxu0 0.0
    %7402 = vmatprep.subr.mxu0 0.0
    %7403 = vmatpush1.msra.mxu0 0.0
    %7404 = vmatprep.subr.mxu0 0.0
    %7405 = vmatpush1.msra.mxu0 0.0
    %7406 = vmatprep.subr.mxu0 0.0
    %7407 = vmatpush1.msra.mxu0 0.0
    %7408 = vmatprep.subr.mxu0 0.0
    %7409 = vmatpush1.msra.mxu0 0.0
    %7410 = vmatprep.mubr.f32.mxu0 0.0
    %7411 = vmatmul.mubr.f32.gmra.mrb[0].mxu0 %v7344
    %v7412 = vpop.f32.mrb[0].mxu0
    %v7413 = vadd.f32 0.0, %v7412
    %v7414 = vpop.f32.mrb[0].mxu0
    %7415 = vdwg.mxu0
    %v7418 = vrot.slane %v7297, 7
    %v7419 = vsel %vm2830, %v7418, %v7296
    %7421 = vmatprep.subr.mxu0 0.0
    %7422 = vmatpush1.msra.mxu0 %v7308
    %7423 = vmatprep.subr.mxu0 0.0
    %7424 = vmatpush1.msra.mxu0 %v7309
    %7425 = vmatprep.subr.mxu0 0.0
    %7426 = vmatpush1.msra.mxu0 %v7310
    %7427 = vmatprep.subr.mxu0 0.0
    %7428 = vmatpush1.msra.mxu0 %v7311
    %7429 = vmatprep.subr.mxu0 0.0
    %7430 = vmatpush1.msra.mxu0 %v7312
    %7431 = vmatprep.subr.mxu0 0.0
    %7432 = vmatpush1.msra.mxu0 %v7313
    %7433 = vmatprep.subr.mxu0 0.0
    %7434 = vmatpush1.msra.mxu0 %v7314
    %7435 = vmatprep.subr.mxu0 0.0
    %7436 = vmatpush1.msra.mxu0 %v7315
    %7437 = vmatprep.subr.mxu0 0.0
    %7438 = vmatpush1.msra.mxu0 %v7316
    %7439 = vmatprep.subr.mxu0 0.0
    %7440 = vmatpush1.msra.mxu0 %v7317
    %7441 = vmatprep.subr.mxu0 0.0
    %7442 = vmatpush1.msra.mxu0 %v7318
    %7443 = vmatprep.subr.mxu0 0.0
    %7444 = vmatpush1.msra.mxu0 %v7319
    %7445 = vmatprep.subr.mxu0 0.0
    %7446 = vmatpush1.msra.mxu0 %v7320
    %7447 = vmatprep.subr.mxu0 0.0
    %7448 = vmatpush1.msra.mxu0 %v7321
    %7449 = vmatprep.subr.mxu0 0.0
    %7450 = vmatpush1.msra.mxu0 %v7322
    %7451 = vmatprep.subr.mxu0 0.0
    %7452 = vmatpush1.msra.mxu0 %v7323
    %7453 = vmatprep.subr.mxu0 0.0
    %7454 = vmatpush1.msra.mxu0 0.0
    %7455 = vmatprep.subr.mxu0 0.0
    %7456 = vmatpush1.msra.mxu0 0.0
    %7457 = vmatprep.subr.mxu0 0.0
    %7458 = vmatpush1.msra.mxu0 0.0
    %7459 = vmatprep.subr.mxu0 0.0
    %7460 = vmatpush1.msra.mxu0 0.0
    %7461 = vmatprep.subr.mxu0 0.0
    %7462 = vmatpush1.msra.mxu0 0.0
    %7463 = vmatprep.subr.mxu0 0.0
    %7464 = vmatpush1.msra.mxu0 0.0
    %7465 = vmatprep.subr.mxu0 0.0
    %7466 = vmatpush1.msra.mxu0 0.0
    %7467 = vmatprep.subr.mxu0 0.0
    %7468 = vmatpush1.msra.mxu0 0.0
    %7469 = vmatprep.subr.mxu0 0.0
    %7470 = vmatpush1.msra.mxu0 0.0
    %7471 = vmatprep.subr.mxu0 0.0
    %7472 = vmatpush1.msra.mxu0 0.0
    %7473 = vmatprep.subr.mxu0 0.0
    %7474 = vmatpush1.msra.mxu0 0.0
    %7475 = vmatprep.subr.mxu0 0.0
    %7476 = vmatpush1.msra.mxu0 0.0
    %7477 = vmatprep.subr.mxu0 0.0
    %7478 = vmatpush1.msra.mxu0 0.0
    %7479 = vmatprep.subr.mxu0 0.0
    %7480 = vmatpush1.msra.mxu0 0.0
    %7481 = vmatprep.subr.mxu0 0.0
    %7482 = vmatpush1.msra.mxu0 0.0
    %7483 = vmatprep.subr.mxu0 0.0
    %7484 = vmatpush1.msra.mxu0 0.0
    %7485 = vmatprep.mubr.f32.mxu0 0.0
    %7486 = vmatmul.mubr.f32.gmra.mrb[0].mxu0 %v7419
    %v7487 = vpop.f32.mrb[0].mxu0
    %v7488 = vadd.f32 %v7413, %v7487
    %v7489 = vpop.f32.mrb[0].mxu0
    %7490 = vdwg.mxu0
    %v7491 = vld [vmem:[#allocation40] sm:$0x1]
    %v7493 = vlaneseq
    %v7494 = vshrl.u32 %v7493, 7
    %v7495 = vsub.s32 0, %v7494
    %v7496 = vrot.slane %v7491, %v7495
    %v7498 = vadd.f32 %v7488, %v7496
    %7499 = vst [vmem:[#allocation41] sm:$0x3] %v7498
    // Predicated region
    $region202: #{tpu_custom_call.1} parent=1 // pred_check
      _
    $region203: #{tpu_custom_call.1} parent=1 // pred_check_branch
      %7501 = sbr.rel (0) target = $region205
    $region204: #{tpu_custom_call.1} parent=1 // pred_region
      %s7503 = ssub.s32 32, 32
      %7504 = vsyncadd [#allocation4], %s7503
      %s7506 = sshll.u32 [#allocation41], 4
      %s7507 = int_to_ptr.vmem [resolvable:$true] %s7506
      %7509 = dma.vmem_to_hbm [thread:$0]  %s7507, 32, %s25, [#allocation4]
    $region205: #{tpu_custom_call.1} parent=1 // pred_fallthru
      _
    // Predicated region
    $region206: #{tpu_custom_call.1} parent=1 // pred_check
      _
    $region207: #{tpu_custom_call.1} parent=1 // pred_check_branch
      %7511 = sbr.rel (0) target = $region209
    $region208: #{tpu_custom_call.1} parent=1 // pred_region
      %7512 = dma.done [#allocation4], 32
    $region209: #{tpu_custom_call.1} parent=1 // pred_fallthru
      _
    %7513 = vsyncpa [#allocation3], 1
    %7514 = vsyncpa [#allocation6], 1
    %7515 = vsyncpa [#allocation9], 1
    %7516 = vsyncpa [#allocation12], 1
    %7517 = vsyncpa [#allocation15], 1
    %7518 = vsyncpa [#allocation18], 1
    %7519 = vsyncpa [#allocation21], 1
    %7520 = vsyncpa [#allocation24], 1
    %7521 = vsyncpa [#allocation27], 1
    %7522 = vsyncpa [#allocation30], 1
    %7523 = vsyncpa [#allocation33], 1
    %7524 = vsyncpa [#allocation36], 1
    %7525 = vsyncpa [#allocation39], 1
    %7526 = vsyncpa [#allocation4], 1

</llo_original>
